<compile_context>
chip_gen: v7x
topology: tpu7x:2x2x1
jax: 0.10.0
libtpu: 0.0.40
codegen_flags: <defaults>
</compile_context>

<pallas_src>
import functools

import jax
import jax.numpy as jnp
from jax import lax
from jax.experimental import pallas as pl
from jax.experimental.pallas import tpu as pltpu


def gat_layer_kernel(*refs, num_heads, fout, tm, concat_heads, with_a_hat):
    if with_a_hat:
        (h_ref, adj_ref, w_ref, a_ref, b_ref,
         out_ref, ahat_ref, zaug_ref, elt_ref, er_ref) = refs
    else:
        (h_ref, adj_ref, w_ref, a_ref, b_ref,
         out_ref, zaug_ref, elt_ref, er_ref) = refs
        ahat_ref = None

    i = pl.program_id(0)
    row0 = pl.multiple_of(i * tm, tm)

    # ---- per-layer projection: done ONCE (row tile 0), kept in VMEM scratch ----
    @pl.when(i == 0)
    def _():
        z = jnp.dot(h_ref[...], w_ref[...],
                    preferred_element_type=jnp.float32)          # (N, H*fout)
        a = a_ref[...]                                           # (H*fout, 2H)
        # el produced already transposed (H, N) via an MXU matmul (no XLU transpose)
        elt_ref[...] = lax.dot_general(a[:, :num_heads], z,
                                       (((0,), (1,)), ((), ())),
                                       preferred_element_type=jnp.float32)
        er_ref[...] = jnp.dot(z, a[:, num_heads:],
                              preferred_element_type=jnp.float32)  # (N, H)
        # per-head [z_h | 1] (bf16): one matmul later gives aggregation + denom
        ones = jnp.ones((z.shape[0], 1), jnp.float32)
        cols = []
        for h in range(num_heads):
            cols.append(z[:, h * fout:(h + 1) * fout])
            cols.append(ones)
        zaug_ref[...] = jnp.concatenate(cols, axis=1).astype(zaug_ref.dtype)

    adj = adj_ref[...]                                 # (TM, N), adj[dst, src]
    edge = adj > 0.0                                   # mask shared by all heads
    elt = elt_ref[...]                                 # (H, N)
    er = er_ref[pl.ds(row0, tm), :]                    # (TM, H)

    acc = None
    for h in range(num_heads):                         # static unroll over heads
        # e[dst, src] = LeakyReLU_{0.2}(er[dst] + el[src]); mask non-edges
        e = er[:, h:h + 1] + elt[h:h + 1, :]           # (TM, N)
        e = jnp.where(e > 0, e, 0.2 * e)
        e = jnp.where(edge, e, -1e30)
        m = jnp.max(e, axis=1, keepdims=True)          # finite: >=1 in-edge/row
        p = jnp.exp(e - m).astype(jnp.bfloat16)        # bf16 only at MXU boundary
        # one MXU matmul: aggregation AND softmax denominator (last column)
        zh_aug = zaug_ref[:, h * (fout + 1):(h + 1) * (fout + 1)]   # (N, fout+1)
        agg = jnp.dot(p, zh_aug, preferred_element_type=jnp.float32)
        inv = pl.reciprocal(agg[:, fout:fout + 1], approx=True)     # denom >= ~1
        rst = agg[:, :fout] * inv + b_ref[h:h + 1, :]
        rst = jnp.where(rst > 0, rst, 0.01 * rst)      # nn.LeakyReLU() activation
        if concat_heads:
            out_ref[:, h * fout:(h + 1) * fout] = rst  # flatten(1): head-major
        else:
            acc = rst if acc is None else acc + rst
    if not concat_heads:
        out_ref[...] = acc * (1.0 / num_heads)         # mean(1)

    if with_a_hat:
        # struct decoder: a_hat[tile] = h2[tile] @ h2.T (contract last dims)
        h_tile = h_ref[pl.ds(row0, tm), :]
        ahat_ref[...] = lax.dot_general(h_tile, h_ref[...],
                                        (((1,), (1,)), ((), ())),
                                        preferred_element_type=jnp.float32)


def gat_layer(h_prev, adj, W, A, b, *, fout, concat, with_a_hat, tm):
    """One GATConv layer (attention over dense adj) as a row-tiled pallas_call."""
    N = adj.shape[0]
    fin = h_prev.shape[1]
    H = b.shape[0]
    out_dim = H * fout if concat else fout
    grid = (N // tm,)

    in_specs = [
        pl.BlockSpec((N, fin), lambda i: (0, 0)),      # h_prev: full, fetched once
        pl.BlockSpec((tm, N), lambda i: (i, 0)),       # adj dst-row tile
        pl.BlockSpec(W.shape, lambda i: (0, 0)),
        pl.BlockSpec(A.shape, lambda i: (0, 0)),
        pl.BlockSpec(b.shape, lambda i: (0, 0)),
    ]
    out_shapes = [jax.ShapeDtypeStruct((N, out_dim), jnp.float32)]
    out_specs = [pl.BlockSpec((tm, out_dim), lambda i: (i, 0))]
    if with_a_hat:
        out_shapes.append(jax.ShapeDtypeStruct((N, N), jnp.float32))
        out_specs.append(pl.BlockSpec((tm, N), lambda i: (i, 0)))

    scratch_shapes = [
        pltpu.VMEM((N, H * (fout + 1)), jnp.bfloat16),   # [z_h | 1] per head
        pltpu.VMEM((H, N), jnp.float32),                 # el, transposed
        pltpu.VMEM((N, H), jnp.float32),                 # er
    ]

    flops = (2 * N * fin * H * fout                       # projection
             + 2 * H * N * N * (fout + 1)                 # aggregation + denom
             + 8 * H * N * N)                             # attention elementwise
    bytes_accessed = 4 * (N * N + N * fin + N * out_dim)
    if with_a_hat:
        flops += 2 * N * N * fin
        bytes_accessed += 4 * N * N

    kern = functools.partial(gat_layer_kernel, num_heads=H, fout=fout, tm=tm,
                             concat_heads=concat, with_a_hat=with_a_hat)
    return pl.pallas_call(
        kern,
        grid=grid,
        in_specs=in_specs,
        out_specs=tuple(out_specs) if with_a_hat else out_specs[0],
        out_shape=tuple(out_shapes) if with_a_hat else out_shapes[0],
        scratch_shapes=scratch_shapes,
        compiler_params=pltpu.CompilerParams(
            # row axis must be sequential: row-tile 0 fills the persistent scratch
            dimension_semantics=("arbitrary",),
            vmem_limit_bytes=48 * 1024 * 1024,
        ),
        cost_estimate=pl.CostEstimate(flops=flops,
                                      transcendentals=H * N * N,
                                      bytes_accessed=bytes_accessed),
    )(h_prev, adj, W, A, b)


def conad_forward(adj, x, params):
    """CONAD_Base.forward (single-graph path): returns (a_hat, x_hat)."""
    N = adj.shape[0]
    w0, a0, b0 = params["enc0"]
    w1, a1, b1 = params["enc1"]
    w2, a2, b2 = params["dec"]
    hid_feats = b0.shape[1]
    out_feats = b1.shape[1]
    in_feats = b2.shape[1]

    # dst-row tile: (TM, N) blocks must satisfy the (8,128) rule unless full-array
    tm = 128 if (N % 128 == 0 and N > 128) else N

    h1 = gat_layer(x, adj, w0, a0, b0, fout=hid_feats, concat=True,
                   with_a_hat=False, tm=tm)                       # (N, H*hid)
    h2 = gat_layer(h1, adj, w1, a1, b1, fout=out_feats, concat=False,
                   with_a_hat=False, tm=tm)                       # (N, out)
    x_hat, a_hat = gat_layer(h2, adj, w2, a2, b2, fout=in_feats, concat=False,
                             with_a_hat=True, tm=tm)              # (N, in), (N, N)
    return a_hat, x_hat


def init_gat_params(key, fin, fout, heads):
    """Returns (W, A, bias). A is the block-diagonal (heads*fout, 2*heads)
    attention matrix so z @ A yields [el_1..el_H, er_1..er_H]."""
    k1, k2, k3, k4 = jax.random.split(key, 4)
    scale = 1.0 / jnp.sqrt(jnp.float32(fin))
    W = jax.random.normal(k1, (fin, heads * fout), jnp.float32) * scale
    attn_l = jax.random.normal(k2, (heads, fout), jnp.float32) * 0.1
    attn_r = jax.random.normal(k3, (heads, fout), jnp.float32) * 0.1
    bias = jax.random.normal(k4, (heads, fout), jnp.float32) * 0.01
    A = jnp.zeros((heads * fout, 2 * heads), jnp.float32)
    for h in range(heads):
        A = A.at[h * fout:(h + 1) * fout, h].set(attn_l[h])
        A = A.at[h * fout:(h + 1) * fout, heads + h].set(attn_r[h])
    return (W, A, bias)


# ------------------------- pure-JAX reference (f32) -------------------------
def gat_reference(h, adj, W, A, b, fout, concat):
    H = b.shape[0]
    z = h @ W
    ea = z @ A
    mask = adj > 0.0
    outs = []
    for hd in range(H):
        zh = z[:, hd * fout:(hd + 1) * fout]
        e = ea[:, H + hd][:, None] + ea[:, hd][None, :]
        e = jnp.where(e > 0, e, 0.2 * e)
        e = jnp.where(mask, e, -1e30)
        e = e - jnp.max(e, axis=1, keepdims=True)
        p = jnp.exp(e)
        alpha = p / jnp.sum(p, axis=1, keepdims=True)
        rst = alpha @ zh + b[hd][None, :]
        outs.append(jnp.where(rst > 0, rst, 0.01 * rst))
    return jnp.concatenate(outs, axis=1) if concat else sum(outs) / H


def conad_reference(adj, x, params):
    w0, a0, b0 = params["enc0"]
    w1, a1, b1 = params["enc1"]
    w2, a2, b2 = params["dec"]
    h1 = gat_reference(x, adj, w0, a0, b0, b0.shape[1], True)
    h2 = gat_reference(h1, adj, w1, a1, b1, b1.shape[1], False)
    x_hat = gat_reference(h2, adj, w2, a2, b2, b2.shape[1], False)
    return h2 @ h2.T, x_hat


if __name__ == "__main__":
    # Small, module-consistent shapes (module defaults are hid=128/out=64/H=2).
    N, in_feats, hid_feats, out_feats, num_heads = 256, 16, 32, 16, 2

    key = jax.random.PRNGKey(0)
    kx, k0, k1, k2 = jax.random.split(key, 4)

    x = jax.random.normal(kx, (N, in_feats), jnp.float32)

    # Synthetic graph: self-loops + symmetric ring (every node has >=1 in-edge,
    # matching DGL GATConv's no-zero-in-degree requirement).  adj[dst, src].
    adj = jnp.eye(N, dtype=jnp.float32)
    src = jnp.arange(N)
    dst = (src + 1) % N
    adj = adj.at[dst, src].set(1.0)
    adj = adj.at[src, dst].set(1.0)

    params = {
        "enc0": init_gat_params(k0, in_feats, hid_feats, num_heads),
        "enc1": init_gat_params(k1, hid_feats * num_heads, out_feats, num_heads),
        "dec":  init_gat_params(k2, out_feats, in_feats, num_heads),
    }

    a_hat, x_hat = jax.jit(conad_forward)(adj, x, params)
    jax.block_until_ready((a_hat, x_hat))

    assert a_hat.shape == (N, N) and a_hat.dtype == jnp.float32
    assert x_hat.shape == (N, in_feats) and x_hat.dtype == jnp.float32
    assert bool(jnp.all(jnp.isfinite(a_hat))) and bool(jnp.all(jnp.isfinite(x_hat)))
    # a_hat = h2 @ h2.T must be (numerically) symmetric
    assert bool(jnp.allclose(a_hat, a_hat.T, atol=1e-3))

    # compare against the pure-JAX reference (kernel uses bf16 attention probs
    # at the MXU and an approximate EUP reciprocal -> allow a loose tolerance)
    a_ref, x_ref = conad_reference(adj, x, params)
    err_a = float(jnp.max(jnp.abs(a_hat - a_ref)))
    err_x = float(jnp.max(jnp.abs(x_hat - x_ref)))
    tol_a = 0.1 * max(1.0, float(jnp.max(jnp.abs(a_ref))))
    tol_x = 0.1 * max(1.0, float(jnp.max(jnp.abs(x_ref))))
    assert err_a <= tol_a, f"a_hat max err {err_a} > {tol_a}"
    assert err_x <= tol_x, f"x_hat max err {err_x} > {tol_x}"

    print("KERNEL_OK")
</pallas_src>

<mosaic_0001>
module attributes {stable_mosaic.version = 11 : i64} {
  func.func @gat_layer_kernel(%arg0: i32, %arg1: memref<256x64xf32, #tpu.memory_space<vmem>>, %arg2: memref<128x256xf32, #tpu.memory_space<vmem>>, %arg3: memref<64x32xf32, #tpu.memory_space<vmem>>, %arg4: memref<32x4xf32, #tpu.memory_space<vmem>>, %arg5: memref<2x16xf32, #tpu.memory_space<vmem>>, %arg6: memref<128x16xf32, #tpu.memory_space<vmem>>, %arg7: memref<256x34xbf16, #tpu.memory_space<vmem>>, %arg8: memref<2x256xf32, #tpu.memory_space<vmem>>, %arg9: memref<256x2xf32, #tpu.memory_space<vmem>>) attributes {dimension_semantics = [#tpu.dimension_semantics<arbitrary>], iteration_bounds = array<i64: 2>, scalar_prefetch = 0 : i64, scratch_operands = 3 : i64, tpu.core_type = #tpu.core_type<tc>, window_params = [{pipeline_mode = #tpu.pipeline_mode<synchronous>, transform_indices = @transform_0, window_bounds = array<i64: 256, 64>}, {transform_indices = @transform_1, window_bounds = array<i64: 128, 256>}, {pipeline_mode = #tpu.pipeline_mode<synchronous>, transform_indices = @transform_2, window_bounds = array<i64: 64, 32>}, {pipeline_mode = #tpu.pipeline_mode<synchronous>, transform_indices = @transform_3, window_bounds = array<i64: 32, 4>}, {pipeline_mode = #tpu.pipeline_mode<synchronous>, transform_indices = @transform_4, window_bounds = array<i64: 2, 16>}, {transform_indices = @transform_5, window_bounds = array<i64: 128, 16>}]} {
    %c128_i32 = arith.constant 128 : i32
    %0 = arith.muli %arg0, %c128_i32 : i32
    %1 = tpu.assume_multiple %0, 128 : i32
    %c0_i32 = arith.constant 0 : i32
    %2 = arith.cmpi eq, %arg0, %c0_i32 : i32
    %3 = arith.extui %2 : i1 to i32
    %c0_i32_0 = arith.constant 0 : i32
    %4 = arith.cmpi ne, %3, %c0_i32_0 : i32
    scf.if %4 {
      %c0_28 = arith.constant 0 : index
      %c0_29 = arith.constant 0 : index
      %81 = vector.load %arg1[%c0_28, %c0_29] : memref<256x64xf32, #tpu.memory_space<vmem>>, vector<256x64xf32>
      %c0_30 = arith.constant 0 : index
      %c0_31 = arith.constant 0 : index
      %82 = vector.load %arg3[%c0_30, %c0_31] : memref<64x32xf32, #tpu.memory_space<vmem>>, vector<64x32xf32>
      %cst_32 = arith.constant dense<0.000000e+00> : vector<256x32xf32>
      %83 = tpu.matmul %81, %82, %cst_32 {dimension_numbers = #tpu.dot_dimension_numbers<[1], [0], [0], [1], [0, 0, 1, 1], [], []>} : vector<256x64xf32>, vector<64x32xf32>, vector<256x32xf32> -> vector<256x32xf32>
      %c0_33 = arith.constant 0 : index
      %c0_34 = arith.constant 0 : index
      %84 = vector.load %arg4[%c0_33, %c0_34] : memref<32x4xf32, #tpu.memory_space<vmem>>, vector<32x4xf32>
      %85 = vector.extract_strided_slice %84 {offsets = [0, 0], sizes = [32, 2], strides = [1, 1]} : vector<32x4xf32> to vector<32x2xf32>
      %cst_35 = arith.constant dense<0.000000e+00> : vector<2x256xf32>
      %86 = tpu.matmul %85, %83, %cst_35 {dimension_numbers = #tpu.dot_dimension_numbers<[0], [1], [1], [0], [0, 1, 1, 0], [], []>} : vector<32x2xf32>, vector<256x32xf32>, vector<2x256xf32> -> vector<2x256xf32>
      %c0_36 = arith.constant 0 : index
      %c0_37 = arith.constant 0 : index
      %87 = vector.load %arg8[%c0_36, %c0_37] : memref<2x256xf32, #tpu.memory_space<vmem>>, vector<2x256xf32>
      tpu.vector_store %arg8[%c0_36, %c0_37], %86 {strides = array<i32>} : memref<2x256xf32, #tpu.memory_space<vmem>>, vector<2x256xf32>,
      %88 = vector.extract_strided_slice %84 {offsets = [0, 2], sizes = [32, 2], strides = [1, 1]} : vector<32x4xf32> to vector<32x2xf32>
      %cst_38 = arith.constant dense<0.000000e+00> : vector<256x2xf32>
      %89 = tpu.matmul %83, %88, %cst_38 {dimension_numbers = #tpu.dot_dimension_numbers<[1], [0], [0], [1], [0, 0, 1, 1], [], []>} : vector<256x32xf32>, vector<32x2xf32>, vector<256x2xf32> -> vector<256x2xf32>
      %c0_39 = arith.constant 0 : index
      %c0_40 = arith.constant 0 : index
      %90 = vector.load %arg9[%c0_39, %c0_40] : memref<256x2xf32, #tpu.memory_space<vmem>>, vector<256x2xf32>
      tpu.vector_store %arg9[%c0_39, %c0_40], %89 {strides = array<i32>} : memref<256x2xf32, #tpu.memory_space<vmem>>, vector<256x2xf32>,
      %cst_41 = arith.constant 1.000000e+00 : f32
      %91 = vector.broadcast %cst_41 : f32 to vector<256x1xf32>
      %92 = vector.extract_strided_slice %83 {offsets = [0, 0], sizes = [256, 16], strides = [1, 1]} : vector<256x32xf32> to vector<256x16xf32>
      %93 = vector.extract_strided_slice %83 {offsets = [0, 16], sizes = [256, 16], strides = [1, 1]} : vector<256x32xf32> to vector<256x16xf32>
      %94 = tpu.concatenate %92, %91, %93, %91 in 1 : vector<256x16xf32>, vector<256x1xf32>, vector<256x16xf32>, vector<256x1xf32> -> vector<256x34xf32>
      %95 = arith.truncf %94 : vector<256x34xf32> to vector<256x34xbf16>
      %c0_42 = arith.constant 0 : index
      %c0_43 = arith.constant 0 : index
      %96 = vector.load %arg7[%c0_42, %c0_43] : memref<256x34xbf16, #tpu.memory_space<vmem>>, vector<256x34xbf16>
      tpu.vector_store %arg7[%c0_42, %c0_43], %95 {strides = array<i32>} : memref<256x34xbf16, #tpu.memory_space<vmem>>, vector<256x34xbf16>,
    } else {
    }
    %c0 = arith.constant 0 : index
    %c0_1 = arith.constant 0 : index
    %5 = vector.load %arg2[%c0, %c0_1] : memref<128x256xf32, #tpu.memory_space<vmem>>, vector<128x256xf32>
    %cst = arith.constant 0.000000e+00 : f32
    %6 = vector.broadcast %cst : f32 to vector<128x256xf32>
    %7 = arith.cmpf ogt, %5, %6 : vector<128x256xf32>
    %c0_2 = arith.constant 0 : index
    %c0_3 = arith.constant 0 : index
    %8 = vector.load %arg8[%c0_2, %c0_3] : memref<2x256xf32, #tpu.memory_space<vmem>>, vector<2x256xf32>
    %9 = arith.index_cast %1 : i32 to index
    %c0_4 = arith.constant 0 : index
    %10 = vector.load %arg9[%9, %c0_4] : memref<256x2xf32, #tpu.memory_space<vmem>>, vector<128x2xf32>
    %11 = vector.extract_strided_slice %10 {offsets = [0, 0], sizes = [128, 1], strides = [1, 1]} : vector<128x2xf32> to vector<128x1xf32>
    %12 = vector.extract_strided_slice %8 {offsets = [0, 0], sizes = [1, 256], strides = [1, 1]} : vector<2x256xf32> to vector<1x256xf32>
    %13 = vector.broadcast %11 : vector<128x1xf32> to vector<128x256xf32>
    %14 = vector.broadcast %12 : vector<1x256xf32> to vector<128x256xf32>
    %15 = arith.addf %13, %14 : vector<128x256xf32>
    %cst_5 = arith.constant 0.000000e+00 : f32
    %16 = vector.broadcast %cst_5 : f32 to vector<128x256xf32>
    %17 = arith.cmpf ogt, %15, %16 : vector<128x256xf32>
    %cst_6 = arith.constant 2.000000e-01 : f32
    %18 = vector.broadcast %cst_6 : f32 to vector<128x256xf32>
    %19 = arith.mulf %18, %15 : vector<128x256xf32>
    %20 = arith.select %17, %15, %19 : vector<128x256xi1>, vector<128x256xf32>
    %cst_7 = arith.constant -1.000000e+30 : f32
    %21 = vector.broadcast %cst_7 : f32 to vector<128x256xf32>
    %22 = arith.select %7, %20, %21 : vector<128x256xi1>, vector<128x256xf32>
    %cst_8 = arith.constant dense<0xFF800000> : vector<128xf32>
    %23 = vector.multi_reduction <maximumf>, %22, %cst_8 [1] : vector<128x256xf32> to vector<128xf32>
    %24 = vector.shape_cast %23 : vector<128xf32> to vector<128x1xf32>
    %25 = vector.broadcast %24 : vector<128x1xf32> to vector<128x256xf32>
    %26 = arith.subf %22, %25 : vector<128x256xf32>
    %27 = math.exp %26 : vector<128x256xf32>
    %28 = arith.truncf %27 : vector<128x256xf32> to vector<128x256xbf16>
    %c0_9 = arith.constant 0 : index
    %c0_10 = arith.constant 0 : index
    %29 = vector.load %arg7[%c0_9, %c0_10] : memref<256x34xbf16, #tpu.memory_space<vmem>>, vector<256x17xbf16>
    %cst_11 = arith.constant dense<0.000000e+00> : vector<128x17xf32>
    %30 = tpu.matmul %28, %29, %cst_11 {dimension_numbers = #tpu.dot_dimension_numbers<[1], [0], [0], [1], [0, 0, 1, 1], [], []>} : vector<128x256xbf16>, vector<256x17xbf16>, vector<128x17xf32> -> vector<128x17xf32>
    %31 = vector.extract_strided_slice %30 {offsets = [0, 16], sizes = [128, 1], strides = [1, 1]} : vector<128x17xf32> to vector<128x1xf32>
    %32 = tpu.reciprocal %31 {approx = true} : vector<128x1xf32> -> vector<128x1xf32>
    %33 = vector.extract_strided_slice %30 {offsets = [0, 0], sizes = [128, 16], strides = [1, 1]} : vector<128x17xf32> to vector<128x16xf32>
    %34 = vector.broadcast %32 : vector<128x1xf32> to vector<128x16xf32>
    %35 = arith.mulf %33, %34 : vector<128x16xf32>
    %c0_12 = arith.constant 0 : index
    %c0_13 = arith.constant 0 : index
    %36 = vector.load %arg5[%c0_12, %c0_13] : memref<2x16xf32, #tpu.memory_space<vmem>>, vector<1x16xf32>
    %37 = vector.broadcast %36 : vector<1x16xf32> to vector<128x16xf32>
    %38 = arith.addf %35, %37 : vector<128x16xf32>
    %cst_14 = arith.constant 0.000000e+00 : f32
    %39 = vector.broadcast %cst_14 : f32 to vector<128x16xf32>
    %40 = arith.cmpf ogt, %38, %39 : vector<128x16xf32>
    %cst_15 = arith.constant 0.00999999977 : f32
    %41 = vector.broadcast %cst_15 : f32 to vector<128x16xf32>
    %42 = arith.mulf %41, %38 : vector<128x16xf32>
    %43 = arith.select %40, %38, %42 : vector<128x16xi1>, vector<128x16xf32>
    %44 = vector.extract_strided_slice %10 {offsets = [0, 1], sizes = [128, 1], strides = [1, 1]} : vector<128x2xf32> to vector<128x1xf32>
    %45 = vector.extract_strided_slice %8 {offsets = [1, 0], sizes = [1, 256], strides = [1, 1]} : vector<2x256xf32> to vector<1x256xf32>
    %46 = vector.broadcast %44 : vector<128x1xf32> to vector<128x256xf32>
    %47 = vector.broadcast %45 : vector<1x256xf32> to vector<128x256xf32>
    %48 = arith.addf %46, %47 : vector<128x256xf32>
    %cst_16 = arith.constant 0.000000e+00 : f32
    %49 = vector.broadcast %cst_16 : f32 to vector<128x256xf32>
    %50 = arith.cmpf ogt, %48, %49 : vector<128x256xf32>
    %cst_17 = arith.constant 2.000000e-01 : f32
    %51 = vector.broadcast %cst_17 : f32 to vector<128x256xf32>
    %52 = arith.mulf %51, %48 : vector<128x256xf32>
    %53 = arith.select %50, %48, %52 : vector<128x256xi1>, vector<128x256xf32>
    %cst_18 = arith.constant -1.000000e+30 : f32
    %54 = vector.broadcast %cst_18 : f32 to vector<128x256xf32>
    %55 = arith.select %7, %53, %54 : vector<128x256xi1>, vector<128x256xf32>
    %cst_19 = arith.constant dense<0xFF800000> : vector<128xf32>
    %56 = vector.multi_reduction <maximumf>, %55, %cst_19 [1] : vector<128x256xf32> to vector<128xf32>
    %57 = vector.shape_cast %56 : vector<128xf32> to vector<128x1xf32>
    %58 = vector.broadcast %57 : vector<128x1xf32> to vector<128x256xf32>
    %59 = arith.subf %55, %58 : vector<128x256xf32>
    %60 = math.exp %59 : vector<128x256xf32>
    %61 = arith.truncf %60 : vector<128x256xf32> to vector<128x256xbf16>
    %c0_20 = arith.constant 0 : index
    %c17 = arith.constant 17 : index
    %62 = vector.load %arg7[%c0_20, %c17] : memref<256x34xbf16, #tpu.memory_space<vmem>>, vector<256x17xbf16>
    %cst_21 = arith.constant dense<0.000000e+00> : vector<128x17xf32>
    %63 = tpu.matmul %61, %62, %cst_21 {dimension_numbers = #tpu.dot_dimension_numbers<[1], [0], [0], [1], [0, 0, 1, 1], [], []>} : vector<128x256xbf16>, vector<256x17xbf16>, vector<128x17xf32> -> vector<128x17xf32>
    %64 = vector.extract_strided_slice %63 {offsets = [0, 16], sizes = [128, 1], strides = [1, 1]} : vector<128x17xf32> to vector<128x1xf32>
    %65 = tpu.reciprocal %64 {approx = true} : vector<128x1xf32> -> vector<128x1xf32>
    %66 = vector.extract_strided_slice %63 {offsets = [0, 0], sizes = [128, 16], strides = [1, 1]} : vector<128x17xf32> to vector<128x16xf32>
    %67 = vector.broadcast %65 : vector<128x1xf32> to vector<128x16xf32>
    %68 = arith.mulf %66, %67 : vector<128x16xf32>
    %c1 = arith.constant 1 : index
    %c0_22 = arith.constant 0 : index
    %69 = vector.load %arg5[%c1, %c0_22] : memref<2x16xf32, #tpu.memory_space<vmem>>, vector<1x16xf32>
    %70 = vector.broadcast %69 : vector<1x16xf32> to vector<128x16xf32>
    %71 = arith.addf %68, %70 : vector<128x16xf32>
    %cst_23 = arith.constant 0.000000e+00 : f32
    %72 = vector.broadcast %cst_23 : f32 to vector<128x16xf32>
    %73 = arith.cmpf ogt, %71, %72 : vector<128x16xf32>
    %cst_24 = arith.constant 0.00999999977 : f32
    %74 = vector.broadcast %cst_24 : f32 to vector<128x16xf32>
    %75 = arith.mulf %74, %71 : vector<128x16xf32>
    %76 = arith.select %73, %71, %75 : vector<128x16xi1>, vector<128x16xf32>
    %77 = arith.addf %43, %76 : vector<128x16xf32>
    %cst_25 = arith.constant 5.000000e-01 : f32
    %78 = vector.broadcast %cst_25 : f32 to vector<128x16xf32>
    %79 = arith.mulf %77, %78 : vector<128x16xf32>
    %c0_26 = arith.constant 0 : index
    %c0_27 = arith.constant 0 : index
    %80 = vector.load %arg6[%c0_26, %c0_27] : memref<128x16xf32, #tpu.memory_space<vmem>>, vector<128x16xf32>
    tpu.vector_store %arg6[%c0_26, %c0_27], %79 {strides = array<i32>} : memref<128x16xf32, #tpu.memory_space<vmem>>, vector<128x16xf32>,
    return
  }
  func.func @transform_0(%arg0: i32) -> (i32, i32) {
    %c0_i32 = arith.constant 0 : i32
    %c0_i32_0 = arith.constant 0 : i32
    %c0_i32_1 = arith.constant 0 : i32
    return %c0_i32, %c0_i32_0 : i32, i32
  }
  func.func @transform_1(%arg0: i32) -> (i32, i32) {
    %c0_i32 = arith.constant 0 : i32
    %c0_i32_0 = arith.constant 0 : i32
    return %arg0, %c0_i32 : i32, i32
  }
  func.func @transform_2(%arg0: i32) -> (i32, i32) {
    %c0_i32 = arith.constant 0 : i32
    %c0_i32_0 = arith.constant 0 : i32
    %c0_i32_1 = arith.constant 0 : i32
    return %c0_i32, %c0_i32_0 : i32, i32
  }
  func.func @transform_3(%arg0: i32) -> (i32, i32) {
    %c0_i32 = arith.constant 0 : i32
    %c0_i32_0 = arith.constant 0 : i32
    %c0_i32_1 = arith.constant 0 : i32
    return %c0_i32, %c0_i32_0 : i32, i32
  }
  func.func @transform_4(%arg0: i32) -> (i32, i32) {
    %c0_i32 = arith.constant 0 : i32
    %c0_i32_0 = arith.constant 0 : i32
    %c0_i32_1 = arith.constant 0 : i32
    return %c0_i32, %c0_i32_0 : i32, i32
  }
  func.func @transform_5(%arg0: i32) -> (i32, i32) {
    %c0_i32 = arith.constant 0 : i32
    %c0_i32_0 = arith.constant 0 : i32
    return %arg0, %c0_i32 : i32, i32
  }
}

module attributes {stable_mosaic.version = 11 : i64} {
  func.func @gat_layer_kernel(%arg0: i32, %arg1: memref<256x16xf32, #tpu.memory_space<vmem>>, %arg2: memref<128x256xf32, #tpu.memory_space<vmem>>, %arg3: memref<16x64xf32, #tpu.memory_space<vmem>>, %arg4: memref<64x4xf32, #tpu.memory_space<vmem>>, %arg5: memref<2x32xf32, #tpu.memory_space<vmem>>, %arg6: memref<128x64xf32, #tpu.memory_space<vmem>>, %arg7: memref<256x66xbf16, #tpu.memory_space<vmem>>, %arg8: memref<2x256xf32, #tpu.memory_space<vmem>>, %arg9: memref<256x2xf32, #tpu.memory_space<vmem>>) attributes {dimension_semantics = [#tpu.dimension_semantics<arbitrary>], iteration_bounds = array<i64: 2>, scalar_prefetch = 0 : i64, scratch_operands = 3 : i64, tpu.core_type = #tpu.core_type<tc>, window_params = [{pipeline_mode = #tpu.pipeline_mode<synchronous>, transform_indices = @transform_0, window_bounds = array<i64: 256, 16>}, {transform_indices = @transform_1, window_bounds = array<i64: 128, 256>}, {pipeline_mode = #tpu.pipeline_mode<synchronous>, transform_indices = @transform_2, window_bounds = array<i64: 16, 64>}, {pipeline_mode = #tpu.pipeline_mode<synchronous>, transform_indices = @transform_3, window_bounds = array<i64: 64, 4>}, {pipeline_mode = #tpu.pipeline_mode<synchronous>, transform_indices = @transform_4, window_bounds = array<i64: 2, 32>}, {transform_indices = @transform_5, window_bounds = array<i64: 128, 64>}]} {
    %c128_i32 = arith.constant 128 : i32
    %0 = arith.muli %arg0, %c128_i32 : i32
    %1 = tpu.assume_multiple %0, 128 : i32
    %c0_i32 = arith.constant 0 : i32
    %2 = arith.cmpi eq, %arg0, %c0_i32 : i32
    %3 = arith.extui %2 : i1 to i32
    %c0_i32_0 = arith.constant 0 : i32
    %4 = arith.cmpi ne, %3, %c0_i32_0 : i32
    scf.if %4 {
      %c0_28 = arith.constant 0 : index
      %c0_29 = arith.constant 0 : index
      %79 = vector.load %arg1[%c0_28, %c0_29] : memref<256x16xf32, #tpu.memory_space<vmem>>, vector<256x16xf32>
      %c0_30 = arith.constant 0 : index
      %c0_31 = arith.constant 0 : index
      %80 = vector.load %arg3[%c0_30, %c0_31] : memref<16x64xf32, #tpu.memory_space<vmem>>, vector<16x64xf32>
      %cst_32 = arith.constant dense<0.000000e+00> : vector<256x64xf32>
      %81 = tpu.matmul %79, %80, %cst_32 {dimension_numbers = #tpu.dot_dimension_numbers<[1], [0], [0], [1], [0, 0, 1, 1], [], []>} : vector<256x16xf32>, vector<16x64xf32>, vector<256x64xf32> -> vector<256x64xf32>
      %c0_33 = arith.constant 0 : index
      %c0_34 = arith.constant 0 : index
      %82 = vector.load %arg4[%c0_33, %c0_34] : memref<64x4xf32, #tpu.memory_space<vmem>>, vector<64x4xf32>
      %83 = vector.extract_strided_slice %82 {offsets = [0, 0], sizes = [64, 2], strides = [1, 1]} : vector<64x4xf32> to vector<64x2xf32>
      %cst_35 = arith.constant dense<0.000000e+00> : vector<2x256xf32>
      %84 = tpu.matmul %83, %81, %cst_35 {dimension_numbers = #tpu.dot_dimension_numbers<[0], [1], [1], [0], [0, 1, 1, 0], [], []>} : vector<64x2xf32>, vector<256x64xf32>, vector<2x256xf32> -> vector<2x256xf32>
      %c0_36 = arith.constant 0 : index
      %c0_37 = arith.constant 0 : index
      %85 = vector.load %arg8[%c0_36, %c0_37] : memref<2x256xf32, #tpu.memory_space<vmem>>, vector<2x256xf32>
      tpu.vector_store %arg8[%c0_36, %c0_37], %84 {strides = array<i32>} : memref<2x256xf32, #tpu.memory_space<vmem>>, vector<2x256xf32>,
      %86 = vector.extract_strided_slice %82 {offsets = [0, 2], sizes = [64, 2], strides = [1, 1]} : vector<64x4xf32> to vector<64x2xf32>
      %cst_38 = arith.constant dense<0.000000e+00> : vector<256x2xf32>
      %87 = tpu.matmul %81, %86, %cst_38 {dimension_numbers = #tpu.dot_dimension_numbers<[1], [0], [0], [1], [0, 0, 1, 1], [], []>} : vector<256x64xf32>, vector<64x2xf32>, vector<256x2xf32> -> vector<256x2xf32>
      %c0_39 = arith.constant 0 : index
      %c0_40 = arith.constant 0 : index
      %88 = vector.load %arg9[%c0_39, %c0_40] : memref<256x2xf32, #tpu.memory_space<vmem>>, vector<256x2xf32>
      tpu.vector_store %arg9[%c0_39, %c0_40], %87 {strides = array<i32>} : memref<256x2xf32, #tpu.memory_space<vmem>>, vector<256x2xf32>,
      %cst_41 = arith.constant 1.000000e+00 : f32
      %89 = vector.broadcast %cst_41 : f32 to vector<256x1xf32>
      %90 = vector.extract_strided_slice %81 {offsets = [0, 0], sizes = [256, 32], strides = [1, 1]} : vector<256x64xf32> to vector<256x32xf32>
      %91 = vector.extract_strided_slice %81 {offsets = [0, 32], sizes = [256, 32], strides = [1, 1]} : vector<256x64xf32> to vector<256x32xf32>
      %92 = tpu.concatenate %90, %89, %91, %89 in 1 : vector<256x32xf32>, vector<256x1xf32>, vector<256x32xf32>, vector<256x1xf32> -> vector<256x66xf32>
      %93 = arith.truncf %92 : vector<256x66xf32> to vector<256x66xbf16>
      %c0_42 = arith.constant 0 : index
      %c0_43 = arith.constant 0 : index
      %94 = vector.load %arg7[%c0_42, %c0_43] : memref<256x66xbf16, #tpu.memory_space<vmem>>, vector<256x66xbf16>
      tpu.vector_store %arg7[%c0_42, %c0_43], %93 {strides = array<i32>} : memref<256x66xbf16, #tpu.memory_space<vmem>>, vector<256x66xbf16>,
    } else {
    }
    %c0 = arith.constant 0 : index
    %c0_1 = arith.constant 0 : index
    %5 = vector.load %arg2[%c0, %c0_1] : memref<128x256xf32, #tpu.memory_space<vmem>>, vector<128x256xf32>
    %cst = arith.constant 0.000000e+00 : f32
    %6 = vector.broadcast %cst : f32 to vector<128x256xf32>
    %7 = arith.cmpf ogt, %5, %6 : vector<128x256xf32>
    %c0_2 = arith.constant 0 : index
    %c0_3 = arith.constant 0 : index
    %8 = vector.load %arg8[%c0_2, %c0_3] : memref<2x256xf32, #tpu.memory_space<vmem>>, vector<2x256xf32>
    %9 = arith.index_cast %1 : i32 to index
    %c0_4 = arith.constant 0 : index
    %10 = vector.load %arg9[%9, %c0_4] : memref<256x2xf32, #tpu.memory_space<vmem>>, vector<128x2xf32>
    %11 = vector.extract_strided_slice %10 {offsets = [0, 0], sizes = [128, 1], strides = [1, 1]} : vector<128x2xf32> to vector<128x1xf32>
    %12 = vector.extract_strided_slice %8 {offsets = [0, 0], sizes = [1, 256], strides = [1, 1]} : vector<2x256xf32> to vector<1x256xf32>
    %13 = vector.broadcast %11 : vector<128x1xf32> to vector<128x256xf32>
    %14 = vector.broadcast %12 : vector<1x256xf32> to vector<128x256xf32>
    %15 = arith.addf %13, %14 : vector<128x256xf32>
    %cst_5 = arith.constant 0.000000e+00 : f32
    %16 = vector.broadcast %cst_5 : f32 to vector<128x256xf32>
    %17 = arith.cmpf ogt, %15, %16 : vector<128x256xf32>
    %cst_6 = arith.constant 2.000000e-01 : f32
    %18 = vector.broadcast %cst_6 : f32 to vector<128x256xf32>
    %19 = arith.mulf %18, %15 : vector<128x256xf32>
    %20 = arith.select %17, %15, %19 : vector<128x256xi1>, vector<128x256xf32>
    %cst_7 = arith.constant -1.000000e+30 : f32
    %21 = vector.broadcast %cst_7 : f32 to vector<128x256xf32>
    %22 = arith.select %7, %20, %21 : vector<128x256xi1>, vector<128x256xf32>
    %cst_8 = arith.constant dense<0xFF800000> : vector<128xf32>
    %23 = vector.multi_reduction <maximumf>, %22, %cst_8 [1] : vector<128x256xf32> to vector<128xf32>
    %24 = vector.shape_cast %23 : vector<128xf32> to vector<128x1xf32>
    %25 = vector.broadcast %24 : vector<128x1xf32> to vector<128x256xf32>
    %26 = arith.subf %22, %25 : vector<128x256xf32>
    %27 = math.exp %26 : vector<128x256xf32>
    %28 = arith.truncf %27 : vector<128x256xf32> to vector<128x256xbf16>
    %c0_9 = arith.constant 0 : index
    %c0_10 = arith.constant 0 : index
    %29 = vector.load %arg7[%c0_9, %c0_10] : memref<256x66xbf16, #tpu.memory_space<vmem>>, vector<256x33xbf16>
    %cst_11 = arith.constant dense<0.000000e+00> : vector<128x33xf32>
    %30 = tpu.matmul %28, %29, %cst_11 {dimension_numbers = #tpu.dot_dimension_numbers<[1], [0], [0], [1], [0, 0, 1, 1], [], []>} : vector<128x256xbf16>, vector<256x33xbf16>, vector<128x33xf32> -> vector<128x33xf32>
    %31 = vector.extract_strided_slice %30 {offsets = [0, 32], sizes = [128, 1], strides = [1, 1]} : vector<128x33xf32> to vector<128x1xf32>
    %32 = tpu.reciprocal %31 {approx = true} : vector<128x1xf32> -> vector<128x1xf32>
    %33 = vector.extract_strided_slice %30 {offsets = [0, 0], sizes = [128, 32], strides = [1, 1]} : vector<128x33xf32> to vector<128x32xf32>
    %34 = vector.broadcast %32 : vector<128x1xf32> to vector<128x32xf32>
    %35 = arith.mulf %33, %34 : vector<128x32xf32>
    %c0_12 = arith.constant 0 : index
    %c0_13 = arith.constant 0 : index
    %36 = vector.load %arg5[%c0_12, %c0_13] : memref<2x32xf32, #tpu.memory_space<vmem>>, vector<1x32xf32>
    %37 = vector.broadcast %36 : vector<1x32xf32> to vector<128x32xf32>
    %38 = arith.addf %35, %37 : vector<128x32xf32>
    %cst_14 = arith.constant 0.000000e+00 : f32
    %39 = vector.broadcast %cst_14 : f32 to vector<128x32xf32>
    %40 = arith.cmpf ogt, %38, %39 : vector<128x32xf32>
    %cst_15 = arith.constant 0.00999999977 : f32
    %41 = vector.broadcast %cst_15 : f32 to vector<128x32xf32>
    %42 = arith.mulf %41, %38 : vector<128x32xf32>
    %43 = arith.select %40, %38, %42 : vector<128x32xi1>, vector<128x32xf32>
    %c0_16 = arith.constant 0 : index
    %c0_17 = arith.constant 0 : index
    %44 = vector.load %arg6[%c0_16, %c0_17] : memref<128x64xf32, #tpu.memory_space<vmem>>, vector<128x32xf32>
    tpu.vector_store %arg6[%c0_16, %c0_17], %43 {strides = array<i32>} : memref<128x64xf32, #tpu.memory_space<vmem>>, vector<128x32xf32>,
    %45 = vector.extract_strided_slice %10 {offsets = [0, 1], sizes = [128, 1], strides = [1, 1]} : vector<128x2xf32> to vector<128x1xf32>
    %46 = vector.extract_strided_slice %8 {offsets = [1, 0], sizes = [1, 256], strides = [1, 1]} : vector<2x256xf32> to vector<1x256xf32>
    %47 = vector.broadcast %45 : vector<128x1xf32> to vector<128x256xf32>
    %48 = vector.broadcast %46 : vector<1x256xf32> to vector<128x256xf32>
    %49 = arith.addf %47, %48 : vector<128x256xf32>
    %cst_18 = arith.constant 0.000000e+00 : f32
    %50 = vector.broadcast %cst_18 : f32 to vector<128x256xf32>
    %51 = arith.cmpf ogt, %49, %50 : vector<128x256xf32>
    %cst_19 = arith.constant 2.000000e-01 : f32
    %52 = vector.broadcast %cst_19 : f32 to vector<128x256xf32>
    %53 = arith.mulf %52, %49 : vector<128x256xf32>
    %54 = arith.select %51, %49, %53 : vector<128x256xi1>, vector<128x256xf32>
    %cst_20 = arith.constant -1.000000e+30 : f32
    %55 = vector.broadcast %cst_20 : f32 to vector<128x256xf32>
    %56 = arith.select %7, %54, %55 : vector<128x256xi1>, vector<128x256xf32>
    %cst_21 = arith.constant dense<0xFF800000> : vector<128xf32>
    %57 = vector.multi_reduction <maximumf>, %56, %cst_21 [1] : vector<128x256xf32> to vector<128xf32>
    %58 = vector.shape_cast %57 : vector<128xf32> to vector<128x1xf32>
    %59 = vector.broadcast %58 : vector<128x1xf32> to vector<128x256xf32>
    %60 = arith.subf %56, %59 : vector<128x256xf32>
    %61 = math.exp %60 : vector<128x256xf32>
    %62 = arith.truncf %61 : vector<128x256xf32> to vector<128x256xbf16>
    %c0_22 = arith.constant 0 : index
    %c33 = arith.constant 33 : index
    %63 = vector.load %arg7[%c0_22, %c33] : memref<256x66xbf16, #tpu.memory_space<vmem>>, vector<256x33xbf16>
    %cst_23 = arith.constant dense<0.000000e+00> : vector<128x33xf32>
    %64 = tpu.matmul %62, %63, %cst_23 {dimension_numbers = #tpu.dot_dimension_numbers<[1], [0], [0], [1], [0, 0, 1, 1], [], []>} : vector<128x256xbf16>, vector<256x33xbf16>, vector<128x33xf32> -> vector<128x33xf32>
    %65 = vector.extract_strided_slice %64 {offsets = [0, 32], sizes = [128, 1], strides = [1, 1]} : vector<128x33xf32> to vector<128x1xf32>
    %66 = tpu.reciprocal %65 {approx = true} : vector<128x1xf32> -> vector<128x1xf32>
    %67 = vector.extract_strided_slice %64 {offsets = [0, 0], sizes = [128, 32], strides = [1, 1]} : vector<128x33xf32> to vector<128x32xf32>
    %68 = vector.broadcast %66 : vector<128x1xf32> to vector<128x32xf32>
    %69 = arith.mulf %67, %68 : vector<128x32xf32>
    %c1 = arith.constant 1 : index
    %c0_24 = arith.constant 0 : index
    %70 = vector.load %arg5[%c1, %c0_24] : memref<2x32xf32, #tpu.memory_space<vmem>>, vector<1x32xf32>
    %71 = vector.broadcast %70 : vector<1x32xf32> to vector<128x32xf32>
    %72 = arith.addf %69, %71 : vector<128x32xf32>
    %cst_25 = arith.constant 0.000000e+00 : f32
    %73 = vector.broadcast %cst_25 : f32 to vector<128x32xf32>
    %74 = arith.cmpf ogt, %72, %73 : vector<128x32xf32>
    %cst_26 = arith.constant 0.00999999977 : f32
    %75 = vector.broadcast %cst_26 : f32 to vector<128x32xf32>
    %76 = arith.mulf %75, %72 : vector<128x32xf32>
    %77 = arith.select %74, %72, %76 : vector<128x32xi1>, vector<128x32xf32>
    %c0_27 = arith.constant 0 : index
    %c32 = arith.constant 32 : index
    %78 = vector.load %arg6[%c0_27, %c32] : memref<128x64xf32, #tpu.memory_space<vmem>>, vector<128x32xf32>
    tpu.vector_store %arg6[%c0_27, %c32], %77 {strides = array<i32>} : memref<128x64xf32, #tpu.memory_space<vmem>>, vector<128x32xf32>,
    return
  }
  func.func @transform_0(%arg0: i32) -> (i32, i32) {
    %c0_i32 = arith.constant 0 : i32
    %c0_i32_0 = arith.constant 0 : i32
    %c0_i32_1 = arith.constant 0 : i32
    return %c0_i32, %c0_i32_0 : i32, i32
  }
  func.func @transform_1(%arg0: i32) -> (i32, i32) {
    %c0_i32 = arith.constant 0 : i32
    %c0_i32_0 = arith.constant 0 : i32
    return %arg0, %c0_i32 : i32, i32
  }
  func.func @transform_2(%arg0: i32) -> (i32, i32) {
    %c0_i32 = arith.constant 0 : i32
    %c0_i32_0 = arith.constant 0 : i32
    %c0_i32_1 = arith.constant 0 : i32
    return %c0_i32, %c0_i32_0 : i32, i32
  }
  func.func @transform_3(%arg0: i32) -> (i32, i32) {
    %c0_i32 = arith.constant 0 : i32
    %c0_i32_0 = arith.constant 0 : i32
    %c0_i32_1 = arith.constant 0 : i32
    return %c0_i32, %c0_i32_0 : i32, i32
  }
  func.func @transform_4(%arg0: i32) -> (i32, i32) {
    %c0_i32 = arith.constant 0 : i32
    %c0_i32_0 = arith.constant 0 : i32
    %c0_i32_1 = arith.constant 0 : i32
    return %c0_i32, %c0_i32_0 : i32, i32
  }
  func.func @transform_5(%arg0: i32) -> (i32, i32) {
    %c0_i32 = arith.constant 0 : i32
    %c0_i32_0 = arith.constant 0 : i32
    return %arg0, %c0_i32 : i32, i32
  }
}

module attributes {stable_mosaic.version = 11 : i64} {
  func.func @gat_layer_kernel(%arg0: i32, %arg1: memref<256x16xf32, #tpu.memory_space<vmem>>, %arg2: memref<128x256xf32, #tpu.memory_space<vmem>>, %arg3: memref<16x32xf32, #tpu.memory_space<vmem>>, %arg4: memref<32x4xf32, #tpu.memory_space<vmem>>, %arg5: memref<2x16xf32, #tpu.memory_space<vmem>>, %arg6: memref<128x16xf32, #tpu.memory_space<vmem>>, %arg7: memref<128x256xf32, #tpu.memory_space<vmem>>, %arg8: memref<256x34xbf16, #tpu.memory_space<vmem>>, %arg9: memref<2x256xf32, #tpu.memory_space<vmem>>, %arg10: memref<256x2xf32, #tpu.memory_space<vmem>>) attributes {dimension_semantics = [#tpu.dimension_semantics<arbitrary>], iteration_bounds = array<i64: 2>, scalar_prefetch = 0 : i64, scratch_operands = 3 : i64, tpu.core_type = #tpu.core_type<tc>, window_params = [{pipeline_mode = #tpu.pipeline_mode<synchronous>, transform_indices = @transform_0, window_bounds = array<i64: 256, 16>}, {transform_indices = @transform_1, window_bounds = array<i64: 128, 256>}, {pipeline_mode = #tpu.pipeline_mode<synchronous>, transform_indices = @transform_2, window_bounds = array<i64: 16, 32>}, {pipeline_mode = #tpu.pipeline_mode<synchronous>, transform_indices = @transform_3, window_bounds = array<i64: 32, 4>}, {pipeline_mode = #tpu.pipeline_mode<synchronous>, transform_indices = @transform_4, window_bounds = array<i64: 2, 16>}, {transform_indices = @transform_5, window_bounds = array<i64: 128, 16>}, {transform_indices = @transform_6, window_bounds = array<i64: 128, 256>}]} {
    %c128_i32 = arith.constant 128 : i32
    %0 = arith.muli %arg0, %c128_i32 : i32
    %1 = tpu.assume_multiple %0, 128 : i32
    %c0_i32 = arith.constant 0 : i32
    %2 = arith.cmpi eq, %arg0, %c0_i32 : i32
    %3 = arith.extui %2 : i1 to i32
    %c0_i32_0 = arith.constant 0 : i32
    %4 = arith.cmpi ne, %3, %c0_i32_0 : i32
    scf.if %4 {
      %c0_34 = arith.constant 0 : index
      %c0_35 = arith.constant 0 : index
      %86 = vector.load %arg1[%c0_34, %c0_35] : memref<256x16xf32, #tpu.memory_space<vmem>>, vector<256x16xf32>
      %c0_36 = arith.constant 0 : index
      %c0_37 = arith.constant 0 : index
      %87 = vector.load %arg3[%c0_36, %c0_37] : memref<16x32xf32, #tpu.memory_space<vmem>>, vector<16x32xf32>
      %cst_38 = arith.constant dense<0.000000e+00> : vector<256x32xf32>
      %88 = tpu.matmul %86, %87, %cst_38 {dimension_numbers = #tpu.dot_dimension_numbers<[1], [0], [0], [1], [0, 0, 1, 1], [], []>} : vector<256x16xf32>, vector<16x32xf32>, vector<256x32xf32> -> vector<256x32xf32>
      %c0_39 = arith.constant 0 : index
      %c0_40 = arith.constant 0 : index
      %89 = vector.load %arg4[%c0_39, %c0_40] : memref<32x4xf32, #tpu.memory_space<vmem>>, vector<32x4xf32>
      %90 = vector.extract_strided_slice %89 {offsets = [0, 0], sizes = [32, 2], strides = [1, 1]} : vector<32x4xf32> to vector<32x2xf32>
      %cst_41 = arith.constant dense<0.000000e+00> : vector<2x256xf32>
      %91 = tpu.matmul %90, %88, %cst_41 {dimension_numbers = #tpu.dot_dimension_numbers<[0], [1], [1], [0], [0, 1, 1, 0], [], []>} : vector<32x2xf32>, vector<256x32xf32>, vector<2x256xf32> -> vector<2x256xf32>
      %c0_42 = arith.constant 0 : index
      %c0_43 = arith.constant 0 : index
      %92 = vector.load %arg9[%c0_42, %c0_43] : memref<2x256xf32, #tpu.memory_space<vmem>>, vector<2x256xf32>
      tpu.vector_store %arg9[%c0_42, %c0_43], %91 {strides = array<i32>} : memref<2x256xf32, #tpu.memory_space<vmem>>, vector<2x256xf32>,
      %93 = vector.extract_strided_slice %89 {offsets = [0, 2], sizes = [32, 2], strides = [1, 1]} : vector<32x4xf32> to vector<32x2xf32>
      %cst_44 = arith.constant dense<0.000000e+00> : vector<256x2xf32>
      %94 = tpu.matmul %88, %93, %cst_44 {dimension_numbers = #tpu.dot_dimension_numbers<[1], [0], [0], [1], [0, 0, 1, 1], [], []>} : vector<256x32xf32>, vector<32x2xf32>, vector<256x2xf32> -> vector<256x2xf32>
      %c0_45 = arith.constant 0 : index
      %c0_46 = arith.constant 0 : index
      %95 = vector.load %arg10[%c0_45, %c0_46] : memref<256x2xf32, #tpu.memory_space<vmem>>, vector<256x2xf32>
      tpu.vector_store %arg10[%c0_45, %c0_46], %94 {strides = array<i32>} : memref<256x2xf32, #tpu.memory_space<vmem>>, vector<256x2xf32>,
      %cst_47 = arith.constant 1.000000e+00 : f32
      %96 = vector.broadcast %cst_47 : f32 to vector<256x1xf32>
      %97 = vector.extract_strided_slice %88 {offsets = [0, 0], sizes = [256, 16], strides = [1, 1]} : vector<256x32xf32> to vector<256x16xf32>
      %98 = vector.extract_strided_slice %88 {offsets = [0, 16], sizes = [256, 16], strides = [1, 1]} : vector<256x32xf32> to vector<256x16xf32>
      %99 = tpu.concatenate %97, %96, %98, %96 in 1 : vector<256x16xf32>, vector<256x1xf32>, vector<256x16xf32>, vector<256x1xf32> -> vector<256x34xf32>
      %100 = arith.truncf %99 : vector<256x34xf32> to vector<256x34xbf16>
      %c0_48 = arith.constant 0 : index
      %c0_49 = arith.constant 0 : index
      %101 = vector.load %arg8[%c0_48, %c0_49] : memref<256x34xbf16, #tpu.memory_space<vmem>>, vector<256x34xbf16>
      tpu.vector_store %arg8[%c0_48, %c0_49], %100 {strides = array<i32>} : memref<256x34xbf16, #tpu.memory_space<vmem>>, vector<256x34xbf16>,
    } else {
    }
    %c0 = arith.constant 0 : index
    %c0_1 = arith.constant 0 : index
    %5 = vector.load %arg2[%c0, %c0_1] : memref<128x256xf32, #tpu.memory_space<vmem>>, vector<128x256xf32>
    %cst = arith.constant 0.000000e+00 : f32
    %6 = vector.broadcast %cst : f32 to vector<128x256xf32>
    %7 = arith.cmpf ogt, %5, %6 : vector<128x256xf32>
    %c0_2 = arith.constant 0 : index
    %c0_3 = arith.constant 0 : index
    %8 = vector.load %arg9[%c0_2, %c0_3] : memref<2x256xf32, #tpu.memory_space<vmem>>, vector<2x256xf32>
    %9 = arith.index_cast %1 : i32 to index
    %c0_4 = arith.constant 0 : index
    %10 = vector.load %arg10[%9, %c0_4] : memref<256x2xf32, #tpu.memory_space<vmem>>, vector<128x2xf32>
    %11 = vector.extract_strided_slice %10 {offsets = [0, 0], sizes = [128, 1], strides = [1, 1]} : vector<128x2xf32> to vector<128x1xf32>
    %12 = vector.extract_strided_slice %8 {offsets = [0, 0], sizes = [1, 256], strides = [1, 1]} : vector<2x256xf32> to vector<1x256xf32>
    %13 = vector.broadcast %11 : vector<128x1xf32> to vector<128x256xf32>
    %14 = vector.broadcast %12 : vector<1x256xf32> to vector<128x256xf32>
    %15 = arith.addf %13, %14 : vector<128x256xf32>
    %cst_5 = arith.constant 0.000000e+00 : f32
    %16 = vector.broadcast %cst_5 : f32 to vector<128x256xf32>
    %17 = arith.cmpf ogt, %15, %16 : vector<128x256xf32>
    %cst_6 = arith.constant 2.000000e-01 : f32
    %18 = vector.broadcast %cst_6 : f32 to vector<128x256xf32>
    %19 = arith.mulf %18, %15 : vector<128x256xf32>
    %20 = arith.select %17, %15, %19 : vector<128x256xi1>, vector<128x256xf32>
    %cst_7 = arith.constant -1.000000e+30 : f32
    %21 = vector.broadcast %cst_7 : f32 to vector<128x256xf32>
    %22 = arith.select %7, %20, %21 : vector<128x256xi1>, vector<128x256xf32>
    %cst_8 = arith.constant dense<0xFF800000> : vector<128xf32>
    %23 = vector.multi_reduction <maximumf>, %22, %cst_8 [1] : vector<128x256xf32> to vector<128xf32>
    %24 = vector.shape_cast %23 : vector<128xf32> to vector<128x1xf32>
    %25 = vector.broadcast %24 : vector<128x1xf32> to vector<128x256xf32>
    %26 = arith.subf %22, %25 : vector<128x256xf32>
    %27 = math.exp %26 : vector<128x256xf32>
    %28 = arith.truncf %27 : vector<128x256xf32> to vector<128x256xbf16>
    %c0_9 = arith.constant 0 : index
    %c0_10 = arith.constant 0 : index
    %29 = vector.load %arg8[%c0_9, %c0_10] : memref<256x34xbf16, #tpu.memory_space<vmem>>, vector<256x17xbf16>
    %cst_11 = arith.constant dense<0.000000e+00> : vector<128x17xf32>
    %30 = tpu.matmul %28, %29, %cst_11 {dimension_numbers = #tpu.dot_dimension_numbers<[1], [0], [0], [1], [0, 0, 1, 1], [], []>} : vector<128x256xbf16>, vector<256x17xbf16>, vector<128x17xf32> -> vector<128x17xf32>
    %31 = vector.extract_strided_slice %30 {offsets = [0, 16], sizes = [128, 1], strides = [1, 1]} : vector<128x17xf32> to vector<128x1xf32>
    %32 = tpu.reciprocal %31 {approx = true} : vector<128x1xf32> -> vector<128x1xf32>
    %33 = vector.extract_strided_slice %30 {offsets = [0, 0], sizes = [128, 16], strides = [1, 1]} : vector<128x17xf32> to vector<128x16xf32>
    %34 = vector.broadcast %32 : vector<128x1xf32> to vector<128x16xf32>
    %35 = arith.mulf %33, %34 : vector<128x16xf32>
    %c0_12 = arith.constant 0 : index
    %c0_13 = arith.constant 0 : index
    %36 = vector.load %arg5[%c0_12, %c0_13] : memref<2x16xf32, #tpu.memory_space<vmem>>, vector<1x16xf32>
    %37 = vector.broadcast %36 : vector<1x16xf32> to vector<128x16xf32>
    %38 = arith.addf %35, %37 : vector<128x16xf32>
    %cst_14 = arith.constant 0.000000e+00 : f32
    %39 = vector.broadcast %cst_14 : f32 to vector<128x16xf32>
    %40 = arith.cmpf ogt, %38, %39 : vector<128x16xf32>
    %cst_15 = arith.constant 0.00999999977 : f32
    %41 = vector.broadcast %cst_15 : f32 to vector<128x16xf32>
    %42 = arith.mulf %41, %38 : vector<128x16xf32>
    %43 = arith.select %40, %38, %42 : vector<128x16xi1>, vector<128x16xf32>
    %44 = vector.extract_strided_slice %10 {offsets = [0, 1], sizes = [128, 1], strides = [1, 1]} : vector<128x2xf32> to vector<128x1xf32>
    %45 = vector.extract_strided_slice %8 {offsets = [1, 0], sizes = [1, 256], strides = [1, 1]} : vector<2x256xf32> to vector<1x256xf32>
    %46 = vector.broadcast %44 : vector<128x1xf32> to vector<128x256xf32>
    %47 = vector.broadcast %45 : vector<1x256xf32> to vector<128x256xf32>
    %48 = arith.addf %46, %47 : vector<128x256xf32>
    %cst_16 = arith.constant 0.000000e+00 : f32
    %49 = vector.broadcast %cst_16 : f32 to vector<128x256xf32>
    %50 = arith.cmpf ogt, %48, %49 : vector<128x256xf32>
    %cst_17 = arith.constant 2.000000e-01 : f32
    %51 = vector.broadcast %cst_17 : f32 to vector<128x256xf32>
    %52 = arith.mulf %51, %48 : vector<128x256xf32>
    %53 = arith.select %50, %48, %52 : vector<128x256xi1>, vector<128x256xf32>
    %cst_18 = arith.constant -1.000000e+30 : f32
    %54 = vector.broadcast %cst_18 : f32 to vector<128x256xf32>
    %55 = arith.select %7, %53, %54 : vector<128x256xi1>, vector<128x256xf32>
    %cst_19 = arith.constant dense<0xFF800000> : vector<128xf32>
    %56 = vector.multi_reduction <maximumf>, %55, %cst_19 [1] : vector<128x256xf32> to vector<128xf32>
    %57 = vector.shape_cast %56 : vector<128xf32> to vector<128x1xf32>
    %58 = vector.broadcast %57 : vector<128x1xf32> to vector<128x256xf32>
    %59 = arith.subf %55, %58 : vector<128x256xf32>
    %60 = math.exp %59 : vector<128x256xf32>
    %61 = arith.truncf %60 : vector<128x256xf32> to vector<128x256xbf16>
    %c0_20 = arith.constant 0 : index
    %c17 = arith.constant 17 : index
    %62 = vector.load %arg8[%c0_20, %c17] : memref<256x34xbf16, #tpu.memory_space<vmem>>, vector<256x17xbf16>
    %cst_21 = arith.constant dense<0.000000e+00> : vector<128x17xf32>
    %63 = tpu.matmul %61, %62, %cst_21 {dimension_numbers = #tpu.dot_dimension_numbers<[1], [0], [0], [1], [0, 0, 1, 1], [], []>} : vector<128x256xbf16>, vector<256x17xbf16>, vector<128x17xf32> -> vector<128x17xf32>
    %64 = vector.extract_strided_slice %63 {offsets = [0, 16], sizes = [128, 1], strides = [1, 1]} : vector<128x17xf32> to vector<128x1xf32>
    %65 = tpu.reciprocal %64 {approx = true} : vector<128x1xf32> -> vector<128x1xf32>
    %66 = vector.extract_strided_slice %63 {offsets = [0, 0], sizes = [128, 16], strides = [1, 1]} : vector<128x17xf32> to vector<128x16xf32>
    %67 = vector.broadcast %65 : vector<128x1xf32> to vector<128x16xf32>
    %68 = arith.mulf %66, %67 : vector<128x16xf32>
    %c1 = arith.constant 1 : index
    %c0_22 = arith.constant 0 : index
    %69 = vector.load %arg5[%c1, %c0_22] : memref<2x16xf32, #tpu.memory_space<vmem>>, vector<1x16xf32>
    %70 = vector.broadcast %69 : vector<1x16xf32> to vector<128x16xf32>
    %71 = arith.addf %68, %70 : vector<128x16xf32>
    %cst_23 = arith.constant 0.000000e+00 : f32
    %72 = vector.broadcast %cst_23 : f32 to vector<128x16xf32>
    %73 = arith.cmpf ogt, %71, %72 : vector<128x16xf32>
    %cst_24 = arith.constant 0.00999999977 : f32
    %74 = vector.broadcast %cst_24 : f32 to vector<128x16xf32>
    %75 = arith.mulf %74, %71 : vector<128x16xf32>
    %76 = arith.select %73, %71, %75 : vector<128x16xi1>, vector<128x16xf32>
    %77 = arith.addf %43, %76 : vector<128x16xf32>
    %cst_25 = arith.constant 5.000000e-01 : f32
    %78 = vector.broadcast %cst_25 : f32 to vector<128x16xf32>
    %79 = arith.mulf %77, %78 : vector<128x16xf32>
    %c0_26 = arith.constant 0 : index
    %c0_27 = arith.constant 0 : index
    %80 = vector.load %arg6[%c0_26, %c0_27] : memref<128x16xf32, #tpu.memory_space<vmem>>, vector<128x16xf32>
    tpu.vector_store %arg6[%c0_26, %c0_27], %79 {strides = array<i32>} : memref<128x16xf32, #tpu.memory_space<vmem>>, vector<128x16xf32>,
    %81 = arith.index_cast %1 : i32 to index
    %c0_28 = arith.constant 0 : index
    %82 = vector.load %arg1[%81, %c0_28] : memref<256x16xf32, #tpu.memory_space<vmem>>, vector<128x16xf32>
    %c0_29 = arith.constant 0 : index
    %c0_30 = arith.constant 0 : index
    %83 = vector.load %arg1[%c0_29, %c0_30] : memref<256x16xf32, #tpu.memory_space<vmem>>, vector<256x16xf32>
    %cst_31 = arith.constant dense<0.000000e+00> : vector<128x256xf32>
    %84 = tpu.matmul %82, %83, %cst_31 {dimension_numbers = #tpu.dot_dimension_numbers<[1], [1], [0], [0], [0, 0, 1, 0], [], []>} : vector<128x16xf32>, vector<256x16xf32>, vector<128x256xf32> -> vector<128x256xf32>
    %c0_32 = arith.constant 0 : index
    %c0_33 = arith.constant 0 : index
    %85 = vector.load %arg7[%c0_32, %c0_33] : memref<128x256xf32, #tpu.memory_space<vmem>>, vector<128x256xf32>
    tpu.vector_store %arg7[%c0_32, %c0_33], %84 {strides = array<i32>} : memref<128x256xf32, #tpu.memory_space<vmem>>, vector<128x256xf32>,
    return
  }
  func.func @transform_0(%arg0: i32) -> (i32, i32) {
    %c0_i32 = arith.constant 0 : i32
    %c0_i32_0 = arith.constant 0 : i32
    %c0_i32_1 = arith.constant 0 : i32
    return %c0_i32, %c0_i32_0 : i32, i32
  }
  func.func @transform_1(%arg0: i32) -> (i32, i32) {
    %c0_i32 = arith.constant 0 : i32
    %c0_i32_0 = arith.constant 0 : i32
    return %arg0, %c0_i32 : i32, i32
  }
  func.func @transform_2(%arg0: i32) -> (i32, i32) {
    %c0_i32 = arith.constant 0 : i32
    %c0_i32_0 = arith.constant 0 : i32
    %c0_i32_1 = arith.constant 0 : i32
    return %c0_i32, %c0_i32_0 : i32, i32
  }
  func.func @transform_3(%arg0: i32) -> (i32, i32) {
    %c0_i32 = arith.constant 0 : i32
    %c0_i32_0 = arith.constant 0 : i32
    %c0_i32_1 = arith.constant 0 : i32
    return %c0_i32, %c0_i32_0 : i32, i32
  }
  func.func @transform_4(%arg0: i32) -> (i32, i32) {
    %c0_i32 = arith.constant 0 : i32
    %c0_i32_0 = arith.constant 0 : i32
    %c0_i32_1 = arith.constant 0 : i32
    return %c0_i32, %c0_i32_0 : i32, i32
  }
  func.func @transform_5(%arg0: i32) -> (i32, i32) {
    %c0_i32 = arith.constant 0 : i32
    %c0_i32_0 = arith.constant 0 : i32
    return %arg0, %c0_i32 : i32, i32
  }
  func.func @transform_6(%arg0: i32) -> (i32, i32) {
    %c0_i32 = arith.constant 0 : i32
    %c0_i32_0 = arith.constant 0 : i32
    return %arg0, %c0_i32 : i32, i32
  }
}

</mosaic_0001>

<llo_original>
// kernel: conad_forward.4
$region0: #{conad_forward.4}
  #allocation0 [shape = 'u32[]', space=smem, size = 0x4, offset = 0x4, fixed_abs, tag = 'smem constant byte address 0x4 - core index']
  #allocation1 [shape = 'u32[144,128]{1,0:T(1,128)}', space=vmem, size = 0x12000, scoped, tag = 'internal scratch']
  #allocation2 [shape = 'bf16[256,34]{1,0:T(16,128)(2,1)}', space=vmem, size = 0x10000, scoped, tag = 'scratch operand']
  #allocation3 [shape = 'f32[2,256]{1,0:T(2,128)}', space=vmem, size = 0x800, scoped, tag = 'scratch operand']
  #allocation4 [shape = 'f32[256,2]{1,0:T(8,128)}', space=vmem, size = 0x20000, scoped, tag = 'scratch operand']
  %s0 = inlined_call_operand.vmem [shape: f32[256,64], index: 0, kind: input, shape index: {}]
  %s1 = inlined_call_operand.vmem [shape: f32[256,256], index: 1, kind: input, shape index: {}]
  %s2 = inlined_call_operand.vmem [shape: f32[64,32], index: 2, kind: input, shape index: {}]
  %s3 = inlined_call_operand.vmem [shape: f32[32,4], index: 3, kind: input, shape index: {}]
  %s4 = inlined_call_operand.vmem [shape: f32[2,16], index: 4, kind: input, shape index: {}]
  %s5 = inlined_call_operand.vmem [shape: f32[256,16], index: 5, kind: output, shape index: {}]
  %s6 = sld [smem:[#allocation0]]
  $region57: #{conad_forward.4} parent=0
    _
  %s8 = ssub.s32 1, %s6
  %s9 = scalar_select 0, %s8, %s6
  loop: start=0, step=1, limit=4
  $region2: #{conad_forward.4} parent=0 // loop_pre_header
    _
  $region3: #{conad_forward.4} parent=0 // loop_header
    %s11 = sphi 0, %s15
    %p12 = scmp.ge.s32.totalorder %s11, 4
    %s19 = sphi 0, %s19
    %s21 = sphi 0, %s19
    %s22 = sphi 0, %s21
    %s36 = sphi 0, %s22
    %s42 = sphi 0, %s44
    %s45 = sphi 0, %s42
    %s46 = sphi 0, %s45
    %s62 = sphi 0, %s46
    %s66 = sphi 0, %s66
    %s68 = sphi 0, %s66
    %s69 = sphi 0, %s68
    %s83 = sphi 0, %s69
    %s87 = sphi 0, %s87
    %s89 = sphi 0, %s87
    %s90 = sphi 0, %s89
    %s104 = sphi 0, %s90
    %s108 = sphi 0, %s108
    %s110 = sphi 0, %s108
    %s111 = sphi 0, %s110
    %s125 = sphi 0, %s111
    %s131 = sphi 0, %s133
    %s134 = sphi 0, %s131
    %s135 = sphi 0, %s134
    %s151 = sphi 0, %s135
  $region4: #{conad_forward.4} parent=0 // loop_header_branch
    %14 = sbr.rel (%p12) target = $region8
  $region5: #{conad_forward.4} parent=0 // loop_body
    %s16 = ssub.s32 %s11, 1
    %s17 = ssub.s32 %s11, 2
    %s18 = sadd.s32 %s11, 1
    %s20 = sadd.s32 %s19, 1
    %p23 = scmp.eq.s32.totalorder %s11, 1
    %p24 = scmp.ne.s32.totalorder %s19, %s21
    %p25 = scmp.eq.s32.totalorder %s11, 0
    %p26 = por %p24, %p25
    %p27 = scmp.ne.s32.totalorder %s19, %s21
    %p28 = scmp.eq.s32.totalorder %s16, 1
    %p29 = por %p27, %p28
    %p30 = scmp.ne.s32.totalorder %s21, %s22
    %p31 = scmp.eq.s32.totalorder %s16, 0
    %p32 = por %p30, %p31
    %p33 = scmp.ne.s32.totalorder %s21, %s22
    %p34 = scmp.eq.s32.totalorder %s17, 1
    %p35 = por %p33, %p34
    %p37 = scmp.ne.s32.totalorder %s22, %s36
    %p38 = scmp.eq.s32.totalorder %s17, 0
    %p39 = por %p37, %p38
    %s40 = ssub.s32 %s11, %s18
    %p41 = scmp.eq.s32.totalorder %s40, 0
    %s43 = sadd.s32 %s42, 1
    %s44 = scalar_select %p41, %s42, %s43
    %p47 = pneg %p41
    %p48 = scmp.eq.s32.totalorder %s11, 1
    %p49 = por %p47, %p48
    %p50 = scmp.ne.s32.totalorder %s42, %s45
    %p51 = scmp.eq.s32.totalorder %s11, 0
    %p52 = por %p50, %p51
    %p53 = scmp.ne.s32.totalorder %s42, %s45
    %p54 = scmp.eq.s32.totalorder %s16, 1
    %p55 = por %p53, %p54
    %p56 = scmp.ne.s32.totalorder %s45, %s46
    %p57 = scmp.eq.s32.totalorder %s16, 0
    %p58 = por %p56, %p57
    %p59 = scmp.ne.s32.totalorder %s45, %s46
    %p60 = scmp.eq.s32.totalorder %s17, 1
    %p61 = por %p59, %p60
    %p63 = scmp.ne.s32.totalorder %s46, %s62
    %p64 = scmp.eq.s32.totalorder %s17, 0
    %p65 = por %p63, %p64
    %s67 = sadd.s32 %s66, 1
    %p70 = scmp.eq.s32.totalorder %s11, 1
    %p71 = scmp.ne.s32.totalorder %s66, %s68
    %p72 = scmp.eq.s32.totalorder %s11, 0
    %p73 = por %p71, %p72
    %p74 = scmp.ne.s32.totalorder %s66, %s68
    %p75 = scmp.eq.s32.totalorder %s16, 1
    %p76 = por %p74, %p75
    %p77 = scmp.ne.s32.totalorder %s68, %s69
    %p78 = scmp.eq.s32.totalorder %s16, 0
    %p79 = por %p77, %p78
    %p80 = scmp.ne.s32.totalorder %s68, %s69
    %p81 = scmp.eq.s32.totalorder %s17, 1
    %p82 = por %p80, %p81
    %p84 = scmp.ne.s32.totalorder %s69, %s83
    %p85 = scmp.eq.s32.totalorder %s17, 0
    %p86 = por %p84, %p85
    %s88 = sadd.s32 %s87, 1
    %p91 = scmp.eq.s32.totalorder %s11, 1
    %p92 = scmp.ne.s32.totalorder %s87, %s89
    %p93 = scmp.eq.s32.totalorder %s11, 0
    %p94 = por %p92, %p93
    %p95 = scmp.ne.s32.totalorder %s87, %s89
    %p96 = scmp.eq.s32.totalorder %s16, 1
    %p97 = por %p95, %p96
    %p98 = scmp.ne.s32.totalorder %s89, %s90
    %p99 = scmp.eq.s32.totalorder %s16, 0
    %p100 = por %p98, %p99
    %p101 = scmp.ne.s32.totalorder %s89, %s90
    %p102 = scmp.eq.s32.totalorder %s17, 1
    %p103 = por %p101, %p102
    %p105 = scmp.ne.s32.totalorder %s90, %s104
    %p106 = scmp.eq.s32.totalorder %s17, 0
    %p107 = por %p105, %p106
    %s109 = sadd.s32 %s108, 1
    %p112 = scmp.eq.s32.totalorder %s11, 1
    %p113 = scmp.ne.s32.totalorder %s108, %s110
    %p114 = scmp.eq.s32.totalorder %s11, 0
    %p115 = por %p113, %p114
    %p116 = scmp.ne.s32.totalorder %s108, %s110
    %p117 = scmp.eq.s32.totalorder %s16, 1
    %p118 = por %p116, %p117
    %p119 = scmp.ne.s32.totalorder %s110, %s111
    %p120 = scmp.eq.s32.totalorder %s16, 0
    %p121 = por %p119, %p120
    %p122 = scmp.ne.s32.totalorder %s110, %s111
    %p123 = scmp.eq.s32.totalorder %s17, 1
    %p124 = por %p122, %p123
    %p126 = scmp.ne.s32.totalorder %s111, %s125
    %p127 = scmp.eq.s32.totalorder %s17, 0
    %p128 = por %p126, %p127
    %s129 = ssub.s32 %s11, %s18
    %p130 = scmp.eq.s32.totalorder %s129, 0
    %s132 = sadd.s32 %s131, 1
    %s133 = scalar_select %p130, %s131, %s132
    %p136 = pneg %p130
    %p137 = scmp.eq.s32.totalorder %s11, 1
    %p138 = por %p136, %p137
    %p139 = scmp.ne.s32.totalorder %s131, %s134
    %p140 = scmp.eq.s32.totalorder %s11, 0
    %p141 = por %p139, %p140
    %p142 = scmp.ne.s32.totalorder %s131, %s134
    %p143 = scmp.eq.s32.totalorder %s16, 1
    %p144 = por %p142, %p143
    %p145 = scmp.ne.s32.totalorder %s134, %s135
    %p146 = scmp.eq.s32.totalorder %s16, 0
    %p147 = por %p145, %p146
    %p148 = scmp.ne.s32.totalorder %s134, %s135
    %p149 = scmp.eq.s32.totalorder %s17, 1
    %p150 = por %p148, %p149
    %p152 = scmp.ne.s32.totalorder %s135, %s151
    %p153 = scmp.eq.s32.totalorder %s17, 0
    %p154 = por %p152, %p153
    %p155 = scmp.le.s32.totalorder 1, %s11
    %p156 = scmp.lt.s32.totalorder %s11, 3
    %p157 = pnand %p155, %p156
    %p158 = pneg %p157
    // Predicated region
    $region9: #{conad_forward.4} parent=5 // pred_check
      _
    $region10: #{conad_forward.4} parent=5 // pred_check_branch
      %160 = sbr.rel (%p157) target = $region12
    $region11: #{conad_forward.4} parent=5 // pred_region
      %s161 = ssub.s32 %s11, 1
      // Predicated region
      $region13: #{conad_forward.4} parent=11 // pred_check
        %p162 = pneg %p32
      $region14: #{conad_forward.4} parent=11 // pred_check_branch
        %164 = sbr.rel (%p162) target = $region16
      $region15: #{conad_forward.4} parent=11 // pred_region
        _
      $region16: #{conad_forward.4} parent=11 // pred_fallthru
        _
      // Predicated region
      $region17: #{conad_forward.4} parent=11 // pred_check
        %p165 = pneg %p79
      $region18: #{conad_forward.4} parent=11 // pred_check_branch
        %167 = sbr.rel (%p165) target = $region20
      $region19: #{conad_forward.4} parent=11 // pred_region
        _
      $region20: #{conad_forward.4} parent=11 // pred_fallthru
        _
      // Predicated region
      $region21: #{conad_forward.4} parent=11 // pred_check
        %p168 = pneg %p100
      $region22: #{conad_forward.4} parent=11 // pred_check_branch
        %170 = sbr.rel (%p168) target = $region24
      $region23: #{conad_forward.4} parent=11 // pred_region
        _
      $region24: #{conad_forward.4} parent=11 // pred_fallthru
        _
      // Predicated region
      $region25: #{conad_forward.4} parent=11 // pred_check
        %p171 = pneg %p121
      $region26: #{conad_forward.4} parent=11 // pred_check_branch
        %173 = sbr.rel (%p171) target = $region28
      $region27: #{conad_forward.4} parent=11 // pred_region
        _
      $region28: #{conad_forward.4} parent=11 // pred_fallthru
        _
    $region12: #{conad_forward.4} parent=5 // pred_fallthru
      _
    %p174 = scmp.lt.s32.totalorder %s11, 2
    // Predicated region
    $region29: #{conad_forward.4} parent=5 // pred_check
      %p175 = pneg %p174
    $region30: #{conad_forward.4} parent=5 // pred_check_branch
      %177 = sbr.rel (%p175) target = $region32
    $region31: #{conad_forward.4} parent=5 // pred_region
      // Predicated region
      $region33: #{conad_forward.4} parent=31 // pred_check
        %p178 = pneg %p52
      $region34: #{conad_forward.4} parent=31 // pred_check_branch
        %180 = sbr.rel (%p178) target = $region36
      $region35: #{conad_forward.4} parent=31 // pred_region
        %s181 = smul.u32 16, %s11
        %p182 = scmp.lt.s32.totalorder %s181, 31
        %s183 = scalar_select %p182, %s181, 31
        %s184 = smul.addr %s183, 2
        %s185 = smul.addr %s184, 8
        %s186 = scalar_lea.vmem %s1, %s185
        %s187 = smul.u32 16, %s11
      $region36: #{conad_forward.4} parent=31 // pred_fallthru
        _
    $region32: #{conad_forward.4} parent=5 // pred_fallthru
      _
    %p188 = scmp.le.s32.totalorder 1, %s11
    %p189 = scmp.lt.s32.totalorder %s11, 3
    %p190 = pnand %p188, %p189
    %p191 = pneg %p190
    // Predicated region
    $region37: #{conad_forward.4} parent=5 // pred_check
      _
    $region38: #{conad_forward.4} parent=5 // pred_check_branch
      %193 = sbr.rel (%p190) target = $region40
    $region39: #{conad_forward.4} parent=5 // pred_region
      %s194 = ssub.s32 %s11, 1
      %p195 = pneg %p32
      %p196 = pneg %p29
      %s197 = smul.u32 16, %s16
      %p198 = scmp.lt.s32.totalorder %s197, 31
      %s199 = scalar_select %p198, %s197, 31
      %s200 = smul.addr %s199, 2
      %s201 = smul.addr %s200, 8
      %s202 = scalar_lea.vmem %s1, %s201
      %p203 = pneg %p58
      %p204 = pneg %p55
      %p205 = pneg %p79
      %p206 = pneg %p76
      %p207 = pneg %p100
      %p208 = pneg %p97
      %p209 = pneg %p121
      %p210 = pneg %p118
      %p211 = pneg %p147
      %p212 = pneg %p144
      %s213 = smul.u32 16, %s16
      %p214 = scmp.lt.s32.totalorder %s213, 31
      %s215 = scalar_select %p214, %s213, 31
      %s216 = smul.addr %s215, 8
      %s217 = scalar_lea.vmem %s5, %s216
      %s218 = smul.u32 16, %s16
      %p219 = scmp.lt.s32.totalorder %s218, 31
      %s220 = scalar_select %p219, %s218, 31
      %s221 = smul.addr %s220, 2
      %s222 = smul.addr %s221, 8
      %s223 = scalar_lea.vmem %s1, %s222
      %s224 = smul.u32 16, %s16
      %s225 = smul.u32 16, %s16
      %p226 = scmp.lt.s32.totalorder %s225, 31
      %s227 = scalar_select %p226, %s225, 31
      %s228 = smul.addr %s227, 8
      %s229 = scalar_lea.vmem %s5, %s228
      %s230 = smul.u32 16, %s16
      %s232 = smul.u32 %s16, 128
      %p233 = scmp.eq.s32.totalorder %s16, 0
      // Predicated region
      $region41: #{conad_forward.4} parent=39 // pred_check
        %p234 = pneg %p233
      $region42: #{conad_forward.4} parent=39 // pred_check_branch
        %236 = sbr.rel (%p234) target = $region44
      $region43: #{conad_forward.4} parent=39 // pred_region
        %v237 = vld [vmem:[%s0] sm:$0xff]
        %v238 = vld [vmem:[%s0 + $0x8] sm:$0xff]
        %v239 = vld [vmem:[%s0 + $0x10] sm:$0xff]
        %v240 = vld [vmem:[%s0 + $0x18] sm:$0xff]
        %v241 = vld [vmem:[%s0 + $0x20] sm:$0xff]
        %v242 = vld [vmem:[%s0 + $0x28] sm:$0xff]
        %v243 = vld [vmem:[%s0 + $0x30] sm:$0xff]
        %v244 = vld [vmem:[%s0 + $0x38] sm:$0xff]
        %v245 = vld [vmem:[%s0 + $0x40] sm:$0xff]
        %v246 = vld [vmem:[%s0 + $0x48] sm:$0xff]
        %v247 = vld [vmem:[%s0 + $0x50] sm:$0xff]
        %v248 = vld [vmem:[%s0 + $0x58] sm:$0xff]
        %v249 = vld [vmem:[%s0 + $0x60] sm:$0xff]
        %v250 = vld [vmem:[%s0 + $0x68] sm:$0xff]
        %v251 = vld [vmem:[%s0 + $0x70] sm:$0xff]
        %v252 = vld [vmem:[%s0 + $0x78] sm:$0xff]
        %v253 = vld [vmem:[%s0 + $0x80] sm:$0xff]
        %v254 = vld [vmem:[%s0 + $0x88] sm:$0xff]
        %v255 = vld [vmem:[%s0 + $0x90] sm:$0xff]
        %v256 = vld [vmem:[%s0 + $0x98] sm:$0xff]
        %v257 = vld [vmem:[%s0 + $0xa0] sm:$0xff]
        %v258 = vld [vmem:[%s0 + $0xa8] sm:$0xff]
        %v259 = vld [vmem:[%s0 + $0xb0] sm:$0xff]
        %v260 = vld [vmem:[%s0 + $0xb8] sm:$0xff]
        %v261 = vld [vmem:[%s0 + $0xc0] sm:$0xff]
        %v262 = vld [vmem:[%s0 + $0xc8] sm:$0xff]
        %v263 = vld [vmem:[%s0 + $0xd0] sm:$0xff]
        %v264 = vld [vmem:[%s0 + $0xd8] sm:$0xff]
        %v265 = vld [vmem:[%s0 + $0xe0] sm:$0xff]
        %v266 = vld [vmem:[%s0 + $0xe8] sm:$0xff]
        %v267 = vld [vmem:[%s0 + $0xf0] sm:$0xff]
        %v268 = vld [vmem:[%s0 + $0xf8] sm:$0xff]
        %v269 = vld [vmem:[%s2] sm:$0xff]
        %v270 = vld [vmem:[%s2 + $0x8] sm:$0xff]
        %v271 = vld [vmem:[%s2 + $0x10] sm:$0xff]
        %v272 = vld [vmem:[%s2 + $0x18] sm:$0xff]
        %v273 = vld [vmem:[%s2 + $0x20] sm:$0xff]
        %v274 = vld [vmem:[%s2 + $0x28] sm:$0xff]
        %v275 = vld [vmem:[%s2 + $0x30] sm:$0xff]
        %v276 = vld [vmem:[%s2 + $0x38] sm:$0xff]
        %vm277 = vcmask 523264
        %v279 = vsel %vm277, %v237, 0
        %v282 = vsel %vm277, %v238, 0
        %v285 = vsel %vm277, %v239, 0
        %v288 = vsel %vm277, %v240, 0
        %v291 = vsel %vm277, %v241, 0
        %v294 = vsel %vm277, %v242, 0
        %v297 = vsel %vm277, %v243, 0
        %v300 = vsel %vm277, %v244, 0
        %v303 = vsel %vm277, %v245, 0
        %v306 = vsel %vm277, %v246, 0
        %v309 = vsel %vm277, %v247, 0
        %v312 = vsel %vm277, %v248, 0
        %v315 = vsel %vm277, %v249, 0
        %v318 = vsel %vm277, %v250, 0
        %v321 = vsel %vm277, %v251, 0
        %v324 = vsel %vm277, %v252, 0
        %v327 = vsel %vm277, %v253, 0
        %v330 = vsel %vm277, %v254, 0
        %v333 = vsel %vm277, %v255, 0
        %v336 = vsel %vm277, %v256, 0
        %v339 = vsel %vm277, %v257, 0
        %v342 = vsel %vm277, %v258, 0
        %v345 = vsel %vm277, %v259, 0
        %v348 = vsel %vm277, %v260, 0
        %v351 = vsel %vm277, %v261, 0
        %v354 = vsel %vm277, %v262, 0
        %v357 = vsel %vm277, %v263, 0
        %v360 = vsel %vm277, %v264, 0
        %v363 = vsel %vm277, %v265, 0
        %v366 = vsel %vm277, %v266, 0
        %v369 = vsel %vm277, %v267, 0
        %v372 = vsel %vm277, %v268, 0
        %374 = vmatprep.subr.mxu0 0.0
        %375 = vmatpush1.msra.mxu0 %v269
        %376 = vmatprep.subr.mxu0 0.0
        %377 = vmatpush1.msra.mxu0 %v270
        %378 = vmatprep.subr.mxu0 0.0
        %379 = vmatpush1.msra.mxu0 %v271
        %380 = vmatprep.subr.mxu0 0.0
        %381 = vmatpush1.msra.mxu0 %v272
        %382 = vmatprep.subr.mxu0 0.0
        %383 = vmatpush1.msra.mxu0 %v273
        %384 = vmatprep.subr.mxu0 0.0
        %385 = vmatpush1.msra.mxu0 %v274
        %386 = vmatprep.subr.mxu0 0.0
        %387 = vmatpush1.msra.mxu0 %v275
        %388 = vmatprep.subr.mxu0 0.0
        %389 = vmatpush1.msra.mxu0 %v276
        %390 = vmatprep.subr.mxu0 0.0
        %391 = vmatpush1.msra.mxu0 0.0
        %392 = vmatprep.subr.mxu0 0.0
        %393 = vmatpush1.msra.mxu0 0.0
        %394 = vmatprep.subr.mxu0 0.0
        %395 = vmatpush1.msra.mxu0 0.0
        %396 = vmatprep.subr.mxu0 0.0
        %397 = vmatpush1.msra.mxu0 0.0
        %398 = vmatprep.subr.mxu0 0.0
        %399 = vmatpush1.msra.mxu0 0.0
        %400 = vmatprep.subr.mxu0 0.0
        %401 = vmatpush1.msra.mxu0 0.0
        %402 = vmatprep.subr.mxu0 0.0
        %403 = vmatpush1.msra.mxu0 0.0
        %404 = vmatprep.subr.mxu0 0.0
        %405 = vmatpush1.msra.mxu0 0.0
        %406 = vmatprep.subr.mxu0 0.0
        %407 = vmatpush1.msra.mxu0 0.0
        %408 = vmatprep.subr.mxu0 0.0
        %409 = vmatpush1.msra.mxu0 0.0
        %410 = vmatprep.subr.mxu0 0.0
        %411 = vmatpush1.msra.mxu0 0.0
        %412 = vmatprep.subr.mxu0 0.0
        %413 = vmatpush1.msra.mxu0 0.0
        %414 = vmatprep.subr.mxu0 0.0
        %415 = vmatpush1.msra.mxu0 0.0
        %416 = vmatprep.subr.mxu0 0.0
        %417 = vmatpush1.msra.mxu0 0.0
        %418 = vmatprep.subr.mxu0 0.0
        %419 = vmatpush1.msra.mxu0 0.0
        %420 = vmatprep.subr.mxu0 0.0
        %421 = vmatpush1.msra.mxu0 0.0
        %422 = vmatprep.subr.mxu0 0.0
        %423 = vmatpush1.msra.mxu0 0.0
        %424 = vmatprep.subr.mxu0 0.0
        %425 = vmatpush1.msra.mxu0 0.0
        %426 = vmatprep.subr.mxu0 0.0
        %427 = vmatpush1.msra.mxu0 0.0
        %428 = vmatprep.subr.mxu0 0.0
        %429 = vmatpush1.msra.mxu0 0.0
        %430 = vmatprep.subr.mxu0 0.0
        %431 = vmatpush1.msra.mxu0 0.0
        %432 = vmatprep.subr.mxu0 0.0
        %433 = vmatpush1.msra.mxu0 0.0
        %434 = vmatprep.subr.mxu0 0.0
        %435 = vmatpush1.msra.mxu0 0.0
        %436 = vmatprep.subr.mxu0 0.0
        %437 = vmatpush1.msra.mxu0 0.0
        %438 = vmatprep.mubr.f32.mxu0 0.0
        %439 = vmatmul.mubr.f32.gmra.mrb[0].mxu0 %v279
        %v440 = vpop.f32.mrb[0].mxu0
        %v441 = vadd.f32 0.0, %v440
        %v442 = vpop.f32.mrb[0].mxu0
        %443 = vmatprep.mubr.f32.mxu0 0.0
        %444 = vmatmul.mubr.f32.gmra.mrb[0].mxu0 %v282
        %v445 = vpop.f32.mrb[0].mxu0
        %v446 = vadd.f32 0.0, %v445
        %v447 = vpop.f32.mrb[0].mxu0
        %448 = vmatprep.mubr.f32.mxu0 0.0
        %449 = vmatmul.mubr.f32.gmra.mrb[0].mxu0 %v285
        %v450 = vpop.f32.mrb[0].mxu0
        %v451 = vadd.f32 0.0, %v450
        %v452 = vpop.f32.mrb[0].mxu0
        %453 = vmatprep.mubr.f32.mxu0 0.0
        %454 = vmatmul.mubr.f32.gmra.mrb[0].mxu0 %v288
        %v455 = vpop.f32.mrb[0].mxu0
        %v456 = vadd.f32 0.0, %v455
        %v457 = vpop.f32.mrb[0].mxu0
        %458 = vmatprep.mubr.f32.mxu0 0.0
        %459 = vmatmul.mubr.f32.gmra.mrb[0].mxu0 %v291
        %v460 = vpop.f32.mrb[0].mxu0
        %v461 = vadd.f32 0.0, %v460
        %v462 = vpop.f32.mrb[0].mxu0
        %463 = vmatprep.mubr.f32.mxu0 0.0
        %464 = vmatmul.mubr.f32.gmra.mrb[0].mxu0 %v294
        %v465 = vpop.f32.mrb[0].mxu0
        %v466 = vadd.f32 0.0, %v465
        %v467 = vpop.f32.mrb[0].mxu0
        %468 = vmatprep.mubr.f32.mxu0 0.0
        %469 = vmatmul.mubr.f32.gmra.mrb[0].mxu0 %v297
        %v470 = vpop.f32.mrb[0].mxu0
        %v471 = vadd.f32 0.0, %v470
        %v472 = vpop.f32.mrb[0].mxu0
        %473 = vmatprep.mubr.f32.mxu0 0.0
        %474 = vmatmul.mubr.f32.gmra.mrb[0].mxu0 %v300
        %v475 = vpop.f32.mrb[0].mxu0
        %v476 = vadd.f32 0.0, %v475
        %v477 = vpop.f32.mrb[0].mxu0
        %478 = vmatprep.mubr.f32.mxu0 0.0
        %479 = vmatmul.mubr.f32.gmra.mrb[0].mxu0 %v303
        %v480 = vpop.f32.mrb[0].mxu0
        %v481 = vadd.f32 0.0, %v480
        %v482 = vpop.f32.mrb[0].mxu0
        %483 = vmatprep.mubr.f32.mxu0 0.0
        %484 = vmatmul.mubr.f32.gmra.mrb[0].mxu0 %v306
        %v485 = vpop.f32.mrb[0].mxu0
        %v486 = vadd.f32 0.0, %v485
        %v487 = vpop.f32.mrb[0].mxu0
        %488 = vmatprep.mubr.f32.mxu0 0.0
        %489 = vmatmul.mubr.f32.gmra.mrb[0].mxu0 %v309
        %v490 = vpop.f32.mrb[0].mxu0
        %v491 = vadd.f32 0.0, %v490
        %v492 = vpop.f32.mrb[0].mxu0
        %493 = vmatprep.mubr.f32.mxu0 0.0
        %494 = vmatmul.mubr.f32.gmra.mrb[0].mxu0 %v312
        %v495 = vpop.f32.mrb[0].mxu0
        %v496 = vadd.f32 0.0, %v495
        %v497 = vpop.f32.mrb[0].mxu0
        %498 = vmatprep.mubr.f32.mxu0 0.0
        %499 = vmatmul.mubr.f32.gmra.mrb[0].mxu0 %v315
        %v500 = vpop.f32.mrb[0].mxu0
        %v501 = vadd.f32 0.0, %v500
        %v502 = vpop.f32.mrb[0].mxu0
        %503 = vmatprep.mubr.f32.mxu0 0.0
        %504 = vmatmul.mubr.f32.gmra.mrb[0].mxu0 %v318
        %v505 = vpop.f32.mrb[0].mxu0
        %v506 = vadd.f32 0.0, %v505
        %v507 = vpop.f32.mrb[0].mxu0
        %508 = vmatprep.mubr.f32.mxu0 0.0
        %509 = vmatmul.mubr.f32.gmra.mrb[0].mxu0 %v321
        %v510 = vpop.f32.mrb[0].mxu0
        %v511 = vadd.f32 0.0, %v510
        %v512 = vpop.f32.mrb[0].mxu0
        %513 = vmatprep.mubr.f32.mxu0 0.0
        %514 = vmatmul.mubr.f32.gmra.mrb[0].mxu0 %v324
        %v515 = vpop.f32.mrb[0].mxu0
        %v516 = vadd.f32 0.0, %v515
        %v517 = vpop.f32.mrb[0].mxu0
        %518 = vmatprep.mubr.f32.mxu0 0.0
        %519 = vmatmul.mubr.f32.gmra.mrb[0].mxu0 %v327
        %v520 = vpop.f32.mrb[0].mxu0
        %v521 = vadd.f32 0.0, %v520
        %v522 = vpop.f32.mrb[0].mxu0
        %523 = vmatprep.mubr.f32.mxu0 0.0
        %524 = vmatmul.mubr.f32.gmra.mrb[0].mxu0 %v330
        %v525 = vpop.f32.mrb[0].mxu0
        %v526 = vadd.f32 0.0, %v525
        %v527 = vpop.f32.mrb[0].mxu0
        %528 = vmatprep.mubr.f32.mxu0 0.0
        %529 = vmatmul.mubr.f32.gmra.mrb[0].mxu0 %v333
        %v530 = vpop.f32.mrb[0].mxu0
        %v531 = vadd.f32 0.0, %v530
        %v532 = vpop.f32.mrb[0].mxu0
        %533 = vmatprep.mubr.f32.mxu0 0.0
        %534 = vmatmul.mubr.f32.gmra.mrb[0].mxu0 %v336
        %v535 = vpop.f32.mrb[0].mxu0
        %v536 = vadd.f32 0.0, %v535
        %v537 = vpop.f32.mrb[0].mxu0
        %538 = vmatprep.mubr.f32.mxu0 0.0
        %539 = vmatmul.mubr.f32.gmra.mrb[0].mxu0 %v339
        %v540 = vpop.f32.mrb[0].mxu0
        %v541 = vadd.f32 0.0, %v540
        %v542 = vpop.f32.mrb[0].mxu0
        %543 = vmatprep.mubr.f32.mxu0 0.0
        %544 = vmatmul.mubr.f32.gmra.mrb[0].mxu0 %v342
        %v545 = vpop.f32.mrb[0].mxu0
        %v546 = vadd.f32 0.0, %v545
        %v547 = vpop.f32.mrb[0].mxu0
        %548 = vmatprep.mubr.f32.mxu0 0.0
        %549 = vmatmul.mubr.f32.gmra.mrb[0].mxu0 %v345
        %v550 = vpop.f32.mrb[0].mxu0
        %v551 = vadd.f32 0.0, %v550
        %v552 = vpop.f32.mrb[0].mxu0
        %553 = vmatprep.mubr.f32.mxu0 0.0
        %554 = vmatmul.mubr.f32.gmra.mrb[0].mxu0 %v348
        %v555 = vpop.f32.mrb[0].mxu0
        %v556 = vadd.f32 0.0, %v555
        %v557 = vpop.f32.mrb[0].mxu0
        %558 = vmatprep.mubr.f32.mxu0 0.0
        %559 = vmatmul.mubr.f32.gmra.mrb[0].mxu0 %v351
        %v560 = vpop.f32.mrb[0].mxu0
        %v561 = vadd.f32 0.0, %v560
        %v562 = vpop.f32.mrb[0].mxu0
        %563 = vmatprep.mubr.f32.mxu0 0.0
        %564 = vmatmul.mubr.f32.gmra.mrb[0].mxu0 %v354
        %v565 = vpop.f32.mrb[0].mxu0
        %v566 = vadd.f32 0.0, %v565
        %v567 = vpop.f32.mrb[0].mxu0
        %568 = vmatprep.mubr.f32.mxu0 0.0
        %569 = vmatmul.mubr.f32.gmra.mrb[0].mxu0 %v357
        %v570 = vpop.f32.mrb[0].mxu0
        %v571 = vadd.f32 0.0, %v570
        %v572 = vpop.f32.mrb[0].mxu0
        %573 = vmatprep.mubr.f32.mxu0 0.0
        %574 = vmatmul.mubr.f32.gmra.mrb[0].mxu0 %v360
        %v575 = vpop.f32.mrb[0].mxu0
        %v576 = vadd.f32 0.0, %v575
        %v577 = vpop.f32.mrb[0].mxu0
        %578 = vmatprep.mubr.f32.mxu0 0.0
        %579 = vmatmul.mubr.f32.gmra.mrb[0].mxu0 %v363
        %v580 = vpop.f32.mrb[0].mxu0
        %v581 = vadd.f32 0.0, %v580
        %v582 = vpop.f32.mrb[0].mxu0
        %583 = vmatprep.mubr.f32.mxu0 0.0
        %584 = vmatmul.mubr.f32.gmra.mrb[0].mxu0 %v366
        %v585 = vpop.f32.mrb[0].mxu0
        %v586 = vadd.f32 0.0, %v585
        %v587 = vpop.f32.mrb[0].mxu0
        %588 = vmatprep.mubr.f32.mxu0 0.0
        %589 = vmatmul.mubr.f32.gmra.mrb[0].mxu0 %v369
        %v590 = vpop.f32.mrb[0].mxu0
        %v591 = vadd.f32 0.0, %v590
        %v592 = vpop.f32.mrb[0].mxu0
        %593 = vmatprep.mubr.f32.mxu0 0.0
        %594 = vmatmul.mubr.f32.gmra.mrb[0].mxu0 %v372
        %v595 = vpop.f32.mrb[0].mxu0
        %v596 = vadd.f32 0.0, %v595
        %v597 = vpop.f32.mrb[0].mxu0
        %598 = vdwg.mxu0
        %v599 = vld [vmem:[%s3] sm:$0xff]
        %v600 = vld [vmem:[%s3 + $0x8] sm:$0xff]
        %v601 = vld [vmem:[%s3 + $0x10] sm:$0xff]
        %v602 = vld [vmem:[%s3 + $0x18] sm:$0xff]
        %603 = vxpose.xlu0.b32.start [1/16] %v599, 128
        %604 = vxpose.xlu0.b32.cont [2/16] %v600, 128
        %605 = vxpose.xlu0.b32.cont [3/16] %v601, 128
        %606 = vxpose.xlu0.b32.cont [4/16] %v602, 128
        %607 = vxpose.xlu0.b32.cont [5/16] 0.0, 128
        %608 = vxpose.xlu0.b32.cont [6/16] 0.0, 128
        %609 = vxpose.xlu0.b32.cont [7/16] 0.0, 128
        %610 = vxpose.xlu0.b32.cont [8/16] 0.0, 128
        %611 = vxpose.xlu0.b32.cont [9/16] 0.0, 128
        %612 = vxpose.xlu0.b32.cont [10/16] 0.0, 128
        %613 = vxpose.xlu0.b32.cont [11/16] 0.0, 128
        %614 = vxpose.xlu0.b32.cont [12/16] 0.0, 128
        %615 = vxpose.xlu0.b32.cont [13/16] 0.0, 128
        %616 = vxpose.xlu0.b32.cont [14/16] 0.0, 128
        %617 = vxpose.xlu0.b32.cont [15/16] 0.0, 128
        %618 = vxpose.xlu0.b32.end [16/16] 0.0, 128
        %v619 = vpop.trf.xlu0
        %v620 = vpop.trf.xlu0
        %v621 = vpop.trf.xlu0
        %v622 = vpop.trf.xlu0
        %v623 = vpop.trf.xlu0
        %v624 = vpop.trf.xlu0
        %v625 = vpop.trf.xlu0
        %v626 = vpop.trf.xlu0
        %v627 = vpop.trf.xlu0
        %v628 = vpop.trf.xlu0
        %v629 = vpop.trf.xlu0
        %v630 = vpop.trf.xlu0
        %v631 = vpop.trf.xlu0
        %v632 = vpop.trf.xlu0
        %v633 = vpop.trf.xlu0
        %v634 = vpop.trf.xlu0
        %vm635 = vcmask 261120
        %v637 = vsel %vm635, %v619, 0
        %v640 = vsel %vm635, %v441, 0
        %v643 = vsel %vm635, %v446, 0
        %v646 = vsel %vm635, %v451, 0
        %v649 = vsel %vm635, %v456, 0
        %v652 = vsel %vm635, %v461, 0
        %v655 = vsel %vm635, %v466, 0
        %v658 = vsel %vm635, %v471, 0
        %v661 = vsel %vm635, %v476, 0
        %v664 = vsel %vm635, %v481, 0
        %v667 = vsel %vm635, %v486, 0
        %v670 = vsel %vm635, %v491, 0
        %v673 = vsel %vm635, %v496, 0
        %v676 = vsel %vm635, %v501, 0
        %v679 = vsel %vm635, %v506, 0
        %v682 = vsel %vm635, %v511, 0
        %v685 = vsel %vm635, %v516, 0
        %v688 = vsel %vm635, %v521, 0
        %v691 = vsel %vm635, %v526, 0
        %v694 = vsel %vm635, %v531, 0
        %v697 = vsel %vm635, %v536, 0
        %v700 = vsel %vm635, %v541, 0
        %v703 = vsel %vm635, %v546, 0
        %v706 = vsel %vm635, %v551, 0
        %v709 = vsel %vm635, %v556, 0
        %v712 = vsel %vm635, %v561, 0
        %v715 = vsel %vm635, %v566, 0
        %v718 = vsel %vm635, %v571, 0
        %v721 = vsel %vm635, %v576, 0
        %v724 = vsel %vm635, %v581, 0
        %v727 = vsel %vm635, %v586, 0
        %v730 = vsel %vm635, %v591, 0
        %v733 = vsel %vm635, %v596, 0
        %735 = vmatprep.subr.mxu0 0.0
        %736 = vmatpush1.xpose.msra.mxu0 %v640
        %737 = vmatprep.subr.mxu0 0.0
        %738 = vmatpush1.xpose.msra.mxu0 %v643
        %739 = vmatprep.subr.mxu0 0.0
        %740 = vmatpush1.xpose.msra.mxu0 %v646
        %741 = vmatprep.subr.mxu0 0.0
        %742 = vmatpush1.xpose.msra.mxu0 %v649
        %743 = vmatprep.subr.mxu0 0.0
        %744 = vmatpush1.xpose.msra.mxu0 %v652
        %745 = vmatprep.subr.mxu0 0.0
        %746 = vmatpush1.xpose.msra.mxu0 %v655
        %747 = vmatprep.subr.mxu0 0.0
        %748 = vmatpush1.xpose.msra.mxu0 %v658
        %749 = vmatprep.subr.mxu0 0.0
        %750 = vmatpush1.xpose.msra.mxu0 %v661
        %751 = vmatprep.subr.mxu0 0.0
        %752 = vmatpush1.xpose.msra.mxu0 %v664
        %753 = vmatprep.subr.mxu0 0.0
        %754 = vmatpush1.xpose.msra.mxu0 %v667
        %755 = vmatprep.subr.mxu0 0.0
        %756 = vmatpush1.xpose.msra.mxu0 %v670
        %757 = vmatprep.subr.mxu0 0.0
        %758 = vmatpush1.xpose.msra.mxu0 %v673
        %759 = vmatprep.subr.mxu0 0.0
        %760 = vmatpush1.xpose.msra.mxu0 %v676
        %761 = vmatprep.subr.mxu0 0.0
        %762 = vmatpush1.xpose.msra.mxu0 %v679
        %763 = vmatprep.subr.mxu0 0.0
        %764 = vmatpush1.xpose.msra.mxu0 %v682
        %765 = vmatprep.subr.mxu0 0.0
        %766 = vmatpush1.xpose.msra.mxu0 %v685
        %767 = vmatprep.subr.mxu0 0.0
        %768 = vmatpush1.xpose.msra.mxu0 %v688
        %769 = vmatprep.subr.mxu0 0.0
        %770 = vmatpush1.xpose.msra.mxu0 %v691
        %771 = vmatprep.subr.mxu0 0.0
        %772 = vmatpush1.xpose.msra.mxu0 %v694
        %773 = vmatprep.subr.mxu0 0.0
        %774 = vmatpush1.xpose.msra.mxu0 %v697
        %775 = vmatprep.subr.mxu0 0.0
        %776 = vmatpush1.xpose.msra.mxu0 %v700
        %777 = vmatprep.subr.mxu0 0.0
        %778 = vmatpush1.xpose.msra.mxu0 %v703
        %779 = vmatprep.subr.mxu0 0.0
        %780 = vmatpush1.xpose.msra.mxu0 %v706
        %781 = vmatprep.subr.mxu0 0.0
        %782 = vmatpush1.xpose.msra.mxu0 %v709
        %783 = vmatprep.subr.mxu0 0.0
        %784 = vmatpush1.xpose.msra.mxu0 %v712
        %785 = vmatprep.subr.mxu0 0.0
        %786 = vmatpush1.xpose.msra.mxu0 %v715
        %787 = vmatprep.subr.mxu0 0.0
        %788 = vmatpush1.xpose.msra.mxu0 %v718
        %789 = vmatprep.subr.mxu0 0.0
        %790 = vmatpush1.xpose.msra.mxu0 %v721
        %791 = vmatprep.subr.mxu0 0.0
        %792 = vmatpush1.xpose.msra.mxu0 %v724
        %793 = vmatprep.subr.mxu0 0.0
        %794 = vmatpush1.xpose.msra.mxu0 %v727
        %795 = vmatprep.subr.mxu0 0.0
        %796 = vmatpush1.xpose.msra.mxu0 %v730
        %797 = vmatprep.subr.mxu0 0.0
        %798 = vmatpush1.xpose.msra.mxu0 %v733
        %799 = vmatprep.mubr.f32.mxu0 0.0
        %800 = vmatmul.mubr.f32.gmra.mrb[0].mxu0 %v637
        %v801 = vpop.f32.mrb[0].mxu0
        %v802 = vadd.f32 0.0, %v801
        %v803 = vpop.f32.mrb[0].mxu0
        %v804 = vadd.f32 0.0, %v803
        %805 = vdwg.mxu0
        %v808 = vcombine.low %v802, %v804
        %v810 = vunpack.c.l.s4 1983009808
        %v811 = vunpack.c.0.s8 %v810
        %v812 = vlaneseq
        %v813 = vshrl.u32 %v812, 7
        %v814 = vsub.s32 %v811, %v813
        %v815 = vrot.slane %v808, %v814
        %817 = vst [vmem:[#allocation3] sm:$0xf] %v815
        %822 = vrot.lane.b32.xlu0 %v599, 126
        %v823 = vpop.permute.xlu0 %822
        %824 = vrot.lane.b32.xlu0 %v600, 126
        %v825 = vpop.permute.xlu0 %824
        %826 = vrot.lane.b32.xlu0 %v601, 126
        %v827 = vpop.permute.xlu0 %826
        %828 = vrot.lane.b32.xlu0 %v602, 126
        %v829 = vpop.permute.xlu0 %828
        %834 = vmatprep.subr.mxu0 0.0
        %835 = vmatpush1.msra.mxu0 %v823
        %836 = vmatprep.subr.mxu0 0.0
        %837 = vmatpush1.msra.mxu0 %v825
        %838 = vmatprep.subr.mxu0 0.0
        %839 = vmatpush1.msra.mxu0 %v827
        %840 = vmatprep.subr.mxu0 0.0
        %841 = vmatpush1.msra.mxu0 %v829
        %842 = vmatprep.subr.mxu0 0.0
        %843 = vmatpush1.msra.mxu0 0.0
        %844 = vmatprep.subr.mxu0 0.0
        %845 = vmatpush1.msra.mxu0 0.0
        %846 = vmatprep.subr.mxu0 0.0
        %847 = vmatpush1.msra.mxu0 0.0
        %848 = vmatprep.subr.mxu0 0.0
        %849 = vmatpush1.msra.mxu0 0.0
        %850 = vmatprep.subr.mxu0 0.0
        %851 = vmatpush1.msra.mxu0 0.0
        %852 = vmatprep.subr.mxu0 0.0
        %853 = vmatpush1.msra.mxu0 0.0
        %854 = vmatprep.subr.mxu0 0.0
        %855 = vmatpush1.msra.mxu0 0.0
        %856 = vmatprep.subr.mxu0 0.0
        %857 = vmatpush1.msra.mxu0 0.0
        %858 = vmatprep.subr.mxu0 0.0
        %859 = vmatpush1.msra.mxu0 0.0
        %860 = vmatprep.subr.mxu0 0.0
        %861 = vmatpush1.msra.mxu0 0.0
        %862 = vmatprep.subr.mxu0 0.0
        %863 = vmatpush1.msra.mxu0 0.0
        %864 = vmatprep.subr.mxu0 0.0
        %865 = vmatpush1.msra.mxu0 0.0
        %866 = vmatprep.subr.mxu0 0.0
        %867 = vmatpush1.msra.mxu0 0.0
        %868 = vmatprep.subr.mxu0 0.0
        %869 = vmatpush1.msra.mxu0 0.0
        %870 = vmatprep.subr.mxu0 0.0
        %871 = vmatpush1.msra.mxu0 0.0
        %872 = vmatprep.subr.mxu0 0.0
        %873 = vmatpush1.msra.mxu0 0.0
        %874 = vmatprep.subr.mxu0 0.0
        %875 = vmatpush1.msra.mxu0 0.0
        %876 = vmatprep.subr.mxu0 0.0
        %877 = vmatpush1.msra.mxu0 0.0
        %878 = vmatprep.subr.mxu0 0.0
        %879 = vmatpush1.msra.mxu0 0.0
        %880 = vmatprep.subr.mxu0 0.0
        %881 = vmatpush1.msra.mxu0 0.0
        %882 = vmatprep.subr.mxu0 0.0
        %883 = vmatpush1.msra.mxu0 0.0
        %884 = vmatprep.subr.mxu0 0.0
        %885 = vmatpush1.msra.mxu0 0.0
        %886 = vmatprep.subr.mxu0 0.0
        %887 = vmatpush1.msra.mxu0 0.0
        %888 = vmatprep.subr.mxu0 0.0
        %889 = vmatpush1.msra.mxu0 0.0
        %890 = vmatprep.subr.mxu0 0.0
        %891 = vmatpush1.msra.mxu0 0.0
        %892 = vmatprep.subr.mxu0 0.0
        %893 = vmatpush1.msra.mxu0 0.0
        %894 = vmatprep.subr.mxu0 0.0
        %895 = vmatpush1.msra.mxu0 0.0
        %896 = vmatprep.subr.mxu0 0.0
        %897 = vmatpush1.msra.mxu0 0.0
        %898 = vmatprep.mubr.f32.mxu0 0.0
        %899 = vmatmul.mubr.f32.gmra.mrb[0].mxu0 %v640
        %v900 = vpop.f32.mrb[0].mxu0
        %v901 = vadd.f32 0.0, %v900
        %v902 = vpop.f32.mrb[0].mxu0
        %903 = vmatprep.mubr.f32.mxu0 0.0
        %904 = vmatmul.mubr.f32.gmra.mrb[0].mxu0 %v643
        %v905 = vpop.f32.mrb[0].mxu0
        %v906 = vadd.f32 0.0, %v905
        %v907 = vpop.f32.mrb[0].mxu0
        %908 = vmatprep.mubr.f32.mxu0 0.0
        %909 = vmatmul.mubr.f32.gmra.mrb[0].mxu0 %v646
        %v910 = vpop.f32.mrb[0].mxu0
        %v911 = vadd.f32 0.0, %v910
        %v912 = vpop.f32.mrb[0].mxu0
        %913 = vmatprep.mubr.f32.mxu0 0.0
        %914 = vmatmul.mubr.f32.gmra.mrb[0].mxu0 %v649
        %v915 = vpop.f32.mrb[0].mxu0
        %v916 = vadd.f32 0.0, %v915
        %v917 = vpop.f32.mrb[0].mxu0
        %918 = vmatprep.mubr.f32.mxu0 0.0
        %919 = vmatmul.mubr.f32.gmra.mrb[0].mxu0 %v652
        %v920 = vpop.f32.mrb[0].mxu0
        %v921 = vadd.f32 0.0, %v920
        %v922 = vpop.f32.mrb[0].mxu0
        %923 = vmatprep.mubr.f32.mxu0 0.0
        %924 = vmatmul.mubr.f32.gmra.mrb[0].mxu0 %v655
        %v925 = vpop.f32.mrb[0].mxu0
        %v926 = vadd.f32 0.0, %v925
        %v927 = vpop.f32.mrb[0].mxu0
        %928 = vmatprep.mubr.f32.mxu0 0.0
        %929 = vmatmul.mubr.f32.gmra.mrb[0].mxu0 %v658
        %v930 = vpop.f32.mrb[0].mxu0
        %v931 = vadd.f32 0.0, %v930
        %v932 = vpop.f32.mrb[0].mxu0
        %933 = vmatprep.mubr.f32.mxu0 0.0
        %934 = vmatmul.mubr.f32.gmra.mrb[0].mxu0 %v661
        %v935 = vpop.f32.mrb[0].mxu0
        %v936 = vadd.f32 0.0, %v935
        %v937 = vpop.f32.mrb[0].mxu0
        %938 = vmatprep.mubr.f32.mxu0 0.0
        %939 = vmatmul.mubr.f32.gmra.mrb[0].mxu0 %v664
        %v940 = vpop.f32.mrb[0].mxu0
        %v941 = vadd.f32 0.0, %v940
        %v942 = vpop.f32.mrb[0].mxu0
        %943 = vmatprep.mubr.f32.mxu0 0.0
        %944 = vmatmul.mubr.f32.gmra.mrb[0].mxu0 %v667
        %v945 = vpop.f32.mrb[0].mxu0
        %v946 = vadd.f32 0.0, %v945
        %v947 = vpop.f32.mrb[0].mxu0
        %948 = vmatprep.mubr.f32.mxu0 0.0
        %949 = vmatmul.mubr.f32.gmra.mrb[0].mxu0 %v670
        %v950 = vpop.f32.mrb[0].mxu0
        %v951 = vadd.f32 0.0, %v950
        %v952 = vpop.f32.mrb[0].mxu0
        %953 = vmatprep.mubr.f32.mxu0 0.0
        %954 = vmatmul.mubr.f32.gmra.mrb[0].mxu0 %v673
        %v955 = vpop.f32.mrb[0].mxu0
        %v956 = vadd.f32 0.0, %v955
        %v957 = vpop.f32.mrb[0].mxu0
        %958 = vmatprep.mubr.f32.mxu0 0.0
        %959 = vmatmul.mubr.f32.gmra.mrb[0].mxu0 %v676
        %v960 = vpop.f32.mrb[0].mxu0
        %v961 = vadd.f32 0.0, %v960
        %v962 = vpop.f32.mrb[0].mxu0
        %963 = vmatprep.mubr.f32.mxu0 0.0
        %964 = vmatmul.mubr.f32.gmra.mrb[0].mxu0 %v679
        %v965 = vpop.f32.mrb[0].mxu0
        %v966 = vadd.f32 0.0, %v965
        %v967 = vpop.f32.mrb[0].mxu0
        %968 = vmatprep.mubr.f32.mxu0 0.0
        %969 = vmatmul.mubr.f32.gmra.mrb[0].mxu0 %v682
        %v970 = vpop.f32.mrb[0].mxu0
        %v971 = vadd.f32 0.0, %v970
        %v972 = vpop.f32.mrb[0].mxu0
        %973 = vmatprep.mubr.f32.mxu0 0.0
        %974 = vmatmul.mubr.f32.gmra.mrb[0].mxu0 %v685
        %v975 = vpop.f32.mrb[0].mxu0
        %v976 = vadd.f32 0.0, %v975
        %v977 = vpop.f32.mrb[0].mxu0
        %978 = vmatprep.mubr.f32.mxu0 0.0
        %979 = vmatmul.mubr.f32.gmra.mrb[0].mxu0 %v688
        %v980 = vpop.f32.mrb[0].mxu0
        %v981 = vadd.f32 0.0, %v980
        %v982 = vpop.f32.mrb[0].mxu0
        %983 = vmatprep.mubr.f32.mxu0 0.0
        %984 = vmatmul.mubr.f32.gmra.mrb[0].mxu0 %v691
        %v985 = vpop.f32.mrb[0].mxu0
        %v986 = vadd.f32 0.0, %v985
        %v987 = vpop.f32.mrb[0].mxu0
        %988 = vmatprep.mubr.f32.mxu0 0.0
        %989 = vmatmul.mubr.f32.gmra.mrb[0].mxu0 %v694
        %v990 = vpop.f32.mrb[0].mxu0
        %v991 = vadd.f32 0.0, %v990
        %v992 = vpop.f32.mrb[0].mxu0
        %993 = vmatprep.mubr.f32.mxu0 0.0
        %994 = vmatmul.mubr.f32.gmra.mrb[0].mxu0 %v697
        %v995 = vpop.f32.mrb[0].mxu0
        %v996 = vadd.f32 0.0, %v995
        %v997 = vpop.f32.mrb[0].mxu0
        %998 = vmatprep.mubr.f32.mxu0 0.0
        %999 = vmatmul.mubr.f32.gmra.mrb[0].mxu0 %v700
        %v1000 = vpop.f32.mrb[0].mxu0
        %v1001 = vadd.f32 0.0, %v1000
        %v1002 = vpop.f32.mrb[0].mxu0
        %1003 = vmatprep.mubr.f32.mxu0 0.0
        %1004 = vmatmul.mubr.f32.gmra.mrb[0].mxu0 %v703
        %v1005 = vpop.f32.mrb[0].mxu0
        %v1006 = vadd.f32 0.0, %v1005
        %v1007 = vpop.f32.mrb[0].mxu0
        %1008 = vmatprep.mubr.f32.mxu0 0.0
        %1009 = vmatmul.mubr.f32.gmra.mrb[0].mxu0 %v706
        %v1010 = vpop.f32.mrb[0].mxu0
        %v1011 = vadd.f32 0.0, %v1010
        %v1012 = vpop.f32.mrb[0].mxu0
        %1013 = vmatprep.mubr.f32.mxu0 0.0
        %1014 = vmatmul.mubr.f32.gmra.mrb[0].mxu0 %v709
        %v1015 = vpop.f32.mrb[0].mxu0
        %v1016 = vadd.f32 0.0, %v1015
        %v1017 = vpop.f32.mrb[0].mxu0
        %1018 = vmatprep.mubr.f32.mxu0 0.0
        %1019 = vmatmul.mubr.f32.gmra.mrb[0].mxu0 %v712
        %v1020 = vpop.f32.mrb[0].mxu0
        %v1021 = vadd.f32 0.0, %v1020
        %v1022 = vpop.f32.mrb[0].mxu0
        %1023 = vmatprep.mubr.f32.mxu0 0.0
        %1024 = vmatmul.mubr.f32.gmra.mrb[0].mxu0 %v715
        %v1025 = vpop.f32.mrb[0].mxu0
        %v1026 = vadd.f32 0.0, %v1025
        %v1027 = vpop.f32.mrb[0].mxu0
        %1028 = vmatprep.mubr.f32.mxu0 0.0
        %1029 = vmatmul.mubr.f32.gmra.mrb[0].mxu0 %v718
        %v1030 = vpop.f32.mrb[0].mxu0
        %v1031 = vadd.f32 0.0, %v1030
        %v1032 = vpop.f32.mrb[0].mxu0
        %1033 = vmatprep.mubr.f32.mxu0 0.0
        %1034 = vmatmul.mubr.f32.gmra.mrb[0].mxu0 %v721
        %v1035 = vpop.f32.mrb[0].mxu0
        %v1036 = vadd.f32 0.0, %v1035
        %v1037 = vpop.f32.mrb[0].mxu0
        %1038 = vmatprep.mubr.f32.mxu0 0.0
        %1039 = vmatmul.mubr.f32.gmra.mrb[0].mxu0 %v724
        %v1040 = vpop.f32.mrb[0].mxu0
        %v1041 = vadd.f32 0.0, %v1040
        %v1042 = vpop.f32.mrb[0].mxu0
        %1043 = vmatprep.mubr.f32.mxu0 0.0
        %1044 = vmatmul.mubr.f32.gmra.mrb[0].mxu0 %v727
        %v1045 = vpop.f32.mrb[0].mxu0
        %v1046 = vadd.f32 0.0, %v1045
        %v1047 = vpop.f32.mrb[0].mxu0
        %1048 = vmatprep.mubr.f32.mxu0 0.0
        %1049 = vmatmul.mubr.f32.gmra.mrb[0].mxu0 %v730
        %v1050 = vpop.f32.mrb[0].mxu0
        %v1051 = vadd.f32 0.0, %v1050
        %v1052 = vpop.f32.mrb[0].mxu0
        %1053 = vmatprep.mubr.f32.mxu0 0.0
        %1054 = vmatmul.mubr.f32.gmra.mrb[0].mxu0 %v733
        %v1055 = vpop.f32.mrb[0].mxu0
        %v1056 = vadd.f32 0.0, %v1055
        %v1057 = vpop.f32.mrb[0].mxu0
        %1058 = vdwg.mxu0
        %vm1059 = vcmask 15360
        %1060 = vst.msk [vmem:[#allocation4] sm:$0xff] %vm1059, %v901
        %1061 = vst.msk [vmem:[#allocation4 + $0x8] sm:$0xff] %vm1059, %v906
        %1062 = vst.msk [vmem:[#allocation4 + $0x10] sm:$0xff] %vm1059, %v911
        %1063 = vst.msk [vmem:[#allocation4 + $0x18] sm:$0xff] %vm1059, %v916
        %1064 = vst.msk [vmem:[#allocation4 + $0x20] sm:$0xff] %vm1059, %v921
        %1065 = vst.msk [vmem:[#allocation4 + $0x28] sm:$0xff] %vm1059, %v926
        %1066 = vst.msk [vmem:[#allocation4 + $0x30] sm:$0xff] %vm1059, %v931
        %1067 = vst.msk [vmem:[#allocation4 + $0x38] sm:$0xff] %vm1059, %v936
        %1068 = vst.msk [vmem:[#allocation4 + $0x40] sm:$0xff] %vm1059, %v941
        %1069 = vst.msk [vmem:[#allocation4 + $0x48] sm:$0xff] %vm1059, %v946
        %1070 = vst.msk [vmem:[#allocation4 + $0x50] sm:$0xff] %vm1059, %v951
        %1071 = vst.msk [vmem:[#allocation4 + $0x58] sm:$0xff] %vm1059, %v956
        %1072 = vst.msk [vmem:[#allocation4 + $0x60] sm:$0xff] %vm1059, %v961
        %1073 = vst.msk [vmem:[#allocation4 + $0x68] sm:$0xff] %vm1059, %v966
        %1074 = vst.msk [vmem:[#allocation4 + $0x70] sm:$0xff] %vm1059, %v971
        %1075 = vst.msk [vmem:[#allocation4 + $0x78] sm:$0xff] %vm1059, %v976
        %1076 = vst.msk [vmem:[#allocation4 + $0x80] sm:$0xff] %vm1059, %v981
        %1077 = vst.msk [vmem:[#allocation4 + $0x88] sm:$0xff] %vm1059, %v986
        %1078 = vst.msk [vmem:[#allocation4 + $0x90] sm:$0xff] %vm1059, %v991
        %1079 = vst.msk [vmem:[#allocation4 + $0x98] sm:$0xff] %vm1059, %v996
        %1080 = vst.msk [vmem:[#allocation4 + $0xa0] sm:$0xff] %vm1059, %v1001
        %1081 = vst.msk [vmem:[#allocation4 + $0xa8] sm:$0xff] %vm1059, %v1006
        %1082 = vst.msk [vmem:[#allocation4 + $0xb0] sm:$0xff] %vm1059, %v1011
        %1083 = vst.msk [vmem:[#allocation4 + $0xb8] sm:$0xff] %vm1059, %v1016
        %1084 = vst.msk [vmem:[#allocation4 + $0xc0] sm:$0xff] %vm1059, %v1021
        %1085 = vst.msk [vmem:[#allocation4 + $0xc8] sm:$0xff] %vm1059, %v1026
        %1086 = vst.msk [vmem:[#allocation4 + $0xd0] sm:$0xff] %vm1059, %v1031
        %1087 = vst.msk [vmem:[#allocation4 + $0xd8] sm:$0xff] %vm1059, %v1036
        %1088 = vst.msk [vmem:[#allocation4 + $0xe0] sm:$0xff] %vm1059, %v1041
        %1089 = vst.msk [vmem:[#allocation4 + $0xe8] sm:$0xff] %vm1059, %v1046
        %1090 = vst.msk [vmem:[#allocation4 + $0xf0] sm:$0xff] %vm1059, %v1051
        %1091 = vst.msk [vmem:[#allocation4 + $0xf8] sm:$0xff] %vm1059, %v1056
        %1092 = vrot.lane.b32.xlu0 %v441, 1
        %v1093 = vpop.permute.xlu0 %1092
        %1094 = vrot.lane.b32.xlu0 %v446, 1
        %v1095 = vpop.permute.xlu0 %1094
        %1096 = vrot.lane.b32.xlu0 %v451, 1
        %v1097 = vpop.permute.xlu0 %1096
        %1098 = vrot.lane.b32.xlu0 %v456, 1
        %v1099 = vpop.permute.xlu0 %1098
        %1100 = vrot.lane.b32.xlu0 %v461, 1
        %v1101 = vpop.permute.xlu0 %1100
        %1102 = vrot.lane.b32.xlu0 %v466, 1
        %v1103 = vpop.permute.xlu0 %1102
        %1104 = vrot.lane.b32.xlu0 %v471, 1
        %v1105 = vpop.permute.xlu0 %1104
        %1106 = vrot.lane.b32.xlu0 %v476, 1
        %v1107 = vpop.permute.xlu0 %1106
        %1108 = vrot.lane.b32.xlu0 %v481, 1
        %v1109 = vpop.permute.xlu0 %1108
        %1110 = vrot.lane.b32.xlu0 %v486, 1
        %v1111 = vpop.permute.xlu0 %1110
        %1112 = vrot.lane.b32.xlu0 %v491, 1
        %v1113 = vpop.permute.xlu0 %1112
        %1114 = vrot.lane.b32.xlu0 %v496, 1
        %v1115 = vpop.permute.xlu0 %1114
        %1116 = vrot.lane.b32.xlu0 %v501, 1
        %v1117 = vpop.permute.xlu0 %1116
        %1118 = vrot.lane.b32.xlu0 %v506, 1
        %v1119 = vpop.permute.xlu0 %1118
        %1120 = vrot.lane.b32.xlu0 %v511, 1
        %v1121 = vpop.permute.xlu0 %1120
        %1122 = vrot.lane.b32.xlu0 %v516, 1
        %v1123 = vpop.permute.xlu0 %1122
        %1124 = vrot.lane.b32.xlu0 %v521, 1
        %v1125 = vpop.permute.xlu0 %1124
        %1126 = vrot.lane.b32.xlu0 %v526, 1
        %v1127 = vpop.permute.xlu0 %1126
        %1128 = vrot.lane.b32.xlu0 %v531, 1
        %v1129 = vpop.permute.xlu0 %1128
        %1130 = vrot.lane.b32.xlu0 %v536, 1
        %v1131 = vpop.permute.xlu0 %1130
        %1132 = vrot.lane.b32.xlu0 %v541, 1
        %v1133 = vpop.permute.xlu0 %1132
        %1134 = vrot.lane.b32.xlu0 %v546, 1
        %v1135 = vpop.permute.xlu0 %1134
        %1136 = vrot.lane.b32.xlu0 %v551, 1
        %v1137 = vpop.permute.xlu0 %1136
        %1138 = vrot.lane.b32.xlu0 %v556, 1
        %v1139 = vpop.permute.xlu0 %1138
        %1140 = vrot.lane.b32.xlu0 %v561, 1
        %v1141 = vpop.permute.xlu0 %1140
        %1142 = vrot.lane.b32.xlu0 %v566, 1
        %v1143 = vpop.permute.xlu0 %1142
        %1144 = vrot.lane.b32.xlu0 %v571, 1
        %v1145 = vpop.permute.xlu0 %1144
        %1146 = vrot.lane.b32.xlu0 %v576, 1
        %v1147 = vpop.permute.xlu0 %1146
        %1148 = vrot.lane.b32.xlu0 %v581, 1
        %v1149 = vpop.permute.xlu0 %1148
        %1150 = vrot.lane.b32.xlu0 %v586, 1
        %v1151 = vpop.permute.xlu0 %1150
        %1152 = vrot.lane.b32.xlu0 %v591, 1
        %v1153 = vpop.permute.xlu0 %1152
        %1154 = vrot.lane.b32.xlu0 %v596, 1
        %v1155 = vpop.permute.xlu0 %1154
        %vm1188 = vcmask 130048
        %v1189 = vsel %vm1188, %v441, 1.0
        %v1190 = vsel %vm1188, %v446, 1.0
        %v1191 = vsel %vm1188, %v451, 1.0
        %v1192 = vsel %vm1188, %v456, 1.0
        %v1193 = vsel %vm1188, %v461, 1.0
        %v1194 = vsel %vm1188, %v466, 1.0
        %v1195 = vsel %vm1188, %v471, 1.0
        %v1196 = vsel %vm1188, %v476, 1.0
        %v1197 = vsel %vm1188, %v481, 1.0
        %v1198 = vsel %vm1188, %v486, 1.0
        %v1199 = vsel %vm1188, %v491, 1.0
        %v1200 = vsel %vm1188, %v496, 1.0
        %v1201 = vsel %vm1188, %v501, 1.0
        %v1202 = vsel %vm1188, %v506, 1.0
        %v1203 = vsel %vm1188, %v511, 1.0
        %v1204 = vsel %vm1188, %v516, 1.0
        %v1205 = vsel %vm1188, %v521, 1.0
        %v1206 = vsel %vm1188, %v526, 1.0
        %v1207 = vsel %vm1188, %v531, 1.0
        %v1208 = vsel %vm1188, %v536, 1.0
        %v1209 = vsel %vm1188, %v541, 1.0
        %v1210 = vsel %vm1188, %v546, 1.0
        %v1211 = vsel %vm1188, %v551, 1.0
        %v1212 = vsel %vm1188, %v556, 1.0
        %v1213 = vsel %vm1188, %v561, 1.0
        %v1214 = vsel %vm1188, %v566, 1.0
        %v1215 = vsel %vm1188, %v571, 1.0
        %v1216 = vsel %vm1188, %v576, 1.0
        %v1217 = vsel %vm1188, %v581, 1.0
        %v1218 = vsel %vm1188, %v586, 1.0
        %v1219 = vsel %vm1188, %v591, 1.0
        %v1220 = vsel %vm1188, %v596, 1.0
        %vm1221 = vcmask 138240
        %v1222 = vsel %vm1221, %v1189, %v1093
        %v1223 = vsel %vm1221, %v1190, %v1095
        %v1224 = vsel %vm1221, %v1191, %v1097
        %v1225 = vsel %vm1221, %v1192, %v1099
        %v1226 = vsel %vm1221, %v1193, %v1101
        %v1227 = vsel %vm1221, %v1194, %v1103
        %v1228 = vsel %vm1221, %v1195, %v1105
        %v1229 = vsel %vm1221, %v1196, %v1107
        %v1230 = vsel %vm1221, %v1197, %v1109
        %v1231 = vsel %vm1221, %v1198, %v1111
        %v1232 = vsel %vm1221, %v1199, %v1113
        %v1233 = vsel %vm1221, %v1200, %v1115
        %v1234 = vsel %vm1221, %v1201, %v1117
        %v1235 = vsel %vm1221, %v1202, %v1119
        %v1236 = vsel %vm1221, %v1203, %v1121
        %v1237 = vsel %vm1221, %v1204, %v1123
        %v1238 = vsel %vm1221, %v1205, %v1125
        %v1239 = vsel %vm1221, %v1206, %v1127
        %v1240 = vsel %vm1221, %v1207, %v1129
        %v1241 = vsel %vm1221, %v1208, %v1131
        %v1242 = vsel %vm1221, %v1209, %v1133
        %v1243 = vsel %vm1221, %v1210, %v1135
        %v1244 = vsel %vm1221, %v1211, %v1137
        %v1245 = vsel %vm1221, %v1212, %v1139
        %v1246 = vsel %vm1221, %v1213, %v1141
        %v1247 = vsel %vm1221, %v1214, %v1143
        %v1248 = vsel %vm1221, %v1215, %v1145
        %v1249 = vsel %vm1221, %v1216, %v1147
        %v1250 = vsel %vm1221, %v1217, %v1149
        %v1251 = vsel %vm1221, %v1218, %v1151
        %v1252 = vsel %vm1221, %v1219, %v1153
        %v1253 = vsel %vm1221, %v1220, %v1155
        %vm1254 = vcmask 269312
        %v1255 = vsel %vm1254, %v1222, 1.0
        %v1256 = vsel %vm1254, %v1223, 1.0
        %v1257 = vsel %vm1254, %v1224, 1.0
        %v1258 = vsel %vm1254, %v1225, 1.0
        %v1259 = vsel %vm1254, %v1226, 1.0
        %v1260 = vsel %vm1254, %v1227, 1.0
        %v1261 = vsel %vm1254, %v1228, 1.0
        %v1262 = vsel %vm1254, %v1229, 1.0
        %v1263 = vsel %vm1254, %v1230, 1.0
        %v1264 = vsel %vm1254, %v1231, 1.0
        %v1265 = vsel %vm1254, %v1232, 1.0
        %v1266 = vsel %vm1254, %v1233, 1.0
        %v1267 = vsel %vm1254, %v1234, 1.0
        %v1268 = vsel %vm1254, %v1235, 1.0
        %v1269 = vsel %vm1254, %v1236, 1.0
        %v1270 = vsel %vm1254, %v1237, 1.0
        %v1271 = vsel %vm1254, %v1238, 1.0
        %v1272 = vsel %vm1254, %v1239, 1.0
        %v1273 = vsel %vm1254, %v1240, 1.0
        %v1274 = vsel %vm1254, %v1241, 1.0
        %v1275 = vsel %vm1254, %v1242, 1.0
        %v1276 = vsel %vm1254, %v1243, 1.0
        %v1277 = vsel %vm1254, %v1244, 1.0
        %v1278 = vsel %vm1254, %v1245, 1.0
        %v1279 = vsel %vm1254, %v1246, 1.0
        %v1280 = vsel %vm1254, %v1247, 1.0
        %v1281 = vsel %vm1254, %v1248, 1.0
        %v1282 = vsel %vm1254, %v1249, 1.0
        %v1283 = vsel %vm1254, %v1250, 1.0
        %v1284 = vsel %vm1254, %v1251, 1.0
        %v1285 = vsel %vm1254, %v1252, 1.0
        %v1286 = vsel %vm1254, %v1253, 1.0
        %v1287 = vpack.c.bf16 %v1256, %v1255
        %v1288 = vpack.c.bf16 %v1258, %v1257
        %v1289 = vpack.c.bf16 %v1260, %v1259
        %v1290 = vpack.c.bf16 %v1262, %v1261
        %v1291 = vpack.c.bf16 %v1264, %v1263
        %v1292 = vpack.c.bf16 %v1266, %v1265
        %v1293 = vpack.c.bf16 %v1268, %v1267
        %v1294 = vpack.c.bf16 %v1270, %v1269
        %v1295 = vpack.c.bf16 %v1272, %v1271
        %v1296 = vpack.c.bf16 %v1274, %v1273
        %v1297 = vpack.c.bf16 %v1276, %v1275
        %v1298 = vpack.c.bf16 %v1278, %v1277
        %v1299 = vpack.c.bf16 %v1280, %v1279
        %v1300 = vpack.c.bf16 %v1282, %v1281
        %v1301 = vpack.c.bf16 %v1284, %v1283
        %v1302 = vpack.c.bf16 %v1286, %v1285
        %vm1303 = vcmask 277504
        %1304 = vst.msk [vmem:[#allocation2] sm:$0xff] %vm1303, %v1287
        %1305 = vst.msk [vmem:[#allocation2 + $0x8] sm:$0xff] %vm1303, %v1288
        %1306 = vst.msk [vmem:[#allocation2 + $0x10] sm:$0xff] %vm1303, %v1289
        %1307 = vst.msk [vmem:[#allocation2 + $0x18] sm:$0xff] %vm1303, %v1290
        %1308 = vst.msk [vmem:[#allocation2 + $0x20] sm:$0xff] %vm1303, %v1291
        %1309 = vst.msk [vmem:[#allocation2 + $0x28] sm:$0xff] %vm1303, %v1292
        %1310 = vst.msk [vmem:[#allocation2 + $0x30] sm:$0xff] %vm1303, %v1293
        %1311 = vst.msk [vmem:[#allocation2 + $0x38] sm:$0xff] %vm1303, %v1294
        %1312 = vst.msk [vmem:[#allocation2 + $0x40] sm:$0xff] %vm1303, %v1295
        %1313 = vst.msk [vmem:[#allocation2 + $0x48] sm:$0xff] %vm1303, %v1296
        %1314 = vst.msk [vmem:[#allocation2 + $0x50] sm:$0xff] %vm1303, %v1297
        %1315 = vst.msk [vmem:[#allocation2 + $0x58] sm:$0xff] %vm1303, %v1298
        %1316 = vst.msk [vmem:[#allocation2 + $0x60] sm:$0xff] %vm1303, %v1299
        %1317 = vst.msk [vmem:[#allocation2 + $0x68] sm:$0xff] %vm1303, %v1300
        %1318 = vst.msk [vmem:[#allocation2 + $0x70] sm:$0xff] %vm1303, %v1301
        %1319 = vst.msk [vmem:[#allocation2 + $0x78] sm:$0xff] %vm1303, %v1302
      $region44: #{conad_forward.4} parent=39 // pred_fallthru
        _
      %v1320 = vld [vmem:[%s223] sm:$0xff]
      %v1321 = vld [vmem:[%s223 + $0x8] sm:$0xff]
      %v1322 = vld [vmem:[%s223 + $0x10] sm:$0xff]
      %v1323 = vld [vmem:[%s223 + $0x18] sm:$0xff]
      %v1324 = vld [vmem:[%s223 + $0x20] sm:$0xff]
      %v1325 = vld [vmem:[%s223 + $0x28] sm:$0xff]
      %v1326 = vld [vmem:[%s223 + $0x30] sm:$0xff]
      %v1327 = vld [vmem:[%s223 + $0x38] sm:$0xff]
      %v1328 = vld [vmem:[%s223 + $0x40] sm:$0xff]
      %v1329 = vld [vmem:[%s223 + $0x48] sm:$0xff]
      %v1330 = vld [vmem:[%s223 + $0x50] sm:$0xff]
      %v1331 = vld [vmem:[%s223 + $0x58] sm:$0xff]
      %v1332 = vld [vmem:[%s223 + $0x60] sm:$0xff]
      %v1333 = vld [vmem:[%s223 + $0x68] sm:$0xff]
      %v1334 = vld [vmem:[%s223 + $0x70] sm:$0xff]
      %v1335 = vld [vmem:[%s223 + $0x78] sm:$0xff]
      %v1336 = vld [vmem:[%s223 + $0x80] sm:$0xff]
      %v1337 = vld [vmem:[%s223 + $0x88] sm:$0xff]
      %v1338 = vld [vmem:[%s223 + $0x90] sm:$0xff]
      %v1339 = vld [vmem:[%s223 + $0x98] sm:$0xff]
      %v1340 = vld [vmem:[%s223 + $0xa0] sm:$0xff]
      %v1341 = vld [vmem:[%s223 + $0xa8] sm:$0xff]
      %v1342 = vld [vmem:[%s223 + $0xb0] sm:$0xff]
      %v1343 = vld [vmem:[%s223 + $0xb8] sm:$0xff]
      %v1344 = vld [vmem:[%s223 + $0xc0] sm:$0xff]
      %v1345 = vld [vmem:[%s223 + $0xc8] sm:$0xff]
      %v1346 = vld [vmem:[%s223 + $0xd0] sm:$0xff]
      %v1347 = vld [vmem:[%s223 + $0xd8] sm:$0xff]
      %v1348 = vld [vmem:[%s223 + $0xe0] sm:$0xff]
      %v1349 = vld [vmem:[%s223 + $0xe8] sm:$0xff]
      %v1350 = vld [vmem:[%s223 + $0xf0] sm:$0xff]
      %v1351 = vld [vmem:[%s223 + $0xf8] sm:$0xff]
      %vm1352 = vcmp.gt.f32.partialorder %v1320, 0.0
      %vm1353 = vcmp.gt.f32.partialorder %v1321, 0.0
      %vm1354 = vcmp.gt.f32.partialorder %v1322, 0.0
      %vm1355 = vcmp.gt.f32.partialorder %v1323, 0.0
      %vm1356 = vcmp.gt.f32.partialorder %v1324, 0.0
      %vm1357 = vcmp.gt.f32.partialorder %v1325, 0.0
      %vm1358 = vcmp.gt.f32.partialorder %v1326, 0.0
      %vm1359 = vcmp.gt.f32.partialorder %v1327, 0.0
      %vm1360 = vcmp.gt.f32.partialorder %v1328, 0.0
      %vm1361 = vcmp.gt.f32.partialorder %v1329, 0.0
      %vm1362 = vcmp.gt.f32.partialorder %v1330, 0.0
      %vm1363 = vcmp.gt.f32.partialorder %v1331, 0.0
      %vm1364 = vcmp.gt.f32.partialorder %v1332, 0.0
      %vm1365 = vcmp.gt.f32.partialorder %v1333, 0.0
      %vm1366 = vcmp.gt.f32.partialorder %v1334, 0.0
      %vm1367 = vcmp.gt.f32.partialorder %v1335, 0.0
      %vm1368 = vcmp.gt.f32.partialorder %v1336, 0.0
      %vm1369 = vcmp.gt.f32.partialorder %v1337, 0.0
      %vm1370 = vcmp.gt.f32.partialorder %v1338, 0.0
      %vm1371 = vcmp.gt.f32.partialorder %v1339, 0.0
      %vm1372 = vcmp.gt.f32.partialorder %v1340, 0.0
      %vm1373 = vcmp.gt.f32.partialorder %v1341, 0.0
      %vm1374 = vcmp.gt.f32.partialorder %v1342, 0.0
      %vm1375 = vcmp.gt.f32.partialorder %v1343, 0.0
      %vm1376 = vcmp.gt.f32.partialorder %v1344, 0.0
      %vm1377 = vcmp.gt.f32.partialorder %v1345, 0.0
      %vm1378 = vcmp.gt.f32.partialorder %v1346, 0.0
      %vm1379 = vcmp.gt.f32.partialorder %v1347, 0.0
      %vm1380 = vcmp.gt.f32.partialorder %v1348, 0.0
      %vm1381 = vcmp.gt.f32.partialorder %v1349, 0.0
      %vm1382 = vcmp.gt.f32.partialorder %v1350, 0.0
      %vm1383 = vcmp.gt.f32.partialorder %v1351, 0.0
      %v1384 = vld [vmem:[#allocation3] sm:$0xf]
      %s1385 = scalar_lea.vmem [#allocation4], %s232
      %v1386 = vld [vmem:[%s1385] sm:$0xff]
      %v1387 = vld [vmem:[%s1385 + $0x8] sm:$0xff]
      %v1388 = vld [vmem:[%s1385 + $0x10] sm:$0xff]
      %v1389 = vld [vmem:[%s1385 + $0x18] sm:$0xff]
      %v1390 = vld [vmem:[%s1385 + $0x20] sm:$0xff]
      %v1391 = vld [vmem:[%s1385 + $0x28] sm:$0xff]
      %v1392 = vld [vmem:[%s1385 + $0x30] sm:$0xff]
      %v1393 = vld [vmem:[%s1385 + $0x38] sm:$0xff]
      %v1394 = vld [vmem:[%s1385 + $0x40] sm:$0xff]
      %v1395 = vld [vmem:[%s1385 + $0x48] sm:$0xff]
      %v1396 = vld [vmem:[%s1385 + $0x50] sm:$0xff]
      %v1397 = vld [vmem:[%s1385 + $0x58] sm:$0xff]
      %v1398 = vld [vmem:[%s1385 + $0x60] sm:$0xff]
      %v1399 = vld [vmem:[%s1385 + $0x68] sm:$0xff]
      %v1400 = vld [vmem:[%s1385 + $0x70] sm:$0xff]
      %v1401 = vld [vmem:[%s1385 + $0x78] sm:$0xff]
      %1403 = vset.pattern.permute.xlu0 0
      %1404 = vperm.xlu0 %1403, %v1386
      %v1405 = vpop.permute.xlu0 %1404
      %1408 = vset.pattern.permute.xlu0 0
      %1409 = vperm.xlu0 %1408, %v1387
      %v1410 = vpop.permute.xlu0 %1409
      %1413 = vset.pattern.permute.xlu0 0
      %1414 = vperm.xlu0 %1413, %v1388
      %v1415 = vpop.permute.xlu0 %1414
      %1418 = vset.pattern.permute.xlu0 0
      %1419 = vperm.xlu0 %1418, %v1389
      %v1420 = vpop.permute.xlu0 %1419
      %1423 = vset.pattern.permute.xlu0 0
      %1424 = vperm.xlu0 %1423, %v1390
      %v1425 = vpop.permute.xlu0 %1424
      %1428 = vset.pattern.permute.xlu0 0
      %1429 = vperm.xlu0 %1428, %v1391
      %v1430 = vpop.permute.xlu0 %1429
      %1433 = vset.pattern.permute.xlu0 0
      %1434 = vperm.xlu0 %1433, %v1392
      %v1435 = vpop.permute.xlu0 %1434
      %1438 = vset.pattern.permute.xlu0 0
      %1439 = vperm.xlu0 %1438, %v1393
      %v1440 = vpop.permute.xlu0 %1439
      %1443 = vset.pattern.permute.xlu0 0
      %1444 = vperm.xlu0 %1443, %v1394
      %v1445 = vpop.permute.xlu0 %1444
      %1448 = vset.pattern.permute.xlu0 0
      %1449 = vperm.xlu0 %1448, %v1395
      %v1450 = vpop.permute.xlu0 %1449
      %1453 = vset.pattern.permute.xlu0 0
      %1454 = vperm.xlu0 %1453, %v1396
      %v1455 = vpop.permute.xlu0 %1454
      %1458 = vset.pattern.permute.xlu0 0
      %1459 = vperm.xlu0 %1458, %v1397
      %v1460 = vpop.permute.xlu0 %1459
      %1463 = vset.pattern.permute.xlu0 0
      %1464 = vperm.xlu0 %1463, %v1398
      %v1465 = vpop.permute.xlu0 %1464
      %1468 = vset.pattern.permute.xlu0 0
      %1469 = vperm.xlu0 %1468, %v1399
      %v1470 = vpop.permute.xlu0 %1469
      %1473 = vset.pattern.permute.xlu0 0
      %1474 = vperm.xlu0 %1473, %v1400
      %v1475 = vpop.permute.xlu0 %1474
      %1478 = vset.pattern.permute.xlu0 0
      %1479 = vperm.xlu0 %1478, %v1401
      %v1480 = vpop.permute.xlu0 %1479
      %v1483 = vlaneseq
      %v1484 = vshrl.u32 %v1483, 7
      %v1485 = vsub.s32 0, %v1484
      %v1486 = vrot.slane %v1384, %v1485
      %v1487 = vlaneseq
      %v1488 = vshrl.u32 %v1487, 7
      %v1489 = vsub.s32 2, %v1488
      %v1490 = vrot.slane %v1384, %v1489
      %v1493 = vlaneseq
      %v1494 = vshrl.u32 %v1493, 7
      %v1495 = vsub.s32 0, %v1494
      %v1496 = vrot.slane %v1486, %v1495
      %v1497 = vlaneseq
      %v1498 = vshrl.u32 %v1497, 7
      %v1499 = vsub.s32 0, %v1498
      %v1500 = vrot.slane %v1490, %v1499
      %v1501 = vadd.f32 %v1405, %v1496
      %v1502 = vadd.f32 %v1405, %v1500
      %v1503 = vadd.f32 %v1410, %v1496
      %v1504 = vadd.f32 %v1410, %v1500
      %v1505 = vadd.f32 %v1415, %v1496
      %v1506 = vadd.f32 %v1415, %v1500
      %v1507 = vadd.f32 %v1420, %v1496
      %v1508 = vadd.f32 %v1420, %v1500
      %v1509 = vadd.f32 %v1425, %v1496
      %v1510 = vadd.f32 %v1425, %v1500
      %v1511 = vadd.f32 %v1430, %v1496
      %v1512 = vadd.f32 %v1430, %v1500
      %v1513 = vadd.f32 %v1435, %v1496
      %v1514 = vadd.f32 %v1435, %v1500
      %v1515 = vadd.f32 %v1440, %v1496
      %v1516 = vadd.f32 %v1440, %v1500
      %v1517 = vadd.f32 %v1445, %v1496
      %v1518 = vadd.f32 %v1445, %v1500
      %v1519 = vadd.f32 %v1450, %v1496
      %v1520 = vadd.f32 %v1450, %v1500
      %v1521 = vadd.f32 %v1455, %v1496
      %v1522 = vadd.f32 %v1455, %v1500
      %v1523 = vadd.f32 %v1460, %v1496
      %v1524 = vadd.f32 %v1460, %v1500
      %v1525 = vadd.f32 %v1465, %v1496
      %v1526 = vadd.f32 %v1465, %v1500
      %v1527 = vadd.f32 %v1470, %v1496
      %v1528 = vadd.f32 %v1470, %v1500
      %v1529 = vadd.f32 %v1475, %v1496
      %v1530 = vadd.f32 %v1475, %v1500
      %v1531 = vadd.f32 %v1480, %v1496
      %v1532 = vadd.f32 %v1480, %v1500
      %vm1533 = vcmp.gt.f32.partialorder %v1501, 0.0
      %vm1534 = vcmp.gt.f32.partialorder %v1502, 0.0
      %vm1535 = vcmp.gt.f32.partialorder %v1503, 0.0
      %vm1536 = vcmp.gt.f32.partialorder %v1504, 0.0
      %vm1537 = vcmp.gt.f32.partialorder %v1505, 0.0
      %vm1538 = vcmp.gt.f32.partialorder %v1506, 0.0
      %vm1539 = vcmp.gt.f32.partialorder %v1507, 0.0
      %vm1540 = vcmp.gt.f32.partialorder %v1508, 0.0
      %vm1541 = vcmp.gt.f32.partialorder %v1509, 0.0
      %vm1542 = vcmp.gt.f32.partialorder %v1510, 0.0
      %vm1543 = vcmp.gt.f32.partialorder %v1511, 0.0
      %vm1544 = vcmp.gt.f32.partialorder %v1512, 0.0
      %vm1545 = vcmp.gt.f32.partialorder %v1513, 0.0
      %vm1546 = vcmp.gt.f32.partialorder %v1514, 0.0
      %vm1547 = vcmp.gt.f32.partialorder %v1515, 0.0
      %vm1548 = vcmp.gt.f32.partialorder %v1516, 0.0
      %vm1549 = vcmp.gt.f32.partialorder %v1517, 0.0
      %vm1550 = vcmp.gt.f32.partialorder %v1518, 0.0
      %vm1551 = vcmp.gt.f32.partialorder %v1519, 0.0
      %vm1552 = vcmp.gt.f32.partialorder %v1520, 0.0
      %vm1553 = vcmp.gt.f32.partialorder %v1521, 0.0
      %vm1554 = vcmp.gt.f32.partialorder %v1522, 0.0
      %vm1555 = vcmp.gt.f32.partialorder %v1523, 0.0
      %vm1556 = vcmp.gt.f32.partialorder %v1524, 0.0
      %vm1557 = vcmp.gt.f32.partialorder %v1525, 0.0
      %vm1558 = vcmp.gt.f32.partialorder %v1526, 0.0
      %vm1559 = vcmp.gt.f32.partialorder %v1527, 0.0
      %vm1560 = vcmp.gt.f32.partialorder %v1528, 0.0
      %vm1561 = vcmp.gt.f32.partialorder %v1529, 0.0
      %vm1562 = vcmp.gt.f32.partialorder %v1530, 0.0
      %vm1563 = vcmp.gt.f32.partialorder %v1531, 0.0
      %vm1564 = vcmp.gt.f32.partialorder %v1532, 0.0
      %v1565 = vmul.f32 %v1501, 0.2
      %v1566 = vmul.f32 %v1502, 0.2
      %v1567 = vmul.f32 %v1503, 0.2
      %v1568 = vmul.f32 %v1504, 0.2
      %v1569 = vmul.f32 %v1505, 0.2
      %v1570 = vmul.f32 %v1506, 0.2
      %v1571 = vmul.f32 %v1507, 0.2
      %v1572 = vmul.f32 %v1508, 0.2
      %v1573 = vmul.f32 %v1509, 0.2
      %v1574 = vmul.f32 %v1510, 0.2
      %v1575 = vmul.f32 %v1511, 0.2
      %v1576 = vmul.f32 %v1512, 0.2
      %v1577 = vmul.f32 %v1513, 0.2
      %v1578 = vmul.f32 %v1514, 0.2
      %v1579 = vmul.f32 %v1515, 0.2
      %v1580 = vmul.f32 %v1516, 0.2
      %v1581 = vmul.f32 %v1517, 0.2
      %v1582 = vmul.f32 %v1518, 0.2
      %v1583 = vmul.f32 %v1519, 0.2
      %v1584 = vmul.f32 %v1520, 0.2
      %v1585 = vmul.f32 %v1521, 0.2
      %v1586 = vmul.f32 %v1522, 0.2
      %v1587 = vmul.f32 %v1523, 0.2
      %v1588 = vmul.f32 %v1524, 0.2
      %v1589 = vmul.f32 %v1525, 0.2
      %v1590 = vmul.f32 %v1526, 0.2
      %v1591 = vmul.f32 %v1527, 0.2
      %v1592 = vmul.f32 %v1528, 0.2
      %v1593 = vmul.f32 %v1529, 0.2
      %v1594 = vmul.f32 %v1530, 0.2
      %v1595 = vmul.f32 %v1531, 0.2
      %v1596 = vmul.f32 %v1532, 0.2
      %v1597 = vsel %vm1533, %v1501, %v1565
      %v1598 = vsel %vm1534, %v1502, %v1566
      %v1599 = vsel %vm1535, %v1503, %v1567
      %v1600 = vsel %vm1536, %v1504, %v1568
      %v1601 = vsel %vm1537, %v1505, %v1569
      %v1602 = vsel %vm1538, %v1506, %v1570
      %v1603 = vsel %vm1539, %v1507, %v1571
      %v1604 = vsel %vm1540, %v1508, %v1572
      %v1605 = vsel %vm1541, %v1509, %v1573
      %v1606 = vsel %vm1542, %v1510, %v1574
      %v1607 = vsel %vm1543, %v1511, %v1575
      %v1608 = vsel %vm1544, %v1512, %v1576
      %v1609 = vsel %vm1545, %v1513, %v1577
      %v1610 = vsel %vm1546, %v1514, %v1578
      %v1611 = vsel %vm1547, %v1515, %v1579
      %v1612 = vsel %vm1548, %v1516, %v1580
      %v1613 = vsel %vm1549, %v1517, %v1581
      %v1614 = vsel %vm1550, %v1518, %v1582
      %v1615 = vsel %vm1551, %v1519, %v1583
      %v1616 = vsel %vm1552, %v1520, %v1584
      %v1617 = vsel %vm1553, %v1521, %v1585
      %v1618 = vsel %vm1554, %v1522, %v1586
      %v1619 = vsel %vm1555, %v1523, %v1587
      %v1620 = vsel %vm1556, %v1524, %v1588
      %v1621 = vsel %vm1557, %v1525, %v1589
      %v1622 = vsel %vm1558, %v1526, %v1590
      %v1623 = vsel %vm1559, %v1527, %v1591
      %v1624 = vsel %vm1560, %v1528, %v1592
      %v1625 = vsel %vm1561, %v1529, %v1593
      %v1626 = vsel %vm1562, %v1530, %v1594
      %v1627 = vsel %vm1563, %v1531, %v1595
      %v1628 = vsel %vm1564, %v1532, %v1596
      %v1629 = vsel %vm1352, %v1597, -1e+30
      %v1630 = vsel %vm1353, %v1598, -1e+30
      %v1631 = vsel %vm1354, %v1599, -1e+30
      %v1632 = vsel %vm1355, %v1600, -1e+30
      %v1633 = vsel %vm1356, %v1601, -1e+30
      %v1634 = vsel %vm1357, %v1602, -1e+30
      %v1635 = vsel %vm1358, %v1603, -1e+30
      %v1636 = vsel %vm1359, %v1604, -1e+30
      %v1637 = vsel %vm1360, %v1605, -1e+30
      %v1638 = vsel %vm1361, %v1606, -1e+30
      %v1639 = vsel %vm1362, %v1607, -1e+30
      %v1640 = vsel %vm1363, %v1608, -1e+30
      %v1641 = vsel %vm1364, %v1609, -1e+30
      %v1642 = vsel %vm1365, %v1610, -1e+30
      %v1643 = vsel %vm1366, %v1611, -1e+30
      %v1644 = vsel %vm1367, %v1612, -1e+30
      %v1645 = vsel %vm1368, %v1613, -1e+30
      %v1646 = vsel %vm1369, %v1614, -1e+30
      %v1647 = vsel %vm1370, %v1615, -1e+30
      %v1648 = vsel %vm1371, %v1616, -1e+30
      %v1649 = vsel %vm1372, %v1617, -1e+30
      %v1650 = vsel %vm1373, %v1618, -1e+30
      %v1651 = vsel %vm1374, %v1619, -1e+30
      %v1652 = vsel %vm1375, %v1620, -1e+30
      %v1653 = vsel %vm1376, %v1621, -1e+30
      %v1654 = vsel %vm1377, %v1622, -1e+30
      %v1655 = vsel %vm1378, %v1623, -1e+30
      %v1656 = vsel %vm1379, %v1624, -1e+30
      %v1657 = vsel %vm1380, %v1625, -1e+30
      %v1658 = vsel %vm1381, %v1626, -1e+30
      %v1659 = vsel %vm1382, %v1627, -1e+30
      %v1660 = vsel %vm1383, %v1628, -1e+30
      %v1661 = vmax.f32 %v1629, %v1630
      %1662 = vmax.xlane.f32.xlu0 %v1661
      %v1663 = vpop.xlane.xlu0 %1662
      %v1664 = vmax.f32 %v1631, %v1632
      %1665 = vmax.xlane.f32.xlu0 %v1664
      %v1666 = vpop.xlane.xlu0 %1665
      %v1667 = vmax.f32 %v1633, %v1634
      %1668 = vmax.xlane.f32.xlu0 %v1667
      %v1669 = vpop.xlane.xlu0 %1668
      %v1670 = vmax.f32 %v1635, %v1636
      %1671 = vmax.xlane.f32.xlu0 %v1670
      %v1672 = vpop.xlane.xlu0 %1671
      %v1673 = vmax.f32 %v1637, %v1638
      %1674 = vmax.xlane.f32.xlu0 %v1673
      %v1675 = vpop.xlane.xlu0 %1674
      %v1676 = vmax.f32 %v1639, %v1640
      %1677 = vmax.xlane.f32.xlu0 %v1676
      %v1678 = vpop.xlane.xlu0 %1677
      %v1679 = vmax.f32 %v1641, %v1642
      %1680 = vmax.xlane.f32.xlu0 %v1679
      %v1681 = vpop.xlane.xlu0 %1680
      %v1682 = vmax.f32 %v1643, %v1644
      %1683 = vmax.xlane.f32.xlu0 %v1682
      %v1684 = vpop.xlane.xlu0 %1683
      %v1685 = vmax.f32 %v1645, %v1646
      %1686 = vmax.xlane.f32.xlu0 %v1685
      %v1687 = vpop.xlane.xlu0 %1686
      %v1688 = vmax.f32 %v1647, %v1648
      %1689 = vmax.xlane.f32.xlu0 %v1688
      %v1690 = vpop.xlane.xlu0 %1689
      %v1691 = vmax.f32 %v1649, %v1650
      %1692 = vmax.xlane.f32.xlu0 %v1691
      %v1693 = vpop.xlane.xlu0 %1692
      %v1694 = vmax.f32 %v1651, %v1652
      %1695 = vmax.xlane.f32.xlu0 %v1694
      %v1696 = vpop.xlane.xlu0 %1695
      %v1697 = vmax.f32 %v1653, %v1654
      %1698 = vmax.xlane.f32.xlu0 %v1697
      %v1699 = vpop.xlane.xlu0 %1698
      %v1700 = vmax.f32 %v1655, %v1656
      %1701 = vmax.xlane.f32.xlu0 %v1700
      %v1702 = vpop.xlane.xlu0 %1701
      %v1703 = vmax.f32 %v1657, %v1658
      %1704 = vmax.xlane.f32.xlu0 %v1703
      %v1705 = vpop.xlane.xlu0 %1704
      %v1706 = vmax.f32 %v1659, %v1660
      %1707 = vmax.xlane.f32.xlu0 %v1706
      %v1708 = vpop.xlane.xlu0 %1707
      %v1709 = vsub.f32 %v1629, %v1663
      %v1710 = vsub.f32 %v1630, %v1663
      %v1711 = vsub.f32 %v1631, %v1666
      %v1712 = vsub.f32 %v1632, %v1666
      %v1713 = vsub.f32 %v1633, %v1669
      %v1714 = vsub.f32 %v1634, %v1669
      %v1715 = vsub.f32 %v1635, %v1672
      %v1716 = vsub.f32 %v1636, %v1672
      %v1717 = vsub.f32 %v1637, %v1675
      %v1718 = vsub.f32 %v1638, %v1675
      %v1719 = vsub.f32 %v1639, %v1678
      %v1720 = vsub.f32 %v1640, %v1678
      %v1721 = vsub.f32 %v1641, %v1681
      %v1722 = vsub.f32 %v1642, %v1681
      %v1723 = vsub.f32 %v1643, %v1684
      %v1724 = vsub.f32 %v1644, %v1684
      %v1725 = vsub.f32 %v1645, %v1687
      %v1726 = vsub.f32 %v1646, %v1687
      %v1727 = vsub.f32 %v1647, %v1690
      %v1728 = vsub.f32 %v1648, %v1690
      %v1729 = vsub.f32 %v1649, %v1693
      %v1730 = vsub.f32 %v1650, %v1693
      %v1731 = vsub.f32 %v1651, %v1696
      %v1732 = vsub.f32 %v1652, %v1696
      %v1733 = vsub.f32 %v1653, %v1699
      %v1734 = vsub.f32 %v1654, %v1699
      %v1735 = vsub.f32 %v1655, %v1702
      %v1736 = vsub.f32 %v1656, %v1702
      %v1737 = vsub.f32 %v1657, %v1705
      %v1738 = vsub.f32 %v1658, %v1705
      %v1739 = vsub.f32 %v1659, %v1708
      %v1740 = vsub.f32 %v1660, %v1708
      %v1741 = vmul.f32 %v1709, 1.442695
      %v1742 = vpow.pop %v1741
      %v1743 = vmul.f32 %v1710, 1.442695
      %v1744 = vpow.pop %v1743
      %v1745 = vmul.f32 %v1711, 1.442695
      %v1746 = vpow.pop %v1745
      %v1747 = vmul.f32 %v1712, 1.442695
      %v1748 = vpow.pop %v1747
      %v1749 = vmul.f32 %v1713, 1.442695
      %v1750 = vpow.pop %v1749
      %v1751 = vmul.f32 %v1714, 1.442695
      %v1752 = vpow.pop %v1751
      %v1753 = vmul.f32 %v1715, 1.442695
      %v1754 = vpow.pop %v1753
      %v1755 = vmul.f32 %v1716, 1.442695
      %v1756 = vpow.pop %v1755
      %v1757 = vmul.f32 %v1717, 1.442695
      %v1758 = vpow.pop %v1757
      %v1759 = vmul.f32 %v1718, 1.442695
      %v1760 = vpow.pop %v1759
      %v1761 = vmul.f32 %v1719, 1.442695
      %v1762 = vpow.pop %v1761
      %v1763 = vmul.f32 %v1720, 1.442695
      %v1764 = vpow.pop %v1763
      %v1765 = vmul.f32 %v1721, 1.442695
      %v1766 = vpow.pop %v1765
      %v1767 = vmul.f32 %v1722, 1.442695
      %v1768 = vpow.pop %v1767
      %v1769 = vmul.f32 %v1723, 1.442695
      %v1770 = vpow.pop %v1769
      %v1771 = vmul.f32 %v1724, 1.442695
      %v1772 = vpow.pop %v1771
      %v1773 = vmul.f32 %v1725, 1.442695
      %v1774 = vpow.pop %v1773
      %v1775 = vmul.f32 %v1726, 1.442695
      %v1776 = vpow.pop %v1775
      %v1777 = vmul.f32 %v1727, 1.442695
      %v1778 = vpow.pop %v1777
      %v1779 = vmul.f32 %v1728, 1.442695
      %v1780 = vpow.pop %v1779
      %v1781 = vmul.f32 %v1729, 1.442695
      %v1782 = vpow.pop %v1781
      %v1783 = vmul.f32 %v1730, 1.442695
      %v1784 = vpow.pop %v1783
      %v1785 = vmul.f32 %v1731, 1.442695
      %v1786 = vpow.pop %v1785
      %v1787 = vmul.f32 %v1732, 1.442695
      %v1788 = vpow.pop %v1787
      %v1789 = vmul.f32 %v1733, 1.442695
      %v1790 = vpow.pop %v1789
      %v1791 = vmul.f32 %v1734, 1.442695
      %v1792 = vpow.pop %v1791
      %v1793 = vmul.f32 %v1735, 1.442695
      %v1794 = vpow.pop %v1793
      %v1795 = vmul.f32 %v1736, 1.442695
      %v1796 = vpow.pop %v1795
      %v1797 = vmul.f32 %v1737, 1.442695
      %v1798 = vpow.pop %v1797
      %v1799 = vmul.f32 %v1738, 1.442695
      %v1800 = vpow.pop %v1799
      %v1801 = vmul.f32 %v1739, 1.442695
      %v1802 = vpow.pop %v1801
      %v1803 = vmul.f32 %v1740, 1.442695
      %v1804 = vpow.pop %v1803
      %v1805 = vpack.c.bf16 %v1746, %v1742
      %v1806 = vpack.c.bf16 %v1748, %v1744
      %v1807 = vpack.c.bf16 %v1754, %v1750
      %v1808 = vpack.c.bf16 %v1756, %v1752
      %v1809 = vpack.c.bf16 %v1762, %v1758
      %v1810 = vpack.c.bf16 %v1764, %v1760
      %v1811 = vpack.c.bf16 %v1770, %v1766
      %v1812 = vpack.c.bf16 %v1772, %v1768
      %v1813 = vpack.c.bf16 %v1778, %v1774
      %v1814 = vpack.c.bf16 %v1780, %v1776
      %v1815 = vpack.c.bf16 %v1786, %v1782
      %v1816 = vpack.c.bf16 %v1788, %v1784
      %v1817 = vpack.c.bf16 %v1794, %v1790
      %v1818 = vpack.c.bf16 %v1796, %v1792
      %v1819 = vpack.c.bf16 %v1802, %v1798
      %v1820 = vpack.c.bf16 %v1804, %v1800
      %v1821 = vld [vmem:[#allocation2] sm:$0xff]
      %v1822 = vld [vmem:[#allocation2 + $0x8] sm:$0xff]
      %v1823 = vld [vmem:[#allocation2 + $0x10] sm:$0xff]
      %v1824 = vld [vmem:[#allocation2 + $0x18] sm:$0xff]
      %v1825 = vld [vmem:[#allocation2 + $0x20] sm:$0xff]
      %v1826 = vld [vmem:[#allocation2 + $0x28] sm:$0xff]
      %v1827 = vld [vmem:[#allocation2 + $0x30] sm:$0xff]
      %v1828 = vld [vmem:[#allocation2 + $0x38] sm:$0xff]
      %v1829 = vld [vmem:[#allocation2 + $0x40] sm:$0xff]
      %v1830 = vld [vmem:[#allocation2 + $0x48] sm:$0xff]
      %v1831 = vld [vmem:[#allocation2 + $0x50] sm:$0xff]
      %v1832 = vld [vmem:[#allocation2 + $0x58] sm:$0xff]
      %v1833 = vld [vmem:[#allocation2 + $0x60] sm:$0xff]
      %v1834 = vld [vmem:[#allocation2 + $0x68] sm:$0xff]
      %v1835 = vld [vmem:[#allocation2 + $0x70] sm:$0xff]
      %v1836 = vld [vmem:[#allocation2 + $0x78] sm:$0xff]
      %1837 = vmatprep.subr.bf16.mxu0 0
      %1838 = vmatpush1.bf16.msra.mxu0 %v1821
      %1839 = vmatprep.subr.bf16.mxu0 0
      %1840 = vmatpush1.bf16.msra.mxu0 %v1822
      %1841 = vmatprep.subr.bf16.mxu0 0
      %1842 = vmatpush1.bf16.msra.mxu0 %v1823
      %1843 = vmatprep.subr.bf16.mxu0 0
      %1844 = vmatpush1.bf16.msra.mxu0 %v1824
      %1845 = vmatprep.subr.bf16.mxu0 0
      %1846 = vmatpush1.bf16.msra.mxu0 %v1825
      %1847 = vmatprep.subr.bf16.mxu0 0
      %1848 = vmatpush1.bf16.msra.mxu0 %v1826
      %1849 = vmatprep.subr.bf16.mxu0 0
      %1850 = vmatpush1.bf16.msra.mxu0 %v1827
      %1851 = vmatprep.subr.bf16.mxu0 0
      %1852 = vmatpush1.bf16.msra.mxu0 %v1828
      %1853 = vmatprep.subr.bf16.mxu0 0
      %1854 = vmatpush1.bf16.msra.mxu0 %v1829
      %1855 = vmatprep.subr.bf16.mxu0 0
      %1856 = vmatpush1.bf16.msra.mxu0 %v1830
      %1857 = vmatprep.subr.bf16.mxu0 0
      %1858 = vmatpush1.bf16.msra.mxu0 %v1831
      %1859 = vmatprep.subr.bf16.mxu0 0
      %1860 = vmatpush1.bf16.msra.mxu0 %v1832
      %1861 = vmatprep.subr.bf16.mxu0 0
      %1862 = vmatpush1.bf16.msra.mxu0 %v1833
      %1863 = vmatprep.subr.bf16.mxu0 0
      %1864 = vmatpush1.bf16.msra.mxu0 %v1834
      %1865 = vmatprep.subr.bf16.mxu0 0
      %1866 = vmatpush1.bf16.msra.mxu0 %v1835
      %1867 = vmatprep.subr.bf16.mxu0 0
      %1868 = vmatpush1.bf16.msra.mxu0 %v1836
      %1869 = vmatprep.mubr.bf16.mxu0 %v1806
      %1870 = vmatmul.mubr.bf16.gmra.mrb[0].mxu0 %v1805
      %v1871 = vpop.f32.mrb[0].mxu0
      %v1872 = vadd.f32 0.0, %v1871
      %v1873 = vpop.f32.mrb[0].mxu0
      %v1874 = vpop.f32.mrb[0].mxu0
      %v1875 = vadd.f32 0.0, %v1874
      %v1876 = vpop.f32.mrb[0].mxu0
      %1877 = vmatprep.mubr.bf16.mxu0 %v1808
      %1878 = vmatmul.mubr.bf16.gmra.mrb[0].mxu0 %v1807
      %v1879 = vpop.f32.mrb[0].mxu0
      %v1880 = vadd.f32 0.0, %v1879
      %v1881 = vpop.f32.mrb[0].mxu0
      %v1882 = vpop.f32.mrb[0].mxu0
      %v1883 = vadd.f32 0.0, %v1882
      %v1884 = vpop.f32.mrb[0].mxu0
      %1885 = vmatprep.mubr.bf16.mxu0 %v1810
      %1886 = vmatmul.mubr.bf16.gmra.mrb[0].mxu0 %v1809
      %v1887 = vpop.f32.mrb[0].mxu0
      %v1888 = vadd.f32 0.0, %v1887
      %v1889 = vpop.f32.mrb[0].mxu0
      %v1890 = vpop.f32.mrb[0].mxu0
      %v1891 = vadd.f32 0.0, %v1890
      %v1892 = vpop.f32.mrb[0].mxu0
      %1893 = vmatprep.mubr.bf16.mxu0 %v1812
      %1894 = vmatmul.mubr.bf16.gmra.mrb[0].mxu0 %v1811
      %v1895 = vpop.f32.mrb[0].mxu0
      %v1896 = vadd.f32 0.0, %v1895
      %v1897 = vpop.f32.mrb[0].mxu0
      %v1898 = vpop.f32.mrb[0].mxu0
      %v1899 = vadd.f32 0.0, %v1898
      %v1900 = vpop.f32.mrb[0].mxu0
      %1901 = vmatprep.mubr.bf16.mxu0 %v1814
      %1902 = vmatmul.mubr.bf16.gmra.mrb[0].mxu0 %v1813
      %v1903 = vpop.f32.mrb[0].mxu0
      %v1904 = vadd.f32 0.0, %v1903
      %v1905 = vpop.f32.mrb[0].mxu0
      %v1906 = vpop.f32.mrb[0].mxu0
      %v1907 = vadd.f32 0.0, %v1906
      %v1908 = vpop.f32.mrb[0].mxu0
      %1909 = vmatprep.mubr.bf16.mxu0 %v1816
      %1910 = vmatmul.mubr.bf16.gmra.mrb[0].mxu0 %v1815
      %v1911 = vpop.f32.mrb[0].mxu0
      %v1912 = vadd.f32 0.0, %v1911
      %v1913 = vpop.f32.mrb[0].mxu0
      %v1914 = vpop.f32.mrb[0].mxu0
      %v1915 = vadd.f32 0.0, %v1914
      %v1916 = vpop.f32.mrb[0].mxu0
      %1917 = vmatprep.mubr.bf16.mxu0 %v1818
      %1918 = vmatmul.mubr.bf16.gmra.mrb[0].mxu0 %v1817
      %v1919 = vpop.f32.mrb[0].mxu0
      %v1920 = vadd.f32 0.0, %v1919
      %v1921 = vpop.f32.mrb[0].mxu0
      %v1922 = vpop.f32.mrb[0].mxu0
      %v1923 = vadd.f32 0.0, %v1922
      %v1924 = vpop.f32.mrb[0].mxu0
      %1925 = vmatprep.mubr.bf16.mxu0 %v1820
      %1926 = vmatmul.mubr.bf16.gmra.mrb[0].mxu0 %v1819
      %v1927 = vpop.f32.mrb[0].mxu0
      %v1928 = vadd.f32 0.0, %v1927
      %v1929 = vpop.f32.mrb[0].mxu0
      %v1930 = vpop.f32.mrb[0].mxu0
      %v1931 = vadd.f32 0.0, %v1930
      %v1932 = vpop.f32.mrb[0].mxu0
      %1933 = vdwg.mxu0
      %v1934 = vrcp.pop %v1872
      %v1935 = vrcp.pop %v1875
      %v1936 = vrcp.pop %v1880
      %v1937 = vrcp.pop %v1883
      %v1938 = vrcp.pop %v1888
      %v1939 = vrcp.pop %v1891
      %v1940 = vrcp.pop %v1896
      %v1941 = vrcp.pop %v1899
      %v1942 = vrcp.pop %v1904
      %v1943 = vrcp.pop %v1907
      %v1944 = vrcp.pop %v1912
      %v1945 = vrcp.pop %v1915
      %v1946 = vrcp.pop %v1920
      %v1947 = vrcp.pop %v1923
      %v1948 = vrcp.pop %v1928
      %v1949 = vrcp.pop %v1931
      %1951 = vset.pattern.permute.xlu0 16
      %1952 = vperm.xlu0 %1951, %v1934
      %v1953 = vpop.permute.xlu0 %1952
      %1956 = vset.pattern.permute.xlu0 16
      %1957 = vperm.xlu0 %1956, %v1935
      %v1958 = vpop.permute.xlu0 %1957
      %1961 = vset.pattern.permute.xlu0 16
      %1962 = vperm.xlu0 %1961, %v1936
      %v1963 = vpop.permute.xlu0 %1962
      %1966 = vset.pattern.permute.xlu0 16
      %1967 = vperm.xlu0 %1966, %v1937
      %v1968 = vpop.permute.xlu0 %1967
      %1971 = vset.pattern.permute.xlu0 16
      %1972 = vperm.xlu0 %1971, %v1938
      %v1973 = vpop.permute.xlu0 %1972
      %1976 = vset.pattern.permute.xlu0 16
      %1977 = vperm.xlu0 %1976, %v1939
      %v1978 = vpop.permute.xlu0 %1977
      %1981 = vset.pattern.permute.xlu0 16
      %1982 = vperm.xlu0 %1981, %v1940
      %v1983 = vpop.permute.xlu0 %1982
      %1986 = vset.pattern.permute.xlu0 16
      %1987 = vperm.xlu0 %1986, %v1941
      %v1988 = vpop.permute.xlu0 %1987
      %1991 = vset.pattern.permute.xlu0 16
      %1992 = vperm.xlu0 %1991, %v1942
      %v1993 = vpop.permute.xlu0 %1992
      %1996 = vset.pattern.permute.xlu0 16
      %1997 = vperm.xlu0 %1996, %v1943
      %v1998 = vpop.permute.xlu0 %1997
      %2001 = vset.pattern.permute.xlu0 16
      %2002 = vperm.xlu0 %2001, %v1944
      %v2003 = vpop.permute.xlu0 %2002
      %2006 = vset.pattern.permute.xlu0 16
      %2007 = vperm.xlu0 %2006, %v1945
      %v2008 = vpop.permute.xlu0 %2007
      %2011 = vset.pattern.permute.xlu0 16
      %2012 = vperm.xlu0 %2011, %v1946
      %v2013 = vpop.permute.xlu0 %2012
      %2016 = vset.pattern.permute.xlu0 16
      %2017 = vperm.xlu0 %2016, %v1947
      %v2018 = vpop.permute.xlu0 %2017
      %2021 = vset.pattern.permute.xlu0 16
      %2022 = vperm.xlu0 %2021, %v1948
      %v2023 = vpop.permute.xlu0 %2022
      %2026 = vset.pattern.permute.xlu0 16
      %2027 = vperm.xlu0 %2026, %v1949
      %v2028 = vpop.permute.xlu0 %2027
      %v2030 = vmul.f32 %v1872, %v1953
      %v2031 = vmul.f32 %v1875, %v1958
      %v2032 = vmul.f32 %v1880, %v1963
      %v2033 = vmul.f32 %v1883, %v1968
      %v2034 = vmul.f32 %v1888, %v1973
      %v2035 = vmul.f32 %v1891, %v1978
      %v2036 = vmul.f32 %v1896, %v1983
      %v2037 = vmul.f32 %v1899, %v1988
      %v2038 = vmul.f32 %v1904, %v1993
      %v2039 = vmul.f32 %v1907, %v1998
      %v2040 = vmul.f32 %v1912, %v2003
      %v2041 = vmul.f32 %v1915, %v2008
      %v2042 = vmul.f32 %v1920, %v2013
      %v2043 = vmul.f32 %v1923, %v2018
      %v2044 = vmul.f32 %v1928, %v2023
      %v2045 = vmul.f32 %v1931, %v2028
      %v2046 = vld [vmem:[%s4] sm:$0x1]
      %v2047 = vlaneseq
      %v2048 = vshrl.u32 %v2047, 7
      %v2049 = vsub.s32 0, %v2048
      %v2050 = vrot.slane %v2046, %v2049
      %v2051 = vadd.f32 %v2030, %v2050
      %v2052 = vadd.f32 %v2031, %v2050
      %v2053 = vadd.f32 %v2032, %v2050
      %v2054 = vadd.f32 %v2033, %v2050
      %v2055 = vadd.f32 %v2034, %v2050
      %v2056 = vadd.f32 %v2035, %v2050
      %v2057 = vadd.f32 %v2036, %v2050
      %v2058 = vadd.f32 %v2037, %v2050
      %v2059 = vadd.f32 %v2038, %v2050
      %v2060 = vadd.f32 %v2039, %v2050
      %v2061 = vadd.f32 %v2040, %v2050
      %v2062 = vadd.f32 %v2041, %v2050
      %v2063 = vadd.f32 %v2042, %v2050
      %v2064 = vadd.f32 %v2043, %v2050
      %v2065 = vadd.f32 %v2044, %v2050
      %v2066 = vadd.f32 %v2045, %v2050
      %vm2067 = vcmp.gt.f32.partialorder %v2051, 0.0
      %vm2068 = vcmp.gt.f32.partialorder %v2052, 0.0
      %vm2069 = vcmp.gt.f32.partialorder %v2053, 0.0
      %vm2070 = vcmp.gt.f32.partialorder %v2054, 0.0
      %vm2071 = vcmp.gt.f32.partialorder %v2055, 0.0
      %vm2072 = vcmp.gt.f32.partialorder %v2056, 0.0
      %vm2073 = vcmp.gt.f32.partialorder %v2057, 0.0
      %vm2074 = vcmp.gt.f32.partialorder %v2058, 0.0
      %vm2075 = vcmp.gt.f32.partialorder %v2059, 0.0
      %vm2076 = vcmp.gt.f32.partialorder %v2060, 0.0
      %vm2077 = vcmp.gt.f32.partialorder %v2061, 0.0
      %vm2078 = vcmp.gt.f32.partialorder %v2062, 0.0
      %vm2079 = vcmp.gt.f32.partialorder %v2063, 0.0
      %vm2080 = vcmp.gt.f32.partialorder %v2064, 0.0
      %vm2081 = vcmp.gt.f32.partialorder %v2065, 0.0
      %vm2082 = vcmp.gt.f32.partialorder %v2066, 0.0
      %v2083 = vmul.f32 %v2051, 0.01
      %v2084 = vmul.f32 %v2052, 0.01
      %v2085 = vmul.f32 %v2053, 0.01
      %v2086 = vmul.f32 %v2054, 0.01
      %v2087 = vmul.f32 %v2055, 0.01
      %v2088 = vmul.f32 %v2056, 0.01
      %v2089 = vmul.f32 %v2057, 0.01
      %v2090 = vmul.f32 %v2058, 0.01
      %v2091 = vmul.f32 %v2059, 0.01
      %v2092 = vmul.f32 %v2060, 0.01
      %v2093 = vmul.f32 %v2061, 0.01
      %v2094 = vmul.f32 %v2062, 0.01
      %v2095 = vmul.f32 %v2063, 0.01
      %v2096 = vmul.f32 %v2064, 0.01
      %v2097 = vmul.f32 %v2065, 0.01
      %v2098 = vmul.f32 %v2066, 0.01
      %v2099 = vsel %vm2067, %v2051, %v2083
      %v2100 = vsel %vm2068, %v2052, %v2084
      %v2101 = vsel %vm2069, %v2053, %v2085
      %v2102 = vsel %vm2070, %v2054, %v2086
      %v2103 = vsel %vm2071, %v2055, %v2087
      %v2104 = vsel %vm2072, %v2056, %v2088
      %v2105 = vsel %vm2073, %v2057, %v2089
      %v2106 = vsel %vm2074, %v2058, %v2090
      %v2107 = vsel %vm2075, %v2059, %v2091
      %v2108 = vsel %vm2076, %v2060, %v2092
      %v2109 = vsel %vm2077, %v2061, %v2093
      %v2110 = vsel %vm2078, %v2062, %v2094
      %v2111 = vsel %vm2079, %v2063, %v2095
      %v2112 = vsel %vm2080, %v2064, %v2096
      %v2113 = vsel %vm2081, %v2065, %v2097
      %v2114 = vsel %vm2082, %v2066, %v2098
      %2115 = vset.pattern.permute.xlu0 1
      %2116 = vperm.xlu0 %2115, %v1386
      %v2117 = vpop.permute.xlu0 %2116
      %2119 = vset.pattern.permute.xlu0 1
      %2120 = vperm.xlu0 %2119, %v1387
      %v2121 = vpop.permute.xlu0 %2120
      %2123 = vset.pattern.permute.xlu0 1
      %2124 = vperm.xlu0 %2123, %v1388
      %v2125 = vpop.permute.xlu0 %2124
      %2127 = vset.pattern.permute.xlu0 1
      %2128 = vperm.xlu0 %2127, %v1389
      %v2129 = vpop.permute.xlu0 %2128
      %2131 = vset.pattern.permute.xlu0 1
      %2132 = vperm.xlu0 %2131, %v1390
      %v2133 = vpop.permute.xlu0 %2132
      %2135 = vset.pattern.permute.xlu0 1
      %2136 = vperm.xlu0 %2135, %v1391
      %v2137 = vpop.permute.xlu0 %2136
      %2139 = vset.pattern.permute.xlu0 1
      %2140 = vperm.xlu0 %2139, %v1392
      %v2141 = vpop.permute.xlu0 %2140
      %2143 = vset.pattern.permute.xlu0 1
      %2144 = vperm.xlu0 %2143, %v1393
      %v2145 = vpop.permute.xlu0 %2144
      %2147 = vset.pattern.permute.xlu0 1
      %2148 = vperm.xlu0 %2147, %v1394
      %v2149 = vpop.permute.xlu0 %2148
      %2151 = vset.pattern.permute.xlu0 1
      %2152 = vperm.xlu0 %2151, %v1395
      %v2153 = vpop.permute.xlu0 %2152
      %2155 = vset.pattern.permute.xlu0 1
      %2156 = vperm.xlu0 %2155, %v1396
      %v2157 = vpop.permute.xlu0 %2156
      %2159 = vset.pattern.permute.xlu0 1
      %2160 = vperm.xlu0 %2159, %v1397
      %v2161 = vpop.permute.xlu0 %2160
      %2163 = vset.pattern.permute.xlu0 1
      %2164 = vperm.xlu0 %2163, %v1398
      %v2165 = vpop.permute.xlu0 %2164
      %2167 = vset.pattern.permute.xlu0 1
      %2168 = vperm.xlu0 %2167, %v1399
      %v2169 = vpop.permute.xlu0 %2168
      %2171 = vset.pattern.permute.xlu0 1
      %2172 = vperm.xlu0 %2171, %v1400
      %v2173 = vpop.permute.xlu0 %2172
      %2175 = vset.pattern.permute.xlu0 1
      %2176 = vperm.xlu0 %2175, %v1401
      %v2177 = vpop.permute.xlu0 %2176
      %v2179 = vlaneseq
      %v2180 = vshrl.u32 %v2179, 7
      %v2181 = vsub.s32 1, %v2180
      %v2182 = vrot.slane %v1384, %v2181
      %v2183 = vlaneseq
      %v2184 = vshrl.u32 %v2183, 7
      %v2185 = vsub.s32 3, %v2184
      %v2186 = vrot.slane %v1384, %v2185
      %v2189 = vlaneseq
      %v2190 = vshrl.u32 %v2189, 7
      %v2191 = vsub.s32 1, %v2190
      %v2192 = vrot.slane %v2182, %v2191
      %v2193 = vlaneseq
      %v2194 = vshrl.u32 %v2193, 7
      %v2195 = vsub.s32 1, %v2194
      %v2196 = vrot.slane %v2186, %v2195
      %v2197 = vadd.f32 %v2117, %v2192
      %v2198 = vadd.f32 %v2117, %v2196
      %v2199 = vadd.f32 %v2121, %v2192
      %v2200 = vadd.f32 %v2121, %v2196
      %v2201 = vadd.f32 %v2125, %v2192
      %v2202 = vadd.f32 %v2125, %v2196
      %v2203 = vadd.f32 %v2129, %v2192
      %v2204 = vadd.f32 %v2129, %v2196
      %v2205 = vadd.f32 %v2133, %v2192
      %v2206 = vadd.f32 %v2133, %v2196
      %v2207 = vadd.f32 %v2137, %v2192
      %v2208 = vadd.f32 %v2137, %v2196
      %v2209 = vadd.f32 %v2141, %v2192
      %v2210 = vadd.f32 %v2141, %v2196
      %v2211 = vadd.f32 %v2145, %v2192
      %v2212 = vadd.f32 %v2145, %v2196
      %v2213 = vadd.f32 %v2149, %v2192
      %v2214 = vadd.f32 %v2149, %v2196
      %v2215 = vadd.f32 %v2153, %v2192
      %v2216 = vadd.f32 %v2153, %v2196
      %v2217 = vadd.f32 %v2157, %v2192
      %v2218 = vadd.f32 %v2157, %v2196
      %v2219 = vadd.f32 %v2161, %v2192
      %v2220 = vadd.f32 %v2161, %v2196
      %v2221 = vadd.f32 %v2165, %v2192
      %v2222 = vadd.f32 %v2165, %v2196
      %v2223 = vadd.f32 %v2169, %v2192
      %v2224 = vadd.f32 %v2169, %v2196
      %v2225 = vadd.f32 %v2173, %v2192
      %v2226 = vadd.f32 %v2173, %v2196
      %v2227 = vadd.f32 %v2177, %v2192
      %v2228 = vadd.f32 %v2177, %v2196
      %vm2229 = vcmp.gt.f32.partialorder %v2197, 0.0
      %vm2230 = vcmp.gt.f32.partialorder %v2198, 0.0
      %vm2231 = vcmp.gt.f32.partialorder %v2199, 0.0
      %vm2232 = vcmp.gt.f32.partialorder %v2200, 0.0
      %vm2233 = vcmp.gt.f32.partialorder %v2201, 0.0
      %vm2234 = vcmp.gt.f32.partialorder %v2202, 0.0
      %vm2235 = vcmp.gt.f32.partialorder %v2203, 0.0
      %vm2236 = vcmp.gt.f32.partialorder %v2204, 0.0
      %vm2237 = vcmp.gt.f32.partialorder %v2205, 0.0
      %vm2238 = vcmp.gt.f32.partialorder %v2206, 0.0
      %vm2239 = vcmp.gt.f32.partialorder %v2207, 0.0
      %vm2240 = vcmp.gt.f32.partialorder %v2208, 0.0
      %vm2241 = vcmp.gt.f32.partialorder %v2209, 0.0
      %vm2242 = vcmp.gt.f32.partialorder %v2210, 0.0
      %vm2243 = vcmp.gt.f32.partialorder %v2211, 0.0
      %vm2244 = vcmp.gt.f32.partialorder %v2212, 0.0
      %vm2245 = vcmp.gt.f32.partialorder %v2213, 0.0
      %vm2246 = vcmp.gt.f32.partialorder %v2214, 0.0
      %vm2247 = vcmp.gt.f32.partialorder %v2215, 0.0
      %vm2248 = vcmp.gt.f32.partialorder %v2216, 0.0
      %vm2249 = vcmp.gt.f32.partialorder %v2217, 0.0
      %vm2250 = vcmp.gt.f32.partialorder %v2218, 0.0
      %vm2251 = vcmp.gt.f32.partialorder %v2219, 0.0
      %vm2252 = vcmp.gt.f32.partialorder %v2220, 0.0
      %vm2253 = vcmp.gt.f32.partialorder %v2221, 0.0
      %vm2254 = vcmp.gt.f32.partialorder %v2222, 0.0
      %vm2255 = vcmp.gt.f32.partialorder %v2223, 0.0
      %vm2256 = vcmp.gt.f32.partialorder %v2224, 0.0
      %vm2257 = vcmp.gt.f32.partialorder %v2225, 0.0
      %vm2258 = vcmp.gt.f32.partialorder %v2226, 0.0
      %vm2259 = vcmp.gt.f32.partialorder %v2227, 0.0
      %vm2260 = vcmp.gt.f32.partialorder %v2228, 0.0
      %v2261 = vmul.f32 %v2197, 0.2
      %v2262 = vmul.f32 %v2198, 0.2
      %v2263 = vmul.f32 %v2199, 0.2
      %v2264 = vmul.f32 %v2200, 0.2
      %v2265 = vmul.f32 %v2201, 0.2
      %v2266 = vmul.f32 %v2202, 0.2
      %v2267 = vmul.f32 %v2203, 0.2
      %v2268 = vmul.f32 %v2204, 0.2
      %v2269 = vmul.f32 %v2205, 0.2
      %v2270 = vmul.f32 %v2206, 0.2
      %v2271 = vmul.f32 %v2207, 0.2
      %v2272 = vmul.f32 %v2208, 0.2
      %v2273 = vmul.f32 %v2209, 0.2
      %v2274 = vmul.f32 %v2210, 0.2
      %v2275 = vmul.f32 %v2211, 0.2
      %v2276 = vmul.f32 %v2212, 0.2
      %v2277 = vmul.f32 %v2213, 0.2
      %v2278 = vmul.f32 %v2214, 0.2
      %v2279 = vmul.f32 %v2215, 0.2
      %v2280 = vmul.f32 %v2216, 0.2
      %v2281 = vmul.f32 %v2217, 0.2
      %v2282 = vmul.f32 %v2218, 0.2
      %v2283 = vmul.f32 %v2219, 0.2
      %v2284 = vmul.f32 %v2220, 0.2
      %v2285 = vmul.f32 %v2221, 0.2
      %v2286 = vmul.f32 %v2222, 0.2
      %v2287 = vmul.f32 %v2223, 0.2
      %v2288 = vmul.f32 %v2224, 0.2
      %v2289 = vmul.f32 %v2225, 0.2
      %v2290 = vmul.f32 %v2226, 0.2
      %v2291 = vmul.f32 %v2227, 0.2
      %v2292 = vmul.f32 %v2228, 0.2
      %v2293 = vsel %vm2229, %v2197, %v2261
      %v2294 = vsel %vm2230, %v2198, %v2262
      %v2295 = vsel %vm2231, %v2199, %v2263
      %v2296 = vsel %vm2232, %v2200, %v2264
      %v2297 = vsel %vm2233, %v2201, %v2265
      %v2298 = vsel %vm2234, %v2202, %v2266
      %v2299 = vsel %vm2235, %v2203, %v2267
      %v2300 = vsel %vm2236, %v2204, %v2268
      %v2301 = vsel %vm2237, %v2205, %v2269
      %v2302 = vsel %vm2238, %v2206, %v2270
      %v2303 = vsel %vm2239, %v2207, %v2271
      %v2304 = vsel %vm2240, %v2208, %v2272
      %v2305 = vsel %vm2241, %v2209, %v2273
      %v2306 = vsel %vm2242, %v2210, %v2274
      %v2307 = vsel %vm2243, %v2211, %v2275
      %v2308 = vsel %vm2244, %v2212, %v2276
      %v2309 = vsel %vm2245, %v2213, %v2277
      %v2310 = vsel %vm2246, %v2214, %v2278
      %v2311 = vsel %vm2247, %v2215, %v2279
      %v2312 = vsel %vm2248, %v2216, %v2280
      %v2313 = vsel %vm2249, %v2217, %v2281
      %v2314 = vsel %vm2250, %v2218, %v2282
      %v2315 = vsel %vm2251, %v2219, %v2283
      %v2316 = vsel %vm2252, %v2220, %v2284
      %v2317 = vsel %vm2253, %v2221, %v2285
      %v2318 = vsel %vm2254, %v2222, %v2286
      %v2319 = vsel %vm2255, %v2223, %v2287
      %v2320 = vsel %vm2256, %v2224, %v2288
      %v2321 = vsel %vm2257, %v2225, %v2289
      %v2322 = vsel %vm2258, %v2226, %v2290
      %v2323 = vsel %vm2259, %v2227, %v2291
      %v2324 = vsel %vm2260, %v2228, %v2292
      %v2325 = vsel %vm1352, %v2293, -1e+30
      %v2326 = vsel %vm1353, %v2294, -1e+30
      %v2327 = vsel %vm1354, %v2295, -1e+30
      %v2328 = vsel %vm1355, %v2296, -1e+30
      %v2329 = vsel %vm1356, %v2297, -1e+30
      %v2330 = vsel %vm1357, %v2298, -1e+30
      %v2331 = vsel %vm1358, %v2299, -1e+30
      %v2332 = vsel %vm1359, %v2300, -1e+30
      %v2333 = vsel %vm1360, %v2301, -1e+30
      %v2334 = vsel %vm1361, %v2302, -1e+30
      %v2335 = vsel %vm1362, %v2303, -1e+30
      %v2336 = vsel %vm1363, %v2304, -1e+30
      %v2337 = vsel %vm1364, %v2305, -1e+30
      %v2338 = vsel %vm1365, %v2306, -1e+30
      %v2339 = vsel %vm1366, %v2307, -1e+30
      %v2340 = vsel %vm1367, %v2308, -1e+30
      %v2341 = vsel %vm1368, %v2309, -1e+30
      %v2342 = vsel %vm1369, %v2310, -1e+30
      %v2343 = vsel %vm1370, %v2311, -1e+30
      %v2344 = vsel %vm1371, %v2312, -1e+30
      %v2345 = vsel %vm1372, %v2313, -1e+30
      %v2346 = vsel %vm1373, %v2314, -1e+30
      %v2347 = vsel %vm1374, %v2315, -1e+30
      %v2348 = vsel %vm1375, %v2316, -1e+30
      %v2349 = vsel %vm1376, %v2317, -1e+30
      %v2350 = vsel %vm1377, %v2318, -1e+30
      %v2351 = vsel %vm1378, %v2319, -1e+30
      %v2352 = vsel %vm1379, %v2320, -1e+30
      %v2353 = vsel %vm1380, %v2321, -1e+30
      %v2354 = vsel %vm1381, %v2322, -1e+30
      %v2355 = vsel %vm1382, %v2323, -1e+30
      %v2356 = vsel %vm1383, %v2324, -1e+30
      %v2357 = vmax.f32 %v2325, %v2326
      %2358 = vmax.xlane.f32.xlu0 %v2357
      %v2359 = vpop.xlane.xlu0 %2358
      %v2360 = vmax.f32 %v2327, %v2328
      %2361 = vmax.xlane.f32.xlu0 %v2360
      %v2362 = vpop.xlane.xlu0 %2361
      %v2363 = vmax.f32 %v2329, %v2330
      %2364 = vmax.xlane.f32.xlu0 %v2363
      %v2365 = vpop.xlane.xlu0 %2364
      %v2366 = vmax.f32 %v2331, %v2332
      %2367 = vmax.xlane.f32.xlu0 %v2366
      %v2368 = vpop.xlane.xlu0 %2367
      %v2369 = vmax.f32 %v2333, %v2334
      %2370 = vmax.xlane.f32.xlu0 %v2369
      %v2371 = vpop.xlane.xlu0 %2370
      %v2372 = vmax.f32 %v2335, %v2336
      %2373 = vmax.xlane.f32.xlu0 %v2372
      %v2374 = vpop.xlane.xlu0 %2373
      %v2375 = vmax.f32 %v2337, %v2338
      %2376 = vmax.xlane.f32.xlu0 %v2375
      %v2377 = vpop.xlane.xlu0 %2376
      %v2378 = vmax.f32 %v2339, %v2340
      %2379 = vmax.xlane.f32.xlu0 %v2378
      %v2380 = vpop.xlane.xlu0 %2379
      %v2381 = vmax.f32 %v2341, %v2342
      %2382 = vmax.xlane.f32.xlu0 %v2381
      %v2383 = vpop.xlane.xlu0 %2382
      %v2384 = vmax.f32 %v2343, %v2344
      %2385 = vmax.xlane.f32.xlu0 %v2384
      %v2386 = vpop.xlane.xlu0 %2385
      %v2387 = vmax.f32 %v2345, %v2346
      %2388 = vmax.xlane.f32.xlu0 %v2387
      %v2389 = vpop.xlane.xlu0 %2388
      %v2390 = vmax.f32 %v2347, %v2348
      %2391 = vmax.xlane.f32.xlu0 %v2390
      %v2392 = vpop.xlane.xlu0 %2391
      %v2393 = vmax.f32 %v2349, %v2350
      %2394 = vmax.xlane.f32.xlu0 %v2393
      %v2395 = vpop.xlane.xlu0 %2394
      %v2396 = vmax.f32 %v2351, %v2352
      %2397 = vmax.xlane.f32.xlu0 %v2396
      %v2398 = vpop.xlane.xlu0 %2397
      %v2399 = vmax.f32 %v2353, %v2354
      %2400 = vmax.xlane.f32.xlu0 %v2399
      %v2401 = vpop.xlane.xlu0 %2400
      %v2402 = vmax.f32 %v2355, %v2356
      %2403 = vmax.xlane.f32.xlu0 %v2402
      %v2404 = vpop.xlane.xlu0 %2403
      %v2405 = vsub.f32 %v2325, %v2359
      %v2406 = vsub.f32 %v2326, %v2359
      %v2407 = vsub.f32 %v2327, %v2362
      %v2408 = vsub.f32 %v2328, %v2362
      %v2409 = vsub.f32 %v2329, %v2365
      %v2410 = vsub.f32 %v2330, %v2365
      %v2411 = vsub.f32 %v2331, %v2368
      %v2412 = vsub.f32 %v2332, %v2368
      %v2413 = vsub.f32 %v2333, %v2371
      %v2414 = vsub.f32 %v2334, %v2371
      %v2415 = vsub.f32 %v2335, %v2374
      %v2416 = vsub.f32 %v2336, %v2374
      %v2417 = vsub.f32 %v2337, %v2377
      %v2418 = vsub.f32 %v2338, %v2377
      %v2419 = vsub.f32 %v2339, %v2380
      %v2420 = vsub.f32 %v2340, %v2380
      %v2421 = vsub.f32 %v2341, %v2383
      %v2422 = vsub.f32 %v2342, %v2383
      %v2423 = vsub.f32 %v2343, %v2386
      %v2424 = vsub.f32 %v2344, %v2386
      %v2425 = vsub.f32 %v2345, %v2389
      %v2426 = vsub.f32 %v2346, %v2389
      %v2427 = vsub.f32 %v2347, %v2392
      %v2428 = vsub.f32 %v2348, %v2392
      %v2429 = vsub.f32 %v2349, %v2395
      %v2430 = vsub.f32 %v2350, %v2395
      %v2431 = vsub.f32 %v2351, %v2398
      %v2432 = vsub.f32 %v2352, %v2398
      %v2433 = vsub.f32 %v2353, %v2401
      %v2434 = vsub.f32 %v2354, %v2401
      %v2435 = vsub.f32 %v2355, %v2404
      %v2436 = vsub.f32 %v2356, %v2404
      %v2437 = vmul.f32 %v2405, 1.442695
      %v2438 = vpow.pop %v2437
      %v2439 = vmul.f32 %v2406, 1.442695
      %v2440 = vpow.pop %v2439
      %v2441 = vmul.f32 %v2407, 1.442695
      %v2442 = vpow.pop %v2441
      %v2443 = vmul.f32 %v2408, 1.442695
      %v2444 = vpow.pop %v2443
      %v2445 = vmul.f32 %v2409, 1.442695
      %v2446 = vpow.pop %v2445
      %v2447 = vmul.f32 %v2410, 1.442695
      %v2448 = vpow.pop %v2447
      %v2449 = vmul.f32 %v2411, 1.442695
      %v2450 = vpow.pop %v2449
      %v2451 = vmul.f32 %v2412, 1.442695
      %v2452 = vpow.pop %v2451
      %v2453 = vmul.f32 %v2413, 1.442695
      %v2454 = vpow.pop %v2453
      %v2455 = vmul.f32 %v2414, 1.442695
      %v2456 = vpow.pop %v2455
      %v2457 = vmul.f32 %v2415, 1.442695
      %v2458 = vpow.pop %v2457
      %v2459 = vmul.f32 %v2416, 1.442695
      %v2460 = vpow.pop %v2459
      %v2461 = vmul.f32 %v2417, 1.442695
      %v2462 = vpow.pop %v2461
      %v2463 = vmul.f32 %v2418, 1.442695
      %v2464 = vpow.pop %v2463
      %v2465 = vmul.f32 %v2419, 1.442695
      %v2466 = vpow.pop %v2465
      %v2467 = vmul.f32 %v2420, 1.442695
      %v2468 = vpow.pop %v2467
      %v2469 = vmul.f32 %v2421, 1.442695
      %v2470 = vpow.pop %v2469
      %v2471 = vmul.f32 %v2422, 1.442695
      %v2472 = vpow.pop %v2471
      %v2473 = vmul.f32 %v2423, 1.442695
      %v2474 = vpow.pop %v2473
      %v2475 = vmul.f32 %v2424, 1.442695
      %v2476 = vpow.pop %v2475
      %v2477 = vmul.f32 %v2425, 1.442695
      %v2478 = vpow.pop %v2477
      %v2479 = vmul.f32 %v2426, 1.442695
      %v2480 = vpow.pop %v2479
      %v2481 = vmul.f32 %v2427, 1.442695
      %v2482 = vpow.pop %v2481
      %v2483 = vmul.f32 %v2428, 1.442695
      %v2484 = vpow.pop %v2483
      %v2485 = vmul.f32 %v2429, 1.442695
      %v2486 = vpow.pop %v2485
      %v2487 = vmul.f32 %v2430, 1.442695
      %v2488 = vpow.pop %v2487
      %v2489 = vmul.f32 %v2431, 1.442695
      %v2490 = vpow.pop %v2489
      %v2491 = vmul.f32 %v2432, 1.442695
      %v2492 = vpow.pop %v2491
      %v2493 = vmul.f32 %v2433, 1.442695
      %v2494 = vpow.pop %v2493
      %v2495 = vmul.f32 %v2434, 1.442695
      %v2496 = vpow.pop %v2495
      %v2497 = vmul.f32 %v2435, 1.442695
      %v2498 = vpow.pop %v2497
      %v2499 = vmul.f32 %v2436, 1.442695
      %v2500 = vpow.pop %v2499
      %v2501 = vpack.c.bf16 %v2442, %v2438
      %v2502 = vpack.c.bf16 %v2444, %v2440
      %v2503 = vpack.c.bf16 %v2450, %v2446
      %v2504 = vpack.c.bf16 %v2452, %v2448
      %v2505 = vpack.c.bf16 %v2458, %v2454
      %v2506 = vpack.c.bf16 %v2460, %v2456
      %v2507 = vpack.c.bf16 %v2466, %v2462
      %v2508 = vpack.c.bf16 %v2468, %v2464
      %v2509 = vpack.c.bf16 %v2474, %v2470
      %v2510 = vpack.c.bf16 %v2476, %v2472
      %v2511 = vpack.c.bf16 %v2482, %v2478
      %v2512 = vpack.c.bf16 %v2484, %v2480
      %v2513 = vpack.c.bf16 %v2490, %v2486
      %v2514 = vpack.c.bf16 %v2492, %v2488
      %v2515 = vpack.c.bf16 %v2498, %v2494
      %v2516 = vpack.c.bf16 %v2500, %v2496
      %2533 = vrot.lane.b32.xlu0 %v1821, 111
      %v2534 = vpop.permute.xlu0 %2533
      %2535 = vrot.lane.b32.xlu0 %v1822, 111
      %v2536 = vpop.permute.xlu0 %2535
      %2537 = vrot.lane.b32.xlu0 %v1823, 111
      %v2538 = vpop.permute.xlu0 %2537
      %2539 = vrot.lane.b32.xlu0 %v1824, 111
      %v2540 = vpop.permute.xlu0 %2539
      %2541 = vrot.lane.b32.xlu0 %v1825, 111
      %v2542 = vpop.permute.xlu0 %2541
      %2543 = vrot.lane.b32.xlu0 %v1826, 111
      %v2544 = vpop.permute.xlu0 %2543
      %2545 = vrot.lane.b32.xlu0 %v1827, 111
      %v2546 = vpop.permute.xlu0 %2545
      %2547 = vrot.lane.b32.xlu0 %v1828, 111
      %v2548 = vpop.permute.xlu0 %2547
      %2549 = vrot.lane.b32.xlu0 %v1829, 111
      %v2550 = vpop.permute.xlu0 %2549
      %2551 = vrot.lane.b32.xlu0 %v1830, 111
      %v2552 = vpop.permute.xlu0 %2551
      %2553 = vrot.lane.b32.xlu0 %v1831, 111
      %v2554 = vpop.permute.xlu0 %2553
      %2555 = vrot.lane.b32.xlu0 %v1832, 111
      %v2556 = vpop.permute.xlu0 %2555
      %2557 = vrot.lane.b32.xlu0 %v1833, 111
      %v2558 = vpop.permute.xlu0 %2557
      %2559 = vrot.lane.b32.xlu0 %v1834, 111
      %v2560 = vpop.permute.xlu0 %2559
      %2561 = vrot.lane.b32.xlu0 %v1835, 111
      %v2562 = vpop.permute.xlu0 %2561
      %2563 = vrot.lane.b32.xlu0 %v1836, 111
      %v2564 = vpop.permute.xlu0 %2563
      %2581 = vmatprep.subr.bf16.mxu0 0
      %2582 = vmatpush1.bf16.msra.mxu0 %v2534
      %2583 = vmatprep.subr.bf16.mxu0 0
      %2584 = vmatpush1.bf16.msra.mxu0 %v2536
      %2585 = vmatprep.subr.bf16.mxu0 0
      %2586 = vmatpush1.bf16.msra.mxu0 %v2538
      %2587 = vmatprep.subr.bf16.mxu0 0
      %2588 = vmatpush1.bf16.msra.mxu0 %v2540
      %2589 = vmatprep.subr.bf16.mxu0 0
      %2590 = vmatpush1.bf16.msra.mxu0 %v2542
      %2591 = vmatprep.subr.bf16.mxu0 0
      %2592 = vmatpush1.bf16.msra.mxu0 %v2544
      %2593 = vmatprep.subr.bf16.mxu0 0
      %2594 = vmatpush1.bf16.msra.mxu0 %v2546
      %2595 = vmatprep.subr.bf16.mxu0 0
      %2596 = vmatpush1.bf16.msra.mxu0 %v2548
      %2597 = vmatprep.subr.bf16.mxu0 0
      %2598 = vmatpush1.bf16.msra.mxu0 %v2550
      %2599 = vmatprep.subr.bf16.mxu0 0
      %2600 = vmatpush1.bf16.msra.mxu0 %v2552
      %2601 = vmatprep.subr.bf16.mxu0 0
      %2602 = vmatpush1.bf16.msra.mxu0 %v2554
      %2603 = vmatprep.subr.bf16.mxu0 0
      %2604 = vmatpush1.bf16.msra.mxu0 %v2556
      %2605 = vmatprep.subr.bf16.mxu0 0
      %2606 = vmatpush1.bf16.msra.mxu0 %v2558
      %2607 = vmatprep.subr.bf16.mxu0 0
      %2608 = vmatpush1.bf16.msra.mxu0 %v2560
      %2609 = vmatprep.subr.bf16.mxu0 0
      %2610 = vmatpush1.bf16.msra.mxu0 %v2562
      %2611 = vmatprep.subr.bf16.mxu0 0
      %2612 = vmatpush1.bf16.msra.mxu0 %v2564
      %2613 = vmatprep.mubr.bf16.mxu0 %v2502
      %2614 = vmatmul.mubr.bf16.gmra.mrb[0].mxu0 %v2501
      %v2615 = vpop.f32.mrb[0].mxu0
      %v2616 = vadd.f32 0.0, %v2615
      %v2617 = vpop.f32.mrb[0].mxu0
      %v2618 = vpop.f32.mrb[0].mxu0
      %v2619 = vadd.f32 0.0, %v2618
      %v2620 = vpop.f32.mrb[0].mxu0
      %2621 = vmatprep.mubr.bf16.mxu0 %v2504
      %2622 = vmatmul.mubr.bf16.gmra.mrb[0].mxu0 %v2503
      %v2623 = vpop.f32.mrb[0].mxu0
      %v2624 = vadd.f32 0.0, %v2623
      %v2625 = vpop.f32.mrb[0].mxu0
      %v2626 = vpop.f32.mrb[0].mxu0
      %v2627 = vadd.f32 0.0, %v2626
      %v2628 = vpop.f32.mrb[0].mxu0
      %2629 = vmatprep.mubr.bf16.mxu0 %v2506
      %2630 = vmatmul.mubr.bf16.gmra.mrb[0].mxu0 %v2505
      %v2631 = vpop.f32.mrb[0].mxu0
      %v2632 = vadd.f32 0.0, %v2631
      %v2633 = vpop.f32.mrb[0].mxu0
      %v2634 = vpop.f32.mrb[0].mxu0
      %v2635 = vadd.f32 0.0, %v2634
      %v2636 = vpop.f32.mrb[0].mxu0
      %2637 = vmatprep.mubr.bf16.mxu0 %v2508
      %2638 = vmatmul.mubr.bf16.gmra.mrb[0].mxu0 %v2507
      %v2639 = vpop.f32.mrb[0].mxu0
      %v2640 = vadd.f32 0.0, %v2639
      %v2641 = vpop.f32.mrb[0].mxu0
      %v2642 = vpop.f32.mrb[0].mxu0
      %v2643 = vadd.f32 0.0, %v2642
      %v2644 = vpop.f32.mrb[0].mxu0
      %2645 = vmatprep.mubr.bf16.mxu0 %v2510
      %2646 = vmatmul.mubr.bf16.gmra.mrb[0].mxu0 %v2509
      %v2647 = vpop.f32.mrb[0].mxu0
      %v2648 = vadd.f32 0.0, %v2647
      %v2649 = vpop.f32.mrb[0].mxu0
      %v2650 = vpop.f32.mrb[0].mxu0
      %v2651 = vadd.f32 0.0, %v2650
      %v2652 = vpop.f32.mrb[0].mxu0
      %2653 = vmatprep.mubr.bf16.mxu0 %v2512
      %2654 = vmatmul.mubr.bf16.gmra.mrb[0].mxu0 %v2511
      %v2655 = vpop.f32.mrb[0].mxu0
      %v2656 = vadd.f32 0.0, %v2655
      %v2657 = vpop.f32.mrb[0].mxu0
      %v2658 = vpop.f32.mrb[0].mxu0
      %v2659 = vadd.f32 0.0, %v2658
      %v2660 = vpop.f32.mrb[0].mxu0
      %2661 = vmatprep.mubr.bf16.mxu0 %v2514
      %2662 = vmatmul.mubr.bf16.gmra.mrb[0].mxu0 %v2513
      %v2663 = vpop.f32.mrb[0].mxu0
      %v2664 = vadd.f32 0.0, %v2663
      %v2665 = vpop.f32.mrb[0].mxu0
      %v2666 = vpop.f32.mrb[0].mxu0
      %v2667 = vadd.f32 0.0, %v2666
      %v2668 = vpop.f32.mrb[0].mxu0
      %2669 = vmatprep.mubr.bf16.mxu0 %v2516
      %2670 = vmatmul.mubr.bf16.gmra.mrb[0].mxu0 %v2515
      %v2671 = vpop.f32.mrb[0].mxu0
      %v2672 = vadd.f32 0.0, %v2671
      %v2673 = vpop.f32.mrb[0].mxu0
      %v2674 = vpop.f32.mrb[0].mxu0
      %v2675 = vadd.f32 0.0, %v2674
      %v2676 = vpop.f32.mrb[0].mxu0
      %2677 = vdwg.mxu0
      %v2678 = vrcp.pop %v2616
      %v2679 = vrcp.pop %v2619
      %v2680 = vrcp.pop %v2624
      %v2681 = vrcp.pop %v2627
      %v2682 = vrcp.pop %v2632
      %v2683 = vrcp.pop %v2635
      %v2684 = vrcp.pop %v2640
      %v2685 = vrcp.pop %v2643
      %v2686 = vrcp.pop %v2648
      %v2687 = vrcp.pop %v2651
      %v2688 = vrcp.pop %v2656
      %v2689 = vrcp.pop %v2659
      %v2690 = vrcp.pop %v2664
      %v2691 = vrcp.pop %v2667
      %v2692 = vrcp.pop %v2672
      %v2693 = vrcp.pop %v2675
      %2695 = vset.pattern.permute.xlu0 16
      %2696 = vperm.xlu0 %2695, %v2678
      %v2697 = vpop.permute.xlu0 %2696
      %2700 = vset.pattern.permute.xlu0 16
      %2701 = vperm.xlu0 %2700, %v2679
      %v2702 = vpop.permute.xlu0 %2701
      %2705 = vset.pattern.permute.xlu0 16
      %2706 = vperm.xlu0 %2705, %v2680
      %v2707 = vpop.permute.xlu0 %2706
      %2710 = vset.pattern.permute.xlu0 16
      %2711 = vperm.xlu0 %2710, %v2681
      %v2712 = vpop.permute.xlu0 %2711
      %2715 = vset.pattern.permute.xlu0 16
      %2716 = vperm.xlu0 %2715, %v2682
      %v2717 = vpop.permute.xlu0 %2716
      %2720 = vset.pattern.permute.xlu0 16
      %2721 = vperm.xlu0 %2720, %v2683
      %v2722 = vpop.permute.xlu0 %2721
      %2725 = vset.pattern.permute.xlu0 16
      %2726 = vperm.xlu0 %2725, %v2684
      %v2727 = vpop.permute.xlu0 %2726
      %2730 = vset.pattern.permute.xlu0 16
      %2731 = vperm.xlu0 %2730, %v2685
      %v2732 = vpop.permute.xlu0 %2731
      %2735 = vset.pattern.permute.xlu0 16
      %2736 = vperm.xlu0 %2735, %v2686
      %v2737 = vpop.permute.xlu0 %2736
      %2740 = vset.pattern.permute.xlu0 16
      %2741 = vperm.xlu0 %2740, %v2687
      %v2742 = vpop.permute.xlu0 %2741
      %2745 = vset.pattern.permute.xlu0 16
      %2746 = vperm.xlu0 %2745, %v2688
      %v2747 = vpop.permute.xlu0 %2746
      %2750 = vset.pattern.permute.xlu0 16
      %2751 = vperm.xlu0 %2750, %v2689
      %v2752 = vpop.permute.xlu0 %2751
      %2755 = vset.pattern.permute.xlu0 16
      %2756 = vperm.xlu0 %2755, %v2690
      %v2757 = vpop.permute.xlu0 %2756
      %2760 = vset.pattern.permute.xlu0 16
      %2761 = vperm.xlu0 %2760, %v2691
      %v2762 = vpop.permute.xlu0 %2761
      %2765 = vset.pattern.permute.xlu0 16
      %2766 = vperm.xlu0 %2765, %v2692
      %v2767 = vpop.permute.xlu0 %2766
      %2770 = vset.pattern.permute.xlu0 16
      %2771 = vperm.xlu0 %2770, %v2693
      %v2772 = vpop.permute.xlu0 %2771
      %v2774 = vmul.f32 %v2616, %v2697
      %v2775 = vmul.f32 %v2619, %v2702
      %v2776 = vmul.f32 %v2624, %v2707
      %v2777 = vmul.f32 %v2627, %v2712
      %v2778 = vmul.f32 %v2632, %v2717
      %v2779 = vmul.f32 %v2635, %v2722
      %v2780 = vmul.f32 %v2640, %v2727
      %v2781 = vmul.f32 %v2643, %v2732
      %v2782 = vmul.f32 %v2648, %v2737
      %v2783 = vmul.f32 %v2651, %v2742
      %v2784 = vmul.f32 %v2656, %v2747
      %v2785 = vmul.f32 %v2659, %v2752
      %v2786 = vmul.f32 %v2664, %v2757
      %v2787 = vmul.f32 %v2667, %v2762
      %v2788 = vmul.f32 %v2672, %v2767
      %v2789 = vmul.f32 %v2675, %v2772
      %v2790 = vld [vmem:[%s4 + $0x1] sm:$0x1]
      %v2791 = vlaneseq
      %v2792 = vshrl.u32 %v2791, 7
      %v2793 = vsub.s32 0, %v2792
      %v2794 = vrot.slane %v2790, %v2793
      %v2795 = vadd.f32 %v2774, %v2794
      %v2796 = vadd.f32 %v2775, %v2794
      %v2797 = vadd.f32 %v2776, %v2794
      %v2798 = vadd.f32 %v2777, %v2794
      %v2799 = vadd.f32 %v2778, %v2794
      %v2800 = vadd.f32 %v2779, %v2794
      %v2801 = vadd.f32 %v2780, %v2794
      %v2802 = vadd.f32 %v2781, %v2794
      %v2803 = vadd.f32 %v2782, %v2794
      %v2804 = vadd.f32 %v2783, %v2794
      %v2805 = vadd.f32 %v2784, %v2794
      %v2806 = vadd.f32 %v2785, %v2794
      %v2807 = vadd.f32 %v2786, %v2794
      %v2808 = vadd.f32 %v2787, %v2794
      %v2809 = vadd.f32 %v2788, %v2794
      %v2810 = vadd.f32 %v2789, %v2794
      %vm2811 = vcmp.gt.f32.partialorder %v2795, 0.0
      %vm2812 = vcmp.gt.f32.partialorder %v2796, 0.0
      %vm2813 = vcmp.gt.f32.partialorder %v2797, 0.0
      %vm2814 = vcmp.gt.f32.partialorder %v2798, 0.0
      %vm2815 = vcmp.gt.f32.partialorder %v2799, 0.0
      %vm2816 = vcmp.gt.f32.partialorder %v2800, 0.0
      %vm2817 = vcmp.gt.f32.partialorder %v2801, 0.0
      %vm2818 = vcmp.gt.f32.partialorder %v2802, 0.0
      %vm2819 = vcmp.gt.f32.partialorder %v2803, 0.0
      %vm2820 = vcmp.gt.f32.partialorder %v2804, 0.0
      %vm2821 = vcmp.gt.f32.partialorder %v2805, 0.0
      %vm2822 = vcmp.gt.f32.partialorder %v2806, 0.0
      %vm2823 = vcmp.gt.f32.partialorder %v2807, 0.0
      %vm2824 = vcmp.gt.f32.partialorder %v2808, 0.0
      %vm2825 = vcmp.gt.f32.partialorder %v2809, 0.0
      %vm2826 = vcmp.gt.f32.partialorder %v2810, 0.0
      %v2827 = vmul.f32 %v2795, 0.01
      %v2828 = vmul.f32 %v2796, 0.01
      %v2829 = vmul.f32 %v2797, 0.01
      %v2830 = vmul.f32 %v2798, 0.01
      %v2831 = vmul.f32 %v2799, 0.01
      %v2832 = vmul.f32 %v2800, 0.01
      %v2833 = vmul.f32 %v2801, 0.01
      %v2834 = vmul.f32 %v2802, 0.01
      %v2835 = vmul.f32 %v2803, 0.01
      %v2836 = vmul.f32 %v2804, 0.01
      %v2837 = vmul.f32 %v2805, 0.01
      %v2838 = vmul.f32 %v2806, 0.01
      %v2839 = vmul.f32 %v2807, 0.01
      %v2840 = vmul.f32 %v2808, 0.01
      %v2841 = vmul.f32 %v2809, 0.01
      %v2842 = vmul.f32 %v2810, 0.01
      %v2843 = vsel %vm2811, %v2795, %v2827
      %v2844 = vsel %vm2812, %v2796, %v2828
      %v2845 = vsel %vm2813, %v2797, %v2829
      %v2846 = vsel %vm2814, %v2798, %v2830
      %v2847 = vsel %vm2815, %v2799, %v2831
      %v2848 = vsel %vm2816, %v2800, %v2832
      %v2849 = vsel %vm2817, %v2801, %v2833
      %v2850 = vsel %vm2818, %v2802, %v2834
      %v2851 = vsel %vm2819, %v2803, %v2835
      %v2852 = vsel %vm2820, %v2804, %v2836
      %v2853 = vsel %vm2821, %v2805, %v2837
      %v2854 = vsel %vm2822, %v2806, %v2838
      %v2855 = vsel %vm2823, %v2807, %v2839
      %v2856 = vsel %vm2824, %v2808, %v2840
      %v2857 = vsel %vm2825, %v2809, %v2841
      %v2858 = vsel %vm2826, %v2810, %v2842
      %v2859 = vadd.f32 %v2099, %v2843
      %v2860 = vadd.f32 %v2100, %v2844
      %v2861 = vadd.f32 %v2101, %v2845
      %v2862 = vadd.f32 %v2102, %v2846
      %v2863 = vadd.f32 %v2103, %v2847
      %v2864 = vadd.f32 %v2104, %v2848
      %v2865 = vadd.f32 %v2105, %v2849
      %v2866 = vadd.f32 %v2106, %v2850
      %v2867 = vadd.f32 %v2107, %v2851
      %v2868 = vadd.f32 %v2108, %v2852
      %v2869 = vadd.f32 %v2109, %v2853
      %v2870 = vadd.f32 %v2110, %v2854
      %v2871 = vadd.f32 %v2111, %v2855
      %v2872 = vadd.f32 %v2112, %v2856
      %v2873 = vadd.f32 %v2113, %v2857
      %v2874 = vadd.f32 %v2114, %v2858
      %v2875 = vmul.f32 %v2859, 0.5
      %v2876 = vmul.f32 %v2860, 0.5
      %v2877 = vmul.f32 %v2861, 0.5
      %v2878 = vmul.f32 %v2862, 0.5
      %v2879 = vmul.f32 %v2863, 0.5
      %v2880 = vmul.f32 %v2864, 0.5
      %v2881 = vmul.f32 %v2865, 0.5
      %v2882 = vmul.f32 %v2866, 0.5
      %v2883 = vmul.f32 %v2867, 0.5
      %v2884 = vmul.f32 %v2868, 0.5
      %v2885 = vmul.f32 %v2869, 0.5
      %v2886 = vmul.f32 %v2870, 0.5
      %v2887 = vmul.f32 %v2871, 0.5
      %v2888 = vmul.f32 %v2872, 0.5
      %v2889 = vmul.f32 %v2873, 0.5
      %v2890 = vmul.f32 %v2874, 0.5
      %vm2891 = vcmask 130048
      %2892 = vst.msk [vmem:[%s229] sm:$0xff] %vm2891, %v2875
      %2893 = vst.msk [vmem:[%s229 + $0x8] sm:$0xff] %vm2891, %v2876
      %2894 = vst.msk [vmem:[%s229 + $0x10] sm:$0xff] %vm2891, %v2877
      %2895 = vst.msk [vmem:[%s229 + $0x18] sm:$0xff] %vm2891, %v2878
      %2896 = vst.msk [vmem:[%s229 + $0x20] sm:$0xff] %vm2891, %v2879
      %2897 = vst.msk [vmem:[%s229 + $0x28] sm:$0xff] %vm2891, %v2880
      %2898 = vst.msk [vmem:[%s229 + $0x30] sm:$0xff] %vm2891, %v2881
      %2899 = vst.msk [vmem:[%s229 + $0x38] sm:$0xff] %vm2891, %v2882
      %2900 = vst.msk [vmem:[%s229 + $0x40] sm:$0xff] %vm2891, %v2883
      %2901 = vst.msk [vmem:[%s229 + $0x48] sm:$0xff] %vm2891, %v2884
      %2902 = vst.msk [vmem:[%s229 + $0x50] sm:$0xff] %vm2891, %v2885
      %2903 = vst.msk [vmem:[%s229 + $0x58] sm:$0xff] %vm2891, %v2886
      %2904 = vst.msk [vmem:[%s229 + $0x60] sm:$0xff] %vm2891, %v2887
      %2905 = vst.msk [vmem:[%s229 + $0x68] sm:$0xff] %vm2891, %v2888
      %2906 = vst.msk [vmem:[%s229 + $0x70] sm:$0xff] %vm2891, %v2889
      %2907 = vst.msk [vmem:[%s229 + $0x78] sm:$0xff] %vm2891, %v2890
      %s2908 = smul.u32 16, %s16
      %p2909 = scmp.lt.s32.totalorder %s2908, 31
      %s2910 = scalar_select %p2909, %s2908, 31
      %s2911 = smul.addr %s2910, 8
      %s2912 = scalar_lea.vmem %s5, %s2911
      // Predicated region
      $region45: #{conad_forward.4} parent=39 // pred_check
        %p2913 = pneg %p144
      $region46: #{conad_forward.4} parent=39 // pred_check_branch
        %2915 = sbr.rel (%p2913) target = $region48
      $region47: #{conad_forward.4} parent=39 // pred_region
        %s2916 = smul.u32 16, %s16
      $region48: #{conad_forward.4} parent=39 // pred_fallthru
        _
    $region40: #{conad_forward.4} parent=5 // pred_fallthru
      _
    %p2917 = scmp.le.s32.totalorder 2, %s11
    // Predicated region
    $region49: #{conad_forward.4} parent=5 // pred_check
      %p2918 = pneg %p2917
    $region50: #{conad_forward.4} parent=5 // pred_check_branch
      %2920 = sbr.rel (%p2918) target = $region52
    $region51: #{conad_forward.4} parent=5 // pred_region
      %s2921 = ssub.s32 %s11, 2
      // Predicated region
      $region53: #{conad_forward.4} parent=51 // pred_check
        %p2922 = pneg %p150
      $region54: #{conad_forward.4} parent=51 // pred_check_branch
        %2924 = sbr.rel (%p2922) target = $region56
      $region55: #{conad_forward.4} parent=51 // pred_region
        %s2925 = smul.u32 16, %s17
        %p2926 = scmp.lt.s32.totalorder %s2925, 31
        %s2927 = scalar_select %p2926, %s2925, 31
        %s2928 = smul.addr %s2927, 8
        %s2929 = scalar_lea.vmem %s5, %s2928
      $region56: #{conad_forward.4} parent=51 // pred_fallthru
        _
    $region52: #{conad_forward.4} parent=5 // pred_fallthru
      _
  $region6: #{conad_forward.4} parent=0 // loop_footer
    %s15 = sadd.s32 1, %s11
  $region7: #{conad_forward.4} parent=0 // loop_footer_branch
    %10 = sbr.rel target = $region3
  $region8: #{conad_forward.4} parent=0 // loop_exit
    _

// kernel: conad_forward.3
$region0: #{conad_forward.3}
  #allocation0 [shape = 'u32[]', space=smem, size = 0x4, offset = 0x4, fixed_abs, tag = 'smem constant byte address 0x4 - core index']
  #allocation1 [shape = 'u32[144,128]{1,0:T(1,128)}', space=vmem, size = 0x12000, scoped, tag = 'internal scratch']
  #allocation2 [shape = 'bf16[256,66]{1,0:T(16,128)(2,1)}', space=vmem, size = 0x10000, scoped, tag = 'scratch operand']
  #allocation3 [shape = 'f32[2,256]{1,0:T(2,128)}', space=vmem, size = 0x800, scoped, tag = 'scratch operand']
  #allocation4 [shape = 'f32[256,2]{1,0:T(8,128)}', space=vmem, size = 0x20000, scoped, tag = 'scratch operand']
  %s0 = inlined_call_operand.vmem [shape: f32[256,16], index: 0, kind: input, shape index: {}]
  %s1 = inlined_call_operand.vmem [shape: f32[256,256], index: 1, kind: input, shape index: {}]
  %s2 = inlined_call_operand.vmem [shape: f32[16,64], index: 2, kind: input, shape index: {}]
  %s3 = inlined_call_operand.vmem [shape: f32[64,4], index: 3, kind: input, shape index: {}]
  %s4 = inlined_call_operand.vmem [shape: f32[2,32], index: 4, kind: input, shape index: {}]
  %s5 = inlined_call_operand.vmem [shape: f32[256,64], index: 5, kind: output, shape index: {}]
  %s6 = sld [smem:[#allocation0]]
  $region57: #{conad_forward.3} parent=0
    _
  %s8 = ssub.s32 1, %s6
  %s9 = scalar_select 0, %s8, %s6
  loop: start=0, step=1, limit=4
  $region2: #{conad_forward.3} parent=0 // loop_pre_header
    _
  $region3: #{conad_forward.3} parent=0 // loop_header
    %s11 = sphi 0, %s15
    %p12 = scmp.ge.s32.totalorder %s11, 4
    %s19 = sphi 0, %s19
    %s21 = sphi 0, %s19
    %s22 = sphi 0, %s21
    %s36 = sphi 0, %s22
    %s42 = sphi 0, %s44
    %s45 = sphi 0, %s42
    %s46 = sphi 0, %s45
    %s62 = sphi 0, %s46
    %s66 = sphi 0, %s66
    %s68 = sphi 0, %s66
    %s69 = sphi 0, %s68
    %s83 = sphi 0, %s69
    %s87 = sphi 0, %s87
    %s89 = sphi 0, %s87
    %s90 = sphi 0, %s89
    %s104 = sphi 0, %s90
    %s108 = sphi 0, %s108
    %s110 = sphi 0, %s108
    %s111 = sphi 0, %s110
    %s125 = sphi 0, %s111
    %s131 = sphi 0, %s133
    %s134 = sphi 0, %s131
    %s135 = sphi 0, %s134
    %s151 = sphi 0, %s135
  $region4: #{conad_forward.3} parent=0 // loop_header_branch
    %14 = sbr.rel (%p12) target = $region8
  $region5: #{conad_forward.3} parent=0 // loop_body
    %s16 = ssub.s32 %s11, 1
    %s17 = ssub.s32 %s11, 2
    %s18 = sadd.s32 %s11, 1
    %s20 = sadd.s32 %s19, 1
    %p23 = scmp.eq.s32.totalorder %s11, 1
    %p24 = scmp.ne.s32.totalorder %s19, %s21
    %p25 = scmp.eq.s32.totalorder %s11, 0
    %p26 = por %p24, %p25
    %p27 = scmp.ne.s32.totalorder %s19, %s21
    %p28 = scmp.eq.s32.totalorder %s16, 1
    %p29 = por %p27, %p28
    %p30 = scmp.ne.s32.totalorder %s21, %s22
    %p31 = scmp.eq.s32.totalorder %s16, 0
    %p32 = por %p30, %p31
    %p33 = scmp.ne.s32.totalorder %s21, %s22
    %p34 = scmp.eq.s32.totalorder %s17, 1
    %p35 = por %p33, %p34
    %p37 = scmp.ne.s32.totalorder %s22, %s36
    %p38 = scmp.eq.s32.totalorder %s17, 0
    %p39 = por %p37, %p38
    %s40 = ssub.s32 %s11, %s18
    %p41 = scmp.eq.s32.totalorder %s40, 0
    %s43 = sadd.s32 %s42, 1
    %s44 = scalar_select %p41, %s42, %s43
    %p47 = pneg %p41
    %p48 = scmp.eq.s32.totalorder %s11, 1
    %p49 = por %p47, %p48
    %p50 = scmp.ne.s32.totalorder %s42, %s45
    %p51 = scmp.eq.s32.totalorder %s11, 0
    %p52 = por %p50, %p51
    %p53 = scmp.ne.s32.totalorder %s42, %s45
    %p54 = scmp.eq.s32.totalorder %s16, 1
    %p55 = por %p53, %p54
    %p56 = scmp.ne.s32.totalorder %s45, %s46
    %p57 = scmp.eq.s32.totalorder %s16, 0
    %p58 = por %p56, %p57
    %p59 = scmp.ne.s32.totalorder %s45, %s46
    %p60 = scmp.eq.s32.totalorder %s17, 1
    %p61 = por %p59, %p60
    %p63 = scmp.ne.s32.totalorder %s46, %s62
    %p64 = scmp.eq.s32.totalorder %s17, 0
    %p65 = por %p63, %p64
    %s67 = sadd.s32 %s66, 1
    %p70 = scmp.eq.s32.totalorder %s11, 1
    %p71 = scmp.ne.s32.totalorder %s66, %s68
    %p72 = scmp.eq.s32.totalorder %s11, 0
    %p73 = por %p71, %p72
    %p74 = scmp.ne.s32.totalorder %s66, %s68
    %p75 = scmp.eq.s32.totalorder %s16, 1
    %p76 = por %p74, %p75
    %p77 = scmp.ne.s32.totalorder %s68, %s69
    %p78 = scmp.eq.s32.totalorder %s16, 0
    %p79 = por %p77, %p78
    %p80 = scmp.ne.s32.totalorder %s68, %s69
    %p81 = scmp.eq.s32.totalorder %s17, 1
    %p82 = por %p80, %p81
    %p84 = scmp.ne.s32.totalorder %s69, %s83
    %p85 = scmp.eq.s32.totalorder %s17, 0
    %p86 = por %p84, %p85
    %s88 = sadd.s32 %s87, 1
    %p91 = scmp.eq.s32.totalorder %s11, 1
    %p92 = scmp.ne.s32.totalorder %s87, %s89
    %p93 = scmp.eq.s32.totalorder %s11, 0
    %p94 = por %p92, %p93
    %p95 = scmp.ne.s32.totalorder %s87, %s89
    %p96 = scmp.eq.s32.totalorder %s16, 1
    %p97 = por %p95, %p96
    %p98 = scmp.ne.s32.totalorder %s89, %s90
    %p99 = scmp.eq.s32.totalorder %s16, 0
    %p100 = por %p98, %p99
    %p101 = scmp.ne.s32.totalorder %s89, %s90
    %p102 = scmp.eq.s32.totalorder %s17, 1
    %p103 = por %p101, %p102
    %p105 = scmp.ne.s32.totalorder %s90, %s104
    %p106 = scmp.eq.s32.totalorder %s17, 0
    %p107 = por %p105, %p106
    %s109 = sadd.s32 %s108, 1
    %p112 = scmp.eq.s32.totalorder %s11, 1
    %p113 = scmp.ne.s32.totalorder %s108, %s110
    %p114 = scmp.eq.s32.totalorder %s11, 0
    %p115 = por %p113, %p114
    %p116 = scmp.ne.s32.totalorder %s108, %s110
    %p117 = scmp.eq.s32.totalorder %s16, 1
    %p118 = por %p116, %p117
    %p119 = scmp.ne.s32.totalorder %s110, %s111
    %p120 = scmp.eq.s32.totalorder %s16, 0
    %p121 = por %p119, %p120
    %p122 = scmp.ne.s32.totalorder %s110, %s111
    %p123 = scmp.eq.s32.totalorder %s17, 1
    %p124 = por %p122, %p123
    %p126 = scmp.ne.s32.totalorder %s111, %s125
    %p127 = scmp.eq.s32.totalorder %s17, 0
    %p128 = por %p126, %p127
    %s129 = ssub.s32 %s11, %s18
    %p130 = scmp.eq.s32.totalorder %s129, 0
    %s132 = sadd.s32 %s131, 1
    %s133 = scalar_select %p130, %s131, %s132
    %p136 = pneg %p130
    %p137 = scmp.eq.s32.totalorder %s11, 1
    %p138 = por %p136, %p137
    %p139 = scmp.ne.s32.totalorder %s131, %s134
    %p140 = scmp.eq.s32.totalorder %s11, 0
    %p141 = por %p139, %p140
    %p142 = scmp.ne.s32.totalorder %s131, %s134
    %p143 = scmp.eq.s32.totalorder %s16, 1
    %p144 = por %p142, %p143
    %p145 = scmp.ne.s32.totalorder %s134, %s135
    %p146 = scmp.eq.s32.totalorder %s16, 0
    %p147 = por %p145, %p146
    %p148 = scmp.ne.s32.totalorder %s134, %s135
    %p149 = scmp.eq.s32.totalorder %s17, 1
    %p150 = por %p148, %p149
    %p152 = scmp.ne.s32.totalorder %s135, %s151
    %p153 = scmp.eq.s32.totalorder %s17, 0
    %p154 = por %p152, %p153
    %p155 = scmp.le.s32.totalorder 1, %s11
    %p156 = scmp.lt.s32.totalorder %s11, 3
    %p157 = pnand %p155, %p156
    %p158 = pneg %p157
    // Predicated region
    $region9: #{conad_forward.3} parent=5 // pred_check
      _
    $region10: #{conad_forward.3} parent=5 // pred_check_branch
      %160 = sbr.rel (%p157) target = $region12
    $region11: #{conad_forward.3} parent=5 // pred_region
      %s161 = ssub.s32 %s11, 1
      // Predicated region
      $region13: #{conad_forward.3} parent=11 // pred_check
        %p162 = pneg %p32
      $region14: #{conad_forward.3} parent=11 // pred_check_branch
        %164 = sbr.rel (%p162) target = $region16
      $region15: #{conad_forward.3} parent=11 // pred_region
        _
      $region16: #{conad_forward.3} parent=11 // pred_fallthru
        _
      // Predicated region
      $region17: #{conad_forward.3} parent=11 // pred_check
        %p165 = pneg %p79
      $region18: #{conad_forward.3} parent=11 // pred_check_branch
        %167 = sbr.rel (%p165) target = $region20
      $region19: #{conad_forward.3} parent=11 // pred_region
        _
      $region20: #{conad_forward.3} parent=11 // pred_fallthru
        _
      // Predicated region
      $region21: #{conad_forward.3} parent=11 // pred_check
        %p168 = pneg %p100
      $region22: #{conad_forward.3} parent=11 // pred_check_branch
        %170 = sbr.rel (%p168) target = $region24
      $region23: #{conad_forward.3} parent=11 // pred_region
        _
      $region24: #{conad_forward.3} parent=11 // pred_fallthru
        _
      // Predicated region
      $region25: #{conad_forward.3} parent=11 // pred_check
        %p171 = pneg %p121
      $region26: #{conad_forward.3} parent=11 // pred_check_branch
        %173 = sbr.rel (%p171) target = $region28
      $region27: #{conad_forward.3} parent=11 // pred_region
        _
      $region28: #{conad_forward.3} parent=11 // pred_fallthru
        _
    $region12: #{conad_forward.3} parent=5 // pred_fallthru
      _
    %p174 = scmp.lt.s32.totalorder %s11, 2
    // Predicated region
    $region29: #{conad_forward.3} parent=5 // pred_check
      %p175 = pneg %p174
    $region30: #{conad_forward.3} parent=5 // pred_check_branch
      %177 = sbr.rel (%p175) target = $region32
    $region31: #{conad_forward.3} parent=5 // pred_region
      // Predicated region
      $region33: #{conad_forward.3} parent=31 // pred_check
        %p178 = pneg %p52
      $region34: #{conad_forward.3} parent=31 // pred_check_branch
        %180 = sbr.rel (%p178) target = $region36
      $region35: #{conad_forward.3} parent=31 // pred_region
        %s181 = smul.u32 16, %s11
        %p182 = scmp.lt.s32.totalorder %s181, 31
        %s183 = scalar_select %p182, %s181, 31
        %s184 = smul.addr %s183, 2
        %s185 = smul.addr %s184, 8
        %s186 = scalar_lea.vmem %s1, %s185
        %s187 = smul.u32 16, %s11
      $region36: #{conad_forward.3} parent=31 // pred_fallthru
        _
    $region32: #{conad_forward.3} parent=5 // pred_fallthru
      _
    %p188 = scmp.le.s32.totalorder 1, %s11
    %p189 = scmp.lt.s32.totalorder %s11, 3
    %p190 = pnand %p188, %p189
    %p191 = pneg %p190
    // Predicated region
    $region37: #{conad_forward.3} parent=5 // pred_check
      _
    $region38: #{conad_forward.3} parent=5 // pred_check_branch
      %193 = sbr.rel (%p190) target = $region40
    $region39: #{conad_forward.3} parent=5 // pred_region
      %s194 = ssub.s32 %s11, 1
      %p195 = pneg %p32
      %p196 = pneg %p29
      %s197 = smul.u32 16, %s16
      %p198 = scmp.lt.s32.totalorder %s197, 31
      %s199 = scalar_select %p198, %s197, 31
      %s200 = smul.addr %s199, 2
      %s201 = smul.addr %s200, 8
      %s202 = scalar_lea.vmem %s1, %s201
      %p203 = pneg %p58
      %p204 = pneg %p55
      %p205 = pneg %p79
      %p206 = pneg %p76
      %p207 = pneg %p100
      %p208 = pneg %p97
      %p209 = pneg %p121
      %p210 = pneg %p118
      %p211 = pneg %p147
      %p212 = pneg %p144
      %s213 = smul.u32 16, %s16
      %p214 = scmp.lt.s32.totalorder %s213, 31
      %s215 = scalar_select %p214, %s213, 31
      %s216 = smul.addr %s215, 8
      %s217 = scalar_lea.vmem %s5, %s216
      %s218 = smul.u32 16, %s16
      %p219 = scmp.lt.s32.totalorder %s218, 31
      %s220 = scalar_select %p219, %s218, 31
      %s221 = smul.addr %s220, 2
      %s222 = smul.addr %s221, 8
      %s223 = scalar_lea.vmem %s1, %s222
      %s224 = smul.u32 16, %s16
      %s225 = smul.u32 16, %s16
      %p226 = scmp.lt.s32.totalorder %s225, 31
      %s227 = scalar_select %p226, %s225, 31
      %s228 = smul.addr %s227, 8
      %s229 = scalar_lea.vmem %s5, %s228
      %s230 = smul.u32 16, %s16
      %s232 = smul.u32 %s16, 128
      %p233 = scmp.eq.s32.totalorder %s16, 0
      // Predicated region
      $region41: #{conad_forward.3} parent=39 // pred_check
        %p234 = pneg %p233
      $region42: #{conad_forward.3} parent=39 // pred_check_branch
        %236 = sbr.rel (%p234) target = $region44
      $region43: #{conad_forward.3} parent=39 // pred_region
        %v237 = vld [vmem:[%s0] sm:$0xff]
        %v238 = vld [vmem:[%s0 + $0x8] sm:$0xff]
        %v239 = vld [vmem:[%s0 + $0x10] sm:$0xff]
        %v240 = vld [vmem:[%s0 + $0x18] sm:$0xff]
        %v241 = vld [vmem:[%s0 + $0x20] sm:$0xff]
        %v242 = vld [vmem:[%s0 + $0x28] sm:$0xff]
        %v243 = vld [vmem:[%s0 + $0x30] sm:$0xff]
        %v244 = vld [vmem:[%s0 + $0x38] sm:$0xff]
        %v245 = vld [vmem:[%s0 + $0x40] sm:$0xff]
        %v246 = vld [vmem:[%s0 + $0x48] sm:$0xff]
        %v247 = vld [vmem:[%s0 + $0x50] sm:$0xff]
        %v248 = vld [vmem:[%s0 + $0x58] sm:$0xff]
        %v249 = vld [vmem:[%s0 + $0x60] sm:$0xff]
        %v250 = vld [vmem:[%s0 + $0x68] sm:$0xff]
        %v251 = vld [vmem:[%s0 + $0x70] sm:$0xff]
        %v252 = vld [vmem:[%s0 + $0x78] sm:$0xff]
        %v253 = vld [vmem:[%s0 + $0x80] sm:$0xff]
        %v254 = vld [vmem:[%s0 + $0x88] sm:$0xff]
        %v255 = vld [vmem:[%s0 + $0x90] sm:$0xff]
        %v256 = vld [vmem:[%s0 + $0x98] sm:$0xff]
        %v257 = vld [vmem:[%s0 + $0xa0] sm:$0xff]
        %v258 = vld [vmem:[%s0 + $0xa8] sm:$0xff]
        %v259 = vld [vmem:[%s0 + $0xb0] sm:$0xff]
        %v260 = vld [vmem:[%s0 + $0xb8] sm:$0xff]
        %v261 = vld [vmem:[%s0 + $0xc0] sm:$0xff]
        %v262 = vld [vmem:[%s0 + $0xc8] sm:$0xff]
        %v263 = vld [vmem:[%s0 + $0xd0] sm:$0xff]
        %v264 = vld [vmem:[%s0 + $0xd8] sm:$0xff]
        %v265 = vld [vmem:[%s0 + $0xe0] sm:$0xff]
        %v266 = vld [vmem:[%s0 + $0xe8] sm:$0xff]
        %v267 = vld [vmem:[%s0 + $0xf0] sm:$0xff]
        %v268 = vld [vmem:[%s0 + $0xf8] sm:$0xff]
        %v269 = vld [vmem:[%s2] sm:$0xff]
        %v270 = vld [vmem:[%s2 + $0x8] sm:$0xff]
        %vm271 = vcmask 130048
        %v273 = vsel %vm271, %v237, 0
        %v276 = vsel %vm271, %v238, 0
        %v279 = vsel %vm271, %v239, 0
        %v282 = vsel %vm271, %v240, 0
        %v285 = vsel %vm271, %v241, 0
        %v288 = vsel %vm271, %v242, 0
        %v291 = vsel %vm271, %v243, 0
        %v294 = vsel %vm271, %v244, 0
        %v297 = vsel %vm271, %v245, 0
        %v300 = vsel %vm271, %v246, 0
        %v303 = vsel %vm271, %v247, 0
        %v306 = vsel %vm271, %v248, 0
        %v309 = vsel %vm271, %v249, 0
        %v312 = vsel %vm271, %v250, 0
        %v315 = vsel %vm271, %v251, 0
        %v318 = vsel %vm271, %v252, 0
        %v321 = vsel %vm271, %v253, 0
        %v324 = vsel %vm271, %v254, 0
        %v327 = vsel %vm271, %v255, 0
        %v330 = vsel %vm271, %v256, 0
        %v333 = vsel %vm271, %v257, 0
        %v336 = vsel %vm271, %v258, 0
        %v339 = vsel %vm271, %v259, 0
        %v342 = vsel %vm271, %v260, 0
        %v345 = vsel %vm271, %v261, 0
        %v348 = vsel %vm271, %v262, 0
        %v351 = vsel %vm271, %v263, 0
        %v354 = vsel %vm271, %v264, 0
        %v357 = vsel %vm271, %v265, 0
        %v360 = vsel %vm271, %v266, 0
        %v363 = vsel %vm271, %v267, 0
        %v366 = vsel %vm271, %v268, 0
        %368 = vmatprep.subr.mxu0 0.0
        %369 = vmatpush1.msra.mxu0 %v269
        %370 = vmatprep.subr.mxu0 0.0
        %371 = vmatpush1.msra.mxu0 %v270
        %372 = vmatprep.subr.mxu0 0.0
        %373 = vmatpush1.msra.mxu0 0.0
        %374 = vmatprep.subr.mxu0 0.0
        %375 = vmatpush1.msra.mxu0 0.0
        %376 = vmatprep.subr.mxu0 0.0
        %377 = vmatpush1.msra.mxu0 0.0
        %378 = vmatprep.subr.mxu0 0.0
        %379 = vmatpush1.msra.mxu0 0.0
        %380 = vmatprep.subr.mxu0 0.0
        %381 = vmatpush1.msra.mxu0 0.0
        %382 = vmatprep.subr.mxu0 0.0
        %383 = vmatpush1.msra.mxu0 0.0
        %384 = vmatprep.subr.mxu0 0.0
        %385 = vmatpush1.msra.mxu0 0.0
        %386 = vmatprep.subr.mxu0 0.0
        %387 = vmatpush1.msra.mxu0 0.0
        %388 = vmatprep.subr.mxu0 0.0
        %389 = vmatpush1.msra.mxu0 0.0
        %390 = vmatprep.subr.mxu0 0.0
        %391 = vmatpush1.msra.mxu0 0.0
        %392 = vmatprep.subr.mxu0 0.0
        %393 = vmatpush1.msra.mxu0 0.0
        %394 = vmatprep.subr.mxu0 0.0
        %395 = vmatpush1.msra.mxu0 0.0
        %396 = vmatprep.subr.mxu0 0.0
        %397 = vmatpush1.msra.mxu0 0.0
        %398 = vmatprep.subr.mxu0 0.0
        %399 = vmatpush1.msra.mxu0 0.0
        %400 = vmatprep.subr.mxu0 0.0
        %401 = vmatpush1.msra.mxu0 0.0
        %402 = vmatprep.subr.mxu0 0.0
        %403 = vmatpush1.msra.mxu0 0.0
        %404 = vmatprep.subr.mxu0 0.0
        %405 = vmatpush1.msra.mxu0 0.0
        %406 = vmatprep.subr.mxu0 0.0
        %407 = vmatpush1.msra.mxu0 0.0
        %408 = vmatprep.subr.mxu0 0.0
        %409 = vmatpush1.msra.mxu0 0.0
        %410 = vmatprep.subr.mxu0 0.0
        %411 = vmatpush1.msra.mxu0 0.0
        %412 = vmatprep.subr.mxu0 0.0
        %413 = vmatpush1.msra.mxu0 0.0
        %414 = vmatprep.subr.mxu0 0.0
        %415 = vmatpush1.msra.mxu0 0.0
        %416 = vmatprep.subr.mxu0 0.0
        %417 = vmatpush1.msra.mxu0 0.0
        %418 = vmatprep.subr.mxu0 0.0
        %419 = vmatpush1.msra.mxu0 0.0
        %420 = vmatprep.subr.mxu0 0.0
        %421 = vmatpush1.msra.mxu0 0.0
        %422 = vmatprep.subr.mxu0 0.0
        %423 = vmatpush1.msra.mxu0 0.0
        %424 = vmatprep.subr.mxu0 0.0
        %425 = vmatpush1.msra.mxu0 0.0
        %426 = vmatprep.subr.mxu0 0.0
        %427 = vmatpush1.msra.mxu0 0.0
        %428 = vmatprep.subr.mxu0 0.0
        %429 = vmatpush1.msra.mxu0 0.0
        %430 = vmatprep.subr.mxu0 0.0
        %431 = vmatpush1.msra.mxu0 0.0
        %432 = vmatprep.mubr.f32.mxu0 0.0
        %433 = vmatmul.mubr.f32.gmra.mrb[0].mxu0 %v273
        %v434 = vpop.f32.mrb[0].mxu0
        %v435 = vadd.f32 0.0, %v434
        %v436 = vpop.f32.mrb[0].mxu0
        %437 = vmatprep.mubr.f32.mxu0 0.0
        %438 = vmatmul.mubr.f32.gmra.mrb[0].mxu0 %v276
        %v439 = vpop.f32.mrb[0].mxu0
        %v440 = vadd.f32 0.0, %v439
        %v441 = vpop.f32.mrb[0].mxu0
        %442 = vmatprep.mubr.f32.mxu0 0.0
        %443 = vmatmul.mubr.f32.gmra.mrb[0].mxu0 %v279
        %v444 = vpop.f32.mrb[0].mxu0
        %v445 = vadd.f32 0.0, %v444
        %v446 = vpop.f32.mrb[0].mxu0
        %447 = vmatprep.mubr.f32.mxu0 0.0
        %448 = vmatmul.mubr.f32.gmra.mrb[0].mxu0 %v282
        %v449 = vpop.f32.mrb[0].mxu0
        %v450 = vadd.f32 0.0, %v449
        %v451 = vpop.f32.mrb[0].mxu0
        %452 = vmatprep.mubr.f32.mxu0 0.0
        %453 = vmatmul.mubr.f32.gmra.mrb[0].mxu0 %v285
        %v454 = vpop.f32.mrb[0].mxu0
        %v455 = vadd.f32 0.0, %v454
        %v456 = vpop.f32.mrb[0].mxu0
        %457 = vmatprep.mubr.f32.mxu0 0.0
        %458 = vmatmul.mubr.f32.gmra.mrb[0].mxu0 %v288
        %v459 = vpop.f32.mrb[0].mxu0
        %v460 = vadd.f32 0.0, %v459
        %v461 = vpop.f32.mrb[0].mxu0
        %462 = vmatprep.mubr.f32.mxu0 0.0
        %463 = vmatmul.mubr.f32.gmra.mrb[0].mxu0 %v291
        %v464 = vpop.f32.mrb[0].mxu0
        %v465 = vadd.f32 0.0, %v464
        %v466 = vpop.f32.mrb[0].mxu0
        %467 = vmatprep.mubr.f32.mxu0 0.0
        %468 = vmatmul.mubr.f32.gmra.mrb[0].mxu0 %v294
        %v469 = vpop.f32.mrb[0].mxu0
        %v470 = vadd.f32 0.0, %v469
        %v471 = vpop.f32.mrb[0].mxu0
        %472 = vmatprep.mubr.f32.mxu0 0.0
        %473 = vmatmul.mubr.f32.gmra.mrb[0].mxu0 %v297
        %v474 = vpop.f32.mrb[0].mxu0
        %v475 = vadd.f32 0.0, %v474
        %v476 = vpop.f32.mrb[0].mxu0
        %477 = vmatprep.mubr.f32.mxu0 0.0
        %478 = vmatmul.mubr.f32.gmra.mrb[0].mxu0 %v300
        %v479 = vpop.f32.mrb[0].mxu0
        %v480 = vadd.f32 0.0, %v479
        %v481 = vpop.f32.mrb[0].mxu0
        %482 = vmatprep.mubr.f32.mxu0 0.0
        %483 = vmatmul.mubr.f32.gmra.mrb[0].mxu0 %v303
        %v484 = vpop.f32.mrb[0].mxu0
        %v485 = vadd.f32 0.0, %v484
        %v486 = vpop.f32.mrb[0].mxu0
        %487 = vmatprep.mubr.f32.mxu0 0.0
        %488 = vmatmul.mubr.f32.gmra.mrb[0].mxu0 %v306
        %v489 = vpop.f32.mrb[0].mxu0
        %v490 = vadd.f32 0.0, %v489
        %v491 = vpop.f32.mrb[0].mxu0
        %492 = vmatprep.mubr.f32.mxu0 0.0
        %493 = vmatmul.mubr.f32.gmra.mrb[0].mxu0 %v309
        %v494 = vpop.f32.mrb[0].mxu0
        %v495 = vadd.f32 0.0, %v494
        %v496 = vpop.f32.mrb[0].mxu0
        %497 = vmatprep.mubr.f32.mxu0 0.0
        %498 = vmatmul.mubr.f32.gmra.mrb[0].mxu0 %v312
        %v499 = vpop.f32.mrb[0].mxu0
        %v500 = vadd.f32 0.0, %v499
        %v501 = vpop.f32.mrb[0].mxu0
        %502 = vmatprep.mubr.f32.mxu0 0.0
        %503 = vmatmul.mubr.f32.gmra.mrb[0].mxu0 %v315
        %v504 = vpop.f32.mrb[0].mxu0
        %v505 = vadd.f32 0.0, %v504
        %v506 = vpop.f32.mrb[0].mxu0
        %507 = vmatprep.mubr.f32.mxu0 0.0
        %508 = vmatmul.mubr.f32.gmra.mrb[0].mxu0 %v318
        %v509 = vpop.f32.mrb[0].mxu0
        %v510 = vadd.f32 0.0, %v509
        %v511 = vpop.f32.mrb[0].mxu0
        %512 = vmatprep.mubr.f32.mxu0 0.0
        %513 = vmatmul.mubr.f32.gmra.mrb[0].mxu0 %v321
        %v514 = vpop.f32.mrb[0].mxu0
        %v515 = vadd.f32 0.0, %v514
        %v516 = vpop.f32.mrb[0].mxu0
        %517 = vmatprep.mubr.f32.mxu0 0.0
        %518 = vmatmul.mubr.f32.gmra.mrb[0].mxu0 %v324
        %v519 = vpop.f32.mrb[0].mxu0
        %v520 = vadd.f32 0.0, %v519
        %v521 = vpop.f32.mrb[0].mxu0
        %522 = vmatprep.mubr.f32.mxu0 0.0
        %523 = vmatmul.mubr.f32.gmra.mrb[0].mxu0 %v327
        %v524 = vpop.f32.mrb[0].mxu0
        %v525 = vadd.f32 0.0, %v524
        %v526 = vpop.f32.mrb[0].mxu0
        %527 = vmatprep.mubr.f32.mxu0 0.0
        %528 = vmatmul.mubr.f32.gmra.mrb[0].mxu0 %v330
        %v529 = vpop.f32.mrb[0].mxu0
        %v530 = vadd.f32 0.0, %v529
        %v531 = vpop.f32.mrb[0].mxu0
        %532 = vmatprep.mubr.f32.mxu0 0.0
        %533 = vmatmul.mubr.f32.gmra.mrb[0].mxu0 %v333
        %v534 = vpop.f32.mrb[0].mxu0
        %v535 = vadd.f32 0.0, %v534
        %v536 = vpop.f32.mrb[0].mxu0
        %537 = vmatprep.mubr.f32.mxu0 0.0
        %538 = vmatmul.mubr.f32.gmra.mrb[0].mxu0 %v336
        %v539 = vpop.f32.mrb[0].mxu0
        %v540 = vadd.f32 0.0, %v539
        %v541 = vpop.f32.mrb[0].mxu0
        %542 = vmatprep.mubr.f32.mxu0 0.0
        %543 = vmatmul.mubr.f32.gmra.mrb[0].mxu0 %v339
        %v544 = vpop.f32.mrb[0].mxu0
        %v545 = vadd.f32 0.0, %v544
        %v546 = vpop.f32.mrb[0].mxu0
        %547 = vmatprep.mubr.f32.mxu0 0.0
        %548 = vmatmul.mubr.f32.gmra.mrb[0].mxu0 %v342
        %v549 = vpop.f32.mrb[0].mxu0
        %v550 = vadd.f32 0.0, %v549
        %v551 = vpop.f32.mrb[0].mxu0
        %552 = vmatprep.mubr.f32.mxu0 0.0
        %553 = vmatmul.mubr.f32.gmra.mrb[0].mxu0 %v345
        %v554 = vpop.f32.mrb[0].mxu0
        %v555 = vadd.f32 0.0, %v554
        %v556 = vpop.f32.mrb[0].mxu0
        %557 = vmatprep.mubr.f32.mxu0 0.0
        %558 = vmatmul.mubr.f32.gmra.mrb[0].mxu0 %v348
        %v559 = vpop.f32.mrb[0].mxu0
        %v560 = vadd.f32 0.0, %v559
        %v561 = vpop.f32.mrb[0].mxu0
        %562 = vmatprep.mubr.f32.mxu0 0.0
        %563 = vmatmul.mubr.f32.gmra.mrb[0].mxu0 %v351
        %v564 = vpop.f32.mrb[0].mxu0
        %v565 = vadd.f32 0.0, %v564
        %v566 = vpop.f32.mrb[0].mxu0
        %567 = vmatprep.mubr.f32.mxu0 0.0
        %568 = vmatmul.mubr.f32.gmra.mrb[0].mxu0 %v354
        %v569 = vpop.f32.mrb[0].mxu0
        %v570 = vadd.f32 0.0, %v569
        %v571 = vpop.f32.mrb[0].mxu0
        %572 = vmatprep.mubr.f32.mxu0 0.0
        %573 = vmatmul.mubr.f32.gmra.mrb[0].mxu0 %v357
        %v574 = vpop.f32.mrb[0].mxu0
        %v575 = vadd.f32 0.0, %v574
        %v576 = vpop.f32.mrb[0].mxu0
        %577 = vmatprep.mubr.f32.mxu0 0.0
        %578 = vmatmul.mubr.f32.gmra.mrb[0].mxu0 %v360
        %v579 = vpop.f32.mrb[0].mxu0
        %v580 = vadd.f32 0.0, %v579
        %v581 = vpop.f32.mrb[0].mxu0
        %582 = vmatprep.mubr.f32.mxu0 0.0
        %583 = vmatmul.mubr.f32.gmra.mrb[0].mxu0 %v363
        %v584 = vpop.f32.mrb[0].mxu0
        %v585 = vadd.f32 0.0, %v584
        %v586 = vpop.f32.mrb[0].mxu0
        %587 = vmatprep.mubr.f32.mxu0 0.0
        %588 = vmatmul.mubr.f32.gmra.mrb[0].mxu0 %v366
        %v589 = vpop.f32.mrb[0].mxu0
        %v590 = vadd.f32 0.0, %v589
        %v591 = vpop.f32.mrb[0].mxu0
        %592 = vdwg.mxu0
        %v593 = vld [vmem:[%s3] sm:$0xff]
        %v594 = vld [vmem:[%s3 + $0x8] sm:$0xff]
        %v595 = vld [vmem:[%s3 + $0x10] sm:$0xff]
        %v596 = vld [vmem:[%s3 + $0x18] sm:$0xff]
        %v597 = vld [vmem:[%s3 + $0x20] sm:$0xff]
        %v598 = vld [vmem:[%s3 + $0x28] sm:$0xff]
        %v599 = vld [vmem:[%s3 + $0x30] sm:$0xff]
        %v600 = vld [vmem:[%s3 + $0x38] sm:$0xff]
        %601 = vxpose.xlu0.b32.start [1/16] %v593, 128
        %602 = vxpose.xlu0.b32.cont [2/16] %v594, 128
        %603 = vxpose.xlu0.b32.cont [3/16] %v595, 128
        %604 = vxpose.xlu0.b32.cont [4/16] %v596, 128
        %605 = vxpose.xlu0.b32.cont [5/16] %v597, 128
        %606 = vxpose.xlu0.b32.cont [6/16] %v598, 128
        %607 = vxpose.xlu0.b32.cont [7/16] %v599, 128
        %608 = vxpose.xlu0.b32.cont [8/16] %v600, 128
        %609 = vxpose.xlu0.b32.cont [9/16] 0.0, 128
        %610 = vxpose.xlu0.b32.cont [10/16] 0.0, 128
        %611 = vxpose.xlu0.b32.cont [11/16] 0.0, 128
        %612 = vxpose.xlu0.b32.cont [12/16] 0.0, 128
        %613 = vxpose.xlu0.b32.cont [13/16] 0.0, 128
        %614 = vxpose.xlu0.b32.cont [14/16] 0.0, 128
        %615 = vxpose.xlu0.b32.cont [15/16] 0.0, 128
        %616 = vxpose.xlu0.b32.end [16/16] 0.0, 128
        %v617 = vpop.trf.xlu0
        %v618 = vpop.trf.xlu0
        %v619 = vpop.trf.xlu0
        %v620 = vpop.trf.xlu0
        %v621 = vpop.trf.xlu0
        %v622 = vpop.trf.xlu0
        %v623 = vpop.trf.xlu0
        %v624 = vpop.trf.xlu0
        %v625 = vpop.trf.xlu0
        %v626 = vpop.trf.xlu0
        %v627 = vpop.trf.xlu0
        %v628 = vpop.trf.xlu0
        %v629 = vpop.trf.xlu0
        %v630 = vpop.trf.xlu0
        %v631 = vpop.trf.xlu0
        %v632 = vpop.trf.xlu0
        %vm633 = vcmask 523264
        %v635 = vsel %vm633, %v617, 0
        %v638 = vsel %vm633, %v435, 0
        %v641 = vsel %vm633, %v440, 0
        %v644 = vsel %vm633, %v445, 0
        %v647 = vsel %vm633, %v450, 0
        %v650 = vsel %vm633, %v455, 0
        %v653 = vsel %vm633, %v460, 0
        %v656 = vsel %vm633, %v465, 0
        %v659 = vsel %vm633, %v470, 0
        %v662 = vsel %vm633, %v475, 0
        %v665 = vsel %vm633, %v480, 0
        %v668 = vsel %vm633, %v485, 0
        %v671 = vsel %vm633, %v490, 0
        %v674 = vsel %vm633, %v495, 0
        %v677 = vsel %vm633, %v500, 0
        %v680 = vsel %vm633, %v505, 0
        %v683 = vsel %vm633, %v510, 0
        %v686 = vsel %vm633, %v515, 0
        %v689 = vsel %vm633, %v520, 0
        %v692 = vsel %vm633, %v525, 0
        %v695 = vsel %vm633, %v530, 0
        %v698 = vsel %vm633, %v535, 0
        %v701 = vsel %vm633, %v540, 0
        %v704 = vsel %vm633, %v545, 0
        %v707 = vsel %vm633, %v550, 0
        %v710 = vsel %vm633, %v555, 0
        %v713 = vsel %vm633, %v560, 0
        %v716 = vsel %vm633, %v565, 0
        %v719 = vsel %vm633, %v570, 0
        %v722 = vsel %vm633, %v575, 0
        %v725 = vsel %vm633, %v580, 0
        %v728 = vsel %vm633, %v585, 0
        %v731 = vsel %vm633, %v590, 0
        %733 = vmatprep.subr.mxu0 0.0
        %734 = vmatpush1.xpose.msra.mxu0 %v638
        %735 = vmatprep.subr.mxu0 0.0
        %736 = vmatpush1.xpose.msra.mxu0 %v641
        %737 = vmatprep.subr.mxu0 0.0
        %738 = vmatpush1.xpose.msra.mxu0 %v644
        %739 = vmatprep.subr.mxu0 0.0
        %740 = vmatpush1.xpose.msra.mxu0 %v647
        %741 = vmatprep.subr.mxu0 0.0
        %742 = vmatpush1.xpose.msra.mxu0 %v650
        %743 = vmatprep.subr.mxu0 0.0
        %744 = vmatpush1.xpose.msra.mxu0 %v653
        %745 = vmatprep.subr.mxu0 0.0
        %746 = vmatpush1.xpose.msra.mxu0 %v656
        %747 = vmatprep.subr.mxu0 0.0
        %748 = vmatpush1.xpose.msra.mxu0 %v659
        %749 = vmatprep.subr.mxu0 0.0
        %750 = vmatpush1.xpose.msra.mxu0 %v662
        %751 = vmatprep.subr.mxu0 0.0
        %752 = vmatpush1.xpose.msra.mxu0 %v665
        %753 = vmatprep.subr.mxu0 0.0
        %754 = vmatpush1.xpose.msra.mxu0 %v668
        %755 = vmatprep.subr.mxu0 0.0
        %756 = vmatpush1.xpose.msra.mxu0 %v671
        %757 = vmatprep.subr.mxu0 0.0
        %758 = vmatpush1.xpose.msra.mxu0 %v674
        %759 = vmatprep.subr.mxu0 0.0
        %760 = vmatpush1.xpose.msra.mxu0 %v677
        %761 = vmatprep.subr.mxu0 0.0
        %762 = vmatpush1.xpose.msra.mxu0 %v680
        %763 = vmatprep.subr.mxu0 0.0
        %764 = vmatpush1.xpose.msra.mxu0 %v683
        %765 = vmatprep.subr.mxu0 0.0
        %766 = vmatpush1.xpose.msra.mxu0 %v686
        %767 = vmatprep.subr.mxu0 0.0
        %768 = vmatpush1.xpose.msra.mxu0 %v689
        %769 = vmatprep.subr.mxu0 0.0
        %770 = vmatpush1.xpose.msra.mxu0 %v692
        %771 = vmatprep.subr.mxu0 0.0
        %772 = vmatpush1.xpose.msra.mxu0 %v695
        %773 = vmatprep.subr.mxu0 0.0
        %774 = vmatpush1.xpose.msra.mxu0 %v698
        %775 = vmatprep.subr.mxu0 0.0
        %776 = vmatpush1.xpose.msra.mxu0 %v701
        %777 = vmatprep.subr.mxu0 0.0
        %778 = vmatpush1.xpose.msra.mxu0 %v704
        %779 = vmatprep.subr.mxu0 0.0
        %780 = vmatpush1.xpose.msra.mxu0 %v707
        %781 = vmatprep.subr.mxu0 0.0
        %782 = vmatpush1.xpose.msra.mxu0 %v710
        %783 = vmatprep.subr.mxu0 0.0
        %784 = vmatpush1.xpose.msra.mxu0 %v713
        %785 = vmatprep.subr.mxu0 0.0
        %786 = vmatpush1.xpose.msra.mxu0 %v716
        %787 = vmatprep.subr.mxu0 0.0
        %788 = vmatpush1.xpose.msra.mxu0 %v719
        %789 = vmatprep.subr.mxu0 0.0
        %790 = vmatpush1.xpose.msra.mxu0 %v722
        %791 = vmatprep.subr.mxu0 0.0
        %792 = vmatpush1.xpose.msra.mxu0 %v725
        %793 = vmatprep.subr.mxu0 0.0
        %794 = vmatpush1.xpose.msra.mxu0 %v728
        %795 = vmatprep.subr.mxu0 0.0
        %796 = vmatpush1.xpose.msra.mxu0 %v731
        %797 = vmatprep.mubr.f32.mxu0 0.0
        %798 = vmatmul.mubr.f32.gmra.mrb[0].mxu0 %v635
        %v799 = vpop.f32.mrb[0].mxu0
        %v800 = vadd.f32 0.0, %v799
        %v801 = vpop.f32.mrb[0].mxu0
        %v802 = vadd.f32 0.0, %v801
        %803 = vdwg.mxu0
        %v806 = vcombine.low %v800, %v802
        %v808 = vunpack.c.l.s4 1983009808
        %v809 = vunpack.c.0.s8 %v808
        %v810 = vlaneseq
        %v811 = vshrl.u32 %v810, 7
        %v812 = vsub.s32 %v809, %v811
        %v813 = vrot.slane %v806, %v812
        %815 = vst [vmem:[#allocation3] sm:$0xf] %v813
        %824 = vrot.lane.b32.xlu0 %v593, 126
        %v825 = vpop.permute.xlu0 %824
        %826 = vrot.lane.b32.xlu0 %v594, 126
        %v827 = vpop.permute.xlu0 %826
        %828 = vrot.lane.b32.xlu0 %v595, 126
        %v829 = vpop.permute.xlu0 %828
        %830 = vrot.lane.b32.xlu0 %v596, 126
        %v831 = vpop.permute.xlu0 %830
        %832 = vrot.lane.b32.xlu0 %v597, 126
        %v833 = vpop.permute.xlu0 %832
        %834 = vrot.lane.b32.xlu0 %v598, 126
        %v835 = vpop.permute.xlu0 %834
        %836 = vrot.lane.b32.xlu0 %v599, 126
        %v837 = vpop.permute.xlu0 %836
        %838 = vrot.lane.b32.xlu0 %v600, 126
        %v839 = vpop.permute.xlu0 %838
        %848 = vmatprep.subr.mxu0 0.0
        %849 = vmatpush1.msra.mxu0 %v825
        %850 = vmatprep.subr.mxu0 0.0
        %851 = vmatpush1.msra.mxu0 %v827
        %852 = vmatprep.subr.mxu0 0.0
        %853 = vmatpush1.msra.mxu0 %v829
        %854 = vmatprep.subr.mxu0 0.0
        %855 = vmatpush1.msra.mxu0 %v831
        %856 = vmatprep.subr.mxu0 0.0
        %857 = vmatpush1.msra.mxu0 %v833
        %858 = vmatprep.subr.mxu0 0.0
        %859 = vmatpush1.msra.mxu0 %v835
        %860 = vmatprep.subr.mxu0 0.0
        %861 = vmatpush1.msra.mxu0 %v837
        %862 = vmatprep.subr.mxu0 0.0
        %863 = vmatpush1.msra.mxu0 %v839
        %864 = vmatprep.subr.mxu0 0.0
        %865 = vmatpush1.msra.mxu0 0.0
        %866 = vmatprep.subr.mxu0 0.0
        %867 = vmatpush1.msra.mxu0 0.0
        %868 = vmatprep.subr.mxu0 0.0
        %869 = vmatpush1.msra.mxu0 0.0
        %870 = vmatprep.subr.mxu0 0.0
        %871 = vmatpush1.msra.mxu0 0.0
        %872 = vmatprep.subr.mxu0 0.0
        %873 = vmatpush1.msra.mxu0 0.0
        %874 = vmatprep.subr.mxu0 0.0
        %875 = vmatpush1.msra.mxu0 0.0
        %876 = vmatprep.subr.mxu0 0.0
        %877 = vmatpush1.msra.mxu0 0.0
        %878 = vmatprep.subr.mxu0 0.0
        %879 = vmatpush1.msra.mxu0 0.0
        %880 = vmatprep.subr.mxu0 0.0
        %881 = vmatpush1.msra.mxu0 0.0
        %882 = vmatprep.subr.mxu0 0.0
        %883 = vmatpush1.msra.mxu0 0.0
        %884 = vmatprep.subr.mxu0 0.0
        %885 = vmatpush1.msra.mxu0 0.0
        %886 = vmatprep.subr.mxu0 0.0
        %887 = vmatpush1.msra.mxu0 0.0
        %888 = vmatprep.subr.mxu0 0.0
        %889 = vmatpush1.msra.mxu0 0.0
        %890 = vmatprep.subr.mxu0 0.0
        %891 = vmatpush1.msra.mxu0 0.0
        %892 = vmatprep.subr.mxu0 0.0
        %893 = vmatpush1.msra.mxu0 0.0
        %894 = vmatprep.subr.mxu0 0.0
        %895 = vmatpush1.msra.mxu0 0.0
        %896 = vmatprep.subr.mxu0 0.0
        %897 = vmatpush1.msra.mxu0 0.0
        %898 = vmatprep.subr.mxu0 0.0
        %899 = vmatpush1.msra.mxu0 0.0
        %900 = vmatprep.subr.mxu0 0.0
        %901 = vmatpush1.msra.mxu0 0.0
        %902 = vmatprep.subr.mxu0 0.0
        %903 = vmatpush1.msra.mxu0 0.0
        %904 = vmatprep.subr.mxu0 0.0
        %905 = vmatpush1.msra.mxu0 0.0
        %906 = vmatprep.subr.mxu0 0.0
        %907 = vmatpush1.msra.mxu0 0.0
        %908 = vmatprep.subr.mxu0 0.0
        %909 = vmatpush1.msra.mxu0 0.0
        %910 = vmatprep.subr.mxu0 0.0
        %911 = vmatpush1.msra.mxu0 0.0
        %912 = vmatprep.mubr.f32.mxu0 0.0
        %913 = vmatmul.mubr.f32.gmra.mrb[0].mxu0 %v638
        %v914 = vpop.f32.mrb[0].mxu0
        %v915 = vadd.f32 0.0, %v914
        %v916 = vpop.f32.mrb[0].mxu0
        %917 = vmatprep.mubr.f32.mxu0 0.0
        %918 = vmatmul.mubr.f32.gmra.mrb[0].mxu0 %v641
        %v919 = vpop.f32.mrb[0].mxu0
        %v920 = vadd.f32 0.0, %v919
        %v921 = vpop.f32.mrb[0].mxu0
        %922 = vmatprep.mubr.f32.mxu0 0.0
        %923 = vmatmul.mubr.f32.gmra.mrb[0].mxu0 %v644
        %v924 = vpop.f32.mrb[0].mxu0
        %v925 = vadd.f32 0.0, %v924
        %v926 = vpop.f32.mrb[0].mxu0
        %927 = vmatprep.mubr.f32.mxu0 0.0
        %928 = vmatmul.mubr.f32.gmra.mrb[0].mxu0 %v647
        %v929 = vpop.f32.mrb[0].mxu0
        %v930 = vadd.f32 0.0, %v929
        %v931 = vpop.f32.mrb[0].mxu0
        %932 = vmatprep.mubr.f32.mxu0 0.0
        %933 = vmatmul.mubr.f32.gmra.mrb[0].mxu0 %v650
        %v934 = vpop.f32.mrb[0].mxu0
        %v935 = vadd.f32 0.0, %v934
        %v936 = vpop.f32.mrb[0].mxu0
        %937 = vmatprep.mubr.f32.mxu0 0.0
        %938 = vmatmul.mubr.f32.gmra.mrb[0].mxu0 %v653
        %v939 = vpop.f32.mrb[0].mxu0
        %v940 = vadd.f32 0.0, %v939
        %v941 = vpop.f32.mrb[0].mxu0
        %942 = vmatprep.mubr.f32.mxu0 0.0
        %943 = vmatmul.mubr.f32.gmra.mrb[0].mxu0 %v656
        %v944 = vpop.f32.mrb[0].mxu0
        %v945 = vadd.f32 0.0, %v944
        %v946 = vpop.f32.mrb[0].mxu0
        %947 = vmatprep.mubr.f32.mxu0 0.0
        %948 = vmatmul.mubr.f32.gmra.mrb[0].mxu0 %v659
        %v949 = vpop.f32.mrb[0].mxu0
        %v950 = vadd.f32 0.0, %v949
        %v951 = vpop.f32.mrb[0].mxu0
        %952 = vmatprep.mubr.f32.mxu0 0.0
        %953 = vmatmul.mubr.f32.gmra.mrb[0].mxu0 %v662
        %v954 = vpop.f32.mrb[0].mxu0
        %v955 = vadd.f32 0.0, %v954
        %v956 = vpop.f32.mrb[0].mxu0
        %957 = vmatprep.mubr.f32.mxu0 0.0
        %958 = vmatmul.mubr.f32.gmra.mrb[0].mxu0 %v665
        %v959 = vpop.f32.mrb[0].mxu0
        %v960 = vadd.f32 0.0, %v959
        %v961 = vpop.f32.mrb[0].mxu0
        %962 = vmatprep.mubr.f32.mxu0 0.0
        %963 = vmatmul.mubr.f32.gmra.mrb[0].mxu0 %v668
        %v964 = vpop.f32.mrb[0].mxu0
        %v965 = vadd.f32 0.0, %v964
        %v966 = vpop.f32.mrb[0].mxu0
        %967 = vmatprep.mubr.f32.mxu0 0.0
        %968 = vmatmul.mubr.f32.gmra.mrb[0].mxu0 %v671
        %v969 = vpop.f32.mrb[0].mxu0
        %v970 = vadd.f32 0.0, %v969
        %v971 = vpop.f32.mrb[0].mxu0
        %972 = vmatprep.mubr.f32.mxu0 0.0
        %973 = vmatmul.mubr.f32.gmra.mrb[0].mxu0 %v674
        %v974 = vpop.f32.mrb[0].mxu0
        %v975 = vadd.f32 0.0, %v974
        %v976 = vpop.f32.mrb[0].mxu0
        %977 = vmatprep.mubr.f32.mxu0 0.0
        %978 = vmatmul.mubr.f32.gmra.mrb[0].mxu0 %v677
        %v979 = vpop.f32.mrb[0].mxu0
        %v980 = vadd.f32 0.0, %v979
        %v981 = vpop.f32.mrb[0].mxu0
        %982 = vmatprep.mubr.f32.mxu0 0.0
        %983 = vmatmul.mubr.f32.gmra.mrb[0].mxu0 %v680
        %v984 = vpop.f32.mrb[0].mxu0
        %v985 = vadd.f32 0.0, %v984
        %v986 = vpop.f32.mrb[0].mxu0
        %987 = vmatprep.mubr.f32.mxu0 0.0
        %988 = vmatmul.mubr.f32.gmra.mrb[0].mxu0 %v683
        %v989 = vpop.f32.mrb[0].mxu0
        %v990 = vadd.f32 0.0, %v989
        %v991 = vpop.f32.mrb[0].mxu0
        %992 = vmatprep.mubr.f32.mxu0 0.0
        %993 = vmatmul.mubr.f32.gmra.mrb[0].mxu0 %v686
        %v994 = vpop.f32.mrb[0].mxu0
        %v995 = vadd.f32 0.0, %v994
        %v996 = vpop.f32.mrb[0].mxu0
        %997 = vmatprep.mubr.f32.mxu0 0.0
        %998 = vmatmul.mubr.f32.gmra.mrb[0].mxu0 %v689
        %v999 = vpop.f32.mrb[0].mxu0
        %v1000 = vadd.f32 0.0, %v999
        %v1001 = vpop.f32.mrb[0].mxu0
        %1002 = vmatprep.mubr.f32.mxu0 0.0
        %1003 = vmatmul.mubr.f32.gmra.mrb[0].mxu0 %v692
        %v1004 = vpop.f32.mrb[0].mxu0
        %v1005 = vadd.f32 0.0, %v1004
        %v1006 = vpop.f32.mrb[0].mxu0
        %1007 = vmatprep.mubr.f32.mxu0 0.0
        %1008 = vmatmul.mubr.f32.gmra.mrb[0].mxu0 %v695
        %v1009 = vpop.f32.mrb[0].mxu0
        %v1010 = vadd.f32 0.0, %v1009
        %v1011 = vpop.f32.mrb[0].mxu0
        %1012 = vmatprep.mubr.f32.mxu0 0.0
        %1013 = vmatmul.mubr.f32.gmra.mrb[0].mxu0 %v698
        %v1014 = vpop.f32.mrb[0].mxu0
        %v1015 = vadd.f32 0.0, %v1014
        %v1016 = vpop.f32.mrb[0].mxu0
        %1017 = vmatprep.mubr.f32.mxu0 0.0
        %1018 = vmatmul.mubr.f32.gmra.mrb[0].mxu0 %v701
        %v1019 = vpop.f32.mrb[0].mxu0
        %v1020 = vadd.f32 0.0, %v1019
        %v1021 = vpop.f32.mrb[0].mxu0
        %1022 = vmatprep.mubr.f32.mxu0 0.0
        %1023 = vmatmul.mubr.f32.gmra.mrb[0].mxu0 %v704
        %v1024 = vpop.f32.mrb[0].mxu0
        %v1025 = vadd.f32 0.0, %v1024
        %v1026 = vpop.f32.mrb[0].mxu0
        %1027 = vmatprep.mubr.f32.mxu0 0.0
        %1028 = vmatmul.mubr.f32.gmra.mrb[0].mxu0 %v707
        %v1029 = vpop.f32.mrb[0].mxu0
        %v1030 = vadd.f32 0.0, %v1029
        %v1031 = vpop.f32.mrb[0].mxu0
        %1032 = vmatprep.mubr.f32.mxu0 0.0
        %1033 = vmatmul.mubr.f32.gmra.mrb[0].mxu0 %v710
        %v1034 = vpop.f32.mrb[0].mxu0
        %v1035 = vadd.f32 0.0, %v1034
        %v1036 = vpop.f32.mrb[0].mxu0
        %1037 = vmatprep.mubr.f32.mxu0 0.0
        %1038 = vmatmul.mubr.f32.gmra.mrb[0].mxu0 %v713
        %v1039 = vpop.f32.mrb[0].mxu0
        %v1040 = vadd.f32 0.0, %v1039
        %v1041 = vpop.f32.mrb[0].mxu0
        %1042 = vmatprep.mubr.f32.mxu0 0.0
        %1043 = vmatmul.mubr.f32.gmra.mrb[0].mxu0 %v716
        %v1044 = vpop.f32.mrb[0].mxu0
        %v1045 = vadd.f32 0.0, %v1044
        %v1046 = vpop.f32.mrb[0].mxu0
        %1047 = vmatprep.mubr.f32.mxu0 0.0
        %1048 = vmatmul.mubr.f32.gmra.mrb[0].mxu0 %v719
        %v1049 = vpop.f32.mrb[0].mxu0
        %v1050 = vadd.f32 0.0, %v1049
        %v1051 = vpop.f32.mrb[0].mxu0
        %1052 = vmatprep.mubr.f32.mxu0 0.0
        %1053 = vmatmul.mubr.f32.gmra.mrb[0].mxu0 %v722
        %v1054 = vpop.f32.mrb[0].mxu0
        %v1055 = vadd.f32 0.0, %v1054
        %v1056 = vpop.f32.mrb[0].mxu0
        %1057 = vmatprep.mubr.f32.mxu0 0.0
        %1058 = vmatmul.mubr.f32.gmra.mrb[0].mxu0 %v725
        %v1059 = vpop.f32.mrb[0].mxu0
        %v1060 = vadd.f32 0.0, %v1059
        %v1061 = vpop.f32.mrb[0].mxu0
        %1062 = vmatprep.mubr.f32.mxu0 0.0
        %1063 = vmatmul.mubr.f32.gmra.mrb[0].mxu0 %v728
        %v1064 = vpop.f32.mrb[0].mxu0
        %v1065 = vadd.f32 0.0, %v1064
        %v1066 = vpop.f32.mrb[0].mxu0
        %1067 = vmatprep.mubr.f32.mxu0 0.0
        %1068 = vmatmul.mubr.f32.gmra.mrb[0].mxu0 %v731
        %v1069 = vpop.f32.mrb[0].mxu0
        %v1070 = vadd.f32 0.0, %v1069
        %v1071 = vpop.f32.mrb[0].mxu0
        %1072 = vdwg.mxu0
        %vm1073 = vcmask 15360
        %1074 = vst.msk [vmem:[#allocation4] sm:$0xff] %vm1073, %v915
        %1075 = vst.msk [vmem:[#allocation4 + $0x8] sm:$0xff] %vm1073, %v920
        %1076 = vst.msk [vmem:[#allocation4 + $0x10] sm:$0xff] %vm1073, %v925
        %1077 = vst.msk [vmem:[#allocation4 + $0x18] sm:$0xff] %vm1073, %v930
        %1078 = vst.msk [vmem:[#allocation4 + $0x20] sm:$0xff] %vm1073, %v935
        %1079 = vst.msk [vmem:[#allocation4 + $0x28] sm:$0xff] %vm1073, %v940
        %1080 = vst.msk [vmem:[#allocation4 + $0x30] sm:$0xff] %vm1073, %v945
        %1081 = vst.msk [vmem:[#allocation4 + $0x38] sm:$0xff] %vm1073, %v950
        %1082 = vst.msk [vmem:[#allocation4 + $0x40] sm:$0xff] %vm1073, %v955
        %1083 = vst.msk [vmem:[#allocation4 + $0x48] sm:$0xff] %vm1073, %v960
        %1084 = vst.msk [vmem:[#allocation4 + $0x50] sm:$0xff] %vm1073, %v965
        %1085 = vst.msk [vmem:[#allocation4 + $0x58] sm:$0xff] %vm1073, %v970
        %1086 = vst.msk [vmem:[#allocation4 + $0x60] sm:$0xff] %vm1073, %v975
        %1087 = vst.msk [vmem:[#allocation4 + $0x68] sm:$0xff] %vm1073, %v980
        %1088 = vst.msk [vmem:[#allocation4 + $0x70] sm:$0xff] %vm1073, %v985
        %1089 = vst.msk [vmem:[#allocation4 + $0x78] sm:$0xff] %vm1073, %v990
        %1090 = vst.msk [vmem:[#allocation4 + $0x80] sm:$0xff] %vm1073, %v995
        %1091 = vst.msk [vmem:[#allocation4 + $0x88] sm:$0xff] %vm1073, %v1000
        %1092 = vst.msk [vmem:[#allocation4 + $0x90] sm:$0xff] %vm1073, %v1005
        %1093 = vst.msk [vmem:[#allocation4 + $0x98] sm:$0xff] %vm1073, %v1010
        %1094 = vst.msk [vmem:[#allocation4 + $0xa0] sm:$0xff] %vm1073, %v1015
        %1095 = vst.msk [vmem:[#allocation4 + $0xa8] sm:$0xff] %vm1073, %v1020
        %1096 = vst.msk [vmem:[#allocation4 + $0xb0] sm:$0xff] %vm1073, %v1025
        %1097 = vst.msk [vmem:[#allocation4 + $0xb8] sm:$0xff] %vm1073, %v1030
        %1098 = vst.msk [vmem:[#allocation4 + $0xc0] sm:$0xff] %vm1073, %v1035
        %1099 = vst.msk [vmem:[#allocation4 + $0xc8] sm:$0xff] %vm1073, %v1040
        %1100 = vst.msk [vmem:[#allocation4 + $0xd0] sm:$0xff] %vm1073, %v1045
        %1101 = vst.msk [vmem:[#allocation4 + $0xd8] sm:$0xff] %vm1073, %v1050
        %1102 = vst.msk [vmem:[#allocation4 + $0xe0] sm:$0xff] %vm1073, %v1055
        %1103 = vst.msk [vmem:[#allocation4 + $0xe8] sm:$0xff] %vm1073, %v1060
        %1104 = vst.msk [vmem:[#allocation4 + $0xf0] sm:$0xff] %vm1073, %v1065
        %1105 = vst.msk [vmem:[#allocation4 + $0xf8] sm:$0xff] %vm1073, %v1070
        %1106 = vrot.lane.b32.xlu0 %v435, 1
        %v1107 = vpop.permute.xlu0 %1106
        %1108 = vrot.lane.b32.xlu0 %v440, 1
        %v1109 = vpop.permute.xlu0 %1108
        %1110 = vrot.lane.b32.xlu0 %v445, 1
        %v1111 = vpop.permute.xlu0 %1110
        %1112 = vrot.lane.b32.xlu0 %v450, 1
        %v1113 = vpop.permute.xlu0 %1112
        %1114 = vrot.lane.b32.xlu0 %v455, 1
        %v1115 = vpop.permute.xlu0 %1114
        %1116 = vrot.lane.b32.xlu0 %v460, 1
        %v1117 = vpop.permute.xlu0 %1116
        %1118 = vrot.lane.b32.xlu0 %v465, 1
        %v1119 = vpop.permute.xlu0 %1118
        %1120 = vrot.lane.b32.xlu0 %v470, 1
        %v1121 = vpop.permute.xlu0 %1120
        %1122 = vrot.lane.b32.xlu0 %v475, 1
        %v1123 = vpop.permute.xlu0 %1122
        %1124 = vrot.lane.b32.xlu0 %v480, 1
        %v1125 = vpop.permute.xlu0 %1124
        %1126 = vrot.lane.b32.xlu0 %v485, 1
        %v1127 = vpop.permute.xlu0 %1126
        %1128 = vrot.lane.b32.xlu0 %v490, 1
        %v1129 = vpop.permute.xlu0 %1128
        %1130 = vrot.lane.b32.xlu0 %v495, 1
        %v1131 = vpop.permute.xlu0 %1130
        %1132 = vrot.lane.b32.xlu0 %v500, 1
        %v1133 = vpop.permute.xlu0 %1132
        %1134 = vrot.lane.b32.xlu0 %v505, 1
        %v1135 = vpop.permute.xlu0 %1134
        %1136 = vrot.lane.b32.xlu0 %v510, 1
        %v1137 = vpop.permute.xlu0 %1136
        %1138 = vrot.lane.b32.xlu0 %v515, 1
        %v1139 = vpop.permute.xlu0 %1138
        %1140 = vrot.lane.b32.xlu0 %v520, 1
        %v1141 = vpop.permute.xlu0 %1140
        %1142 = vrot.lane.b32.xlu0 %v525, 1
        %v1143 = vpop.permute.xlu0 %1142
        %1144 = vrot.lane.b32.xlu0 %v530, 1
        %v1145 = vpop.permute.xlu0 %1144
        %1146 = vrot.lane.b32.xlu0 %v535, 1
        %v1147 = vpop.permute.xlu0 %1146
        %1148 = vrot.lane.b32.xlu0 %v540, 1
        %v1149 = vpop.permute.xlu0 %1148
        %1150 = vrot.lane.b32.xlu0 %v545, 1
        %v1151 = vpop.permute.xlu0 %1150
        %1152 = vrot.lane.b32.xlu0 %v550, 1
        %v1153 = vpop.permute.xlu0 %1152
        %1154 = vrot.lane.b32.xlu0 %v555, 1
        %v1155 = vpop.permute.xlu0 %1154
        %1156 = vrot.lane.b32.xlu0 %v560, 1
        %v1157 = vpop.permute.xlu0 %1156
        %1158 = vrot.lane.b32.xlu0 %v565, 1
        %v1159 = vpop.permute.xlu0 %1158
        %1160 = vrot.lane.b32.xlu0 %v570, 1
        %v1161 = vpop.permute.xlu0 %1160
        %1162 = vrot.lane.b32.xlu0 %v575, 1
        %v1163 = vpop.permute.xlu0 %1162
        %1164 = vrot.lane.b32.xlu0 %v580, 1
        %v1165 = vpop.permute.xlu0 %1164
        %1166 = vrot.lane.b32.xlu0 %v585, 1
        %v1167 = vpop.permute.xlu0 %1166
        %1168 = vrot.lane.b32.xlu0 %v590, 1
        %v1169 = vpop.permute.xlu0 %1168
        %vm1202 = vcmask 261120
        %v1203 = vsel %vm1202, %v435, 1.0
        %v1204 = vsel %vm1202, %v440, 1.0
        %v1205 = vsel %vm1202, %v445, 1.0
        %v1206 = vsel %vm1202, %v450, 1.0
        %v1207 = vsel %vm1202, %v455, 1.0
        %v1208 = vsel %vm1202, %v460, 1.0
        %v1209 = vsel %vm1202, %v465, 1.0
        %v1210 = vsel %vm1202, %v470, 1.0
        %v1211 = vsel %vm1202, %v475, 1.0
        %v1212 = vsel %vm1202, %v480, 1.0
        %v1213 = vsel %vm1202, %v485, 1.0
        %v1214 = vsel %vm1202, %v490, 1.0
        %v1215 = vsel %vm1202, %v495, 1.0
        %v1216 = vsel %vm1202, %v500, 1.0
        %v1217 = vsel %vm1202, %v505, 1.0
        %v1218 = vsel %vm1202, %v510, 1.0
        %v1219 = vsel %vm1202, %v515, 1.0
        %v1220 = vsel %vm1202, %v520, 1.0
        %v1221 = vsel %vm1202, %v525, 1.0
        %v1222 = vsel %vm1202, %v530, 1.0
        %v1223 = vsel %vm1202, %v535, 1.0
        %v1224 = vsel %vm1202, %v540, 1.0
        %v1225 = vsel %vm1202, %v545, 1.0
        %v1226 = vsel %vm1202, %v550, 1.0
        %v1227 = vsel %vm1202, %v555, 1.0
        %v1228 = vsel %vm1202, %v560, 1.0
        %v1229 = vsel %vm1202, %v565, 1.0
        %v1230 = vsel %vm1202, %v570, 1.0
        %v1231 = vsel %vm1202, %v575, 1.0
        %v1232 = vsel %vm1202, %v580, 1.0
        %v1233 = vsel %vm1202, %v585, 1.0
        %v1234 = vsel %vm1202, %v590, 1.0
        %vm1235 = vcmask 269312
        %v1236 = vsel %vm1235, %v1203, %v1107
        %v1237 = vsel %vm1235, %v1204, %v1109
        %v1238 = vsel %vm1235, %v1205, %v1111
        %v1239 = vsel %vm1235, %v1206, %v1113
        %v1240 = vsel %vm1235, %v1207, %v1115
        %v1241 = vsel %vm1235, %v1208, %v1117
        %v1242 = vsel %vm1235, %v1209, %v1119
        %v1243 = vsel %vm1235, %v1210, %v1121
        %v1244 = vsel %vm1235, %v1211, %v1123
        %v1245 = vsel %vm1235, %v1212, %v1125
        %v1246 = vsel %vm1235, %v1213, %v1127
        %v1247 = vsel %vm1235, %v1214, %v1129
        %v1248 = vsel %vm1235, %v1215, %v1131
        %v1249 = vsel %vm1235, %v1216, %v1133
        %v1250 = vsel %vm1235, %v1217, %v1135
        %v1251 = vsel %vm1235, %v1218, %v1137
        %v1252 = vsel %vm1235, %v1219, %v1139
        %v1253 = vsel %vm1235, %v1220, %v1141
        %v1254 = vsel %vm1235, %v1221, %v1143
        %v1255 = vsel %vm1235, %v1222, %v1145
        %v1256 = vsel %vm1235, %v1223, %v1147
        %v1257 = vsel %vm1235, %v1224, %v1149
        %v1258 = vsel %vm1235, %v1225, %v1151
        %v1259 = vsel %vm1235, %v1226, %v1153
        %v1260 = vsel %vm1235, %v1227, %v1155
        %v1261 = vsel %vm1235, %v1228, %v1157
        %v1262 = vsel %vm1235, %v1229, %v1159
        %v1263 = vsel %vm1235, %v1230, %v1161
        %v1264 = vsel %vm1235, %v1231, %v1163
        %v1265 = vsel %vm1235, %v1232, %v1165
        %v1266 = vsel %vm1235, %v1233, %v1167
        %v1267 = vsel %vm1235, %v1234, %v1169
        %vm1268 = vcmask 531456
        %v1269 = vsel %vm1268, %v1236, 1.0
        %v1270 = vsel %vm1268, %v1237, 1.0
        %v1271 = vsel %vm1268, %v1238, 1.0
        %v1272 = vsel %vm1268, %v1239, 1.0
        %v1273 = vsel %vm1268, %v1240, 1.0
        %v1274 = vsel %vm1268, %v1241, 1.0
        %v1275 = vsel %vm1268, %v1242, 1.0
        %v1276 = vsel %vm1268, %v1243, 1.0
        %v1277 = vsel %vm1268, %v1244, 1.0
        %v1278 = vsel %vm1268, %v1245, 1.0
        %v1279 = vsel %vm1268, %v1246, 1.0
        %v1280 = vsel %vm1268, %v1247, 1.0
        %v1281 = vsel %vm1268, %v1248, 1.0
        %v1282 = vsel %vm1268, %v1249, 1.0
        %v1283 = vsel %vm1268, %v1250, 1.0
        %v1284 = vsel %vm1268, %v1251, 1.0
        %v1285 = vsel %vm1268, %v1252, 1.0
        %v1286 = vsel %vm1268, %v1253, 1.0
        %v1287 = vsel %vm1268, %v1254, 1.0
        %v1288 = vsel %vm1268, %v1255, 1.0
        %v1289 = vsel %vm1268, %v1256, 1.0
        %v1290 = vsel %vm1268, %v1257, 1.0
        %v1291 = vsel %vm1268, %v1258, 1.0
        %v1292 = vsel %vm1268, %v1259, 1.0
        %v1293 = vsel %vm1268, %v1260, 1.0
        %v1294 = vsel %vm1268, %v1261, 1.0
        %v1295 = vsel %vm1268, %v1262, 1.0
        %v1296 = vsel %vm1268, %v1263, 1.0
        %v1297 = vsel %vm1268, %v1264, 1.0
        %v1298 = vsel %vm1268, %v1265, 1.0
        %v1299 = vsel %vm1268, %v1266, 1.0
        %v1300 = vsel %vm1268, %v1267, 1.0
        %v1301 = vpack.c.bf16 %v1270, %v1269
        %v1302 = vpack.c.bf16 %v1272, %v1271
        %v1303 = vpack.c.bf16 %v1274, %v1273
        %v1304 = vpack.c.bf16 %v1276, %v1275
        %v1305 = vpack.c.bf16 %v1278, %v1277
        %v1306 = vpack.c.bf16 %v1280, %v1279
        %v1307 = vpack.c.bf16 %v1282, %v1281
        %v1308 = vpack.c.bf16 %v1284, %v1283
        %v1309 = vpack.c.bf16 %v1286, %v1285
        %v1310 = vpack.c.bf16 %v1288, %v1287
        %v1311 = vpack.c.bf16 %v1290, %v1289
        %v1312 = vpack.c.bf16 %v1292, %v1291
        %v1313 = vpack.c.bf16 %v1294, %v1293
        %v1314 = vpack.c.bf16 %v1296, %v1295
        %v1315 = vpack.c.bf16 %v1298, %v1297
        %v1316 = vpack.c.bf16 %v1300, %v1299
        %vm1317 = vcmask 539648
        %1318 = vst.msk [vmem:[#allocation2] sm:$0xff] %vm1317, %v1301
        %1319 = vst.msk [vmem:[#allocation2 + $0x8] sm:$0xff] %vm1317, %v1302
        %1320 = vst.msk [vmem:[#allocation2 + $0x10] sm:$0xff] %vm1317, %v1303
        %1321 = vst.msk [vmem:[#allocation2 + $0x18] sm:$0xff] %vm1317, %v1304
        %1322 = vst.msk [vmem:[#allocation2 + $0x20] sm:$0xff] %vm1317, %v1305
        %1323 = vst.msk [vmem:[#allocation2 + $0x28] sm:$0xff] %vm1317, %v1306
        %1324 = vst.msk [vmem:[#allocation2 + $0x30] sm:$0xff] %vm1317, %v1307
        %1325 = vst.msk [vmem:[#allocation2 + $0x38] sm:$0xff] %vm1317, %v1308
        %1326 = vst.msk [vmem:[#allocation2 + $0x40] sm:$0xff] %vm1317, %v1309
        %1327 = vst.msk [vmem:[#allocation2 + $0x48] sm:$0xff] %vm1317, %v1310
        %1328 = vst.msk [vmem:[#allocation2 + $0x50] sm:$0xff] %vm1317, %v1311
        %1329 = vst.msk [vmem:[#allocation2 + $0x58] sm:$0xff] %vm1317, %v1312
        %1330 = vst.msk [vmem:[#allocation2 + $0x60] sm:$0xff] %vm1317, %v1313
        %1331 = vst.msk [vmem:[#allocation2 + $0x68] sm:$0xff] %vm1317, %v1314
        %1332 = vst.msk [vmem:[#allocation2 + $0x70] sm:$0xff] %vm1317, %v1315
        %1333 = vst.msk [vmem:[#allocation2 + $0x78] sm:$0xff] %vm1317, %v1316
      $region44: #{conad_forward.3} parent=39 // pred_fallthru
        _
      %v1334 = vld [vmem:[%s223] sm:$0xff]
      %v1335 = vld [vmem:[%s223 + $0x8] sm:$0xff]
      %v1336 = vld [vmem:[%s223 + $0x10] sm:$0xff]
      %v1337 = vld [vmem:[%s223 + $0x18] sm:$0xff]
      %v1338 = vld [vmem:[%s223 + $0x20] sm:$0xff]
      %v1339 = vld [vmem:[%s223 + $0x28] sm:$0xff]
      %v1340 = vld [vmem:[%s223 + $0x30] sm:$0xff]
      %v1341 = vld [vmem:[%s223 + $0x38] sm:$0xff]
      %v1342 = vld [vmem:[%s223 + $0x40] sm:$0xff]
      %v1343 = vld [vmem:[%s223 + $0x48] sm:$0xff]
      %v1344 = vld [vmem:[%s223 + $0x50] sm:$0xff]
      %v1345 = vld [vmem:[%s223 + $0x58] sm:$0xff]
      %v1346 = vld [vmem:[%s223 + $0x60] sm:$0xff]
      %v1347 = vld [vmem:[%s223 + $0x68] sm:$0xff]
      %v1348 = vld [vmem:[%s223 + $0x70] sm:$0xff]
      %v1349 = vld [vmem:[%s223 + $0x78] sm:$0xff]
      %v1350 = vld [vmem:[%s223 + $0x80] sm:$0xff]
      %v1351 = vld [vmem:[%s223 + $0x88] sm:$0xff]
      %v1352 = vld [vmem:[%s223 + $0x90] sm:$0xff]
      %v1353 = vld [vmem:[%s223 + $0x98] sm:$0xff]
      %v1354 = vld [vmem:[%s223 + $0xa0] sm:$0xff]
      %v1355 = vld [vmem:[%s223 + $0xa8] sm:$0xff]
      %v1356 = vld [vmem:[%s223 + $0xb0] sm:$0xff]
      %v1357 = vld [vmem:[%s223 + $0xb8] sm:$0xff]
      %v1358 = vld [vmem:[%s223 + $0xc0] sm:$0xff]
      %v1359 = vld [vmem:[%s223 + $0xc8] sm:$0xff]
      %v1360 = vld [vmem:[%s223 + $0xd0] sm:$0xff]
      %v1361 = vld [vmem:[%s223 + $0xd8] sm:$0xff]
      %v1362 = vld [vmem:[%s223 + $0xe0] sm:$0xff]
      %v1363 = vld [vmem:[%s223 + $0xe8] sm:$0xff]
      %v1364 = vld [vmem:[%s223 + $0xf0] sm:$0xff]
      %v1365 = vld [vmem:[%s223 + $0xf8] sm:$0xff]
      %vm1366 = vcmp.gt.f32.partialorder %v1334, 0.0
      %vm1367 = vcmp.gt.f32.partialorder %v1335, 0.0
      %vm1368 = vcmp.gt.f32.partialorder %v1336, 0.0
      %vm1369 = vcmp.gt.f32.partialorder %v1337, 0.0
      %vm1370 = vcmp.gt.f32.partialorder %v1338, 0.0
      %vm1371 = vcmp.gt.f32.partialorder %v1339, 0.0
      %vm1372 = vcmp.gt.f32.partialorder %v1340, 0.0
      %vm1373 = vcmp.gt.f32.partialorder %v1341, 0.0
      %vm1374 = vcmp.gt.f32.partialorder %v1342, 0.0
      %vm1375 = vcmp.gt.f32.partialorder %v1343, 0.0
      %vm1376 = vcmp.gt.f32.partialorder %v1344, 0.0
      %vm1377 = vcmp.gt.f32.partialorder %v1345, 0.0
      %vm1378 = vcmp.gt.f32.partialorder %v1346, 0.0
      %vm1379 = vcmp.gt.f32.partialorder %v1347, 0.0
      %vm1380 = vcmp.gt.f32.partialorder %v1348, 0.0
      %vm1381 = vcmp.gt.f32.partialorder %v1349, 0.0
      %vm1382 = vcmp.gt.f32.partialorder %v1350, 0.0
      %vm1383 = vcmp.gt.f32.partialorder %v1351, 0.0
      %vm1384 = vcmp.gt.f32.partialorder %v1352, 0.0
      %vm1385 = vcmp.gt.f32.partialorder %v1353, 0.0
      %vm1386 = vcmp.gt.f32.partialorder %v1354, 0.0
      %vm1387 = vcmp.gt.f32.partialorder %v1355, 0.0
      %vm1388 = vcmp.gt.f32.partialorder %v1356, 0.0
      %vm1389 = vcmp.gt.f32.partialorder %v1357, 0.0
      %vm1390 = vcmp.gt.f32.partialorder %v1358, 0.0
      %vm1391 = vcmp.gt.f32.partialorder %v1359, 0.0
      %vm1392 = vcmp.gt.f32.partialorder %v1360, 0.0
      %vm1393 = vcmp.gt.f32.partialorder %v1361, 0.0
      %vm1394 = vcmp.gt.f32.partialorder %v1362, 0.0
      %vm1395 = vcmp.gt.f32.partialorder %v1363, 0.0
      %vm1396 = vcmp.gt.f32.partialorder %v1364, 0.0
      %vm1397 = vcmp.gt.f32.partialorder %v1365, 0.0
      %v1398 = vld [vmem:[#allocation3] sm:$0xf]
      %s1399 = scalar_lea.vmem [#allocation4], %s232
      %v1400 = vld [vmem:[%s1399] sm:$0xff]
      %v1401 = vld [vmem:[%s1399 + $0x8] sm:$0xff]
      %v1402 = vld [vmem:[%s1399 + $0x10] sm:$0xff]
      %v1403 = vld [vmem:[%s1399 + $0x18] sm:$0xff]
      %v1404 = vld [vmem:[%s1399 + $0x20] sm:$0xff]
      %v1405 = vld [vmem:[%s1399 + $0x28] sm:$0xff]
      %v1406 = vld [vmem:[%s1399 + $0x30] sm:$0xff]
      %v1407 = vld [vmem:[%s1399 + $0x38] sm:$0xff]
      %v1408 = vld [vmem:[%s1399 + $0x40] sm:$0xff]
      %v1409 = vld [vmem:[%s1399 + $0x48] sm:$0xff]
      %v1410 = vld [vmem:[%s1399 + $0x50] sm:$0xff]
      %v1411 = vld [vmem:[%s1399 + $0x58] sm:$0xff]
      %v1412 = vld [vmem:[%s1399 + $0x60] sm:$0xff]
      %v1413 = vld [vmem:[%s1399 + $0x68] sm:$0xff]
      %v1414 = vld [vmem:[%s1399 + $0x70] sm:$0xff]
      %v1415 = vld [vmem:[%s1399 + $0x78] sm:$0xff]
      %1417 = vset.pattern.permute.xlu0 0
      %1418 = vperm.xlu0 %1417, %v1400
      %v1419 = vpop.permute.xlu0 %1418
      %1422 = vset.pattern.permute.xlu0 0
      %1423 = vperm.xlu0 %1422, %v1401
      %v1424 = vpop.permute.xlu0 %1423
      %1427 = vset.pattern.permute.xlu0 0
      %1428 = vperm.xlu0 %1427, %v1402
      %v1429 = vpop.permute.xlu0 %1428
      %1432 = vset.pattern.permute.xlu0 0
      %1433 = vperm.xlu0 %1432, %v1403
      %v1434 = vpop.permute.xlu0 %1433
      %1437 = vset.pattern.permute.xlu0 0
      %1438 = vperm.xlu0 %1437, %v1404
      %v1439 = vpop.permute.xlu0 %1438
      %1442 = vset.pattern.permute.xlu0 0
      %1443 = vperm.xlu0 %1442, %v1405
      %v1444 = vpop.permute.xlu0 %1443
      %1447 = vset.pattern.permute.xlu0 0
      %1448 = vperm.xlu0 %1447, %v1406
      %v1449 = vpop.permute.xlu0 %1448
      %1452 = vset.pattern.permute.xlu0 0
      %1453 = vperm.xlu0 %1452, %v1407
      %v1454 = vpop.permute.xlu0 %1453
      %1457 = vset.pattern.permute.xlu0 0
      %1458 = vperm.xlu0 %1457, %v1408
      %v1459 = vpop.permute.xlu0 %1458
      %1462 = vset.pattern.permute.xlu0 0
      %1463 = vperm.xlu0 %1462, %v1409
      %v1464 = vpop.permute.xlu0 %1463
      %1467 = vset.pattern.permute.xlu0 0
      %1468 = vperm.xlu0 %1467, %v1410
      %v1469 = vpop.permute.xlu0 %1468
      %1472 = vset.pattern.permute.xlu0 0
      %1473 = vperm.xlu0 %1472, %v1411
      %v1474 = vpop.permute.xlu0 %1473
      %1477 = vset.pattern.permute.xlu0 0
      %1478 = vperm.xlu0 %1477, %v1412
      %v1479 = vpop.permute.xlu0 %1478
      %1482 = vset.pattern.permute.xlu0 0
      %1483 = vperm.xlu0 %1482, %v1413
      %v1484 = vpop.permute.xlu0 %1483
      %1487 = vset.pattern.permute.xlu0 0
      %1488 = vperm.xlu0 %1487, %v1414
      %v1489 = vpop.permute.xlu0 %1488
      %1492 = vset.pattern.permute.xlu0 0
      %1493 = vperm.xlu0 %1492, %v1415
      %v1494 = vpop.permute.xlu0 %1493
      %v1497 = vlaneseq
      %v1498 = vshrl.u32 %v1497, 7
      %v1499 = vsub.s32 0, %v1498
      %v1500 = vrot.slane %v1398, %v1499
      %v1501 = vlaneseq
      %v1502 = vshrl.u32 %v1501, 7
      %v1503 = vsub.s32 2, %v1502
      %v1504 = vrot.slane %v1398, %v1503
      %v1507 = vlaneseq
      %v1508 = vshrl.u32 %v1507, 7
      %v1509 = vsub.s32 0, %v1508
      %v1510 = vrot.slane %v1500, %v1509
      %v1511 = vlaneseq
      %v1512 = vshrl.u32 %v1511, 7
      %v1513 = vsub.s32 0, %v1512
      %v1514 = vrot.slane %v1504, %v1513
      %v1515 = vadd.f32 %v1419, %v1510
      %v1516 = vadd.f32 %v1419, %v1514
      %v1517 = vadd.f32 %v1424, %v1510
      %v1518 = vadd.f32 %v1424, %v1514
      %v1519 = vadd.f32 %v1429, %v1510
      %v1520 = vadd.f32 %v1429, %v1514
      %v1521 = vadd.f32 %v1434, %v1510
      %v1522 = vadd.f32 %v1434, %v1514
      %v1523 = vadd.f32 %v1439, %v1510
      %v1524 = vadd.f32 %v1439, %v1514
      %v1525 = vadd.f32 %v1444, %v1510
      %v1526 = vadd.f32 %v1444, %v1514
      %v1527 = vadd.f32 %v1449, %v1510
      %v1528 = vadd.f32 %v1449, %v1514
      %v1529 = vadd.f32 %v1454, %v1510
      %v1530 = vadd.f32 %v1454, %v1514
      %v1531 = vadd.f32 %v1459, %v1510
      %v1532 = vadd.f32 %v1459, %v1514
      %v1533 = vadd.f32 %v1464, %v1510
      %v1534 = vadd.f32 %v1464, %v1514
      %v1535 = vadd.f32 %v1469, %v1510
      %v1536 = vadd.f32 %v1469, %v1514
      %v1537 = vadd.f32 %v1474, %v1510
      %v1538 = vadd.f32 %v1474, %v1514
      %v1539 = vadd.f32 %v1479, %v1510
      %v1540 = vadd.f32 %v1479, %v1514
      %v1541 = vadd.f32 %v1484, %v1510
      %v1542 = vadd.f32 %v1484, %v1514
      %v1543 = vadd.f32 %v1489, %v1510
      %v1544 = vadd.f32 %v1489, %v1514
      %v1545 = vadd.f32 %v1494, %v1510
      %v1546 = vadd.f32 %v1494, %v1514
      %vm1547 = vcmp.gt.f32.partialorder %v1515, 0.0
      %vm1548 = vcmp.gt.f32.partialorder %v1516, 0.0
      %vm1549 = vcmp.gt.f32.partialorder %v1517, 0.0
      %vm1550 = vcmp.gt.f32.partialorder %v1518, 0.0
      %vm1551 = vcmp.gt.f32.partialorder %v1519, 0.0
      %vm1552 = vcmp.gt.f32.partialorder %v1520, 0.0
      %vm1553 = vcmp.gt.f32.partialorder %v1521, 0.0
      %vm1554 = vcmp.gt.f32.partialorder %v1522, 0.0
      %vm1555 = vcmp.gt.f32.partialorder %v1523, 0.0
      %vm1556 = vcmp.gt.f32.partialorder %v1524, 0.0
      %vm1557 = vcmp.gt.f32.partialorder %v1525, 0.0
      %vm1558 = vcmp.gt.f32.partialorder %v1526, 0.0
      %vm1559 = vcmp.gt.f32.partialorder %v1527, 0.0
      %vm1560 = vcmp.gt.f32.partialorder %v1528, 0.0
      %vm1561 = vcmp.gt.f32.partialorder %v1529, 0.0
      %vm1562 = vcmp.gt.f32.partialorder %v1530, 0.0
      %vm1563 = vcmp.gt.f32.partialorder %v1531, 0.0
      %vm1564 = vcmp.gt.f32.partialorder %v1532, 0.0
      %vm1565 = vcmp.gt.f32.partialorder %v1533, 0.0
      %vm1566 = vcmp.gt.f32.partialorder %v1534, 0.0
      %vm1567 = vcmp.gt.f32.partialorder %v1535, 0.0
      %vm1568 = vcmp.gt.f32.partialorder %v1536, 0.0
      %vm1569 = vcmp.gt.f32.partialorder %v1537, 0.0
      %vm1570 = vcmp.gt.f32.partialorder %v1538, 0.0
      %vm1571 = vcmp.gt.f32.partialorder %v1539, 0.0
      %vm1572 = vcmp.gt.f32.partialorder %v1540, 0.0
      %vm1573 = vcmp.gt.f32.partialorder %v1541, 0.0
      %vm1574 = vcmp.gt.f32.partialorder %v1542, 0.0
      %vm1575 = vcmp.gt.f32.partialorder %v1543, 0.0
      %vm1576 = vcmp.gt.f32.partialorder %v1544, 0.0
      %vm1577 = vcmp.gt.f32.partialorder %v1545, 0.0
      %vm1578 = vcmp.gt.f32.partialorder %v1546, 0.0
      %v1579 = vmul.f32 %v1515, 0.2
      %v1580 = vmul.f32 %v1516, 0.2
      %v1581 = vmul.f32 %v1517, 0.2
      %v1582 = vmul.f32 %v1518, 0.2
      %v1583 = vmul.f32 %v1519, 0.2
      %v1584 = vmul.f32 %v1520, 0.2
      %v1585 = vmul.f32 %v1521, 0.2
      %v1586 = vmul.f32 %v1522, 0.2
      %v1587 = vmul.f32 %v1523, 0.2
      %v1588 = vmul.f32 %v1524, 0.2
      %v1589 = vmul.f32 %v1525, 0.2
      %v1590 = vmul.f32 %v1526, 0.2
      %v1591 = vmul.f32 %v1527, 0.2
      %v1592 = vmul.f32 %v1528, 0.2
      %v1593 = vmul.f32 %v1529, 0.2
      %v1594 = vmul.f32 %v1530, 0.2
      %v1595 = vmul.f32 %v1531, 0.2
      %v1596 = vmul.f32 %v1532, 0.2
      %v1597 = vmul.f32 %v1533, 0.2
      %v1598 = vmul.f32 %v1534, 0.2
      %v1599 = vmul.f32 %v1535, 0.2
      %v1600 = vmul.f32 %v1536, 0.2
      %v1601 = vmul.f32 %v1537, 0.2
      %v1602 = vmul.f32 %v1538, 0.2
      %v1603 = vmul.f32 %v1539, 0.2
      %v1604 = vmul.f32 %v1540, 0.2
      %v1605 = vmul.f32 %v1541, 0.2
      %v1606 = vmul.f32 %v1542, 0.2
      %v1607 = vmul.f32 %v1543, 0.2
      %v1608 = vmul.f32 %v1544, 0.2
      %v1609 = vmul.f32 %v1545, 0.2
      %v1610 = vmul.f32 %v1546, 0.2
      %v1611 = vsel %vm1547, %v1515, %v1579
      %v1612 = vsel %vm1548, %v1516, %v1580
      %v1613 = vsel %vm1549, %v1517, %v1581
      %v1614 = vsel %vm1550, %v1518, %v1582
      %v1615 = vsel %vm1551, %v1519, %v1583
      %v1616 = vsel %vm1552, %v1520, %v1584
      %v1617 = vsel %vm1553, %v1521, %v1585
      %v1618 = vsel %vm1554, %v1522, %v1586
      %v1619 = vsel %vm1555, %v1523, %v1587
      %v1620 = vsel %vm1556, %v1524, %v1588
      %v1621 = vsel %vm1557, %v1525, %v1589
      %v1622 = vsel %vm1558, %v1526, %v1590
      %v1623 = vsel %vm1559, %v1527, %v1591
      %v1624 = vsel %vm1560, %v1528, %v1592
      %v1625 = vsel %vm1561, %v1529, %v1593
      %v1626 = vsel %vm1562, %v1530, %v1594
      %v1627 = vsel %vm1563, %v1531, %v1595
      %v1628 = vsel %vm1564, %v1532, %v1596
      %v1629 = vsel %vm1565, %v1533, %v1597
      %v1630 = vsel %vm1566, %v1534, %v1598
      %v1631 = vsel %vm1567, %v1535, %v1599
      %v1632 = vsel %vm1568, %v1536, %v1600
      %v1633 = vsel %vm1569, %v1537, %v1601
      %v1634 = vsel %vm1570, %v1538, %v1602
      %v1635 = vsel %vm1571, %v1539, %v1603
      %v1636 = vsel %vm1572, %v1540, %v1604
      %v1637 = vsel %vm1573, %v1541, %v1605
      %v1638 = vsel %vm1574, %v1542, %v1606
      %v1639 = vsel %vm1575, %v1543, %v1607
      %v1640 = vsel %vm1576, %v1544, %v1608
      %v1641 = vsel %vm1577, %v1545, %v1609
      %v1642 = vsel %vm1578, %v1546, %v1610
      %v1643 = vsel %vm1366, %v1611, -1e+30
      %v1644 = vsel %vm1367, %v1612, -1e+30
      %v1645 = vsel %vm1368, %v1613, -1e+30
      %v1646 = vsel %vm1369, %v1614, -1e+30
      %v1647 = vsel %vm1370, %v1615, -1e+30
      %v1648 = vsel %vm1371, %v1616, -1e+30
      %v1649 = vsel %vm1372, %v1617, -1e+30
      %v1650 = vsel %vm1373, %v1618, -1e+30
      %v1651 = vsel %vm1374, %v1619, -1e+30
      %v1652 = vsel %vm1375, %v1620, -1e+30
      %v1653 = vsel %vm1376, %v1621, -1e+30
      %v1654 = vsel %vm1377, %v1622, -1e+30
      %v1655 = vsel %vm1378, %v1623, -1e+30
      %v1656 = vsel %vm1379, %v1624, -1e+30
      %v1657 = vsel %vm1380, %v1625, -1e+30
      %v1658 = vsel %vm1381, %v1626, -1e+30
      %v1659 = vsel %vm1382, %v1627, -1e+30
      %v1660 = vsel %vm1383, %v1628, -1e+30
      %v1661 = vsel %vm1384, %v1629, -1e+30
      %v1662 = vsel %vm1385, %v1630, -1e+30
      %v1663 = vsel %vm1386, %v1631, -1e+30
      %v1664 = vsel %vm1387, %v1632, -1e+30
      %v1665 = vsel %vm1388, %v1633, -1e+30
      %v1666 = vsel %vm1389, %v1634, -1e+30
      %v1667 = vsel %vm1390, %v1635, -1e+30
      %v1668 = vsel %vm1391, %v1636, -1e+30
      %v1669 = vsel %vm1392, %v1637, -1e+30
      %v1670 = vsel %vm1393, %v1638, -1e+30
      %v1671 = vsel %vm1394, %v1639, -1e+30
      %v1672 = vsel %vm1395, %v1640, -1e+30
      %v1673 = vsel %vm1396, %v1641, -1e+30
      %v1674 = vsel %vm1397, %v1642, -1e+30
      %v1675 = vmax.f32 %v1643, %v1644
      %1676 = vmax.xlane.f32.xlu0 %v1675
      %v1677 = vpop.xlane.xlu0 %1676
      %v1678 = vmax.f32 %v1645, %v1646
      %1679 = vmax.xlane.f32.xlu0 %v1678
      %v1680 = vpop.xlane.xlu0 %1679
      %v1681 = vmax.f32 %v1647, %v1648
      %1682 = vmax.xlane.f32.xlu0 %v1681
      %v1683 = vpop.xlane.xlu0 %1682
      %v1684 = vmax.f32 %v1649, %v1650
      %1685 = vmax.xlane.f32.xlu0 %v1684
      %v1686 = vpop.xlane.xlu0 %1685
      %v1687 = vmax.f32 %v1651, %v1652
      %1688 = vmax.xlane.f32.xlu0 %v1687
      %v1689 = vpop.xlane.xlu0 %1688
      %v1690 = vmax.f32 %v1653, %v1654
      %1691 = vmax.xlane.f32.xlu0 %v1690
      %v1692 = vpop.xlane.xlu0 %1691
      %v1693 = vmax.f32 %v1655, %v1656
      %1694 = vmax.xlane.f32.xlu0 %v1693
      %v1695 = vpop.xlane.xlu0 %1694
      %v1696 = vmax.f32 %v1657, %v1658
      %1697 = vmax.xlane.f32.xlu0 %v1696
      %v1698 = vpop.xlane.xlu0 %1697
      %v1699 = vmax.f32 %v1659, %v1660
      %1700 = vmax.xlane.f32.xlu0 %v1699
      %v1701 = vpop.xlane.xlu0 %1700
      %v1702 = vmax.f32 %v1661, %v1662
      %1703 = vmax.xlane.f32.xlu0 %v1702
      %v1704 = vpop.xlane.xlu0 %1703
      %v1705 = vmax.f32 %v1663, %v1664
      %1706 = vmax.xlane.f32.xlu0 %v1705
      %v1707 = vpop.xlane.xlu0 %1706
      %v1708 = vmax.f32 %v1665, %v1666
      %1709 = vmax.xlane.f32.xlu0 %v1708
      %v1710 = vpop.xlane.xlu0 %1709
      %v1711 = vmax.f32 %v1667, %v1668
      %1712 = vmax.xlane.f32.xlu0 %v1711
      %v1713 = vpop.xlane.xlu0 %1712
      %v1714 = vmax.f32 %v1669, %v1670
      %1715 = vmax.xlane.f32.xlu0 %v1714
      %v1716 = vpop.xlane.xlu0 %1715
      %v1717 = vmax.f32 %v1671, %v1672
      %1718 = vmax.xlane.f32.xlu0 %v1717
      %v1719 = vpop.xlane.xlu0 %1718
      %v1720 = vmax.f32 %v1673, %v1674
      %1721 = vmax.xlane.f32.xlu0 %v1720
      %v1722 = vpop.xlane.xlu0 %1721
      %v1723 = vsub.f32 %v1643, %v1677
      %v1724 = vsub.f32 %v1644, %v1677
      %v1725 = vsub.f32 %v1645, %v1680
      %v1726 = vsub.f32 %v1646, %v1680
      %v1727 = vsub.f32 %v1647, %v1683
      %v1728 = vsub.f32 %v1648, %v1683
      %v1729 = vsub.f32 %v1649, %v1686
      %v1730 = vsub.f32 %v1650, %v1686
      %v1731 = vsub.f32 %v1651, %v1689
      %v1732 = vsub.f32 %v1652, %v1689
      %v1733 = vsub.f32 %v1653, %v1692
      %v1734 = vsub.f32 %v1654, %v1692
      %v1735 = vsub.f32 %v1655, %v1695
      %v1736 = vsub.f32 %v1656, %v1695
      %v1737 = vsub.f32 %v1657, %v1698
      %v1738 = vsub.f32 %v1658, %v1698
      %v1739 = vsub.f32 %v1659, %v1701
      %v1740 = vsub.f32 %v1660, %v1701
      %v1741 = vsub.f32 %v1661, %v1704
      %v1742 = vsub.f32 %v1662, %v1704
      %v1743 = vsub.f32 %v1663, %v1707
      %v1744 = vsub.f32 %v1664, %v1707
      %v1745 = vsub.f32 %v1665, %v1710
      %v1746 = vsub.f32 %v1666, %v1710
      %v1747 = vsub.f32 %v1667, %v1713
      %v1748 = vsub.f32 %v1668, %v1713
      %v1749 = vsub.f32 %v1669, %v1716
      %v1750 = vsub.f32 %v1670, %v1716
      %v1751 = vsub.f32 %v1671, %v1719
      %v1752 = vsub.f32 %v1672, %v1719
      %v1753 = vsub.f32 %v1673, %v1722
      %v1754 = vsub.f32 %v1674, %v1722
      %v1755 = vmul.f32 %v1723, 1.442695
      %v1756 = vpow.pop %v1755
      %v1757 = vmul.f32 %v1724, 1.442695
      %v1758 = vpow.pop %v1757
      %v1759 = vmul.f32 %v1725, 1.442695
      %v1760 = vpow.pop %v1759
      %v1761 = vmul.f32 %v1726, 1.442695
      %v1762 = vpow.pop %v1761
      %v1763 = vmul.f32 %v1727, 1.442695
      %v1764 = vpow.pop %v1763
      %v1765 = vmul.f32 %v1728, 1.442695
      %v1766 = vpow.pop %v1765
      %v1767 = vmul.f32 %v1729, 1.442695
      %v1768 = vpow.pop %v1767
      %v1769 = vmul.f32 %v1730, 1.442695
      %v1770 = vpow.pop %v1769
      %v1771 = vmul.f32 %v1731, 1.442695
      %v1772 = vpow.pop %v1771
      %v1773 = vmul.f32 %v1732, 1.442695
      %v1774 = vpow.pop %v1773
      %v1775 = vmul.f32 %v1733, 1.442695
      %v1776 = vpow.pop %v1775
      %v1777 = vmul.f32 %v1734, 1.442695
      %v1778 = vpow.pop %v1777
      %v1779 = vmul.f32 %v1735, 1.442695
      %v1780 = vpow.pop %v1779
      %v1781 = vmul.f32 %v1736, 1.442695
      %v1782 = vpow.pop %v1781
      %v1783 = vmul.f32 %v1737, 1.442695
      %v1784 = vpow.pop %v1783
      %v1785 = vmul.f32 %v1738, 1.442695
      %v1786 = vpow.pop %v1785
      %v1787 = vmul.f32 %v1739, 1.442695
      %v1788 = vpow.pop %v1787
      %v1789 = vmul.f32 %v1740, 1.442695
      %v1790 = vpow.pop %v1789
      %v1791 = vmul.f32 %v1741, 1.442695
      %v1792 = vpow.pop %v1791
      %v1793 = vmul.f32 %v1742, 1.442695
      %v1794 = vpow.pop %v1793
      %v1795 = vmul.f32 %v1743, 1.442695
      %v1796 = vpow.pop %v1795
      %v1797 = vmul.f32 %v1744, 1.442695
      %v1798 = vpow.pop %v1797
      %v1799 = vmul.f32 %v1745, 1.442695
      %v1800 = vpow.pop %v1799
      %v1801 = vmul.f32 %v1746, 1.442695
      %v1802 = vpow.pop %v1801
      %v1803 = vmul.f32 %v1747, 1.442695
      %v1804 = vpow.pop %v1803
      %v1805 = vmul.f32 %v1748, 1.442695
      %v1806 = vpow.pop %v1805
      %v1807 = vmul.f32 %v1749, 1.442695
      %v1808 = vpow.pop %v1807
      %v1809 = vmul.f32 %v1750, 1.442695
      %v1810 = vpow.pop %v1809
      %v1811 = vmul.f32 %v1751, 1.442695
      %v1812 = vpow.pop %v1811
      %v1813 = vmul.f32 %v1752, 1.442695
      %v1814 = vpow.pop %v1813
      %v1815 = vmul.f32 %v1753, 1.442695
      %v1816 = vpow.pop %v1815
      %v1817 = vmul.f32 %v1754, 1.442695
      %v1818 = vpow.pop %v1817
      %v1819 = vpack.c.bf16 %v1760, %v1756
      %v1820 = vpack.c.bf16 %v1762, %v1758
      %v1821 = vpack.c.bf16 %v1768, %v1764
      %v1822 = vpack.c.bf16 %v1770, %v1766
      %v1823 = vpack.c.bf16 %v1776, %v1772
      %v1824 = vpack.c.bf16 %v1778, %v1774
      %v1825 = vpack.c.bf16 %v1784, %v1780
      %v1826 = vpack.c.bf16 %v1786, %v1782
      %v1827 = vpack.c.bf16 %v1792, %v1788
      %v1828 = vpack.c.bf16 %v1794, %v1790
      %v1829 = vpack.c.bf16 %v1800, %v1796
      %v1830 = vpack.c.bf16 %v1802, %v1798
      %v1831 = vpack.c.bf16 %v1808, %v1804
      %v1832 = vpack.c.bf16 %v1810, %v1806
      %v1833 = vpack.c.bf16 %v1816, %v1812
      %v1834 = vpack.c.bf16 %v1818, %v1814
      %v1835 = vld [vmem:[#allocation2] sm:$0xff]
      %v1836 = vld [vmem:[#allocation2 + $0x8] sm:$0xff]
      %v1837 = vld [vmem:[#allocation2 + $0x10] sm:$0xff]
      %v1838 = vld [vmem:[#allocation2 + $0x18] sm:$0xff]
      %v1839 = vld [vmem:[#allocation2 + $0x20] sm:$0xff]
      %v1840 = vld [vmem:[#allocation2 + $0x28] sm:$0xff]
      %v1841 = vld [vmem:[#allocation2 + $0x30] sm:$0xff]
      %v1842 = vld [vmem:[#allocation2 + $0x38] sm:$0xff]
      %v1843 = vld [vmem:[#allocation2 + $0x40] sm:$0xff]
      %v1844 = vld [vmem:[#allocation2 + $0x48] sm:$0xff]
      %v1845 = vld [vmem:[#allocation2 + $0x50] sm:$0xff]
      %v1846 = vld [vmem:[#allocation2 + $0x58] sm:$0xff]
      %v1847 = vld [vmem:[#allocation2 + $0x60] sm:$0xff]
      %v1848 = vld [vmem:[#allocation2 + $0x68] sm:$0xff]
      %v1849 = vld [vmem:[#allocation2 + $0x70] sm:$0xff]
      %v1850 = vld [vmem:[#allocation2 + $0x78] sm:$0xff]
      %1851 = vmatprep.subr.bf16.mxu0 0
      %1852 = vmatpush1.bf16.msra.mxu0 %v1835
      %1853 = vmatprep.subr.bf16.mxu0 0
      %1854 = vmatpush1.bf16.msra.mxu0 %v1836
      %1855 = vmatprep.subr.bf16.mxu0 0
      %1856 = vmatpush1.bf16.msra.mxu0 %v1837
      %1857 = vmatprep.subr.bf16.mxu0 0
      %1858 = vmatpush1.bf16.msra.mxu0 %v1838
      %1859 = vmatprep.subr.bf16.mxu0 0
      %1860 = vmatpush1.bf16.msra.mxu0 %v1839
      %1861 = vmatprep.subr.bf16.mxu0 0
      %1862 = vmatpush1.bf16.msra.mxu0 %v1840
      %1863 = vmatprep.subr.bf16.mxu0 0
      %1864 = vmatpush1.bf16.msra.mxu0 %v1841
      %1865 = vmatprep.subr.bf16.mxu0 0
      %1866 = vmatpush1.bf16.msra.mxu0 %v1842
      %1867 = vmatprep.subr.bf16.mxu0 0
      %1868 = vmatpush1.bf16.msra.mxu0 %v1843
      %1869 = vmatprep.subr.bf16.mxu0 0
      %1870 = vmatpush1.bf16.msra.mxu0 %v1844
      %1871 = vmatprep.subr.bf16.mxu0 0
      %1872 = vmatpush1.bf16.msra.mxu0 %v1845
      %1873 = vmatprep.subr.bf16.mxu0 0
      %1874 = vmatpush1.bf16.msra.mxu0 %v1846
      %1875 = vmatprep.subr.bf16.mxu0 0
      %1876 = vmatpush1.bf16.msra.mxu0 %v1847
      %1877 = vmatprep.subr.bf16.mxu0 0
      %1878 = vmatpush1.bf16.msra.mxu0 %v1848
      %1879 = vmatprep.subr.bf16.mxu0 0
      %1880 = vmatpush1.bf16.msra.mxu0 %v1849
      %1881 = vmatprep.subr.bf16.mxu0 0
      %1882 = vmatpush1.bf16.msra.mxu0 %v1850
      %1883 = vmatprep.mubr.bf16.mxu0 %v1820
      %1884 = vmatmul.mubr.bf16.gmra.mrb[0].mxu0 %v1819
      %v1885 = vpop.f32.mrb[0].mxu0
      %v1886 = vadd.f32 0.0, %v1885
      %v1887 = vpop.f32.mrb[0].mxu0
      %v1888 = vpop.f32.mrb[0].mxu0
      %v1889 = vadd.f32 0.0, %v1888
      %v1890 = vpop.f32.mrb[0].mxu0
      %1891 = vmatprep.mubr.bf16.mxu0 %v1822
      %1892 = vmatmul.mubr.bf16.gmra.mrb[0].mxu0 %v1821
      %v1893 = vpop.f32.mrb[0].mxu0
      %v1894 = vadd.f32 0.0, %v1893
      %v1895 = vpop.f32.mrb[0].mxu0
      %v1896 = vpop.f32.mrb[0].mxu0
      %v1897 = vadd.f32 0.0, %v1896
      %v1898 = vpop.f32.mrb[0].mxu0
      %1899 = vmatprep.mubr.bf16.mxu0 %v1824
      %1900 = vmatmul.mubr.bf16.gmra.mrb[0].mxu0 %v1823
      %v1901 = vpop.f32.mrb[0].mxu0
      %v1902 = vadd.f32 0.0, %v1901
      %v1903 = vpop.f32.mrb[0].mxu0
      %v1904 = vpop.f32.mrb[0].mxu0
      %v1905 = vadd.f32 0.0, %v1904
      %v1906 = vpop.f32.mrb[0].mxu0
      %1907 = vmatprep.mubr.bf16.mxu0 %v1826
      %1908 = vmatmul.mubr.bf16.gmra.mrb[0].mxu0 %v1825
      %v1909 = vpop.f32.mrb[0].mxu0
      %v1910 = vadd.f32 0.0, %v1909
      %v1911 = vpop.f32.mrb[0].mxu0
      %v1912 = vpop.f32.mrb[0].mxu0
      %v1913 = vadd.f32 0.0, %v1912
      %v1914 = vpop.f32.mrb[0].mxu0
      %1915 = vmatprep.mubr.bf16.mxu0 %v1828
      %1916 = vmatmul.mubr.bf16.gmra.mrb[0].mxu0 %v1827
      %v1917 = vpop.f32.mrb[0].mxu0
      %v1918 = vadd.f32 0.0, %v1917
      %v1919 = vpop.f32.mrb[0].mxu0
      %v1920 = vpop.f32.mrb[0].mxu0
      %v1921 = vadd.f32 0.0, %v1920
      %v1922 = vpop.f32.mrb[0].mxu0
      %1923 = vmatprep.mubr.bf16.mxu0 %v1830
      %1924 = vmatmul.mubr.bf16.gmra.mrb[0].mxu0 %v1829
      %v1925 = vpop.f32.mrb[0].mxu0
      %v1926 = vadd.f32 0.0, %v1925
      %v1927 = vpop.f32.mrb[0].mxu0
      %v1928 = vpop.f32.mrb[0].mxu0
      %v1929 = vadd.f32 0.0, %v1928
      %v1930 = vpop.f32.mrb[0].mxu0
      %1931 = vmatprep.mubr.bf16.mxu0 %v1832
      %1932 = vmatmul.mubr.bf16.gmra.mrb[0].mxu0 %v1831
      %v1933 = vpop.f32.mrb[0].mxu0
      %v1934 = vadd.f32 0.0, %v1933
      %v1935 = vpop.f32.mrb[0].mxu0
      %v1936 = vpop.f32.mrb[0].mxu0
      %v1937 = vadd.f32 0.0, %v1936
      %v1938 = vpop.f32.mrb[0].mxu0
      %1939 = vmatprep.mubr.bf16.mxu0 %v1834
      %1940 = vmatmul.mubr.bf16.gmra.mrb[0].mxu0 %v1833
      %v1941 = vpop.f32.mrb[0].mxu0
      %v1942 = vadd.f32 0.0, %v1941
      %v1943 = vpop.f32.mrb[0].mxu0
      %v1944 = vpop.f32.mrb[0].mxu0
      %v1945 = vadd.f32 0.0, %v1944
      %v1946 = vpop.f32.mrb[0].mxu0
      %1947 = vdwg.mxu0
      %v1948 = vrcp.pop %v1886
      %v1949 = vrcp.pop %v1889
      %v1950 = vrcp.pop %v1894
      %v1951 = vrcp.pop %v1897
      %v1952 = vrcp.pop %v1902
      %v1953 = vrcp.pop %v1905
      %v1954 = vrcp.pop %v1910
      %v1955 = vrcp.pop %v1913
      %v1956 = vrcp.pop %v1918
      %v1957 = vrcp.pop %v1921
      %v1958 = vrcp.pop %v1926
      %v1959 = vrcp.pop %v1929
      %v1960 = vrcp.pop %v1934
      %v1961 = vrcp.pop %v1937
      %v1962 = vrcp.pop %v1942
      %v1963 = vrcp.pop %v1945
      %1965 = vset.pattern.permute.xlu0 32
      %1966 = vperm.xlu0 %1965, %v1948
      %v1967 = vpop.permute.xlu0 %1966
      %1970 = vset.pattern.permute.xlu0 32
      %1971 = vperm.xlu0 %1970, %v1949
      %v1972 = vpop.permute.xlu0 %1971
      %1975 = vset.pattern.permute.xlu0 32
      %1976 = vperm.xlu0 %1975, %v1950
      %v1977 = vpop.permute.xlu0 %1976
      %1980 = vset.pattern.permute.xlu0 32
      %1981 = vperm.xlu0 %1980, %v1951
      %v1982 = vpop.permute.xlu0 %1981
      %1985 = vset.pattern.permute.xlu0 32
      %1986 = vperm.xlu0 %1985, %v1952
      %v1987 = vpop.permute.xlu0 %1986
      %1990 = vset.pattern.permute.xlu0 32
      %1991 = vperm.xlu0 %1990, %v1953
      %v1992 = vpop.permute.xlu0 %1991
      %1995 = vset.pattern.permute.xlu0 32
      %1996 = vperm.xlu0 %1995, %v1954
      %v1997 = vpop.permute.xlu0 %1996
      %2000 = vset.pattern.permute.xlu0 32
      %2001 = vperm.xlu0 %2000, %v1955
      %v2002 = vpop.permute.xlu0 %2001
      %2005 = vset.pattern.permute.xlu0 32
      %2006 = vperm.xlu0 %2005, %v1956
      %v2007 = vpop.permute.xlu0 %2006
      %2010 = vset.pattern.permute.xlu0 32
      %2011 = vperm.xlu0 %2010, %v1957
      %v2012 = vpop.permute.xlu0 %2011
      %2015 = vset.pattern.permute.xlu0 32
      %2016 = vperm.xlu0 %2015, %v1958
      %v2017 = vpop.permute.xlu0 %2016
      %2020 = vset.pattern.permute.xlu0 32
      %2021 = vperm.xlu0 %2020, %v1959
      %v2022 = vpop.permute.xlu0 %2021
      %2025 = vset.pattern.permute.xlu0 32
      %2026 = vperm.xlu0 %2025, %v1960
      %v2027 = vpop.permute.xlu0 %2026
      %2030 = vset.pattern.permute.xlu0 32
      %2031 = vperm.xlu0 %2030, %v1961
      %v2032 = vpop.permute.xlu0 %2031
      %2035 = vset.pattern.permute.xlu0 32
      %2036 = vperm.xlu0 %2035, %v1962
      %v2037 = vpop.permute.xlu0 %2036
      %2040 = vset.pattern.permute.xlu0 32
      %2041 = vperm.xlu0 %2040, %v1963
      %v2042 = vpop.permute.xlu0 %2041
      %v2044 = vmul.f32 %v1886, %v1967
      %v2045 = vmul.f32 %v1889, %v1972
      %v2046 = vmul.f32 %v1894, %v1977
      %v2047 = vmul.f32 %v1897, %v1982
      %v2048 = vmul.f32 %v1902, %v1987
      %v2049 = vmul.f32 %v1905, %v1992
      %v2050 = vmul.f32 %v1910, %v1997
      %v2051 = vmul.f32 %v1913, %v2002
      %v2052 = vmul.f32 %v1918, %v2007
      %v2053 = vmul.f32 %v1921, %v2012
      %v2054 = vmul.f32 %v1926, %v2017
      %v2055 = vmul.f32 %v1929, %v2022
      %v2056 = vmul.f32 %v1934, %v2027
      %v2057 = vmul.f32 %v1937, %v2032
      %v2058 = vmul.f32 %v1942, %v2037
      %v2059 = vmul.f32 %v1945, %v2042
      %v2060 = vld [vmem:[%s4] sm:$0x1]
      %v2061 = vlaneseq
      %v2062 = vshrl.u32 %v2061, 7
      %v2063 = vsub.s32 0, %v2062
      %v2064 = vrot.slane %v2060, %v2063
      %v2065 = vadd.f32 %v2044, %v2064
      %v2066 = vadd.f32 %v2045, %v2064
      %v2067 = vadd.f32 %v2046, %v2064
      %v2068 = vadd.f32 %v2047, %v2064
      %v2069 = vadd.f32 %v2048, %v2064
      %v2070 = vadd.f32 %v2049, %v2064
      %v2071 = vadd.f32 %v2050, %v2064
      %v2072 = vadd.f32 %v2051, %v2064
      %v2073 = vadd.f32 %v2052, %v2064
      %v2074 = vadd.f32 %v2053, %v2064
      %v2075 = vadd.f32 %v2054, %v2064
      %v2076 = vadd.f32 %v2055, %v2064
      %v2077 = vadd.f32 %v2056, %v2064
      %v2078 = vadd.f32 %v2057, %v2064
      %v2079 = vadd.f32 %v2058, %v2064
      %v2080 = vadd.f32 %v2059, %v2064
      %vm2081 = vcmp.gt.f32.partialorder %v2065, 0.0
      %vm2082 = vcmp.gt.f32.partialorder %v2066, 0.0
      %vm2083 = vcmp.gt.f32.partialorder %v2067, 0.0
      %vm2084 = vcmp.gt.f32.partialorder %v2068, 0.0
      %vm2085 = vcmp.gt.f32.partialorder %v2069, 0.0
      %vm2086 = vcmp.gt.f32.partialorder %v2070, 0.0
      %vm2087 = vcmp.gt.f32.partialorder %v2071, 0.0
      %vm2088 = vcmp.gt.f32.partialorder %v2072, 0.0
      %vm2089 = vcmp.gt.f32.partialorder %v2073, 0.0
      %vm2090 = vcmp.gt.f32.partialorder %v2074, 0.0
      %vm2091 = vcmp.gt.f32.partialorder %v2075, 0.0
      %vm2092 = vcmp.gt.f32.partialorder %v2076, 0.0
      %vm2093 = vcmp.gt.f32.partialorder %v2077, 0.0
      %vm2094 = vcmp.gt.f32.partialorder %v2078, 0.0
      %vm2095 = vcmp.gt.f32.partialorder %v2079, 0.0
      %vm2096 = vcmp.gt.f32.partialorder %v2080, 0.0
      %v2097 = vmul.f32 %v2065, 0.01
      %v2098 = vmul.f32 %v2066, 0.01
      %v2099 = vmul.f32 %v2067, 0.01
      %v2100 = vmul.f32 %v2068, 0.01
      %v2101 = vmul.f32 %v2069, 0.01
      %v2102 = vmul.f32 %v2070, 0.01
      %v2103 = vmul.f32 %v2071, 0.01
      %v2104 = vmul.f32 %v2072, 0.01
      %v2105 = vmul.f32 %v2073, 0.01
      %v2106 = vmul.f32 %v2074, 0.01
      %v2107 = vmul.f32 %v2075, 0.01
      %v2108 = vmul.f32 %v2076, 0.01
      %v2109 = vmul.f32 %v2077, 0.01
      %v2110 = vmul.f32 %v2078, 0.01
      %v2111 = vmul.f32 %v2079, 0.01
      %v2112 = vmul.f32 %v2080, 0.01
      %v2113 = vsel %vm2081, %v2065, %v2097
      %v2114 = vsel %vm2082, %v2066, %v2098
      %v2115 = vsel %vm2083, %v2067, %v2099
      %v2116 = vsel %vm2084, %v2068, %v2100
      %v2117 = vsel %vm2085, %v2069, %v2101
      %v2118 = vsel %vm2086, %v2070, %v2102
      %v2119 = vsel %vm2087, %v2071, %v2103
      %v2120 = vsel %vm2088, %v2072, %v2104
      %v2121 = vsel %vm2089, %v2073, %v2105
      %v2122 = vsel %vm2090, %v2074, %v2106
      %v2123 = vsel %vm2091, %v2075, %v2107
      %v2124 = vsel %vm2092, %v2076, %v2108
      %v2125 = vsel %vm2093, %v2077, %v2109
      %v2126 = vsel %vm2094, %v2078, %v2110
      %v2127 = vsel %vm2095, %v2079, %v2111
      %v2128 = vsel %vm2096, %v2080, %v2112
      %vm2129 = vcmask 261120
      %2130 = vst.msk [vmem:[%s229] sm:$0xff] %vm2129, %v2113
      %2131 = vst.msk [vmem:[%s229 + $0x8] sm:$0xff] %vm2129, %v2114
      %2132 = vst.msk [vmem:[%s229 + $0x10] sm:$0xff] %vm2129, %v2115
      %2133 = vst.msk [vmem:[%s229 + $0x18] sm:$0xff] %vm2129, %v2116
      %2134 = vst.msk [vmem:[%s229 + $0x20] sm:$0xff] %vm2129, %v2117
      %2135 = vst.msk [vmem:[%s229 + $0x28] sm:$0xff] %vm2129, %v2118
      %2136 = vst.msk [vmem:[%s229 + $0x30] sm:$0xff] %vm2129, %v2119
      %2137 = vst.msk [vmem:[%s229 + $0x38] sm:$0xff] %vm2129, %v2120
      %2138 = vst.msk [vmem:[%s229 + $0x40] sm:$0xff] %vm2129, %v2121
      %2139 = vst.msk [vmem:[%s229 + $0x48] sm:$0xff] %vm2129, %v2122
      %2140 = vst.msk [vmem:[%s229 + $0x50] sm:$0xff] %vm2129, %v2123
      %2141 = vst.msk [vmem:[%s229 + $0x58] sm:$0xff] %vm2129, %v2124
      %2142 = vst.msk [vmem:[%s229 + $0x60] sm:$0xff] %vm2129, %v2125
      %2143 = vst.msk [vmem:[%s229 + $0x68] sm:$0xff] %vm2129, %v2126
      %2144 = vst.msk [vmem:[%s229 + $0x70] sm:$0xff] %vm2129, %v2127
      %2145 = vst.msk [vmem:[%s229 + $0x78] sm:$0xff] %vm2129, %v2128
      %2146 = vset.pattern.permute.xlu0 1
      %2147 = vperm.xlu0 %2146, %v1400
      %v2148 = vpop.permute.xlu0 %2147
      %2150 = vset.pattern.permute.xlu0 1
      %2151 = vperm.xlu0 %2150, %v1401
      %v2152 = vpop.permute.xlu0 %2151
      %2154 = vset.pattern.permute.xlu0 1
      %2155 = vperm.xlu0 %2154, %v1402
      %v2156 = vpop.permute.xlu0 %2155
      %2158 = vset.pattern.permute.xlu0 1
      %2159 = vperm.xlu0 %2158, %v1403
      %v2160 = vpop.permute.xlu0 %2159
      %2162 = vset.pattern.permute.xlu0 1
      %2163 = vperm.xlu0 %2162, %v1404
      %v2164 = vpop.permute.xlu0 %2163
      %2166 = vset.pattern.permute.xlu0 1
      %2167 = vperm.xlu0 %2166, %v1405
      %v2168 = vpop.permute.xlu0 %2167
      %2170 = vset.pattern.permute.xlu0 1
      %2171 = vperm.xlu0 %2170, %v1406
      %v2172 = vpop.permute.xlu0 %2171
      %2174 = vset.pattern.permute.xlu0 1
      %2175 = vperm.xlu0 %2174, %v1407
      %v2176 = vpop.permute.xlu0 %2175
      %2178 = vset.pattern.permute.xlu0 1
      %2179 = vperm.xlu0 %2178, %v1408
      %v2180 = vpop.permute.xlu0 %2179
      %2182 = vset.pattern.permute.xlu0 1
      %2183 = vperm.xlu0 %2182, %v1409
      %v2184 = vpop.permute.xlu0 %2183
      %2186 = vset.pattern.permute.xlu0 1
      %2187 = vperm.xlu0 %2186, %v1410
      %v2188 = vpop.permute.xlu0 %2187
      %2190 = vset.pattern.permute.xlu0 1
      %2191 = vperm.xlu0 %2190, %v1411
      %v2192 = vpop.permute.xlu0 %2191
      %2194 = vset.pattern.permute.xlu0 1
      %2195 = vperm.xlu0 %2194, %v1412
      %v2196 = vpop.permute.xlu0 %2195
      %2198 = vset.pattern.permute.xlu0 1
      %2199 = vperm.xlu0 %2198, %v1413
      %v2200 = vpop.permute.xlu0 %2199
      %2202 = vset.pattern.permute.xlu0 1
      %2203 = vperm.xlu0 %2202, %v1414
      %v2204 = vpop.permute.xlu0 %2203
      %2206 = vset.pattern.permute.xlu0 1
      %2207 = vperm.xlu0 %2206, %v1415
      %v2208 = vpop.permute.xlu0 %2207
      %v2210 = vlaneseq
      %v2211 = vshrl.u32 %v2210, 7
      %v2212 = vsub.s32 1, %v2211
      %v2213 = vrot.slane %v1398, %v2212
      %v2214 = vlaneseq
      %v2215 = vshrl.u32 %v2214, 7
      %v2216 = vsub.s32 3, %v2215
      %v2217 = vrot.slane %v1398, %v2216
      %v2220 = vlaneseq
      %v2221 = vshrl.u32 %v2220, 7
      %v2222 = vsub.s32 1, %v2221
      %v2223 = vrot.slane %v2213, %v2222
      %v2224 = vlaneseq
      %v2225 = vshrl.u32 %v2224, 7
      %v2226 = vsub.s32 1, %v2225
      %v2227 = vrot.slane %v2217, %v2226
      %v2228 = vadd.f32 %v2148, %v2223
      %v2229 = vadd.f32 %v2148, %v2227
      %v2230 = vadd.f32 %v2152, %v2223
      %v2231 = vadd.f32 %v2152, %v2227
      %v2232 = vadd.f32 %v2156, %v2223
      %v2233 = vadd.f32 %v2156, %v2227
      %v2234 = vadd.f32 %v2160, %v2223
      %v2235 = vadd.f32 %v2160, %v2227
      %v2236 = vadd.f32 %v2164, %v2223
      %v2237 = vadd.f32 %v2164, %v2227
      %v2238 = vadd.f32 %v2168, %v2223
      %v2239 = vadd.f32 %v2168, %v2227
      %v2240 = vadd.f32 %v2172, %v2223
      %v2241 = vadd.f32 %v2172, %v2227
      %v2242 = vadd.f32 %v2176, %v2223
      %v2243 = vadd.f32 %v2176, %v2227
      %v2244 = vadd.f32 %v2180, %v2223
      %v2245 = vadd.f32 %v2180, %v2227
      %v2246 = vadd.f32 %v2184, %v2223
      %v2247 = vadd.f32 %v2184, %v2227
      %v2248 = vadd.f32 %v2188, %v2223
      %v2249 = vadd.f32 %v2188, %v2227
      %v2250 = vadd.f32 %v2192, %v2223
      %v2251 = vadd.f32 %v2192, %v2227
      %v2252 = vadd.f32 %v2196, %v2223
      %v2253 = vadd.f32 %v2196, %v2227
      %v2254 = vadd.f32 %v2200, %v2223
      %v2255 = vadd.f32 %v2200, %v2227
      %v2256 = vadd.f32 %v2204, %v2223
      %v2257 = vadd.f32 %v2204, %v2227
      %v2258 = vadd.f32 %v2208, %v2223
      %v2259 = vadd.f32 %v2208, %v2227
      %vm2260 = vcmp.gt.f32.partialorder %v2228, 0.0
      %vm2261 = vcmp.gt.f32.partialorder %v2229, 0.0
      %vm2262 = vcmp.gt.f32.partialorder %v2230, 0.0
      %vm2263 = vcmp.gt.f32.partialorder %v2231, 0.0
      %vm2264 = vcmp.gt.f32.partialorder %v2232, 0.0
      %vm2265 = vcmp.gt.f32.partialorder %v2233, 0.0
      %vm2266 = vcmp.gt.f32.partialorder %v2234, 0.0
      %vm2267 = vcmp.gt.f32.partialorder %v2235, 0.0
      %vm2268 = vcmp.gt.f32.partialorder %v2236, 0.0
      %vm2269 = vcmp.gt.f32.partialorder %v2237, 0.0
      %vm2270 = vcmp.gt.f32.partialorder %v2238, 0.0
      %vm2271 = vcmp.gt.f32.partialorder %v2239, 0.0
      %vm2272 = vcmp.gt.f32.partialorder %v2240, 0.0
      %vm2273 = vcmp.gt.f32.partialorder %v2241, 0.0
      %vm2274 = vcmp.gt.f32.partialorder %v2242, 0.0
      %vm2275 = vcmp.gt.f32.partialorder %v2243, 0.0
      %vm2276 = vcmp.gt.f32.partialorder %v2244, 0.0
      %vm2277 = vcmp.gt.f32.partialorder %v2245, 0.0
      %vm2278 = vcmp.gt.f32.partialorder %v2246, 0.0
      %vm2279 = vcmp.gt.f32.partialorder %v2247, 0.0
      %vm2280 = vcmp.gt.f32.partialorder %v2248, 0.0
      %vm2281 = vcmp.gt.f32.partialorder %v2249, 0.0
      %vm2282 = vcmp.gt.f32.partialorder %v2250, 0.0
      %vm2283 = vcmp.gt.f32.partialorder %v2251, 0.0
      %vm2284 = vcmp.gt.f32.partialorder %v2252, 0.0
      %vm2285 = vcmp.gt.f32.partialorder %v2253, 0.0
      %vm2286 = vcmp.gt.f32.partialorder %v2254, 0.0
      %vm2287 = vcmp.gt.f32.partialorder %v2255, 0.0
      %vm2288 = vcmp.gt.f32.partialorder %v2256, 0.0
      %vm2289 = vcmp.gt.f32.partialorder %v2257, 0.0
      %vm2290 = vcmp.gt.f32.partialorder %v2258, 0.0
      %vm2291 = vcmp.gt.f32.partialorder %v2259, 0.0
      %v2292 = vmul.f32 %v2228, 0.2
      %v2293 = vmul.f32 %v2229, 0.2
      %v2294 = vmul.f32 %v2230, 0.2
      %v2295 = vmul.f32 %v2231, 0.2
      %v2296 = vmul.f32 %v2232, 0.2
      %v2297 = vmul.f32 %v2233, 0.2
      %v2298 = vmul.f32 %v2234, 0.2
      %v2299 = vmul.f32 %v2235, 0.2
      %v2300 = vmul.f32 %v2236, 0.2
      %v2301 = vmul.f32 %v2237, 0.2
      %v2302 = vmul.f32 %v2238, 0.2
      %v2303 = vmul.f32 %v2239, 0.2
      %v2304 = vmul.f32 %v2240, 0.2
      %v2305 = vmul.f32 %v2241, 0.2
      %v2306 = vmul.f32 %v2242, 0.2
      %v2307 = vmul.f32 %v2243, 0.2
      %v2308 = vmul.f32 %v2244, 0.2
      %v2309 = vmul.f32 %v2245, 0.2
      %v2310 = vmul.f32 %v2246, 0.2
      %v2311 = vmul.f32 %v2247, 0.2
      %v2312 = vmul.f32 %v2248, 0.2
      %v2313 = vmul.f32 %v2249, 0.2
      %v2314 = vmul.f32 %v2250, 0.2
      %v2315 = vmul.f32 %v2251, 0.2
      %v2316 = vmul.f32 %v2252, 0.2
      %v2317 = vmul.f32 %v2253, 0.2
      %v2318 = vmul.f32 %v2254, 0.2
      %v2319 = vmul.f32 %v2255, 0.2
      %v2320 = vmul.f32 %v2256, 0.2
      %v2321 = vmul.f32 %v2257, 0.2
      %v2322 = vmul.f32 %v2258, 0.2
      %v2323 = vmul.f32 %v2259, 0.2
      %v2324 = vsel %vm2260, %v2228, %v2292
      %v2325 = vsel %vm2261, %v2229, %v2293
      %v2326 = vsel %vm2262, %v2230, %v2294
      %v2327 = vsel %vm2263, %v2231, %v2295
      %v2328 = vsel %vm2264, %v2232, %v2296
      %v2329 = vsel %vm2265, %v2233, %v2297
      %v2330 = vsel %vm2266, %v2234, %v2298
      %v2331 = vsel %vm2267, %v2235, %v2299
      %v2332 = vsel %vm2268, %v2236, %v2300
      %v2333 = vsel %vm2269, %v2237, %v2301
      %v2334 = vsel %vm2270, %v2238, %v2302
      %v2335 = vsel %vm2271, %v2239, %v2303
      %v2336 = vsel %vm2272, %v2240, %v2304
      %v2337 = vsel %vm2273, %v2241, %v2305
      %v2338 = vsel %vm2274, %v2242, %v2306
      %v2339 = vsel %vm2275, %v2243, %v2307
      %v2340 = vsel %vm2276, %v2244, %v2308
      %v2341 = vsel %vm2277, %v2245, %v2309
      %v2342 = vsel %vm2278, %v2246, %v2310
      %v2343 = vsel %vm2279, %v2247, %v2311
      %v2344 = vsel %vm2280, %v2248, %v2312
      %v2345 = vsel %vm2281, %v2249, %v2313
      %v2346 = vsel %vm2282, %v2250, %v2314
      %v2347 = vsel %vm2283, %v2251, %v2315
      %v2348 = vsel %vm2284, %v2252, %v2316
      %v2349 = vsel %vm2285, %v2253, %v2317
      %v2350 = vsel %vm2286, %v2254, %v2318
      %v2351 = vsel %vm2287, %v2255, %v2319
      %v2352 = vsel %vm2288, %v2256, %v2320
      %v2353 = vsel %vm2289, %v2257, %v2321
      %v2354 = vsel %vm2290, %v2258, %v2322
      %v2355 = vsel %vm2291, %v2259, %v2323
      %v2356 = vsel %vm1366, %v2324, -1e+30
      %v2357 = vsel %vm1367, %v2325, -1e+30
      %v2358 = vsel %vm1368, %v2326, -1e+30
      %v2359 = vsel %vm1369, %v2327, -1e+30
      %v2360 = vsel %vm1370, %v2328, -1e+30
      %v2361 = vsel %vm1371, %v2329, -1e+30
      %v2362 = vsel %vm1372, %v2330, -1e+30
      %v2363 = vsel %vm1373, %v2331, -1e+30
      %v2364 = vsel %vm1374, %v2332, -1e+30
      %v2365 = vsel %vm1375, %v2333, -1e+30
      %v2366 = vsel %vm1376, %v2334, -1e+30
      %v2367 = vsel %vm1377, %v2335, -1e+30
      %v2368 = vsel %vm1378, %v2336, -1e+30
      %v2369 = vsel %vm1379, %v2337, -1e+30
      %v2370 = vsel %vm1380, %v2338, -1e+30
      %v2371 = vsel %vm1381, %v2339, -1e+30
      %v2372 = vsel %vm1382, %v2340, -1e+30
      %v2373 = vsel %vm1383, %v2341, -1e+30
      %v2374 = vsel %vm1384, %v2342, -1e+30
      %v2375 = vsel %vm1385, %v2343, -1e+30
      %v2376 = vsel %vm1386, %v2344, -1e+30
      %v2377 = vsel %vm1387, %v2345, -1e+30
      %v2378 = vsel %vm1388, %v2346, -1e+30
      %v2379 = vsel %vm1389, %v2347, -1e+30
      %v2380 = vsel %vm1390, %v2348, -1e+30
      %v2381 = vsel %vm1391, %v2349, -1e+30
      %v2382 = vsel %vm1392, %v2350, -1e+30
      %v2383 = vsel %vm1393, %v2351, -1e+30
      %v2384 = vsel %vm1394, %v2352, -1e+30
      %v2385 = vsel %vm1395, %v2353, -1e+30
      %v2386 = vsel %vm1396, %v2354, -1e+30
      %v2387 = vsel %vm1397, %v2355, -1e+30
      %v2388 = vmax.f32 %v2356, %v2357
      %2389 = vmax.xlane.f32.xlu0 %v2388
      %v2390 = vpop.xlane.xlu0 %2389
      %v2391 = vmax.f32 %v2358, %v2359
      %2392 = vmax.xlane.f32.xlu0 %v2391
      %v2393 = vpop.xlane.xlu0 %2392
      %v2394 = vmax.f32 %v2360, %v2361
      %2395 = vmax.xlane.f32.xlu0 %v2394
      %v2396 = vpop.xlane.xlu0 %2395
      %v2397 = vmax.f32 %v2362, %v2363
      %2398 = vmax.xlane.f32.xlu0 %v2397
      %v2399 = vpop.xlane.xlu0 %2398
      %v2400 = vmax.f32 %v2364, %v2365
      %2401 = vmax.xlane.f32.xlu0 %v2400
      %v2402 = vpop.xlane.xlu0 %2401
      %v2403 = vmax.f32 %v2366, %v2367
      %2404 = vmax.xlane.f32.xlu0 %v2403
      %v2405 = vpop.xlane.xlu0 %2404
      %v2406 = vmax.f32 %v2368, %v2369
      %2407 = vmax.xlane.f32.xlu0 %v2406
      %v2408 = vpop.xlane.xlu0 %2407
      %v2409 = vmax.f32 %v2370, %v2371
      %2410 = vmax.xlane.f32.xlu0 %v2409
      %v2411 = vpop.xlane.xlu0 %2410
      %v2412 = vmax.f32 %v2372, %v2373
      %2413 = vmax.xlane.f32.xlu0 %v2412
      %v2414 = vpop.xlane.xlu0 %2413
      %v2415 = vmax.f32 %v2374, %v2375
      %2416 = vmax.xlane.f32.xlu0 %v2415
      %v2417 = vpop.xlane.xlu0 %2416
      %v2418 = vmax.f32 %v2376, %v2377
      %2419 = vmax.xlane.f32.xlu0 %v2418
      %v2420 = vpop.xlane.xlu0 %2419
      %v2421 = vmax.f32 %v2378, %v2379
      %2422 = vmax.xlane.f32.xlu0 %v2421
      %v2423 = vpop.xlane.xlu0 %2422
      %v2424 = vmax.f32 %v2380, %v2381
      %2425 = vmax.xlane.f32.xlu0 %v2424
      %v2426 = vpop.xlane.xlu0 %2425
      %v2427 = vmax.f32 %v2382, %v2383
      %2428 = vmax.xlane.f32.xlu0 %v2427
      %v2429 = vpop.xlane.xlu0 %2428
      %v2430 = vmax.f32 %v2384, %v2385
      %2431 = vmax.xlane.f32.xlu0 %v2430
      %v2432 = vpop.xlane.xlu0 %2431
      %v2433 = vmax.f32 %v2386, %v2387
      %2434 = vmax.xlane.f32.xlu0 %v2433
      %v2435 = vpop.xlane.xlu0 %2434
      %v2436 = vsub.f32 %v2356, %v2390
      %v2437 = vsub.f32 %v2357, %v2390
      %v2438 = vsub.f32 %v2358, %v2393
      %v2439 = vsub.f32 %v2359, %v2393
      %v2440 = vsub.f32 %v2360, %v2396
      %v2441 = vsub.f32 %v2361, %v2396
      %v2442 = vsub.f32 %v2362, %v2399
      %v2443 = vsub.f32 %v2363, %v2399
      %v2444 = vsub.f32 %v2364, %v2402
      %v2445 = vsub.f32 %v2365, %v2402
      %v2446 = vsub.f32 %v2366, %v2405
      %v2447 = vsub.f32 %v2367, %v2405
      %v2448 = vsub.f32 %v2368, %v2408
      %v2449 = vsub.f32 %v2369, %v2408
      %v2450 = vsub.f32 %v2370, %v2411
      %v2451 = vsub.f32 %v2371, %v2411
      %v2452 = vsub.f32 %v2372, %v2414
      %v2453 = vsub.f32 %v2373, %v2414
      %v2454 = vsub.f32 %v2374, %v2417
      %v2455 = vsub.f32 %v2375, %v2417
      %v2456 = vsub.f32 %v2376, %v2420
      %v2457 = vsub.f32 %v2377, %v2420
      %v2458 = vsub.f32 %v2378, %v2423
      %v2459 = vsub.f32 %v2379, %v2423
      %v2460 = vsub.f32 %v2380, %v2426
      %v2461 = vsub.f32 %v2381, %v2426
      %v2462 = vsub.f32 %v2382, %v2429
      %v2463 = vsub.f32 %v2383, %v2429
      %v2464 = vsub.f32 %v2384, %v2432
      %v2465 = vsub.f32 %v2385, %v2432
      %v2466 = vsub.f32 %v2386, %v2435
      %v2467 = vsub.f32 %v2387, %v2435
      %v2468 = vmul.f32 %v2436, 1.442695
      %v2469 = vpow.pop %v2468
      %v2470 = vmul.f32 %v2437, 1.442695
      %v2471 = vpow.pop %v2470
      %v2472 = vmul.f32 %v2438, 1.442695
      %v2473 = vpow.pop %v2472
      %v2474 = vmul.f32 %v2439, 1.442695
      %v2475 = vpow.pop %v2474
      %v2476 = vmul.f32 %v2440, 1.442695
      %v2477 = vpow.pop %v2476
      %v2478 = vmul.f32 %v2441, 1.442695
      %v2479 = vpow.pop %v2478
      %v2480 = vmul.f32 %v2442, 1.442695
      %v2481 = vpow.pop %v2480
      %v2482 = vmul.f32 %v2443, 1.442695
      %v2483 = vpow.pop %v2482
      %v2484 = vmul.f32 %v2444, 1.442695
      %v2485 = vpow.pop %v2484
      %v2486 = vmul.f32 %v2445, 1.442695
      %v2487 = vpow.pop %v2486
      %v2488 = vmul.f32 %v2446, 1.442695
      %v2489 = vpow.pop %v2488
      %v2490 = vmul.f32 %v2447, 1.442695
      %v2491 = vpow.pop %v2490
      %v2492 = vmul.f32 %v2448, 1.442695
      %v2493 = vpow.pop %v2492
      %v2494 = vmul.f32 %v2449, 1.442695
      %v2495 = vpow.pop %v2494
      %v2496 = vmul.f32 %v2450, 1.442695
      %v2497 = vpow.pop %v2496
      %v2498 = vmul.f32 %v2451, 1.442695
      %v2499 = vpow.pop %v2498
      %v2500 = vmul.f32 %v2452, 1.442695
      %v2501 = vpow.pop %v2500
      %v2502 = vmul.f32 %v2453, 1.442695
      %v2503 = vpow.pop %v2502
      %v2504 = vmul.f32 %v2454, 1.442695
      %v2505 = vpow.pop %v2504
      %v2506 = vmul.f32 %v2455, 1.442695
      %v2507 = vpow.pop %v2506
      %v2508 = vmul.f32 %v2456, 1.442695
      %v2509 = vpow.pop %v2508
      %v2510 = vmul.f32 %v2457, 1.442695
      %v2511 = vpow.pop %v2510
      %v2512 = vmul.f32 %v2458, 1.442695
      %v2513 = vpow.pop %v2512
      %v2514 = vmul.f32 %v2459, 1.442695
      %v2515 = vpow.pop %v2514
      %v2516 = vmul.f32 %v2460, 1.442695
      %v2517 = vpow.pop %v2516
      %v2518 = vmul.f32 %v2461, 1.442695
      %v2519 = vpow.pop %v2518
      %v2520 = vmul.f32 %v2462, 1.442695
      %v2521 = vpow.pop %v2520
      %v2522 = vmul.f32 %v2463, 1.442695
      %v2523 = vpow.pop %v2522
      %v2524 = vmul.f32 %v2464, 1.442695
      %v2525 = vpow.pop %v2524
      %v2526 = vmul.f32 %v2465, 1.442695
      %v2527 = vpow.pop %v2526
      %v2528 = vmul.f32 %v2466, 1.442695
      %v2529 = vpow.pop %v2528
      %v2530 = vmul.f32 %v2467, 1.442695
      %v2531 = vpow.pop %v2530
      %v2532 = vpack.c.bf16 %v2473, %v2469
      %v2533 = vpack.c.bf16 %v2475, %v2471
      %v2534 = vpack.c.bf16 %v2481, %v2477
      %v2535 = vpack.c.bf16 %v2483, %v2479
      %v2536 = vpack.c.bf16 %v2489, %v2485
      %v2537 = vpack.c.bf16 %v2491, %v2487
      %v2538 = vpack.c.bf16 %v2497, %v2493
      %v2539 = vpack.c.bf16 %v2499, %v2495
      %v2540 = vpack.c.bf16 %v2505, %v2501
      %v2541 = vpack.c.bf16 %v2507, %v2503
      %v2542 = vpack.c.bf16 %v2513, %v2509
      %v2543 = vpack.c.bf16 %v2515, %v2511
      %v2544 = vpack.c.bf16 %v2521, %v2517
      %v2545 = vpack.c.bf16 %v2523, %v2519
      %v2546 = vpack.c.bf16 %v2529, %v2525
      %v2547 = vpack.c.bf16 %v2531, %v2527
      %v2548 = vld [vmem:[#allocation2] sm:$0xff]
      %v2549 = vld [vmem:[#allocation2 + $0x8] sm:$0xff]
      %v2550 = vld [vmem:[#allocation2 + $0x10] sm:$0xff]
      %v2551 = vld [vmem:[#allocation2 + $0x18] sm:$0xff]
      %v2552 = vld [vmem:[#allocation2 + $0x20] sm:$0xff]
      %v2553 = vld [vmem:[#allocation2 + $0x28] sm:$0xff]
      %v2554 = vld [vmem:[#allocation2 + $0x30] sm:$0xff]
      %v2555 = vld [vmem:[#allocation2 + $0x38] sm:$0xff]
      %v2556 = vld [vmem:[#allocation2 + $0x40] sm:$0xff]
      %v2557 = vld [vmem:[#allocation2 + $0x48] sm:$0xff]
      %v2558 = vld [vmem:[#allocation2 + $0x50] sm:$0xff]
      %v2559 = vld [vmem:[#allocation2 + $0x58] sm:$0xff]
      %v2560 = vld [vmem:[#allocation2 + $0x60] sm:$0xff]
      %v2561 = vld [vmem:[#allocation2 + $0x68] sm:$0xff]
      %v2562 = vld [vmem:[#allocation2 + $0x70] sm:$0xff]
      %v2563 = vld [vmem:[#allocation2 + $0x78] sm:$0xff]
      %2580 = vrot.lane.b32.xlu0 %v2548, 95
      %v2581 = vpop.permute.xlu0 %2580
      %2582 = vrot.lane.b32.xlu0 %v2549, 95
      %v2583 = vpop.permute.xlu0 %2582
      %2584 = vrot.lane.b32.xlu0 %v2550, 95
      %v2585 = vpop.permute.xlu0 %2584
      %2586 = vrot.lane.b32.xlu0 %v2551, 95
      %v2587 = vpop.permute.xlu0 %2586
      %2588 = vrot.lane.b32.xlu0 %v2552, 95
      %v2589 = vpop.permute.xlu0 %2588
      %2590 = vrot.lane.b32.xlu0 %v2553, 95
      %v2591 = vpop.permute.xlu0 %2590
      %2592 = vrot.lane.b32.xlu0 %v2554, 95
      %v2593 = vpop.permute.xlu0 %2592
      %2594 = vrot.lane.b32.xlu0 %v2555, 95
      %v2595 = vpop.permute.xlu0 %2594
      %2596 = vrot.lane.b32.xlu0 %v2556, 95
      %v2597 = vpop.permute.xlu0 %2596
      %2598 = vrot.lane.b32.xlu0 %v2557, 95
      %v2599 = vpop.permute.xlu0 %2598
      %2600 = vrot.lane.b32.xlu0 %v2558, 95
      %v2601 = vpop.permute.xlu0 %2600
      %2602 = vrot.lane.b32.xlu0 %v2559, 95
      %v2603 = vpop.permute.xlu0 %2602
      %2604 = vrot.lane.b32.xlu0 %v2560, 95
      %v2605 = vpop.permute.xlu0 %2604
      %2606 = vrot.lane.b32.xlu0 %v2561, 95
      %v2607 = vpop.permute.xlu0 %2606
      %2608 = vrot.lane.b32.xlu0 %v2562, 95
      %v2609 = vpop.permute.xlu0 %2608
      %2610 = vrot.lane.b32.xlu0 %v2563, 95
      %v2611 = vpop.permute.xlu0 %2610
      %2628 = vmatprep.subr.bf16.mxu0 0
      %2629 = vmatpush1.bf16.msra.mxu0 %v2581
      %2630 = vmatprep.subr.bf16.mxu0 0
      %2631 = vmatpush1.bf16.msra.mxu0 %v2583
      %2632 = vmatprep.subr.bf16.mxu0 0
      %2633 = vmatpush1.bf16.msra.mxu0 %v2585
      %2634 = vmatprep.subr.bf16.mxu0 0
      %2635 = vmatpush1.bf16.msra.mxu0 %v2587
      %2636 = vmatprep.subr.bf16.mxu0 0
      %2637 = vmatpush1.bf16.msra.mxu0 %v2589
      %2638 = vmatprep.subr.bf16.mxu0 0
      %2639 = vmatpush1.bf16.msra.mxu0 %v2591
      %2640 = vmatprep.subr.bf16.mxu0 0
      %2641 = vmatpush1.bf16.msra.mxu0 %v2593
      %2642 = vmatprep.subr.bf16.mxu0 0
      %2643 = vmatpush1.bf16.msra.mxu0 %v2595
      %2644 = vmatprep.subr.bf16.mxu0 0
      %2645 = vmatpush1.bf16.msra.mxu0 %v2597
      %2646 = vmatprep.subr.bf16.mxu0 0
      %2647 = vmatpush1.bf16.msra.mxu0 %v2599
      %2648 = vmatprep.subr.bf16.mxu0 0
      %2649 = vmatpush1.bf16.msra.mxu0 %v2601
      %2650 = vmatprep.subr.bf16.mxu0 0
      %2651 = vmatpush1.bf16.msra.mxu0 %v2603
      %2652 = vmatprep.subr.bf16.mxu0 0
      %2653 = vmatpush1.bf16.msra.mxu0 %v2605
      %2654 = vmatprep.subr.bf16.mxu0 0
      %2655 = vmatpush1.bf16.msra.mxu0 %v2607
      %2656 = vmatprep.subr.bf16.mxu0 0
      %2657 = vmatpush1.bf16.msra.mxu0 %v2609
      %2658 = vmatprep.subr.bf16.mxu0 0
      %2659 = vmatpush1.bf16.msra.mxu0 %v2611
      %2660 = vmatprep.mubr.bf16.mxu0 %v2533
      %2661 = vmatmul.mubr.bf16.gmra.mrb[0].mxu0 %v2532
      %v2662 = vpop.f32.mrb[0].mxu0
      %v2663 = vadd.f32 0.0, %v2662
      %v2664 = vpop.f32.mrb[0].mxu0
      %v2665 = vpop.f32.mrb[0].mxu0
      %v2666 = vadd.f32 0.0, %v2665
      %v2667 = vpop.f32.mrb[0].mxu0
      %2668 = vmatprep.mubr.bf16.mxu0 %v2535
      %2669 = vmatmul.mubr.bf16.gmra.mrb[0].mxu0 %v2534
      %v2670 = vpop.f32.mrb[0].mxu0
      %v2671 = vadd.f32 0.0, %v2670
      %v2672 = vpop.f32.mrb[0].mxu0
      %v2673 = vpop.f32.mrb[0].mxu0
      %v2674 = vadd.f32 0.0, %v2673
      %v2675 = vpop.f32.mrb[0].mxu0
      %2676 = vmatprep.mubr.bf16.mxu0 %v2537
      %2677 = vmatmul.mubr.bf16.gmra.mrb[0].mxu0 %v2536
      %v2678 = vpop.f32.mrb[0].mxu0
      %v2679 = vadd.f32 0.0, %v2678
      %v2680 = vpop.f32.mrb[0].mxu0
      %v2681 = vpop.f32.mrb[0].mxu0
      %v2682 = vadd.f32 0.0, %v2681
      %v2683 = vpop.f32.mrb[0].mxu0
      %2684 = vmatprep.mubr.bf16.mxu0 %v2539
      %2685 = vmatmul.mubr.bf16.gmra.mrb[0].mxu0 %v2538
      %v2686 = vpop.f32.mrb[0].mxu0
      %v2687 = vadd.f32 0.0, %v2686
      %v2688 = vpop.f32.mrb[0].mxu0
      %v2689 = vpop.f32.mrb[0].mxu0
      %v2690 = vadd.f32 0.0, %v2689
      %v2691 = vpop.f32.mrb[0].mxu0
      %2692 = vmatprep.mubr.bf16.mxu0 %v2541
      %2693 = vmatmul.mubr.bf16.gmra.mrb[0].mxu0 %v2540
      %v2694 = vpop.f32.mrb[0].mxu0
      %v2695 = vadd.f32 0.0, %v2694
      %v2696 = vpop.f32.mrb[0].mxu0
      %v2697 = vpop.f32.mrb[0].mxu0
      %v2698 = vadd.f32 0.0, %v2697
      %v2699 = vpop.f32.mrb[0].mxu0
      %2700 = vmatprep.mubr.bf16.mxu0 %v2543
      %2701 = vmatmul.mubr.bf16.gmra.mrb[0].mxu0 %v2542
      %v2702 = vpop.f32.mrb[0].mxu0
      %v2703 = vadd.f32 0.0, %v2702
      %v2704 = vpop.f32.mrb[0].mxu0
      %v2705 = vpop.f32.mrb[0].mxu0
      %v2706 = vadd.f32 0.0, %v2705
      %v2707 = vpop.f32.mrb[0].mxu0
      %2708 = vmatprep.mubr.bf16.mxu0 %v2545
      %2709 = vmatmul.mubr.bf16.gmra.mrb[0].mxu0 %v2544
      %v2710 = vpop.f32.mrb[0].mxu0
      %v2711 = vadd.f32 0.0, %v2710
      %v2712 = vpop.f32.mrb[0].mxu0
      %v2713 = vpop.f32.mrb[0].mxu0
      %v2714 = vadd.f32 0.0, %v2713
      %v2715 = vpop.f32.mrb[0].mxu0
      %2716 = vmatprep.mubr.bf16.mxu0 %v2547
      %2717 = vmatmul.mubr.bf16.gmra.mrb[0].mxu0 %v2546
      %v2718 = vpop.f32.mrb[0].mxu0
      %v2719 = vadd.f32 0.0, %v2718
      %v2720 = vpop.f32.mrb[0].mxu0
      %v2721 = vpop.f32.mrb[0].mxu0
      %v2722 = vadd.f32 0.0, %v2721
      %v2723 = vpop.f32.mrb[0].mxu0
      %2724 = vdwg.mxu0
      %v2725 = vrcp.pop %v2663
      %v2726 = vrcp.pop %v2666
      %v2727 = vrcp.pop %v2671
      %v2728 = vrcp.pop %v2674
      %v2729 = vrcp.pop %v2679
      %v2730 = vrcp.pop %v2682
      %v2731 = vrcp.pop %v2687
      %v2732 = vrcp.pop %v2690
      %v2733 = vrcp.pop %v2695
      %v2734 = vrcp.pop %v2698
      %v2735 = vrcp.pop %v2703
      %v2736 = vrcp.pop %v2706
      %v2737 = vrcp.pop %v2711
      %v2738 = vrcp.pop %v2714
      %v2739 = vrcp.pop %v2719
      %v2740 = vrcp.pop %v2722
      %2742 = vset.pattern.permute.xlu0 32
      %2743 = vperm.xlu0 %2742, %v2725
      %v2744 = vpop.permute.xlu0 %2743
      %2747 = vset.pattern.permute.xlu0 32
      %2748 = vperm.xlu0 %2747, %v2726
      %v2749 = vpop.permute.xlu0 %2748
      %2752 = vset.pattern.permute.xlu0 32
      %2753 = vperm.xlu0 %2752, %v2727
      %v2754 = vpop.permute.xlu0 %2753
      %2757 = vset.pattern.permute.xlu0 32
      %2758 = vperm.xlu0 %2757, %v2728
      %v2759 = vpop.permute.xlu0 %2758
      %2762 = vset.pattern.permute.xlu0 32
      %2763 = vperm.xlu0 %2762, %v2729
      %v2764 = vpop.permute.xlu0 %2763
      %2767 = vset.pattern.permute.xlu0 32
      %2768 = vperm.xlu0 %2767, %v2730
      %v2769 = vpop.permute.xlu0 %2768
      %2772 = vset.pattern.permute.xlu0 32
      %2773 = vperm.xlu0 %2772, %v2731
      %v2774 = vpop.permute.xlu0 %2773
      %2777 = vset.pattern.permute.xlu0 32
      %2778 = vperm.xlu0 %2777, %v2732
      %v2779 = vpop.permute.xlu0 %2778
      %2782 = vset.pattern.permute.xlu0 32
      %2783 = vperm.xlu0 %2782, %v2733
      %v2784 = vpop.permute.xlu0 %2783
      %2787 = vset.pattern.permute.xlu0 32
      %2788 = vperm.xlu0 %2787, %v2734
      %v2789 = vpop.permute.xlu0 %2788
      %2792 = vset.pattern.permute.xlu0 32
      %2793 = vperm.xlu0 %2792, %v2735
      %v2794 = vpop.permute.xlu0 %2793
      %2797 = vset.pattern.permute.xlu0 32
      %2798 = vperm.xlu0 %2797, %v2736
      %v2799 = vpop.permute.xlu0 %2798
      %2802 = vset.pattern.permute.xlu0 32
      %2803 = vperm.xlu0 %2802, %v2737
      %v2804 = vpop.permute.xlu0 %2803
      %2807 = vset.pattern.permute.xlu0 32
      %2808 = vperm.xlu0 %2807, %v2738
      %v2809 = vpop.permute.xlu0 %2808
      %2812 = vset.pattern.permute.xlu0 32
      %2813 = vperm.xlu0 %2812, %v2739
      %v2814 = vpop.permute.xlu0 %2813
      %2817 = vset.pattern.permute.xlu0 32
      %2818 = vperm.xlu0 %2817, %v2740
      %v2819 = vpop.permute.xlu0 %2818
      %v2821 = vmul.f32 %v2663, %v2744
      %v2822 = vmul.f32 %v2666, %v2749
      %v2823 = vmul.f32 %v2671, %v2754
      %v2824 = vmul.f32 %v2674, %v2759
      %v2825 = vmul.f32 %v2679, %v2764
      %v2826 = vmul.f32 %v2682, %v2769
      %v2827 = vmul.f32 %v2687, %v2774
      %v2828 = vmul.f32 %v2690, %v2779
      %v2829 = vmul.f32 %v2695, %v2784
      %v2830 = vmul.f32 %v2698, %v2789
      %v2831 = vmul.f32 %v2703, %v2794
      %v2832 = vmul.f32 %v2706, %v2799
      %v2833 = vmul.f32 %v2711, %v2804
      %v2834 = vmul.f32 %v2714, %v2809
      %v2835 = vmul.f32 %v2719, %v2814
      %v2836 = vmul.f32 %v2722, %v2819
      %v2837 = vld [vmem:[%s4 + $0x1] sm:$0x1]
      %v2838 = vlaneseq
      %v2839 = vshrl.u32 %v2838, 7
      %v2840 = vsub.s32 0, %v2839
      %v2841 = vrot.slane %v2837, %v2840
      %v2842 = vadd.f32 %v2821, %v2841
      %v2843 = vadd.f32 %v2822, %v2841
      %v2844 = vadd.f32 %v2823, %v2841
      %v2845 = vadd.f32 %v2824, %v2841
      %v2846 = vadd.f32 %v2825, %v2841
      %v2847 = vadd.f32 %v2826, %v2841
      %v2848 = vadd.f32 %v2827, %v2841
      %v2849 = vadd.f32 %v2828, %v2841
      %v2850 = vadd.f32 %v2829, %v2841
      %v2851 = vadd.f32 %v2830, %v2841
      %v2852 = vadd.f32 %v2831, %v2841
      %v2853 = vadd.f32 %v2832, %v2841
      %v2854 = vadd.f32 %v2833, %v2841
      %v2855 = vadd.f32 %v2834, %v2841
      %v2856 = vadd.f32 %v2835, %v2841
      %v2857 = vadd.f32 %v2836, %v2841
      %vm2858 = vcmp.gt.f32.partialorder %v2842, 0.0
      %vm2859 = vcmp.gt.f32.partialorder %v2843, 0.0
      %vm2860 = vcmp.gt.f32.partialorder %v2844, 0.0
      %vm2861 = vcmp.gt.f32.partialorder %v2845, 0.0
      %vm2862 = vcmp.gt.f32.partialorder %v2846, 0.0
      %vm2863 = vcmp.gt.f32.partialorder %v2847, 0.0
      %vm2864 = vcmp.gt.f32.partialorder %v2848, 0.0
      %vm2865 = vcmp.gt.f32.partialorder %v2849, 0.0
      %vm2866 = vcmp.gt.f32.partialorder %v2850, 0.0
      %vm2867 = vcmp.gt.f32.partialorder %v2851, 0.0
      %vm2868 = vcmp.gt.f32.partialorder %v2852, 0.0
      %vm2869 = vcmp.gt.f32.partialorder %v2853, 0.0
      %vm2870 = vcmp.gt.f32.partialorder %v2854, 0.0
      %vm2871 = vcmp.gt.f32.partialorder %v2855, 0.0
      %vm2872 = vcmp.gt.f32.partialorder %v2856, 0.0
      %vm2873 = vcmp.gt.f32.partialorder %v2857, 0.0
      %v2874 = vmul.f32 %v2842, 0.01
      %v2875 = vmul.f32 %v2843, 0.01
      %v2876 = vmul.f32 %v2844, 0.01
      %v2877 = vmul.f32 %v2845, 0.01
      %v2878 = vmul.f32 %v2846, 0.01
      %v2879 = vmul.f32 %v2847, 0.01
      %v2880 = vmul.f32 %v2848, 0.01
      %v2881 = vmul.f32 %v2849, 0.01
      %v2882 = vmul.f32 %v2850, 0.01
      %v2883 = vmul.f32 %v2851, 0.01
      %v2884 = vmul.f32 %v2852, 0.01
      %v2885 = vmul.f32 %v2853, 0.01
      %v2886 = vmul.f32 %v2854, 0.01
      %v2887 = vmul.f32 %v2855, 0.01
      %v2888 = vmul.f32 %v2856, 0.01
      %v2889 = vmul.f32 %v2857, 0.01
      %v2890 = vsel %vm2858, %v2842, %v2874
      %v2891 = vsel %vm2859, %v2843, %v2875
      %v2892 = vsel %vm2860, %v2844, %v2876
      %v2893 = vsel %vm2861, %v2845, %v2877
      %v2894 = vsel %vm2862, %v2846, %v2878
      %v2895 = vsel %vm2863, %v2847, %v2879
      %v2896 = vsel %vm2864, %v2848, %v2880
      %v2897 = vsel %vm2865, %v2849, %v2881
      %v2898 = vsel %vm2866, %v2850, %v2882
      %v2899 = vsel %vm2867, %v2851, %v2883
      %v2900 = vsel %vm2868, %v2852, %v2884
      %v2901 = vsel %vm2869, %v2853, %v2885
      %v2902 = vsel %vm2870, %v2854, %v2886
      %v2903 = vsel %vm2871, %v2855, %v2887
      %v2904 = vsel %vm2872, %v2856, %v2888
      %v2905 = vsel %vm2873, %v2857, %v2889
      %2922 = vrot.lane.b32.xlu0 %v2890, 32
      %v2923 = vpop.permute.xlu0 %2922
      %2924 = vrot.lane.b32.xlu0 %v2891, 32
      %v2925 = vpop.permute.xlu0 %2924
      %2926 = vrot.lane.b32.xlu0 %v2892, 32
      %v2927 = vpop.permute.xlu0 %2926
      %2928 = vrot.lane.b32.xlu0 %v2893, 32
      %v2929 = vpop.permute.xlu0 %2928
      %2930 = vrot.lane.b32.xlu0 %v2894, 32
      %v2931 = vpop.permute.xlu0 %2930
      %2932 = vrot.lane.b32.xlu0 %v2895, 32
      %v2933 = vpop.permute.xlu0 %2932
      %2934 = vrot.lane.b32.xlu0 %v2896, 32
      %v2935 = vpop.permute.xlu0 %2934
      %2936 = vrot.lane.b32.xlu0 %v2897, 32
      %v2937 = vpop.permute.xlu0 %2936
      %2938 = vrot.lane.b32.xlu0 %v2898, 32
      %v2939 = vpop.permute.xlu0 %2938
      %2940 = vrot.lane.b32.xlu0 %v2899, 32
      %v2941 = vpop.permute.xlu0 %2940
      %2942 = vrot.lane.b32.xlu0 %v2900, 32
      %v2943 = vpop.permute.xlu0 %2942
      %2944 = vrot.lane.b32.xlu0 %v2901, 32
      %v2945 = vpop.permute.xlu0 %2944
      %2946 = vrot.lane.b32.xlu0 %v2902, 32
      %v2947 = vpop.permute.xlu0 %2946
      %2948 = vrot.lane.b32.xlu0 %v2903, 32
      %v2949 = vpop.permute.xlu0 %2948
      %2950 = vrot.lane.b32.xlu0 %v2904, 32
      %v2951 = vpop.permute.xlu0 %2950
      %2952 = vrot.lane.b32.xlu0 %v2905, 32
      %v2953 = vpop.permute.xlu0 %2952
      %vm2970 = vcmask 523520
      %2971 = vst.msk [vmem:[%s229] sm:$0xff] %vm2970, %v2923
      %2972 = vst.msk [vmem:[%s229 + $0x8] sm:$0xff] %vm2970, %v2925
      %2973 = vst.msk [vmem:[%s229 + $0x10] sm:$0xff] %vm2970, %v2927
      %2974 = vst.msk [vmem:[%s229 + $0x18] sm:$0xff] %vm2970, %v2929
      %2975 = vst.msk [vmem:[%s229 + $0x20] sm:$0xff] %vm2970, %v2931
      %2976 = vst.msk [vmem:[%s229 + $0x28] sm:$0xff] %vm2970, %v2933
      %2977 = vst.msk [vmem:[%s229 + $0x30] sm:$0xff] %vm2970, %v2935
      %2978 = vst.msk [vmem:[%s229 + $0x38] sm:$0xff] %vm2970, %v2937
      %2979 = vst.msk [vmem:[%s229 + $0x40] sm:$0xff] %vm2970, %v2939
      %2980 = vst.msk [vmem:[%s229 + $0x48] sm:$0xff] %vm2970, %v2941
      %2981 = vst.msk [vmem:[%s229 + $0x50] sm:$0xff] %vm2970, %v2943
      %2982 = vst.msk [vmem:[%s229 + $0x58] sm:$0xff] %vm2970, %v2945
      %2983 = vst.msk [vmem:[%s229 + $0x60] sm:$0xff] %vm2970, %v2947
      %2984 = vst.msk [vmem:[%s229 + $0x68] sm:$0xff] %vm2970, %v2949
      %2985 = vst.msk [vmem:[%s229 + $0x70] sm:$0xff] %vm2970, %v2951
      %2986 = vst.msk [vmem:[%s229 + $0x78] sm:$0xff] %vm2970, %v2953
      %s2987 = smul.u32 16, %s16
      %p2988 = scmp.lt.s32.totalorder %s2987, 31
      %s2989 = scalar_select %p2988, %s2987, 31
      %s2990 = smul.addr %s2989, 8
      %s2991 = scalar_lea.vmem %s5, %s2990
      // Predicated region
      $region45: #{conad_forward.3} parent=39 // pred_check
        %p2992 = pneg %p144
      $region46: #{conad_forward.3} parent=39 // pred_check_branch
        %2994 = sbr.rel (%p2992) target = $region48
      $region47: #{conad_forward.3} parent=39 // pred_region
        %s2995 = smul.u32 16, %s16
      $region48: #{conad_forward.3} parent=39 // pred_fallthru
        _
    $region40: #{conad_forward.3} parent=5 // pred_fallthru
      _
    %p2996 = scmp.le.s32.totalorder 2, %s11
    // Predicated region
    $region49: #{conad_forward.3} parent=5 // pred_check
      %p2997 = pneg %p2996
    $region50: #{conad_forward.3} parent=5 // pred_check_branch
      %2999 = sbr.rel (%p2997) target = $region52
    $region51: #{conad_forward.3} parent=5 // pred_region
      %s3000 = ssub.s32 %s11, 2
      // Predicated region
      $region53: #{conad_forward.3} parent=51 // pred_check
        %p3001 = pneg %p150
      $region54: #{conad_forward.3} parent=51 // pred_check_branch
        %3003 = sbr.rel (%p3001) target = $region56
      $region55: #{conad_forward.3} parent=51 // pred_region
        %s3004 = smul.u32 16, %s17
        %p3005 = scmp.lt.s32.totalorder %s3004, 31
        %s3006 = scalar_select %p3005, %s3004, 31
        %s3007 = smul.addr %s3006, 8
        %s3008 = scalar_lea.vmem %s5, %s3007
      $region56: #{conad_forward.3} parent=51 // pred_fallthru
        _
    $region52: #{conad_forward.3} parent=5 // pred_fallthru
      _
  $region6: #{conad_forward.3} parent=0 // loop_footer
    %s15 = sadd.s32 1, %s11
  $region7: #{conad_forward.3} parent=0 // loop_footer_branch
    %10 = sbr.rel target = $region3
  $region8: #{conad_forward.3} parent=0 // loop_exit
    _

// kernel: conad_forward.5
$region0: #{conad_forward.5}
  #allocation0 [shape = 'u32[]', space=smem, size = 0x4, offset = 0x4, fixed_abs, tag = 'smem constant byte address 0x4 - core index']
  #allocation1 [shape = 'u32[144,128]{1,0:T(1,128)}', space=vmem, size = 0x12000, scoped, tag = 'internal scratch']
  #allocation2 [shape = 'bf16[256,34]{1,0:T(16,128)(2,1)}', space=vmem, size = 0x10000, scoped, tag = 'scratch operand']
  #allocation3 [shape = 'f32[2,256]{1,0:T(2,128)}', space=vmem, size = 0x800, scoped, tag = 'scratch operand']
  #allocation4 [shape = 'f32[256,2]{1,0:T(8,128)}', space=vmem, size = 0x20000, scoped, tag = 'scratch operand']
  %s0 = inlined_call_operand.vmem [shape: f32[256,16], index: 0, kind: input, shape index: {}]
  %s1 = inlined_call_operand.vmem [shape: f32[256,256], index: 1, kind: input, shape index: {}]
  %s2 = inlined_call_operand.vmem [shape: f32[16,32], index: 2, kind: input, shape index: {}]
  %s3 = inlined_call_operand.vmem [shape: f32[32,4], index: 3, kind: input, shape index: {}]
  %s4 = inlined_call_operand.vmem [shape: f32[2,16], index: 4, kind: input, shape index: {}]
  %s5 = inlined_call_operand.vmem [shape: f32[256,16], index: 5, kind: output, shape index: {0}]
  %s6 = inlined_call_operand.hbm [shape: f32[256,256], index: 6, kind: output, shape index: {1}]
  %7 = xla_tuple %s5, %s6
  %s8 = sld [smem:[#allocation0]]
  $region65: #{conad_forward.5} parent=0
    _
  %s10 = ssub.s32 1, %s8
  %s11 = scalar_select 0, %s10, %s8
  $region1: #{conad_forward.5} parent=0
    #allocation5 [shape = 'u8[262144]{0}', space=vmem, size = 0x40000, scoped, tag = 'output window, operand 1']
    #allocation6 [shape = 's32[2]{0}', space=sflag, size = 0x8, scoped, tag = 'scoped memory for conad_forward.5']
    %12 = vsyncpa [#allocation6], 0
    %s13 = scalar_lea.sflag [#allocation6], 1
    %14 = vsyncpa %s13, 0
    loop: start=0, step=1, limit=4
    $region2: #{conad_forward.5} parent=1 // loop_pre_header
      _
    $region3: #{conad_forward.5} parent=1 // loop_header
      %s16 = sphi 0, %s20
      %p17 = scmp.ge.s32.totalorder %s16, 4
      %s24 = sphi 0, %s24
      %s26 = sphi 0, %s24
      %s27 = sphi 0, %s26
      %s41 = sphi 0, %s27
      %s47 = sphi 0, %s49
      %s50 = sphi 0, %s47
      %s51 = sphi 0, %s50
      %s67 = sphi 0, %s51
      %s71 = sphi 0, %s71
      %s73 = sphi 0, %s71
      %s74 = sphi 0, %s73
      %s88 = sphi 0, %s74
      %s92 = sphi 0, %s92
      %s94 = sphi 0, %s92
      %s95 = sphi 0, %s94
      %s109 = sphi 0, %s95
      %s113 = sphi 0, %s113
      %s115 = sphi 0, %s113
      %s116 = sphi 0, %s115
      %s130 = sphi 0, %s116
      %s136 = sphi 0, %s138
      %s139 = sphi 0, %s136
      %s140 = sphi 0, %s139
      %s156 = sphi 0, %s140
      %s162 = sphi 0, %s164
      %s165 = sphi 0, %s162
      %s166 = sphi 0, %s165
      %s182 = sphi 0, %s166
    $region4: #{conad_forward.5} parent=1 // loop_header_branch
      %19 = sbr.rel (%p17) target = $region8
    $region5: #{conad_forward.5} parent=1 // loop_body
      %s21 = ssub.s32 %s16, 1
      %s22 = ssub.s32 %s16, 2
      %s23 = sadd.s32 %s16, 1
      %s25 = sadd.s32 %s24, 1
      %p28 = scmp.eq.s32.totalorder %s16, 1
      %p29 = scmp.ne.s32.totalorder %s24, %s26
      %p30 = scmp.eq.s32.totalorder %s16, 0
      %p31 = por %p29, %p30
      %p32 = scmp.ne.s32.totalorder %s24, %s26
      %p33 = scmp.eq.s32.totalorder %s21, 1
      %p34 = por %p32, %p33
      %p35 = scmp.ne.s32.totalorder %s26, %s27
      %p36 = scmp.eq.s32.totalorder %s21, 0
      %p37 = por %p35, %p36
      %p38 = scmp.ne.s32.totalorder %s26, %s27
      %p39 = scmp.eq.s32.totalorder %s22, 1
      %p40 = por %p38, %p39
      %p42 = scmp.ne.s32.totalorder %s27, %s41
      %p43 = scmp.eq.s32.totalorder %s22, 0
      %p44 = por %p42, %p43
      %s45 = ssub.s32 %s16, %s23
      %p46 = scmp.eq.s32.totalorder %s45, 0
      %s48 = sadd.s32 %s47, 1
      %s49 = scalar_select %p46, %s47, %s48
      %p52 = pneg %p46
      %p53 = scmp.eq.s32.totalorder %s16, 1
      %p54 = por %p52, %p53
      %p55 = scmp.ne.s32.totalorder %s47, %s50
      %p56 = scmp.eq.s32.totalorder %s16, 0
      %p57 = por %p55, %p56
      %p58 = scmp.ne.s32.totalorder %s47, %s50
      %p59 = scmp.eq.s32.totalorder %s21, 1
      %p60 = por %p58, %p59
      %p61 = scmp.ne.s32.totalorder %s50, %s51
      %p62 = scmp.eq.s32.totalorder %s21, 0
      %p63 = por %p61, %p62
      %p64 = scmp.ne.s32.totalorder %s50, %s51
      %p65 = scmp.eq.s32.totalorder %s22, 1
      %p66 = por %p64, %p65
      %p68 = scmp.ne.s32.totalorder %s51, %s67
      %p69 = scmp.eq.s32.totalorder %s22, 0
      %p70 = por %p68, %p69
      %s72 = sadd.s32 %s71, 1
      %p75 = scmp.eq.s32.totalorder %s16, 1
      %p76 = scmp.ne.s32.totalorder %s71, %s73
      %p77 = scmp.eq.s32.totalorder %s16, 0
      %p78 = por %p76, %p77
      %p79 = scmp.ne.s32.totalorder %s71, %s73
      %p80 = scmp.eq.s32.totalorder %s21, 1
      %p81 = por %p79, %p80
      %p82 = scmp.ne.s32.totalorder %s73, %s74
      %p83 = scmp.eq.s32.totalorder %s21, 0
      %p84 = por %p82, %p83
      %p85 = scmp.ne.s32.totalorder %s73, %s74
      %p86 = scmp.eq.s32.totalorder %s22, 1
      %p87 = por %p85, %p86
      %p89 = scmp.ne.s32.totalorder %s74, %s88
      %p90 = scmp.eq.s32.totalorder %s22, 0
      %p91 = por %p89, %p90
      %s93 = sadd.s32 %s92, 1
      %p96 = scmp.eq.s32.totalorder %s16, 1
      %p97 = scmp.ne.s32.totalorder %s92, %s94
      %p98 = scmp.eq.s32.totalorder %s16, 0
      %p99 = por %p97, %p98
      %p100 = scmp.ne.s32.totalorder %s92, %s94
      %p101 = scmp.eq.s32.totalorder %s21, 1
      %p102 = por %p100, %p101
      %p103 = scmp.ne.s32.totalorder %s94, %s95
      %p104 = scmp.eq.s32.totalorder %s21, 0
      %p105 = por %p103, %p104
      %p106 = scmp.ne.s32.totalorder %s94, %s95
      %p107 = scmp.eq.s32.totalorder %s22, 1
      %p108 = por %p106, %p107
      %p110 = scmp.ne.s32.totalorder %s95, %s109
      %p111 = scmp.eq.s32.totalorder %s22, 0
      %p112 = por %p110, %p111
      %s114 = sadd.s32 %s113, 1
      %p117 = scmp.eq.s32.totalorder %s16, 1
      %p118 = scmp.ne.s32.totalorder %s113, %s115
      %p119 = scmp.eq.s32.totalorder %s16, 0
      %p120 = por %p118, %p119
      %p121 = scmp.ne.s32.totalorder %s113, %s115
      %p122 = scmp.eq.s32.totalorder %s21, 1
      %p123 = por %p121, %p122
      %p124 = scmp.ne.s32.totalorder %s115, %s116
      %p125 = scmp.eq.s32.totalorder %s21, 0
      %p126 = por %p124, %p125
      %p127 = scmp.ne.s32.totalorder %s115, %s116
      %p128 = scmp.eq.s32.totalorder %s22, 1
      %p129 = por %p127, %p128
      %p131 = scmp.ne.s32.totalorder %s116, %s130
      %p132 = scmp.eq.s32.totalorder %s22, 0
      %p133 = por %p131, %p132
      %s134 = ssub.s32 %s16, %s23
      %p135 = scmp.eq.s32.totalorder %s134, 0
      %s137 = sadd.s32 %s136, 1
      %s138 = scalar_select %p135, %s136, %s137
      %p141 = pneg %p135
      %p142 = scmp.eq.s32.totalorder %s16, 1
      %p143 = por %p141, %p142
      %p144 = scmp.ne.s32.totalorder %s136, %s139
      %p145 = scmp.eq.s32.totalorder %s16, 0
      %p146 = por %p144, %p145
      %p147 = scmp.ne.s32.totalorder %s136, %s139
      %p148 = scmp.eq.s32.totalorder %s21, 1
      %p149 = por %p147, %p148
      %p150 = scmp.ne.s32.totalorder %s139, %s140
      %p151 = scmp.eq.s32.totalorder %s21, 0
      %p152 = por %p150, %p151
      %p153 = scmp.ne.s32.totalorder %s139, %s140
      %p154 = scmp.eq.s32.totalorder %s22, 1
      %p155 = por %p153, %p154
      %p157 = scmp.ne.s32.totalorder %s140, %s156
      %p158 = scmp.eq.s32.totalorder %s22, 0
      %p159 = por %p157, %p158
      %s160 = ssub.s32 %s16, %s23
      %p161 = scmp.eq.s32.totalorder %s160, 0
      %s163 = sadd.s32 %s162, 1
      %s164 = scalar_select %p161, %s162, %s163
      %p167 = pneg %p161
      %p168 = scmp.eq.s32.totalorder %s16, 1
      %p169 = por %p167, %p168
      %p170 = scmp.ne.s32.totalorder %s162, %s165
      %p171 = scmp.eq.s32.totalorder %s16, 0
      %p172 = por %p170, %p171
      %p173 = scmp.ne.s32.totalorder %s162, %s165
      %p174 = scmp.eq.s32.totalorder %s21, 1
      %p175 = por %p173, %p174
      %p176 = scmp.ne.s32.totalorder %s165, %s166
      %p177 = scmp.eq.s32.totalorder %s21, 0
      %p178 = por %p176, %p177
      %p179 = scmp.ne.s32.totalorder %s165, %s166
      %p180 = scmp.eq.s32.totalorder %s22, 1
      %p181 = por %p179, %p180
      %p183 = scmp.ne.s32.totalorder %s166, %s182
      %p184 = scmp.eq.s32.totalorder %s22, 0
      %p185 = por %p183, %p184
      %p186 = scmp.le.s32.totalorder 1, %s16
      %p187 = scmp.lt.s32.totalorder %s16, 3
      %p188 = pnand %p186, %p187
      %p189 = pneg %p188
      // Predicated region
      $region9: #{conad_forward.5} parent=5 // pred_check
        _
      $region10: #{conad_forward.5} parent=5 // pred_check_branch
        %191 = sbr.rel (%p188) target = $region12
      $region11: #{conad_forward.5} parent=5 // pred_region
        %s192 = ssub.s32 %s16, 1
        // Predicated region
        $region13: #{conad_forward.5} parent=11 // pred_check
          %p193 = pneg %p37
        $region14: #{conad_forward.5} parent=11 // pred_check_branch
          %195 = sbr.rel (%p193) target = $region16
        $region15: #{conad_forward.5} parent=11 // pred_region
          _
        $region16: #{conad_forward.5} parent=11 // pred_fallthru
          _
        // Predicated region
        $region17: #{conad_forward.5} parent=11 // pred_check
          %p196 = pneg %p84
        $region18: #{conad_forward.5} parent=11 // pred_check_branch
          %198 = sbr.rel (%p196) target = $region20
        $region19: #{conad_forward.5} parent=11 // pred_region
          _
        $region20: #{conad_forward.5} parent=11 // pred_fallthru
          _
        // Predicated region
        $region21: #{conad_forward.5} parent=11 // pred_check
          %p199 = pneg %p105
        $region22: #{conad_forward.5} parent=11 // pred_check_branch
          %201 = sbr.rel (%p199) target = $region24
        $region23: #{conad_forward.5} parent=11 // pred_region
          _
        $region24: #{conad_forward.5} parent=11 // pred_fallthru
          _
        // Predicated region
        $region25: #{conad_forward.5} parent=11 // pred_check
          %p202 = pneg %p126
        $region26: #{conad_forward.5} parent=11 // pred_check_branch
          %204 = sbr.rel (%p202) target = $region28
        $region27: #{conad_forward.5} parent=11 // pred_region
          _
        $region28: #{conad_forward.5} parent=11 // pred_fallthru
          _
      $region12: #{conad_forward.5} parent=5 // pred_fallthru
        _
      %p205 = scmp.lt.s32.totalorder %s16, 2
      // Predicated region
      $region29: #{conad_forward.5} parent=5 // pred_check
        %p206 = pneg %p205
      $region30: #{conad_forward.5} parent=5 // pred_check_branch
        %208 = sbr.rel (%p206) target = $region32
      $region31: #{conad_forward.5} parent=5 // pred_region
        // Predicated region
        $region33: #{conad_forward.5} parent=31 // pred_check
          %p209 = pneg %p57
        $region34: #{conad_forward.5} parent=31 // pred_check_branch
          %211 = sbr.rel (%p209) target = $region36
        $region35: #{conad_forward.5} parent=31 // pred_region
          %s212 = smul.u32 16, %s16
          %p213 = scmp.lt.s32.totalorder %s212, 31
          %s214 = scalar_select %p213, %s212, 31
          %s215 = smul.addr %s214, 2
          %s216 = smul.addr %s215, 8
          %s217 = scalar_lea.vmem %s1, %s216
          %s218 = smul.u32 16, %s16
        $region36: #{conad_forward.5} parent=31 // pred_fallthru
          _
      $region32: #{conad_forward.5} parent=5 // pred_fallthru
        _
      %p219 = scmp.le.s32.totalorder 1, %s16
      %p220 = scmp.lt.s32.totalorder %s16, 3
      %p221 = pnand %p219, %p220
      %p222 = pneg %p221
      // Predicated region
      $region37: #{conad_forward.5} parent=5 // pred_check
        _
      $region38: #{conad_forward.5} parent=5 // pred_check_branch
        %224 = sbr.rel (%p221) target = $region40
      $region39: #{conad_forward.5} parent=5 // pred_region
        %s225 = ssub.s32 %s16, 1
        %p226 = pneg %p37
        %p227 = pneg %p34
        %s228 = smul.u32 16, %s21
        %p229 = scmp.lt.s32.totalorder %s228, 31
        %s230 = scalar_select %p229, %s228, 31
        %s231 = smul.addr %s230, 2
        %s232 = smul.addr %s231, 8
        %s233 = scalar_lea.vmem %s1, %s232
        %p234 = pneg %p63
        %p235 = pneg %p60
        %p236 = pneg %p84
        %p237 = pneg %p81
        %p238 = pneg %p105
        %p239 = pneg %p102
        %p240 = pneg %p126
        %p241 = pneg %p123
        %p242 = pneg %p152
        %p243 = pneg %p149
        %s244 = smul.u32 16, %s21
        %p245 = scmp.lt.s32.totalorder %s244, 31
        %s246 = scalar_select %p245, %s244, 31
        %s247 = smul.addr %s246, 8
        %s248 = scalar_lea.vmem %s5, %s247
        %p249 = pneg %p178
        %p250 = pneg %p175
        %s251 = sand.u32 %s165, 1
        %s252 = scalar_lea.sflag [#allocation6], %s251
        %s253 = sand.u32 %s165, 1
        %s254 = smul.addr %s253, 256
        %s255 = scalar_lea.vmem [#allocation5], %s254
        %s256 = smul.u32 16, %s21
        %p257 = scmp.lt.s32.totalorder %s256, 31
        %s258 = scalar_select %p257, %s256, 31
        %s259 = smul.addr %s258, 2
        %s260 = smul.addr %s259, 8
        %s261 = scalar_lea.vmem %s1, %s260
        %s262 = smul.u32 16, %s21
        %s263 = smul.u32 16, %s21
        %p264 = scmp.lt.s32.totalorder %s263, 31
        %s265 = scalar_select %p264, %s263, 31
        %s266 = smul.addr %s265, 8
        %s267 = scalar_lea.vmem %s5, %s266
        %s268 = smul.u32 16, %s21
        %s269 = smul.u32 16, %s21
        %s271 = smul.u32 %s21, 128
        %p272 = scmp.eq.s32.totalorder %s21, 0
        // Predicated region
        $region41: #{conad_forward.5} parent=39 // pred_check
          %p273 = pneg %p272
        $region42: #{conad_forward.5} parent=39 // pred_check_branch
          %275 = sbr.rel (%p273) target = $region44
        $region43: #{conad_forward.5} parent=39 // pred_region
          %v276 = vld [vmem:[%s0] sm:$0xff]
          %v277 = vld [vmem:[%s0 + $0x8] sm:$0xff]
          %v278 = vld [vmem:[%s0 + $0x10] sm:$0xff]
          %v279 = vld [vmem:[%s0 + $0x18] sm:$0xff]
          %v280 = vld [vmem:[%s0 + $0x20] sm:$0xff]
          %v281 = vld [vmem:[%s0 + $0x28] sm:$0xff]
          %v282 = vld [vmem:[%s0 + $0x30] sm:$0xff]
          %v283 = vld [vmem:[%s0 + $0x38] sm:$0xff]
          %v284 = vld [vmem:[%s0 + $0x40] sm:$0xff]
          %v285 = vld [vmem:[%s0 + $0x48] sm:$0xff]
          %v286 = vld [vmem:[%s0 + $0x50] sm:$0xff]
          %v287 = vld [vmem:[%s0 + $0x58] sm:$0xff]
          %v288 = vld [vmem:[%s0 + $0x60] sm:$0xff]
          %v289 = vld [vmem:[%s0 + $0x68] sm:$0xff]
          %v290 = vld [vmem:[%s0 + $0x70] sm:$0xff]
          %v291 = vld [vmem:[%s0 + $0x78] sm:$0xff]
          %v292 = vld [vmem:[%s0 + $0x80] sm:$0xff]
          %v293 = vld [vmem:[%s0 + $0x88] sm:$0xff]
          %v294 = vld [vmem:[%s0 + $0x90] sm:$0xff]
          %v295 = vld [vmem:[%s0 + $0x98] sm:$0xff]
          %v296 = vld [vmem:[%s0 + $0xa0] sm:$0xff]
          %v297 = vld [vmem:[%s0 + $0xa8] sm:$0xff]
          %v298 = vld [vmem:[%s0 + $0xb0] sm:$0xff]
          %v299 = vld [vmem:[%s0 + $0xb8] sm:$0xff]
          %v300 = vld [vmem:[%s0 + $0xc0] sm:$0xff]
          %v301 = vld [vmem:[%s0 + $0xc8] sm:$0xff]
          %v302 = vld [vmem:[%s0 + $0xd0] sm:$0xff]
          %v303 = vld [vmem:[%s0 + $0xd8] sm:$0xff]
          %v304 = vld [vmem:[%s0 + $0xe0] sm:$0xff]
          %v305 = vld [vmem:[%s0 + $0xe8] sm:$0xff]
          %v306 = vld [vmem:[%s0 + $0xf0] sm:$0xff]
          %v307 = vld [vmem:[%s0 + $0xf8] sm:$0xff]
          %v308 = vld [vmem:[%s2] sm:$0xff]
          %v309 = vld [vmem:[%s2 + $0x8] sm:$0xff]
          %vm310 = vcmask 130048
          %v312 = vsel %vm310, %v276, 0
          %v315 = vsel %vm310, %v277, 0
          %v318 = vsel %vm310, %v278, 0
          %v321 = vsel %vm310, %v279, 0
          %v324 = vsel %vm310, %v280, 0
          %v327 = vsel %vm310, %v281, 0
          %v330 = vsel %vm310, %v282, 0
          %v333 = vsel %vm310, %v283, 0
          %v336 = vsel %vm310, %v284, 0
          %v339 = vsel %vm310, %v285, 0
          %v342 = vsel %vm310, %v286, 0
          %v345 = vsel %vm310, %v287, 0
          %v348 = vsel %vm310, %v288, 0
          %v351 = vsel %vm310, %v289, 0
          %v354 = vsel %vm310, %v290, 0
          %v357 = vsel %vm310, %v291, 0
          %v360 = vsel %vm310, %v292, 0
          %v363 = vsel %vm310, %v293, 0
          %v366 = vsel %vm310, %v294, 0
          %v369 = vsel %vm310, %v295, 0
          %v372 = vsel %vm310, %v296, 0
          %v375 = vsel %vm310, %v297, 0
          %v378 = vsel %vm310, %v298, 0
          %v381 = vsel %vm310, %v299, 0
          %v384 = vsel %vm310, %v300, 0
          %v387 = vsel %vm310, %v301, 0
          %v390 = vsel %vm310, %v302, 0
          %v393 = vsel %vm310, %v303, 0
          %v396 = vsel %vm310, %v304, 0
          %v399 = vsel %vm310, %v305, 0
          %v402 = vsel %vm310, %v306, 0
          %v405 = vsel %vm310, %v307, 0
          %407 = vmatprep.subr.mxu0 0.0
          %408 = vmatpush1.msra.mxu0 %v308
          %409 = vmatprep.subr.mxu0 0.0
          %410 = vmatpush1.msra.mxu0 %v309
          %411 = vmatprep.subr.mxu0 0.0
          %412 = vmatpush1.msra.mxu0 0.0
          %413 = vmatprep.subr.mxu0 0.0
          %414 = vmatpush1.msra.mxu0 0.0
          %415 = vmatprep.subr.mxu0 0.0
          %416 = vmatpush1.msra.mxu0 0.0
          %417 = vmatprep.subr.mxu0 0.0
          %418 = vmatpush1.msra.mxu0 0.0
          %419 = vmatprep.subr.mxu0 0.0
          %420 = vmatpush1.msra.mxu0 0.0
          %421 = vmatprep.subr.mxu0 0.0
          %422 = vmatpush1.msra.mxu0 0.0
          %423 = vmatprep.subr.mxu0 0.0
          %424 = vmatpush1.msra.mxu0 0.0
          %425 = vmatprep.subr.mxu0 0.0
          %426 = vmatpush1.msra.mxu0 0.0
          %427 = vmatprep.subr.mxu0 0.0
          %428 = vmatpush1.msra.mxu0 0.0
          %429 = vmatprep.subr.mxu0 0.0
          %430 = vmatpush1.msra.mxu0 0.0
          %431 = vmatprep.subr.mxu0 0.0
          %432 = vmatpush1.msra.mxu0 0.0
          %433 = vmatprep.subr.mxu0 0.0
          %434 = vmatpush1.msra.mxu0 0.0
          %435 = vmatprep.subr.mxu0 0.0
          %436 = vmatpush1.msra.mxu0 0.0
          %437 = vmatprep.subr.mxu0 0.0
          %438 = vmatpush1.msra.mxu0 0.0
          %439 = vmatprep.subr.mxu0 0.0
          %440 = vmatpush1.msra.mxu0 0.0
          %441 = vmatprep.subr.mxu0 0.0
          %442 = vmatpush1.msra.mxu0 0.0
          %443 = vmatprep.subr.mxu0 0.0
          %444 = vmatpush1.msra.mxu0 0.0
          %445 = vmatprep.subr.mxu0 0.0
          %446 = vmatpush1.msra.mxu0 0.0
          %447 = vmatprep.subr.mxu0 0.0
          %448 = vmatpush1.msra.mxu0 0.0
          %449 = vmatprep.subr.mxu0 0.0
          %450 = vmatpush1.msra.mxu0 0.0
          %451 = vmatprep.subr.mxu0 0.0
          %452 = vmatpush1.msra.mxu0 0.0
          %453 = vmatprep.subr.mxu0 0.0
          %454 = vmatpush1.msra.mxu0 0.0
          %455 = vmatprep.subr.mxu0 0.0
          %456 = vmatpush1.msra.mxu0 0.0
          %457 = vmatprep.subr.mxu0 0.0
          %458 = vmatpush1.msra.mxu0 0.0
          %459 = vmatprep.subr.mxu0 0.0
          %460 = vmatpush1.msra.mxu0 0.0
          %461 = vmatprep.subr.mxu0 0.0
          %462 = vmatpush1.msra.mxu0 0.0
          %463 = vmatprep.subr.mxu0 0.0
          %464 = vmatpush1.msra.mxu0 0.0
          %465 = vmatprep.subr.mxu0 0.0
          %466 = vmatpush1.msra.mxu0 0.0
          %467 = vmatprep.subr.mxu0 0.0
          %468 = vmatpush1.msra.mxu0 0.0
          %469 = vmatprep.subr.mxu0 0.0
          %470 = vmatpush1.msra.mxu0 0.0
          %471 = vmatprep.mubr.f32.mxu0 0.0
          %472 = vmatmul.mubr.f32.gmra.mrb[0].mxu0 %v312
          %v473 = vpop.f32.mrb[0].mxu0
          %v474 = vadd.f32 0.0, %v473
          %v475 = vpop.f32.mrb[0].mxu0
          %476 = vmatprep.mubr.f32.mxu0 0.0
          %477 = vmatmul.mubr.f32.gmra.mrb[0].mxu0 %v315
          %v478 = vpop.f32.mrb[0].mxu0
          %v479 = vadd.f32 0.0, %v478
          %v480 = vpop.f32.mrb[0].mxu0
          %481 = vmatprep.mubr.f32.mxu0 0.0
          %482 = vmatmul.mubr.f32.gmra.mrb[0].mxu0 %v318
          %v483 = vpop.f32.mrb[0].mxu0
          %v484 = vadd.f32 0.0, %v483
          %v485 = vpop.f32.mrb[0].mxu0
          %486 = vmatprep.mubr.f32.mxu0 0.0
          %487 = vmatmul.mubr.f32.gmra.mrb[0].mxu0 %v321
          %v488 = vpop.f32.mrb[0].mxu0
          %v489 = vadd.f32 0.0, %v488
          %v490 = vpop.f32.mrb[0].mxu0
          %491 = vmatprep.mubr.f32.mxu0 0.0
          %492 = vmatmul.mubr.f32.gmra.mrb[0].mxu0 %v324
          %v493 = vpop.f32.mrb[0].mxu0
          %v494 = vadd.f32 0.0, %v493
          %v495 = vpop.f32.mrb[0].mxu0
          %496 = vmatprep.mubr.f32.mxu0 0.0
          %497 = vmatmul.mubr.f32.gmra.mrb[0].mxu0 %v327
          %v498 = vpop.f32.mrb[0].mxu0
          %v499 = vadd.f32 0.0, %v498
          %v500 = vpop.f32.mrb[0].mxu0
          %501 = vmatprep.mubr.f32.mxu0 0.0
          %502 = vmatmul.mubr.f32.gmra.mrb[0].mxu0 %v330
          %v503 = vpop.f32.mrb[0].mxu0
          %v504 = vadd.f32 0.0, %v503
          %v505 = vpop.f32.mrb[0].mxu0
          %506 = vmatprep.mubr.f32.mxu0 0.0
          %507 = vmatmul.mubr.f32.gmra.mrb[0].mxu0 %v333
          %v508 = vpop.f32.mrb[0].mxu0
          %v509 = vadd.f32 0.0, %v508
          %v510 = vpop.f32.mrb[0].mxu0
          %511 = vmatprep.mubr.f32.mxu0 0.0
          %512 = vmatmul.mubr.f32.gmra.mrb[0].mxu0 %v336
          %v513 = vpop.f32.mrb[0].mxu0
          %v514 = vadd.f32 0.0, %v513
          %v515 = vpop.f32.mrb[0].mxu0
          %516 = vmatprep.mubr.f32.mxu0 0.0
          %517 = vmatmul.mubr.f32.gmra.mrb[0].mxu0 %v339
          %v518 = vpop.f32.mrb[0].mxu0
          %v519 = vadd.f32 0.0, %v518
          %v520 = vpop.f32.mrb[0].mxu0
          %521 = vmatprep.mubr.f32.mxu0 0.0
          %522 = vmatmul.mubr.f32.gmra.mrb[0].mxu0 %v342
          %v523 = vpop.f32.mrb[0].mxu0
          %v524 = vadd.f32 0.0, %v523
          %v525 = vpop.f32.mrb[0].mxu0
          %526 = vmatprep.mubr.f32.mxu0 0.0
          %527 = vmatmul.mubr.f32.gmra.mrb[0].mxu0 %v345
          %v528 = vpop.f32.mrb[0].mxu0
          %v529 = vadd.f32 0.0, %v528
          %v530 = vpop.f32.mrb[0].mxu0
          %531 = vmatprep.mubr.f32.mxu0 0.0
          %532 = vmatmul.mubr.f32.gmra.mrb[0].mxu0 %v348
          %v533 = vpop.f32.mrb[0].mxu0
          %v534 = vadd.f32 0.0, %v533
          %v535 = vpop.f32.mrb[0].mxu0
          %536 = vmatprep.mubr.f32.mxu0 0.0
          %537 = vmatmul.mubr.f32.gmra.mrb[0].mxu0 %v351
          %v538 = vpop.f32.mrb[0].mxu0
          %v539 = vadd.f32 0.0, %v538
          %v540 = vpop.f32.mrb[0].mxu0
          %541 = vmatprep.mubr.f32.mxu0 0.0
          %542 = vmatmul.mubr.f32.gmra.mrb[0].mxu0 %v354
          %v543 = vpop.f32.mrb[0].mxu0
          %v544 = vadd.f32 0.0, %v543
          %v545 = vpop.f32.mrb[0].mxu0
          %546 = vmatprep.mubr.f32.mxu0 0.0
          %547 = vmatmul.mubr.f32.gmra.mrb[0].mxu0 %v357
          %v548 = vpop.f32.mrb[0].mxu0
          %v549 = vadd.f32 0.0, %v548
          %v550 = vpop.f32.mrb[0].mxu0
          %551 = vmatprep.mubr.f32.mxu0 0.0
          %552 = vmatmul.mubr.f32.gmra.mrb[0].mxu0 %v360
          %v553 = vpop.f32.mrb[0].mxu0
          %v554 = vadd.f32 0.0, %v553
          %v555 = vpop.f32.mrb[0].mxu0
          %556 = vmatprep.mubr.f32.mxu0 0.0
          %557 = vmatmul.mubr.f32.gmra.mrb[0].mxu0 %v363
          %v558 = vpop.f32.mrb[0].mxu0
          %v559 = vadd.f32 0.0, %v558
          %v560 = vpop.f32.mrb[0].mxu0
          %561 = vmatprep.mubr.f32.mxu0 0.0
          %562 = vmatmul.mubr.f32.gmra.mrb[0].mxu0 %v366
          %v563 = vpop.f32.mrb[0].mxu0
          %v564 = vadd.f32 0.0, %v563
          %v565 = vpop.f32.mrb[0].mxu0
          %566 = vmatprep.mubr.f32.mxu0 0.0
          %567 = vmatmul.mubr.f32.gmra.mrb[0].mxu0 %v369
          %v568 = vpop.f32.mrb[0].mxu0
          %v569 = vadd.f32 0.0, %v568
          %v570 = vpop.f32.mrb[0].mxu0
          %571 = vmatprep.mubr.f32.mxu0 0.0
          %572 = vmatmul.mubr.f32.gmra.mrb[0].mxu0 %v372
          %v573 = vpop.f32.mrb[0].mxu0
          %v574 = vadd.f32 0.0, %v573
          %v575 = vpop.f32.mrb[0].mxu0
          %576 = vmatprep.mubr.f32.mxu0 0.0
          %577 = vmatmul.mubr.f32.gmra.mrb[0].mxu0 %v375
          %v578 = vpop.f32.mrb[0].mxu0
          %v579 = vadd.f32 0.0, %v578
          %v580 = vpop.f32.mrb[0].mxu0
          %581 = vmatprep.mubr.f32.mxu0 0.0
          %582 = vmatmul.mubr.f32.gmra.mrb[0].mxu0 %v378
          %v583 = vpop.f32.mrb[0].mxu0
          %v584 = vadd.f32 0.0, %v583
          %v585 = vpop.f32.mrb[0].mxu0
          %586 = vmatprep.mubr.f32.mxu0 0.0
          %587 = vmatmul.mubr.f32.gmra.mrb[0].mxu0 %v381
          %v588 = vpop.f32.mrb[0].mxu0
          %v589 = vadd.f32 0.0, %v588
          %v590 = vpop.f32.mrb[0].mxu0
          %591 = vmatprep.mubr.f32.mxu0 0.0
          %592 = vmatmul.mubr.f32.gmra.mrb[0].mxu0 %v384
          %v593 = vpop.f32.mrb[0].mxu0
          %v594 = vadd.f32 0.0, %v593
          %v595 = vpop.f32.mrb[0].mxu0
          %596 = vmatprep.mubr.f32.mxu0 0.0
          %597 = vmatmul.mubr.f32.gmra.mrb[0].mxu0 %v387
          %v598 = vpop.f32.mrb[0].mxu0
          %v599 = vadd.f32 0.0, %v598
          %v600 = vpop.f32.mrb[0].mxu0
          %601 = vmatprep.mubr.f32.mxu0 0.0
          %602 = vmatmul.mubr.f32.gmra.mrb[0].mxu0 %v390
          %v603 = vpop.f32.mrb[0].mxu0
          %v604 = vadd.f32 0.0, %v603
          %v605 = vpop.f32.mrb[0].mxu0
          %606 = vmatprep.mubr.f32.mxu0 0.0
          %607 = vmatmul.mubr.f32.gmra.mrb[0].mxu0 %v393
          %v608 = vpop.f32.mrb[0].mxu0
          %v609 = vadd.f32 0.0, %v608
          %v610 = vpop.f32.mrb[0].mxu0
          %611 = vmatprep.mubr.f32.mxu0 0.0
          %612 = vmatmul.mubr.f32.gmra.mrb[0].mxu0 %v396
          %v613 = vpop.f32.mrb[0].mxu0
          %v614 = vadd.f32 0.0, %v613
          %v615 = vpop.f32.mrb[0].mxu0
          %616 = vmatprep.mubr.f32.mxu0 0.0
          %617 = vmatmul.mubr.f32.gmra.mrb[0].mxu0 %v399
          %v618 = vpop.f32.mrb[0].mxu0
          %v619 = vadd.f32 0.0, %v618
          %v620 = vpop.f32.mrb[0].mxu0
          %621 = vmatprep.mubr.f32.mxu0 0.0
          %622 = vmatmul.mubr.f32.gmra.mrb[0].mxu0 %v402
          %v623 = vpop.f32.mrb[0].mxu0
          %v624 = vadd.f32 0.0, %v623
          %v625 = vpop.f32.mrb[0].mxu0
          %626 = vmatprep.mubr.f32.mxu0 0.0
          %627 = vmatmul.mubr.f32.gmra.mrb[0].mxu0 %v405
          %v628 = vpop.f32.mrb[0].mxu0
          %v629 = vadd.f32 0.0, %v628
          %v630 = vpop.f32.mrb[0].mxu0
          %631 = vdwg.mxu0
          %v632 = vld [vmem:[%s3] sm:$0xff]
          %v633 = vld [vmem:[%s3 + $0x8] sm:$0xff]
          %v634 = vld [vmem:[%s3 + $0x10] sm:$0xff]
          %v635 = vld [vmem:[%s3 + $0x18] sm:$0xff]
          %636 = vxpose.xlu0.b32.start [1/16] %v632, 128
          %637 = vxpose.xlu0.b32.cont [2/16] %v633, 128
          %638 = vxpose.xlu0.b32.cont [3/16] %v634, 128
          %639 = vxpose.xlu0.b32.cont [4/16] %v635, 128
          %640 = vxpose.xlu0.b32.cont [5/16] 0.0, 128
          %641 = vxpose.xlu0.b32.cont [6/16] 0.0, 128
          %642 = vxpose.xlu0.b32.cont [7/16] 0.0, 128
          %643 = vxpose.xlu0.b32.cont [8/16] 0.0, 128
          %644 = vxpose.xlu0.b32.cont [9/16] 0.0, 128
          %645 = vxpose.xlu0.b32.cont [10/16] 0.0, 128
          %646 = vxpose.xlu0.b32.cont [11/16] 0.0, 128
          %647 = vxpose.xlu0.b32.cont [12/16] 0.0, 128
          %648 = vxpose.xlu0.b32.cont [13/16] 0.0, 128
          %649 = vxpose.xlu0.b32.cont [14/16] 0.0, 128
          %650 = vxpose.xlu0.b32.cont [15/16] 0.0, 128
          %651 = vxpose.xlu0.b32.end [16/16] 0.0, 128
          %v652 = vpop.trf.xlu0
          %v653 = vpop.trf.xlu0
          %v654 = vpop.trf.xlu0
          %v655 = vpop.trf.xlu0
          %v656 = vpop.trf.xlu0
          %v657 = vpop.trf.xlu0
          %v658 = vpop.trf.xlu0
          %v659 = vpop.trf.xlu0
          %v660 = vpop.trf.xlu0
          %v661 = vpop.trf.xlu0
          %v662 = vpop.trf.xlu0
          %v663 = vpop.trf.xlu0
          %v664 = vpop.trf.xlu0
          %v665 = vpop.trf.xlu0
          %v666 = vpop.trf.xlu0
          %v667 = vpop.trf.xlu0
          %vm668 = vcmask 261120
          %v670 = vsel %vm668, %v652, 0
          %v673 = vsel %vm668, %v474, 0
          %v676 = vsel %vm668, %v479, 0
          %v679 = vsel %vm668, %v484, 0
          %v682 = vsel %vm668, %v489, 0
          %v685 = vsel %vm668, %v494, 0
          %v688 = vsel %vm668, %v499, 0
          %v691 = vsel %vm668, %v504, 0
          %v694 = vsel %vm668, %v509, 0
          %v697 = vsel %vm668, %v514, 0
          %v700 = vsel %vm668, %v519, 0
          %v703 = vsel %vm668, %v524, 0
          %v706 = vsel %vm668, %v529, 0
          %v709 = vsel %vm668, %v534, 0
          %v712 = vsel %vm668, %v539, 0
          %v715 = vsel %vm668, %v544, 0
          %v718 = vsel %vm668, %v549, 0
          %v721 = vsel %vm668, %v554, 0
          %v724 = vsel %vm668, %v559, 0
          %v727 = vsel %vm668, %v564, 0
          %v730 = vsel %vm668, %v569, 0
          %v733 = vsel %vm668, %v574, 0
          %v736 = vsel %vm668, %v579, 0
          %v739 = vsel %vm668, %v584, 0
          %v742 = vsel %vm668, %v589, 0
          %v745 = vsel %vm668, %v594, 0
          %v748 = vsel %vm668, %v599, 0
          %v751 = vsel %vm668, %v604, 0
          %v754 = vsel %vm668, %v609, 0
          %v757 = vsel %vm668, %v614, 0
          %v760 = vsel %vm668, %v619, 0
          %v763 = vsel %vm668, %v624, 0
          %v766 = vsel %vm668, %v629, 0
          %768 = vmatprep.subr.mxu0 0.0
          %769 = vmatpush1.xpose.msra.mxu0 %v673
          %770 = vmatprep.subr.mxu0 0.0
          %771 = vmatpush1.xpose.msra.mxu0 %v676
          %772 = vmatprep.subr.mxu0 0.0
          %773 = vmatpush1.xpose.msra.mxu0 %v679
          %774 = vmatprep.subr.mxu0 0.0
          %775 = vmatpush1.xpose.msra.mxu0 %v682
          %776 = vmatprep.subr.mxu0 0.0
          %777 = vmatpush1.xpose.msra.mxu0 %v685
          %778 = vmatprep.subr.mxu0 0.0
          %779 = vmatpush1.xpose.msra.mxu0 %v688
          %780 = vmatprep.subr.mxu0 0.0
          %781 = vmatpush1.xpose.msra.mxu0 %v691
          %782 = vmatprep.subr.mxu0 0.0
          %783 = vmatpush1.xpose.msra.mxu0 %v694
          %784 = vmatprep.subr.mxu0 0.0
          %785 = vmatpush1.xpose.msra.mxu0 %v697
          %786 = vmatprep.subr.mxu0 0.0
          %787 = vmatpush1.xpose.msra.mxu0 %v700
          %788 = vmatprep.subr.mxu0 0.0
          %789 = vmatpush1.xpose.msra.mxu0 %v703
          %790 = vmatprep.subr.mxu0 0.0
          %791 = vmatpush1.xpose.msra.mxu0 %v706
          %792 = vmatprep.subr.mxu0 0.0
          %793 = vmatpush1.xpose.msra.mxu0 %v709
          %794 = vmatprep.subr.mxu0 0.0
          %795 = vmatpush1.xpose.msra.mxu0 %v712
          %796 = vmatprep.subr.mxu0 0.0
          %797 = vmatpush1.xpose.msra.mxu0 %v715
          %798 = vmatprep.subr.mxu0 0.0
          %799 = vmatpush1.xpose.msra.mxu0 %v718
          %800 = vmatprep.subr.mxu0 0.0
          %801 = vmatpush1.xpose.msra.mxu0 %v721
          %802 = vmatprep.subr.mxu0 0.0
          %803 = vmatpush1.xpose.msra.mxu0 %v724
          %804 = vmatprep.subr.mxu0 0.0
          %805 = vmatpush1.xpose.msra.mxu0 %v727
          %806 = vmatprep.subr.mxu0 0.0
          %807 = vmatpush1.xpose.msra.mxu0 %v730
          %808 = vmatprep.subr.mxu0 0.0
          %809 = vmatpush1.xpose.msra.mxu0 %v733
          %810 = vmatprep.subr.mxu0 0.0
          %811 = vmatpush1.xpose.msra.mxu0 %v736
          %812 = vmatprep.subr.mxu0 0.0
          %813 = vmatpush1.xpose.msra.mxu0 %v739
          %814 = vmatprep.subr.mxu0 0.0
          %815 = vmatpush1.xpose.msra.mxu0 %v742
          %816 = vmatprep.subr.mxu0 0.0
          %817 = vmatpush1.xpose.msra.mxu0 %v745
          %818 = vmatprep.subr.mxu0 0.0
          %819 = vmatpush1.xpose.msra.mxu0 %v748
          %820 = vmatprep.subr.mxu0 0.0
          %821 = vmatpush1.xpose.msra.mxu0 %v751
          %822 = vmatprep.subr.mxu0 0.0
          %823 = vmatpush1.xpose.msra.mxu0 %v754
          %824 = vmatprep.subr.mxu0 0.0
          %825 = vmatpush1.xpose.msra.mxu0 %v757
          %826 = vmatprep.subr.mxu0 0.0
          %827 = vmatpush1.xpose.msra.mxu0 %v760
          %828 = vmatprep.subr.mxu0 0.0
          %829 = vmatpush1.xpose.msra.mxu0 %v763
          %830 = vmatprep.subr.mxu0 0.0
          %831 = vmatpush1.xpose.msra.mxu0 %v766
          %832 = vmatprep.mubr.f32.mxu0 0.0
          %833 = vmatmul.mubr.f32.gmra.mrb[0].mxu0 %v670
          %v834 = vpop.f32.mrb[0].mxu0
          %v835 = vadd.f32 0.0, %v834
          %v836 = vpop.f32.mrb[0].mxu0
          %v837 = vadd.f32 0.0, %v836
          %838 = vdwg.mxu0
          %v841 = vcombine.low %v835, %v837
          %v843 = vunpack.c.l.s4 1983009808
          %v844 = vunpack.c.0.s8 %v843
          %v845 = vlaneseq
          %v846 = vshrl.u32 %v845, 7
          %v847 = vsub.s32 %v844, %v846
          %v848 = vrot.slane %v841, %v847
          %850 = vst [vmem:[#allocation3] sm:$0xf] %v848
          %855 = vrot.lane.b32.xlu0 %v632, 126
          %v856 = vpop.permute.xlu0 %855
          %857 = vrot.lane.b32.xlu0 %v633, 126
          %v858 = vpop.permute.xlu0 %857
          %859 = vrot.lane.b32.xlu0 %v634, 126
          %v860 = vpop.permute.xlu0 %859
          %861 = vrot.lane.b32.xlu0 %v635, 126
          %v862 = vpop.permute.xlu0 %861
          %867 = vmatprep.subr.mxu0 0.0
          %868 = vmatpush1.msra.mxu0 %v856
          %869 = vmatprep.subr.mxu0 0.0
          %870 = vmatpush1.msra.mxu0 %v858
          %871 = vmatprep.subr.mxu0 0.0
          %872 = vmatpush1.msra.mxu0 %v860
          %873 = vmatprep.subr.mxu0 0.0
          %874 = vmatpush1.msra.mxu0 %v862
          %875 = vmatprep.subr.mxu0 0.0
          %876 = vmatpush1.msra.mxu0 0.0
          %877 = vmatprep.subr.mxu0 0.0
          %878 = vmatpush1.msra.mxu0 0.0
          %879 = vmatprep.subr.mxu0 0.0
          %880 = vmatpush1.msra.mxu0 0.0
          %881 = vmatprep.subr.mxu0 0.0
          %882 = vmatpush1.msra.mxu0 0.0
          %883 = vmatprep.subr.mxu0 0.0
          %884 = vmatpush1.msra.mxu0 0.0
          %885 = vmatprep.subr.mxu0 0.0
          %886 = vmatpush1.msra.mxu0 0.0
          %887 = vmatprep.subr.mxu0 0.0
          %888 = vmatpush1.msra.mxu0 0.0
          %889 = vmatprep.subr.mxu0 0.0
          %890 = vmatpush1.msra.mxu0 0.0
          %891 = vmatprep.subr.mxu0 0.0
          %892 = vmatpush1.msra.mxu0 0.0
          %893 = vmatprep.subr.mxu0 0.0
          %894 = vmatpush1.msra.mxu0 0.0
          %895 = vmatprep.subr.mxu0 0.0
          %896 = vmatpush1.msra.mxu0 0.0
          %897 = vmatprep.subr.mxu0 0.0
          %898 = vmatpush1.msra.mxu0 0.0
          %899 = vmatprep.subr.mxu0 0.0
          %900 = vmatpush1.msra.mxu0 0.0
          %901 = vmatprep.subr.mxu0 0.0
          %902 = vmatpush1.msra.mxu0 0.0
          %903 = vmatprep.subr.mxu0 0.0
          %904 = vmatpush1.msra.mxu0 0.0
          %905 = vmatprep.subr.mxu0 0.0
          %906 = vmatpush1.msra.mxu0 0.0
          %907 = vmatprep.subr.mxu0 0.0
          %908 = vmatpush1.msra.mxu0 0.0
          %909 = vmatprep.subr.mxu0 0.0
          %910 = vmatpush1.msra.mxu0 0.0
          %911 = vmatprep.subr.mxu0 0.0
          %912 = vmatpush1.msra.mxu0 0.0
          %913 = vmatprep.subr.mxu0 0.0
          %914 = vmatpush1.msra.mxu0 0.0
          %915 = vmatprep.subr.mxu0 0.0
          %916 = vmatpush1.msra.mxu0 0.0
          %917 = vmatprep.subr.mxu0 0.0
          %918 = vmatpush1.msra.mxu0 0.0
          %919 = vmatprep.subr.mxu0 0.0
          %920 = vmatpush1.msra.mxu0 0.0
          %921 = vmatprep.subr.mxu0 0.0
          %922 = vmatpush1.msra.mxu0 0.0
          %923 = vmatprep.subr.mxu0 0.0
          %924 = vmatpush1.msra.mxu0 0.0
          %925 = vmatprep.subr.mxu0 0.0
          %926 = vmatpush1.msra.mxu0 0.0
          %927 = vmatprep.subr.mxu0 0.0
          %928 = vmatpush1.msra.mxu0 0.0
          %929 = vmatprep.subr.mxu0 0.0
          %930 = vmatpush1.msra.mxu0 0.0
          %931 = vmatprep.mubr.f32.mxu0 0.0
          %932 = vmatmul.mubr.f32.gmra.mrb[0].mxu0 %v673
          %v933 = vpop.f32.mrb[0].mxu0
          %v934 = vadd.f32 0.0, %v933
          %v935 = vpop.f32.mrb[0].mxu0
          %936 = vmatprep.mubr.f32.mxu0 0.0
          %937 = vmatmul.mubr.f32.gmra.mrb[0].mxu0 %v676
          %v938 = vpop.f32.mrb[0].mxu0
          %v939 = vadd.f32 0.0, %v938
          %v940 = vpop.f32.mrb[0].mxu0
          %941 = vmatprep.mubr.f32.mxu0 0.0
          %942 = vmatmul.mubr.f32.gmra.mrb[0].mxu0 %v679
          %v943 = vpop.f32.mrb[0].mxu0
          %v944 = vadd.f32 0.0, %v943
          %v945 = vpop.f32.mrb[0].mxu0
          %946 = vmatprep.mubr.f32.mxu0 0.0
          %947 = vmatmul.mubr.f32.gmra.mrb[0].mxu0 %v682
          %v948 = vpop.f32.mrb[0].mxu0
          %v949 = vadd.f32 0.0, %v948
          %v950 = vpop.f32.mrb[0].mxu0
          %951 = vmatprep.mubr.f32.mxu0 0.0
          %952 = vmatmul.mubr.f32.gmra.mrb[0].mxu0 %v685
          %v953 = vpop.f32.mrb[0].mxu0
          %v954 = vadd.f32 0.0, %v953
          %v955 = vpop.f32.mrb[0].mxu0
          %956 = vmatprep.mubr.f32.mxu0 0.0
          %957 = vmatmul.mubr.f32.gmra.mrb[0].mxu0 %v688
          %v958 = vpop.f32.mrb[0].mxu0
          %v959 = vadd.f32 0.0, %v958
          %v960 = vpop.f32.mrb[0].mxu0
          %961 = vmatprep.mubr.f32.mxu0 0.0
          %962 = vmatmul.mubr.f32.gmra.mrb[0].mxu0 %v691
          %v963 = vpop.f32.mrb[0].mxu0
          %v964 = vadd.f32 0.0, %v963
          %v965 = vpop.f32.mrb[0].mxu0
          %966 = vmatprep.mubr.f32.mxu0 0.0
          %967 = vmatmul.mubr.f32.gmra.mrb[0].mxu0 %v694
          %v968 = vpop.f32.mrb[0].mxu0
          %v969 = vadd.f32 0.0, %v968
          %v970 = vpop.f32.mrb[0].mxu0
          %971 = vmatprep.mubr.f32.mxu0 0.0
          %972 = vmatmul.mubr.f32.gmra.mrb[0].mxu0 %v697
          %v973 = vpop.f32.mrb[0].mxu0
          %v974 = vadd.f32 0.0, %v973
          %v975 = vpop.f32.mrb[0].mxu0
          %976 = vmatprep.mubr.f32.mxu0 0.0
          %977 = vmatmul.mubr.f32.gmra.mrb[0].mxu0 %v700
          %v978 = vpop.f32.mrb[0].mxu0
          %v979 = vadd.f32 0.0, %v978
          %v980 = vpop.f32.mrb[0].mxu0
          %981 = vmatprep.mubr.f32.mxu0 0.0
          %982 = vmatmul.mubr.f32.gmra.mrb[0].mxu0 %v703
          %v983 = vpop.f32.mrb[0].mxu0
          %v984 = vadd.f32 0.0, %v983
          %v985 = vpop.f32.mrb[0].mxu0
          %986 = vmatprep.mubr.f32.mxu0 0.0
          %987 = vmatmul.mubr.f32.gmra.mrb[0].mxu0 %v706
          %v988 = vpop.f32.mrb[0].mxu0
          %v989 = vadd.f32 0.0, %v988
          %v990 = vpop.f32.mrb[0].mxu0
          %991 = vmatprep.mubr.f32.mxu0 0.0
          %992 = vmatmul.mubr.f32.gmra.mrb[0].mxu0 %v709
          %v993 = vpop.f32.mrb[0].mxu0
          %v994 = vadd.f32 0.0, %v993
          %v995 = vpop.f32.mrb[0].mxu0
          %996 = vmatprep.mubr.f32.mxu0 0.0
          %997 = vmatmul.mubr.f32.gmra.mrb[0].mxu0 %v712
          %v998 = vpop.f32.mrb[0].mxu0
          %v999 = vadd.f32 0.0, %v998
          %v1000 = vpop.f32.mrb[0].mxu0
          %1001 = vmatprep.mubr.f32.mxu0 0.0
          %1002 = vmatmul.mubr.f32.gmra.mrb[0].mxu0 %v715
          %v1003 = vpop.f32.mrb[0].mxu0
          %v1004 = vadd.f32 0.0, %v1003
          %v1005 = vpop.f32.mrb[0].mxu0
          %1006 = vmatprep.mubr.f32.mxu0 0.0
          %1007 = vmatmul.mubr.f32.gmra.mrb[0].mxu0 %v718
          %v1008 = vpop.f32.mrb[0].mxu0
          %v1009 = vadd.f32 0.0, %v1008
          %v1010 = vpop.f32.mrb[0].mxu0
          %1011 = vmatprep.mubr.f32.mxu0 0.0
          %1012 = vmatmul.mubr.f32.gmra.mrb[0].mxu0 %v721
          %v1013 = vpop.f32.mrb[0].mxu0
          %v1014 = vadd.f32 0.0, %v1013
          %v1015 = vpop.f32.mrb[0].mxu0
          %1016 = vmatprep.mubr.f32.mxu0 0.0
          %1017 = vmatmul.mubr.f32.gmra.mrb[0].mxu0 %v724
          %v1018 = vpop.f32.mrb[0].mxu0
          %v1019 = vadd.f32 0.0, %v1018
          %v1020 = vpop.f32.mrb[0].mxu0
          %1021 = vmatprep.mubr.f32.mxu0 0.0
          %1022 = vmatmul.mubr.f32.gmra.mrb[0].mxu0 %v727
          %v1023 = vpop.f32.mrb[0].mxu0
          %v1024 = vadd.f32 0.0, %v1023
          %v1025 = vpop.f32.mrb[0].mxu0
          %1026 = vmatprep.mubr.f32.mxu0 0.0
          %1027 = vmatmul.mubr.f32.gmra.mrb[0].mxu0 %v730
          %v1028 = vpop.f32.mrb[0].mxu0
          %v1029 = vadd.f32 0.0, %v1028
          %v1030 = vpop.f32.mrb[0].mxu0
          %1031 = vmatprep.mubr.f32.mxu0 0.0
          %1032 = vmatmul.mubr.f32.gmra.mrb[0].mxu0 %v733
          %v1033 = vpop.f32.mrb[0].mxu0
          %v1034 = vadd.f32 0.0, %v1033
          %v1035 = vpop.f32.mrb[0].mxu0
          %1036 = vmatprep.mubr.f32.mxu0 0.0
          %1037 = vmatmul.mubr.f32.gmra.mrb[0].mxu0 %v736
          %v1038 = vpop.f32.mrb[0].mxu0
          %v1039 = vadd.f32 0.0, %v1038
          %v1040 = vpop.f32.mrb[0].mxu0
          %1041 = vmatprep.mubr.f32.mxu0 0.0
          %1042 = vmatmul.mubr.f32.gmra.mrb[0].mxu0 %v739
          %v1043 = vpop.f32.mrb[0].mxu0
          %v1044 = vadd.f32 0.0, %v1043
          %v1045 = vpop.f32.mrb[0].mxu0
          %1046 = vmatprep.mubr.f32.mxu0 0.0
          %1047 = vmatmul.mubr.f32.gmra.mrb[0].mxu0 %v742
          %v1048 = vpop.f32.mrb[0].mxu0
          %v1049 = vadd.f32 0.0, %v1048
          %v1050 = vpop.f32.mrb[0].mxu0
          %1051 = vmatprep.mubr.f32.mxu0 0.0
          %1052 = vmatmul.mubr.f32.gmra.mrb[0].mxu0 %v745
          %v1053 = vpop.f32.mrb[0].mxu0
          %v1054 = vadd.f32 0.0, %v1053
          %v1055 = vpop.f32.mrb[0].mxu0
          %1056 = vmatprep.mubr.f32.mxu0 0.0
          %1057 = vmatmul.mubr.f32.gmra.mrb[0].mxu0 %v748
          %v1058 = vpop.f32.mrb[0].mxu0
          %v1059 = vadd.f32 0.0, %v1058
          %v1060 = vpop.f32.mrb[0].mxu0
          %1061 = vmatprep.mubr.f32.mxu0 0.0
          %1062 = vmatmul.mubr.f32.gmra.mrb[0].mxu0 %v751
          %v1063 = vpop.f32.mrb[0].mxu0
          %v1064 = vadd.f32 0.0, %v1063
          %v1065 = vpop.f32.mrb[0].mxu0
          %1066 = vmatprep.mubr.f32.mxu0 0.0
          %1067 = vmatmul.mubr.f32.gmra.mrb[0].mxu0 %v754
          %v1068 = vpop.f32.mrb[0].mxu0
          %v1069 = vadd.f32 0.0, %v1068
          %v1070 = vpop.f32.mrb[0].mxu0
          %1071 = vmatprep.mubr.f32.mxu0 0.0
          %1072 = vmatmul.mubr.f32.gmra.mrb[0].mxu0 %v757
          %v1073 = vpop.f32.mrb[0].mxu0
          %v1074 = vadd.f32 0.0, %v1073
          %v1075 = vpop.f32.mrb[0].mxu0
          %1076 = vmatprep.mubr.f32.mxu0 0.0
          %1077 = vmatmul.mubr.f32.gmra.mrb[0].mxu0 %v760
          %v1078 = vpop.f32.mrb[0].mxu0
          %v1079 = vadd.f32 0.0, %v1078
          %v1080 = vpop.f32.mrb[0].mxu0
          %1081 = vmatprep.mubr.f32.mxu0 0.0
          %1082 = vmatmul.mubr.f32.gmra.mrb[0].mxu0 %v763
          %v1083 = vpop.f32.mrb[0].mxu0
          %v1084 = vadd.f32 0.0, %v1083
          %v1085 = vpop.f32.mrb[0].mxu0
          %1086 = vmatprep.mubr.f32.mxu0 0.0
          %1087 = vmatmul.mubr.f32.gmra.mrb[0].mxu0 %v766
          %v1088 = vpop.f32.mrb[0].mxu0
          %v1089 = vadd.f32 0.0, %v1088
          %v1090 = vpop.f32.mrb[0].mxu0
          %1091 = vdwg.mxu0
          %vm1092 = vcmask 15360
          %1093 = vst.msk [vmem:[#allocation4] sm:$0xff] %vm1092, %v934
          %1094 = vst.msk [vmem:[#allocation4 + $0x8] sm:$0xff] %vm1092, %v939
          %1095 = vst.msk [vmem:[#allocation4 + $0x10] sm:$0xff] %vm1092, %v944
          %1096 = vst.msk [vmem:[#allocation4 + $0x18] sm:$0xff] %vm1092, %v949
          %1097 = vst.msk [vmem:[#allocation4 + $0x20] sm:$0xff] %vm1092, %v954
          %1098 = vst.msk [vmem:[#allocation4 + $0x28] sm:$0xff] %vm1092, %v959
          %1099 = vst.msk [vmem:[#allocation4 + $0x30] sm:$0xff] %vm1092, %v964
          %1100 = vst.msk [vmem:[#allocation4 + $0x38] sm:$0xff] %vm1092, %v969
          %1101 = vst.msk [vmem:[#allocation4 + $0x40] sm:$0xff] %vm1092, %v974
          %1102 = vst.msk [vmem:[#allocation4 + $0x48] sm:$0xff] %vm1092, %v979
          %1103 = vst.msk [vmem:[#allocation4 + $0x50] sm:$0xff] %vm1092, %v984
          %1104 = vst.msk [vmem:[#allocation4 + $0x58] sm:$0xff] %vm1092, %v989
          %1105 = vst.msk [vmem:[#allocation4 + $0x60] sm:$0xff] %vm1092, %v994
          %1106 = vst.msk [vmem:[#allocation4 + $0x68] sm:$0xff] %vm1092, %v999
          %1107 = vst.msk [vmem:[#allocation4 + $0x70] sm:$0xff] %vm1092, %v1004
          %1108 = vst.msk [vmem:[#allocation4 + $0x78] sm:$0xff] %vm1092, %v1009
          %1109 = vst.msk [vmem:[#allocation4 + $0x80] sm:$0xff] %vm1092, %v1014
          %1110 = vst.msk [vmem:[#allocation4 + $0x88] sm:$0xff] %vm1092, %v1019
          %1111 = vst.msk [vmem:[#allocation4 + $0x90] sm:$0xff] %vm1092, %v1024
          %1112 = vst.msk [vmem:[#allocation4 + $0x98] sm:$0xff] %vm1092, %v1029
          %1113 = vst.msk [vmem:[#allocation4 + $0xa0] sm:$0xff] %vm1092, %v1034
          %1114 = vst.msk [vmem:[#allocation4 + $0xa8] sm:$0xff] %vm1092, %v1039
          %1115 = vst.msk [vmem:[#allocation4 + $0xb0] sm:$0xff] %vm1092, %v1044
          %1116 = vst.msk [vmem:[#allocation4 + $0xb8] sm:$0xff] %vm1092, %v1049
          %1117 = vst.msk [vmem:[#allocation4 + $0xc0] sm:$0xff] %vm1092, %v1054
          %1118 = vst.msk [vmem:[#allocation4 + $0xc8] sm:$0xff] %vm1092, %v1059
          %1119 = vst.msk [vmem:[#allocation4 + $0xd0] sm:$0xff] %vm1092, %v1064
          %1120 = vst.msk [vmem:[#allocation4 + $0xd8] sm:$0xff] %vm1092, %v1069
          %1121 = vst.msk [vmem:[#allocation4 + $0xe0] sm:$0xff] %vm1092, %v1074
          %1122 = vst.msk [vmem:[#allocation4 + $0xe8] sm:$0xff] %vm1092, %v1079
          %1123 = vst.msk [vmem:[#allocation4 + $0xf0] sm:$0xff] %vm1092, %v1084
          %1124 = vst.msk [vmem:[#allocation4 + $0xf8] sm:$0xff] %vm1092, %v1089
          %1125 = vrot.lane.b32.xlu0 %v474, 1
          %v1126 = vpop.permute.xlu0 %1125
          %1127 = vrot.lane.b32.xlu0 %v479, 1
          %v1128 = vpop.permute.xlu0 %1127
          %1129 = vrot.lane.b32.xlu0 %v484, 1
          %v1130 = vpop.permute.xlu0 %1129
          %1131 = vrot.lane.b32.xlu0 %v489, 1
          %v1132 = vpop.permute.xlu0 %1131
          %1133 = vrot.lane.b32.xlu0 %v494, 1
          %v1134 = vpop.permute.xlu0 %1133
          %1135 = vrot.lane.b32.xlu0 %v499, 1
          %v1136 = vpop.permute.xlu0 %1135
          %1137 = vrot.lane.b32.xlu0 %v504, 1
          %v1138 = vpop.permute.xlu0 %1137
          %1139 = vrot.lane.b32.xlu0 %v509, 1
          %v1140 = vpop.permute.xlu0 %1139
          %1141 = vrot.lane.b32.xlu0 %v514, 1
          %v1142 = vpop.permute.xlu0 %1141
          %1143 = vrot.lane.b32.xlu0 %v519, 1
          %v1144 = vpop.permute.xlu0 %1143
          %1145 = vrot.lane.b32.xlu0 %v524, 1
          %v1146 = vpop.permute.xlu0 %1145
          %1147 = vrot.lane.b32.xlu0 %v529, 1
          %v1148 = vpop.permute.xlu0 %1147
          %1149 = vrot.lane.b32.xlu0 %v534, 1
          %v1150 = vpop.permute.xlu0 %1149
          %1151 = vrot.lane.b32.xlu0 %v539, 1
          %v1152 = vpop.permute.xlu0 %1151
          %1153 = vrot.lane.b32.xlu0 %v544, 1
          %v1154 = vpop.permute.xlu0 %1153
          %1155 = vrot.lane.b32.xlu0 %v549, 1
          %v1156 = vpop.permute.xlu0 %1155
          %1157 = vrot.lane.b32.xlu0 %v554, 1
          %v1158 = vpop.permute.xlu0 %1157
          %1159 = vrot.lane.b32.xlu0 %v559, 1
          %v1160 = vpop.permute.xlu0 %1159
          %1161 = vrot.lane.b32.xlu0 %v564, 1
          %v1162 = vpop.permute.xlu0 %1161
          %1163 = vrot.lane.b32.xlu0 %v569, 1
          %v1164 = vpop.permute.xlu0 %1163
          %1165 = vrot.lane.b32.xlu0 %v574, 1
          %v1166 = vpop.permute.xlu0 %1165
          %1167 = vrot.lane.b32.xlu0 %v579, 1
          %v1168 = vpop.permute.xlu0 %1167
          %1169 = vrot.lane.b32.xlu0 %v584, 1
          %v1170 = vpop.permute.xlu0 %1169
          %1171 = vrot.lane.b32.xlu0 %v589, 1
          %v1172 = vpop.permute.xlu0 %1171
          %1173 = vrot.lane.b32.xlu0 %v594, 1
          %v1174 = vpop.permute.xlu0 %1173
          %1175 = vrot.lane.b32.xlu0 %v599, 1
          %v1176 = vpop.permute.xlu0 %1175
          %1177 = vrot.lane.b32.xlu0 %v604, 1
          %v1178 = vpop.permute.xlu0 %1177
          %1179 = vrot.lane.b32.xlu0 %v609, 1
          %v1180 = vpop.permute.xlu0 %1179
          %1181 = vrot.lane.b32.xlu0 %v614, 1
          %v1182 = vpop.permute.xlu0 %1181
          %1183 = vrot.lane.b32.xlu0 %v619, 1
          %v1184 = vpop.permute.xlu0 %1183
          %1185 = vrot.lane.b32.xlu0 %v624, 1
          %v1186 = vpop.permute.xlu0 %1185
          %1187 = vrot.lane.b32.xlu0 %v629, 1
          %v1188 = vpop.permute.xlu0 %1187
          %v1221 = vsel %vm310, %v474, 1.0
          %v1222 = vsel %vm310, %v479, 1.0
          %v1223 = vsel %vm310, %v484, 1.0
          %v1224 = vsel %vm310, %v489, 1.0
          %v1225 = vsel %vm310, %v494, 1.0
          %v1226 = vsel %vm310, %v499, 1.0
          %v1227 = vsel %vm310, %v504, 1.0
          %v1228 = vsel %vm310, %v509, 1.0
          %v1229 = vsel %vm310, %v514, 1.0
          %v1230 = vsel %vm310, %v519, 1.0
          %v1231 = vsel %vm310, %v524, 1.0
          %v1232 = vsel %vm310, %v529, 1.0
          %v1233 = vsel %vm310, %v534, 1.0
          %v1234 = vsel %vm310, %v539, 1.0
          %v1235 = vsel %vm310, %v544, 1.0
          %v1236 = vsel %vm310, %v549, 1.0
          %v1237 = vsel %vm310, %v554, 1.0
          %v1238 = vsel %vm310, %v559, 1.0
          %v1239 = vsel %vm310, %v564, 1.0
          %v1240 = vsel %vm310, %v569, 1.0
          %v1241 = vsel %vm310, %v574, 1.0
          %v1242 = vsel %vm310, %v579, 1.0
          %v1243 = vsel %vm310, %v584, 1.0
          %v1244 = vsel %vm310, %v589, 1.0
          %v1245 = vsel %vm310, %v594, 1.0
          %v1246 = vsel %vm310, %v599, 1.0
          %v1247 = vsel %vm310, %v604, 1.0
          %v1248 = vsel %vm310, %v609, 1.0
          %v1249 = vsel %vm310, %v614, 1.0
          %v1250 = vsel %vm310, %v619, 1.0
          %v1251 = vsel %vm310, %v624, 1.0
          %v1252 = vsel %vm310, %v629, 1.0
          %vm1253 = vcmask 138240
          %v1254 = vsel %vm1253, %v1221, %v1126
          %v1255 = vsel %vm1253, %v1222, %v1128
          %v1256 = vsel %vm1253, %v1223, %v1130
          %v1257 = vsel %vm1253, %v1224, %v1132
          %v1258 = vsel %vm1253, %v1225, %v1134
          %v1259 = vsel %vm1253, %v1226, %v1136
          %v1260 = vsel %vm1253, %v1227, %v1138
          %v1261 = vsel %vm1253, %v1228, %v1140
          %v1262 = vsel %vm1253, %v1229, %v1142
          %v1263 = vsel %vm1253, %v1230, %v1144
          %v1264 = vsel %vm1253, %v1231, %v1146
          %v1265 = vsel %vm1253, %v1232, %v1148
          %v1266 = vsel %vm1253, %v1233, %v1150
          %v1267 = vsel %vm1253, %v1234, %v1152
          %v1268 = vsel %vm1253, %v1235, %v1154
          %v1269 = vsel %vm1253, %v1236, %v1156
          %v1270 = vsel %vm1253, %v1237, %v1158
          %v1271 = vsel %vm1253, %v1238, %v1160
          %v1272 = vsel %vm1253, %v1239, %v1162
          %v1273 = vsel %vm1253, %v1240, %v1164
          %v1274 = vsel %vm1253, %v1241, %v1166
          %v1275 = vsel %vm1253, %v1242, %v1168
          %v1276 = vsel %vm1253, %v1243, %v1170
          %v1277 = vsel %vm1253, %v1244, %v1172
          %v1278 = vsel %vm1253, %v1245, %v1174
          %v1279 = vsel %vm1253, %v1246, %v1176
          %v1280 = vsel %vm1253, %v1247, %v1178
          %v1281 = vsel %vm1253, %v1248, %v1180
          %v1282 = vsel %vm1253, %v1249, %v1182
          %v1283 = vsel %vm1253, %v1250, %v1184
          %v1284 = vsel %vm1253, %v1251, %v1186
          %v1285 = vsel %vm1253, %v1252, %v1188
          %vm1286 = vcmask 269312
          %v1287 = vsel %vm1286, %v1254, 1.0
          %v1288 = vsel %vm1286, %v1255, 1.0
          %v1289 = vsel %vm1286, %v1256, 1.0
          %v1290 = vsel %vm1286, %v1257, 1.0
          %v1291 = vsel %vm1286, %v1258, 1.0
          %v1292 = vsel %vm1286, %v1259, 1.0
          %v1293 = vsel %vm1286, %v1260, 1.0
          %v1294 = vsel %vm1286, %v1261, 1.0
          %v1295 = vsel %vm1286, %v1262, 1.0
          %v1296 = vsel %vm1286, %v1263, 1.0
          %v1297 = vsel %vm1286, %v1264, 1.0
          %v1298 = vsel %vm1286, %v1265, 1.0
          %v1299 = vsel %vm1286, %v1266, 1.0
          %v1300 = vsel %vm1286, %v1267, 1.0
          %v1301 = vsel %vm1286, %v1268, 1.0
          %v1302 = vsel %vm1286, %v1269, 1.0
          %v1303 = vsel %vm1286, %v1270, 1.0
          %v1304 = vsel %vm1286, %v1271, 1.0
          %v1305 = vsel %vm1286, %v1272, 1.0
          %v1306 = vsel %vm1286, %v1273, 1.0
          %v1307 = vsel %vm1286, %v1274, 1.0
          %v1308 = vsel %vm1286, %v1275, 1.0
          %v1309 = vsel %vm1286, %v1276, 1.0
          %v1310 = vsel %vm1286, %v1277, 1.0
          %v1311 = vsel %vm1286, %v1278, 1.0
          %v1312 = vsel %vm1286, %v1279, 1.0
          %v1313 = vsel %vm1286, %v1280, 1.0
          %v1314 = vsel %vm1286, %v1281, 1.0
          %v1315 = vsel %vm1286, %v1282, 1.0
          %v1316 = vsel %vm1286, %v1283, 1.0
          %v1317 = vsel %vm1286, %v1284, 1.0
          %v1318 = vsel %vm1286, %v1285, 1.0
          %v1319 = vpack.c.bf16 %v1288, %v1287
          %v1320 = vpack.c.bf16 %v1290, %v1289
          %v1321 = vpack.c.bf16 %v1292, %v1291
          %v1322 = vpack.c.bf16 %v1294, %v1293
          %v1323 = vpack.c.bf16 %v1296, %v1295
          %v1324 = vpack.c.bf16 %v1298, %v1297
          %v1325 = vpack.c.bf16 %v1300, %v1299
          %v1326 = vpack.c.bf16 %v1302, %v1301
          %v1327 = vpack.c.bf16 %v1304, %v1303
          %v1328 = vpack.c.bf16 %v1306, %v1305
          %v1329 = vpack.c.bf16 %v1308, %v1307
          %v1330 = vpack.c.bf16 %v1310, %v1309
          %v1331 = vpack.c.bf16 %v1312, %v1311
          %v1332 = vpack.c.bf16 %v1314, %v1313
          %v1333 = vpack.c.bf16 %v1316, %v1315
          %v1334 = vpack.c.bf16 %v1318, %v1317
          %vm1335 = vcmask 277504
          %1336 = vst.msk [vmem:[#allocation2] sm:$0xff] %vm1335, %v1319
          %1337 = vst.msk [vmem:[#allocation2 + $0x8] sm:$0xff] %vm1335, %v1320
          %1338 = vst.msk [vmem:[#allocation2 + $0x10] sm:$0xff] %vm1335, %v1321
          %1339 = vst.msk [vmem:[#allocation2 + $0x18] sm:$0xff] %vm1335, %v1322
          %1340 = vst.msk [vmem:[#allocation2 + $0x20] sm:$0xff] %vm1335, %v1323
          %1341 = vst.msk [vmem:[#allocation2 + $0x28] sm:$0xff] %vm1335, %v1324
          %1342 = vst.msk [vmem:[#allocation2 + $0x30] sm:$0xff] %vm1335, %v1325
          %1343 = vst.msk [vmem:[#allocation2 + $0x38] sm:$0xff] %vm1335, %v1326
          %1344 = vst.msk [vmem:[#allocation2 + $0x40] sm:$0xff] %vm1335, %v1327
          %1345 = vst.msk [vmem:[#allocation2 + $0x48] sm:$0xff] %vm1335, %v1328
          %1346 = vst.msk [vmem:[#allocation2 + $0x50] sm:$0xff] %vm1335, %v1329
          %1347 = vst.msk [vmem:[#allocation2 + $0x58] sm:$0xff] %vm1335, %v1330
          %1348 = vst.msk [vmem:[#allocation2 + $0x60] sm:$0xff] %vm1335, %v1331
          %1349 = vst.msk [vmem:[#allocation2 + $0x68] sm:$0xff] %vm1335, %v1332
          %1350 = vst.msk [vmem:[#allocation2 + $0x70] sm:$0xff] %vm1335, %v1333
          %1351 = vst.msk [vmem:[#allocation2 + $0x78] sm:$0xff] %vm1335, %v1334
        $region44: #{conad_forward.5} parent=39 // pred_fallthru
          _
        %v1352 = vld [vmem:[%s261] sm:$0xff]
        %v1353 = vld [vmem:[%s261 + $0x8] sm:$0xff]
        %v1354 = vld [vmem:[%s261 + $0x10] sm:$0xff]
        %v1355 = vld [vmem:[%s261 + $0x18] sm:$0xff]
        %v1356 = vld [vmem:[%s261 + $0x20] sm:$0xff]
        %v1357 = vld [vmem:[%s261 + $0x28] sm:$0xff]
        %v1358 = vld [vmem:[%s261 + $0x30] sm:$0xff]
        %v1359 = vld [vmem:[%s261 + $0x38] sm:$0xff]
        %v1360 = vld [vmem:[%s261 + $0x40] sm:$0xff]
        %v1361 = vld [vmem:[%s261 + $0x48] sm:$0xff]
        %v1362 = vld [vmem:[%s261 + $0x50] sm:$0xff]
        %v1363 = vld [vmem:[%s261 + $0x58] sm:$0xff]
        %v1364 = vld [vmem:[%s261 + $0x60] sm:$0xff]
        %v1365 = vld [vmem:[%s261 + $0x68] sm:$0xff]
        %v1366 = vld [vmem:[%s261 + $0x70] sm:$0xff]
        %v1367 = vld [vmem:[%s261 + $0x78] sm:$0xff]
        %v1368 = vld [vmem:[%s261 + $0x80] sm:$0xff]
        %v1369 = vld [vmem:[%s261 + $0x88] sm:$0xff]
        %v1370 = vld [vmem:[%s261 + $0x90] sm:$0xff]
        %v1371 = vld [vmem:[%s261 + $0x98] sm:$0xff]
        %v1372 = vld [vmem:[%s261 + $0xa0] sm:$0xff]
        %v1373 = vld [vmem:[%s261 + $0xa8] sm:$0xff]
        %v1374 = vld [vmem:[%s261 + $0xb0] sm:$0xff]
        %v1375 = vld [vmem:[%s261 + $0xb8] sm:$0xff]
        %v1376 = vld [vmem:[%s261 + $0xc0] sm:$0xff]
        %v1377 = vld [vmem:[%s261 + $0xc8] sm:$0xff]
        %v1378 = vld [vmem:[%s261 + $0xd0] sm:$0xff]
        %v1379 = vld [vmem:[%s261 + $0xd8] sm:$0xff]
        %v1380 = vld [vmem:[%s261 + $0xe0] sm:$0xff]
        %v1381 = vld [vmem:[%s261 + $0xe8] sm:$0xff]
        %v1382 = vld [vmem:[%s261 + $0xf0] sm:$0xff]
        %v1383 = vld [vmem:[%s261 + $0xf8] sm:$0xff]
        %vm1384 = vcmp.gt.f32.partialorder %v1352, 0.0
        %vm1385 = vcmp.gt.f32.partialorder %v1353, 0.0
        %vm1386 = vcmp.gt.f32.partialorder %v1354, 0.0
        %vm1387 = vcmp.gt.f32.partialorder %v1355, 0.0
        %vm1388 = vcmp.gt.f32.partialorder %v1356, 0.0
        %vm1389 = vcmp.gt.f32.partialorder %v1357, 0.0
        %vm1390 = vcmp.gt.f32.partialorder %v1358, 0.0
        %vm1391 = vcmp.gt.f32.partialorder %v1359, 0.0
        %vm1392 = vcmp.gt.f32.partialorder %v1360, 0.0
        %vm1393 = vcmp.gt.f32.partialorder %v1361, 0.0
        %vm1394 = vcmp.gt.f32.partialorder %v1362, 0.0
        %vm1395 = vcmp.gt.f32.partialorder %v1363, 0.0
        %vm1396 = vcmp.gt.f32.partialorder %v1364, 0.0
        %vm1397 = vcmp.gt.f32.partialorder %v1365, 0.0
        %vm1398 = vcmp.gt.f32.partialorder %v1366, 0.0
        %vm1399 = vcmp.gt.f32.partialorder %v1367, 0.0
        %vm1400 = vcmp.gt.f32.partialorder %v1368, 0.0
        %vm1401 = vcmp.gt.f32.partialorder %v1369, 0.0
        %vm1402 = vcmp.gt.f32.partialorder %v1370, 0.0
        %vm1403 = vcmp.gt.f32.partialorder %v1371, 0.0
        %vm1404 = vcmp.gt.f32.partialorder %v1372, 0.0
        %vm1405 = vcmp.gt.f32.partialorder %v1373, 0.0
        %vm1406 = vcmp.gt.f32.partialorder %v1374, 0.0
        %vm1407 = vcmp.gt.f32.partialorder %v1375, 0.0
        %vm1408 = vcmp.gt.f32.partialorder %v1376, 0.0
        %vm1409 = vcmp.gt.f32.partialorder %v1377, 0.0
        %vm1410 = vcmp.gt.f32.partialorder %v1378, 0.0
        %vm1411 = vcmp.gt.f32.partialorder %v1379, 0.0
        %vm1412 = vcmp.gt.f32.partialorder %v1380, 0.0
        %vm1413 = vcmp.gt.f32.partialorder %v1381, 0.0
        %vm1414 = vcmp.gt.f32.partialorder %v1382, 0.0
        %vm1415 = vcmp.gt.f32.partialorder %v1383, 0.0
        %v1416 = vld [vmem:[#allocation3] sm:$0xf]
        %s1417 = scalar_lea.vmem [#allocation4], %s271
        %v1418 = vld [vmem:[%s1417] sm:$0xff]
        %v1419 = vld [vmem:[%s1417 + $0x8] sm:$0xff]
        %v1420 = vld [vmem:[%s1417 + $0x10] sm:$0xff]
        %v1421 = vld [vmem:[%s1417 + $0x18] sm:$0xff]
        %v1422 = vld [vmem:[%s1417 + $0x20] sm:$0xff]
        %v1423 = vld [vmem:[%s1417 + $0x28] sm:$0xff]
        %v1424 = vld [vmem:[%s1417 + $0x30] sm:$0xff]
        %v1425 = vld [vmem:[%s1417 + $0x38] sm:$0xff]
        %v1426 = vld [vmem:[%s1417 + $0x40] sm:$0xff]
        %v1427 = vld [vmem:[%s1417 + $0x48] sm:$0xff]
        %v1428 = vld [vmem:[%s1417 + $0x50] sm:$0xff]
        %v1429 = vld [vmem:[%s1417 + $0x58] sm:$0xff]
        %v1430 = vld [vmem:[%s1417 + $0x60] sm:$0xff]
        %v1431 = vld [vmem:[%s1417 + $0x68] sm:$0xff]
        %v1432 = vld [vmem:[%s1417 + $0x70] sm:$0xff]
        %v1433 = vld [vmem:[%s1417 + $0x78] sm:$0xff]
        %1435 = vset.pattern.permute.xlu0 0
        %1436 = vperm.xlu0 %1435, %v1418
        %v1437 = vpop.permute.xlu0 %1436
        %1440 = vset.pattern.permute.xlu0 0
        %1441 = vperm.xlu0 %1440, %v1419
        %v1442 = vpop.permute.xlu0 %1441
        %1445 = vset.pattern.permute.xlu0 0
        %1446 = vperm.xlu0 %1445, %v1420
        %v1447 = vpop.permute.xlu0 %1446
        %1450 = vset.pattern.permute.xlu0 0
        %1451 = vperm.xlu0 %1450, %v1421
        %v1452 = vpop.permute.xlu0 %1451
        %1455 = vset.pattern.permute.xlu0 0
        %1456 = vperm.xlu0 %1455, %v1422
        %v1457 = vpop.permute.xlu0 %1456
        %1460 = vset.pattern.permute.xlu0 0
        %1461 = vperm.xlu0 %1460, %v1423
        %v1462 = vpop.permute.xlu0 %1461
        %1465 = vset.pattern.permute.xlu0 0
        %1466 = vperm.xlu0 %1465, %v1424
        %v1467 = vpop.permute.xlu0 %1466
        %1470 = vset.pattern.permute.xlu0 0
        %1471 = vperm.xlu0 %1470, %v1425
        %v1472 = vpop.permute.xlu0 %1471
        %1475 = vset.pattern.permute.xlu0 0
        %1476 = vperm.xlu0 %1475, %v1426
        %v1477 = vpop.permute.xlu0 %1476
        %1480 = vset.pattern.permute.xlu0 0
        %1481 = vperm.xlu0 %1480, %v1427
        %v1482 = vpop.permute.xlu0 %1481
        %1485 = vset.pattern.permute.xlu0 0
        %1486 = vperm.xlu0 %1485, %v1428
        %v1487 = vpop.permute.xlu0 %1486
        %1490 = vset.pattern.permute.xlu0 0
        %1491 = vperm.xlu0 %1490, %v1429
        %v1492 = vpop.permute.xlu0 %1491
        %1495 = vset.pattern.permute.xlu0 0
        %1496 = vperm.xlu0 %1495, %v1430
        %v1497 = vpop.permute.xlu0 %1496
        %1500 = vset.pattern.permute.xlu0 0
        %1501 = vperm.xlu0 %1500, %v1431
        %v1502 = vpop.permute.xlu0 %1501
        %1505 = vset.pattern.permute.xlu0 0
        %1506 = vperm.xlu0 %1505, %v1432
        %v1507 = vpop.permute.xlu0 %1506
        %1510 = vset.pattern.permute.xlu0 0
        %1511 = vperm.xlu0 %1510, %v1433
        %v1512 = vpop.permute.xlu0 %1511
        %v1515 = vlaneseq
        %v1516 = vshrl.u32 %v1515, 7
        %v1517 = vsub.s32 0, %v1516
        %v1518 = vrot.slane %v1416, %v1517
        %v1519 = vlaneseq
        %v1520 = vshrl.u32 %v1519, 7
        %v1521 = vsub.s32 2, %v1520
        %v1522 = vrot.slane %v1416, %v1521
        %v1525 = vlaneseq
        %v1526 = vshrl.u32 %v1525, 7
        %v1527 = vsub.s32 0, %v1526
        %v1528 = vrot.slane %v1518, %v1527
        %v1529 = vlaneseq
        %v1530 = vshrl.u32 %v1529, 7
        %v1531 = vsub.s32 0, %v1530
        %v1532 = vrot.slane %v1522, %v1531
        %v1533 = vadd.f32 %v1437, %v1528
        %v1534 = vadd.f32 %v1437, %v1532
        %v1535 = vadd.f32 %v1442, %v1528
        %v1536 = vadd.f32 %v1442, %v1532
        %v1537 = vadd.f32 %v1447, %v1528
        %v1538 = vadd.f32 %v1447, %v1532
        %v1539 = vadd.f32 %v1452, %v1528
        %v1540 = vadd.f32 %v1452, %v1532
        %v1541 = vadd.f32 %v1457, %v1528
        %v1542 = vadd.f32 %v1457, %v1532
        %v1543 = vadd.f32 %v1462, %v1528
        %v1544 = vadd.f32 %v1462, %v1532
        %v1545 = vadd.f32 %v1467, %v1528
        %v1546 = vadd.f32 %v1467, %v1532
        %v1547 = vadd.f32 %v1472, %v1528
        %v1548 = vadd.f32 %v1472, %v1532
        %v1549 = vadd.f32 %v1477, %v1528
        %v1550 = vadd.f32 %v1477, %v1532
        %v1551 = vadd.f32 %v1482, %v1528
        %v1552 = vadd.f32 %v1482, %v1532
        %v1553 = vadd.f32 %v1487, %v1528
        %v1554 = vadd.f32 %v1487, %v1532
        %v1555 = vadd.f32 %v1492, %v1528
        %v1556 = vadd.f32 %v1492, %v1532
        %v1557 = vadd.f32 %v1497, %v1528
        %v1558 = vadd.f32 %v1497, %v1532
        %v1559 = vadd.f32 %v1502, %v1528
        %v1560 = vadd.f32 %v1502, %v1532
        %v1561 = vadd.f32 %v1507, %v1528
        %v1562 = vadd.f32 %v1507, %v1532
        %v1563 = vadd.f32 %v1512, %v1528
        %v1564 = vadd.f32 %v1512, %v1532
        %vm1565 = vcmp.gt.f32.partialorder %v1533, 0.0
        %vm1566 = vcmp.gt.f32.partialorder %v1534, 0.0
        %vm1567 = vcmp.gt.f32.partialorder %v1535, 0.0
        %vm1568 = vcmp.gt.f32.partialorder %v1536, 0.0
        %vm1569 = vcmp.gt.f32.partialorder %v1537, 0.0
        %vm1570 = vcmp.gt.f32.partialorder %v1538, 0.0
        %vm1571 = vcmp.gt.f32.partialorder %v1539, 0.0
        %vm1572 = vcmp.gt.f32.partialorder %v1540, 0.0
        %vm1573 = vcmp.gt.f32.partialorder %v1541, 0.0
        %vm1574 = vcmp.gt.f32.partialorder %v1542, 0.0
        %vm1575 = vcmp.gt.f32.partialorder %v1543, 0.0
        %vm1576 = vcmp.gt.f32.partialorder %v1544, 0.0
        %vm1577 = vcmp.gt.f32.partialorder %v1545, 0.0
        %vm1578 = vcmp.gt.f32.partialorder %v1546, 0.0
        %vm1579 = vcmp.gt.f32.partialorder %v1547, 0.0
        %vm1580 = vcmp.gt.f32.partialorder %v1548, 0.0
        %vm1581 = vcmp.gt.f32.partialorder %v1549, 0.0
        %vm1582 = vcmp.gt.f32.partialorder %v1550, 0.0
        %vm1583 = vcmp.gt.f32.partialorder %v1551, 0.0
        %vm1584 = vcmp.gt.f32.partialorder %v1552, 0.0
        %vm1585 = vcmp.gt.f32.partialorder %v1553, 0.0
        %vm1586 = vcmp.gt.f32.partialorder %v1554, 0.0
        %vm1587 = vcmp.gt.f32.partialorder %v1555, 0.0
        %vm1588 = vcmp.gt.f32.partialorder %v1556, 0.0
        %vm1589 = vcmp.gt.f32.partialorder %v1557, 0.0
        %vm1590 = vcmp.gt.f32.partialorder %v1558, 0.0
        %vm1591 = vcmp.gt.f32.partialorder %v1559, 0.0
        %vm1592 = vcmp.gt.f32.partialorder %v1560, 0.0
        %vm1593 = vcmp.gt.f32.partialorder %v1561, 0.0
        %vm1594 = vcmp.gt.f32.partialorder %v1562, 0.0
        %vm1595 = vcmp.gt.f32.partialorder %v1563, 0.0
        %vm1596 = vcmp.gt.f32.partialorder %v1564, 0.0
        %v1597 = vmul.f32 %v1533, 0.2
        %v1598 = vmul.f32 %v1534, 0.2
        %v1599 = vmul.f32 %v1535, 0.2
        %v1600 = vmul.f32 %v1536, 0.2
        %v1601 = vmul.f32 %v1537, 0.2
        %v1602 = vmul.f32 %v1538, 0.2
        %v1603 = vmul.f32 %v1539, 0.2
        %v1604 = vmul.f32 %v1540, 0.2
        %v1605 = vmul.f32 %v1541, 0.2
        %v1606 = vmul.f32 %v1542, 0.2
        %v1607 = vmul.f32 %v1543, 0.2
        %v1608 = vmul.f32 %v1544, 0.2
        %v1609 = vmul.f32 %v1545, 0.2
        %v1610 = vmul.f32 %v1546, 0.2
        %v1611 = vmul.f32 %v1547, 0.2
        %v1612 = vmul.f32 %v1548, 0.2
        %v1613 = vmul.f32 %v1549, 0.2
        %v1614 = vmul.f32 %v1550, 0.2
        %v1615 = vmul.f32 %v1551, 0.2
        %v1616 = vmul.f32 %v1552, 0.2
        %v1617 = vmul.f32 %v1553, 0.2
        %v1618 = vmul.f32 %v1554, 0.2
        %v1619 = vmul.f32 %v1555, 0.2
        %v1620 = vmul.f32 %v1556, 0.2
        %v1621 = vmul.f32 %v1557, 0.2
        %v1622 = vmul.f32 %v1558, 0.2
        %v1623 = vmul.f32 %v1559, 0.2
        %v1624 = vmul.f32 %v1560, 0.2
        %v1625 = vmul.f32 %v1561, 0.2
        %v1626 = vmul.f32 %v1562, 0.2
        %v1627 = vmul.f32 %v1563, 0.2
        %v1628 = vmul.f32 %v1564, 0.2
        %v1629 = vsel %vm1565, %v1533, %v1597
        %v1630 = vsel %vm1566, %v1534, %v1598
        %v1631 = vsel %vm1567, %v1535, %v1599
        %v1632 = vsel %vm1568, %v1536, %v1600
        %v1633 = vsel %vm1569, %v1537, %v1601
        %v1634 = vsel %vm1570, %v1538, %v1602
        %v1635 = vsel %vm1571, %v1539, %v1603
        %v1636 = vsel %vm1572, %v1540, %v1604
        %v1637 = vsel %vm1573, %v1541, %v1605
        %v1638 = vsel %vm1574, %v1542, %v1606
        %v1639 = vsel %vm1575, %v1543, %v1607
        %v1640 = vsel %vm1576, %v1544, %v1608
        %v1641 = vsel %vm1577, %v1545, %v1609
        %v1642 = vsel %vm1578, %v1546, %v1610
        %v1643 = vsel %vm1579, %v1547, %v1611
        %v1644 = vsel %vm1580, %v1548, %v1612
        %v1645 = vsel %vm1581, %v1549, %v1613
        %v1646 = vsel %vm1582, %v1550, %v1614
        %v1647 = vsel %vm1583, %v1551, %v1615
        %v1648 = vsel %vm1584, %v1552, %v1616
        %v1649 = vsel %vm1585, %v1553, %v1617
        %v1650 = vsel %vm1586, %v1554, %v1618
        %v1651 = vsel %vm1587, %v1555, %v1619
        %v1652 = vsel %vm1588, %v1556, %v1620
        %v1653 = vsel %vm1589, %v1557, %v1621
        %v1654 = vsel %vm1590, %v1558, %v1622
        %v1655 = vsel %vm1591, %v1559, %v1623
        %v1656 = vsel %vm1592, %v1560, %v1624
        %v1657 = vsel %vm1593, %v1561, %v1625
        %v1658 = vsel %vm1594, %v1562, %v1626
        %v1659 = vsel %vm1595, %v1563, %v1627
        %v1660 = vsel %vm1596, %v1564, %v1628
        %v1661 = vsel %vm1384, %v1629, -1e+30
        %v1662 = vsel %vm1385, %v1630, -1e+30
        %v1663 = vsel %vm1386, %v1631, -1e+30
        %v1664 = vsel %vm1387, %v1632, -1e+30
        %v1665 = vsel %vm1388, %v1633, -1e+30
        %v1666 = vsel %vm1389, %v1634, -1e+30
        %v1667 = vsel %vm1390, %v1635, -1e+30
        %v1668 = vsel %vm1391, %v1636, -1e+30
        %v1669 = vsel %vm1392, %v1637, -1e+30
        %v1670 = vsel %vm1393, %v1638, -1e+30
        %v1671 = vsel %vm1394, %v1639, -1e+30
        %v1672 = vsel %vm1395, %v1640, -1e+30
        %v1673 = vsel %vm1396, %v1641, -1e+30
        %v1674 = vsel %vm1397, %v1642, -1e+30
        %v1675 = vsel %vm1398, %v1643, -1e+30
        %v1676 = vsel %vm1399, %v1644, -1e+30
        %v1677 = vsel %vm1400, %v1645, -1e+30
        %v1678 = vsel %vm1401, %v1646, -1e+30
        %v1679 = vsel %vm1402, %v1647, -1e+30
        %v1680 = vsel %vm1403, %v1648, -1e+30
        %v1681 = vsel %vm1404, %v1649, -1e+30
        %v1682 = vsel %vm1405, %v1650, -1e+30
        %v1683 = vsel %vm1406, %v1651, -1e+30
        %v1684 = vsel %vm1407, %v1652, -1e+30
        %v1685 = vsel %vm1408, %v1653, -1e+30
        %v1686 = vsel %vm1409, %v1654, -1e+30
        %v1687 = vsel %vm1410, %v1655, -1e+30
        %v1688 = vsel %vm1411, %v1656, -1e+30
        %v1689 = vsel %vm1412, %v1657, -1e+30
        %v1690 = vsel %vm1413, %v1658, -1e+30
        %v1691 = vsel %vm1414, %v1659, -1e+30
        %v1692 = vsel %vm1415, %v1660, -1e+30
        %v1693 = vmax.f32 %v1661, %v1662
        %1694 = vmax.xlane.f32.xlu0 %v1693
        %v1695 = vpop.xlane.xlu0 %1694
        %v1696 = vmax.f32 %v1663, %v1664
        %1697 = vmax.xlane.f32.xlu0 %v1696
        %v1698 = vpop.xlane.xlu0 %1697
        %v1699 = vmax.f32 %v1665, %v1666
        %1700 = vmax.xlane.f32.xlu0 %v1699
        %v1701 = vpop.xlane.xlu0 %1700
        %v1702 = vmax.f32 %v1667, %v1668
        %1703 = vmax.xlane.f32.xlu0 %v1702
        %v1704 = vpop.xlane.xlu0 %1703
        %v1705 = vmax.f32 %v1669, %v1670
        %1706 = vmax.xlane.f32.xlu0 %v1705
        %v1707 = vpop.xlane.xlu0 %1706
        %v1708 = vmax.f32 %v1671, %v1672
        %1709 = vmax.xlane.f32.xlu0 %v1708
        %v1710 = vpop.xlane.xlu0 %1709
        %v1711 = vmax.f32 %v1673, %v1674
        %1712 = vmax.xlane.f32.xlu0 %v1711
        %v1713 = vpop.xlane.xlu0 %1712
        %v1714 = vmax.f32 %v1675, %v1676
        %1715 = vmax.xlane.f32.xlu0 %v1714
        %v1716 = vpop.xlane.xlu0 %1715
        %v1717 = vmax.f32 %v1677, %v1678
        %1718 = vmax.xlane.f32.xlu0 %v1717
        %v1719 = vpop.xlane.xlu0 %1718
        %v1720 = vmax.f32 %v1679, %v1680
        %1721 = vmax.xlane.f32.xlu0 %v1720
        %v1722 = vpop.xlane.xlu0 %1721
        %v1723 = vmax.f32 %v1681, %v1682
        %1724 = vmax.xlane.f32.xlu0 %v1723
        %v1725 = vpop.xlane.xlu0 %1724
        %v1726 = vmax.f32 %v1683, %v1684
        %1727 = vmax.xlane.f32.xlu0 %v1726
        %v1728 = vpop.xlane.xlu0 %1727
        %v1729 = vmax.f32 %v1685, %v1686
        %1730 = vmax.xlane.f32.xlu0 %v1729
        %v1731 = vpop.xlane.xlu0 %1730
        %v1732 = vmax.f32 %v1687, %v1688
        %1733 = vmax.xlane.f32.xlu0 %v1732
        %v1734 = vpop.xlane.xlu0 %1733
        %v1735 = vmax.f32 %v1689, %v1690
        %1736 = vmax.xlane.f32.xlu0 %v1735
        %v1737 = vpop.xlane.xlu0 %1736
        %v1738 = vmax.f32 %v1691, %v1692
        %1739 = vmax.xlane.f32.xlu0 %v1738
        %v1740 = vpop.xlane.xlu0 %1739
        %v1741 = vsub.f32 %v1661, %v1695
        %v1742 = vsub.f32 %v1662, %v1695
        %v1743 = vsub.f32 %v1663, %v1698
        %v1744 = vsub.f32 %v1664, %v1698
        %v1745 = vsub.f32 %v1665, %v1701
        %v1746 = vsub.f32 %v1666, %v1701
        %v1747 = vsub.f32 %v1667, %v1704
        %v1748 = vsub.f32 %v1668, %v1704
        %v1749 = vsub.f32 %v1669, %v1707
        %v1750 = vsub.f32 %v1670, %v1707
        %v1751 = vsub.f32 %v1671, %v1710
        %v1752 = vsub.f32 %v1672, %v1710
        %v1753 = vsub.f32 %v1673, %v1713
        %v1754 = vsub.f32 %v1674, %v1713
        %v1755 = vsub.f32 %v1675, %v1716
        %v1756 = vsub.f32 %v1676, %v1716
        %v1757 = vsub.f32 %v1677, %v1719
        %v1758 = vsub.f32 %v1678, %v1719
        %v1759 = vsub.f32 %v1679, %v1722
        %v1760 = vsub.f32 %v1680, %v1722
        %v1761 = vsub.f32 %v1681, %v1725
        %v1762 = vsub.f32 %v1682, %v1725
        %v1763 = vsub.f32 %v1683, %v1728
        %v1764 = vsub.f32 %v1684, %v1728
        %v1765 = vsub.f32 %v1685, %v1731
        %v1766 = vsub.f32 %v1686, %v1731
        %v1767 = vsub.f32 %v1687, %v1734
        %v1768 = vsub.f32 %v1688, %v1734
        %v1769 = vsub.f32 %v1689, %v1737
        %v1770 = vsub.f32 %v1690, %v1737
        %v1771 = vsub.f32 %v1691, %v1740
        %v1772 = vsub.f32 %v1692, %v1740
        %v1773 = vmul.f32 %v1741, 1.442695
        %v1774 = vpow.pop %v1773
        %v1775 = vmul.f32 %v1742, 1.442695
        %v1776 = vpow.pop %v1775
        %v1777 = vmul.f32 %v1743, 1.442695
        %v1778 = vpow.pop %v1777
        %v1779 = vmul.f32 %v1744, 1.442695
        %v1780 = vpow.pop %v1779
        %v1781 = vmul.f32 %v1745, 1.442695
        %v1782 = vpow.pop %v1781
        %v1783 = vmul.f32 %v1746, 1.442695
        %v1784 = vpow.pop %v1783
        %v1785 = vmul.f32 %v1747, 1.442695
        %v1786 = vpow.pop %v1785
        %v1787 = vmul.f32 %v1748, 1.442695
        %v1788 = vpow.pop %v1787
        %v1789 = vmul.f32 %v1749, 1.442695
        %v1790 = vpow.pop %v1789
        %v1791 = vmul.f32 %v1750, 1.442695
        %v1792 = vpow.pop %v1791
        %v1793 = vmul.f32 %v1751, 1.442695
        %v1794 = vpow.pop %v1793
        %v1795 = vmul.f32 %v1752, 1.442695
        %v1796 = vpow.pop %v1795
        %v1797 = vmul.f32 %v1753, 1.442695
        %v1798 = vpow.pop %v1797
        %v1799 = vmul.f32 %v1754, 1.442695
        %v1800 = vpow.pop %v1799
        %v1801 = vmul.f32 %v1755, 1.442695
        %v1802 = vpow.pop %v1801
        %v1803 = vmul.f32 %v1756, 1.442695
        %v1804 = vpow.pop %v1803
        %v1805 = vmul.f32 %v1757, 1.442695
        %v1806 = vpow.pop %v1805
        %v1807 = vmul.f32 %v1758, 1.442695
        %v1808 = vpow.pop %v1807
        %v1809 = vmul.f32 %v1759, 1.442695
        %v1810 = vpow.pop %v1809
        %v1811 = vmul.f32 %v1760, 1.442695
        %v1812 = vpow.pop %v1811
        %v1813 = vmul.f32 %v1761, 1.442695
        %v1814 = vpow.pop %v1813
        %v1815 = vmul.f32 %v1762, 1.442695
        %v1816 = vpow.pop %v1815
        %v1817 = vmul.f32 %v1763, 1.442695
        %v1818 = vpow.pop %v1817
        %v1819 = vmul.f32 %v1764, 1.442695
        %v1820 = vpow.pop %v1819
        %v1821 = vmul.f32 %v1765, 1.442695
        %v1822 = vpow.pop %v1821
        %v1823 = vmul.f32 %v1766, 1.442695
        %v1824 = vpow.pop %v1823
        %v1825 = vmul.f32 %v1767, 1.442695
        %v1826 = vpow.pop %v1825
        %v1827 = vmul.f32 %v1768, 1.442695
        %v1828 = vpow.pop %v1827
        %v1829 = vmul.f32 %v1769, 1.442695
        %v1830 = vpow.pop %v1829
        %v1831 = vmul.f32 %v1770, 1.442695
        %v1832 = vpow.pop %v1831
        %v1833 = vmul.f32 %v1771, 1.442695
        %v1834 = vpow.pop %v1833
        %v1835 = vmul.f32 %v1772, 1.442695
        %v1836 = vpow.pop %v1835
        %v1837 = vpack.c.bf16 %v1778, %v1774
        %v1838 = vpack.c.bf16 %v1780, %v1776
        %v1839 = vpack.c.bf16 %v1786, %v1782
        %v1840 = vpack.c.bf16 %v1788, %v1784
        %v1841 = vpack.c.bf16 %v1794, %v1790
        %v1842 = vpack.c.bf16 %v1796, %v1792
        %v1843 = vpack.c.bf16 %v1802, %v1798
        %v1844 = vpack.c.bf16 %v1804, %v1800
        %v1845 = vpack.c.bf16 %v1810, %v1806
        %v1846 = vpack.c.bf16 %v1812, %v1808
        %v1847 = vpack.c.bf16 %v1818, %v1814
        %v1848 = vpack.c.bf16 %v1820, %v1816
        %v1849 = vpack.c.bf16 %v1826, %v1822
        %v1850 = vpack.c.bf16 %v1828, %v1824
        %v1851 = vpack.c.bf16 %v1834, %v1830
        %v1852 = vpack.c.bf16 %v1836, %v1832
        %v1853 = vld [vmem:[#allocation2] sm:$0xff]
        %v1854 = vld [vmem:[#allocation2 + $0x8] sm:$0xff]
        %v1855 = vld [vmem:[#allocation2 + $0x10] sm:$0xff]
        %v1856 = vld [vmem:[#allocation2 + $0x18] sm:$0xff]
        %v1857 = vld [vmem:[#allocation2 + $0x20] sm:$0xff]
        %v1858 = vld [vmem:[#allocation2 + $0x28] sm:$0xff]
        %v1859 = vld [vmem:[#allocation2 + $0x30] sm:$0xff]
        %v1860 = vld [vmem:[#allocation2 + $0x38] sm:$0xff]
        %v1861 = vld [vmem:[#allocation2 + $0x40] sm:$0xff]
        %v1862 = vld [vmem:[#allocation2 + $0x48] sm:$0xff]
        %v1863 = vld [vmem:[#allocation2 + $0x50] sm:$0xff]
        %v1864 = vld [vmem:[#allocation2 + $0x58] sm:$0xff]
        %v1865 = vld [vmem:[#allocation2 + $0x60] sm:$0xff]
        %v1866 = vld [vmem:[#allocation2 + $0x68] sm:$0xff]
        %v1867 = vld [vmem:[#allocation2 + $0x70] sm:$0xff]
        %v1868 = vld [vmem:[#allocation2 + $0x78] sm:$0xff]
        %1869 = vmatprep.subr.bf16.mxu0 0
        %1870 = vmatpush1.bf16.msra.mxu0 %v1853
        %1871 = vmatprep.subr.bf16.mxu0 0
        %1872 = vmatpush1.bf16.msra.mxu0 %v1854
        %1873 = vmatprep.subr.bf16.mxu0 0
        %1874 = vmatpush1.bf16.msra.mxu0 %v1855
        %1875 = vmatprep.subr.bf16.mxu0 0
        %1876 = vmatpush1.bf16.msra.mxu0 %v1856
        %1877 = vmatprep.subr.bf16.mxu0 0
        %1878 = vmatpush1.bf16.msra.mxu0 %v1857
        %1879 = vmatprep.subr.bf16.mxu0 0
        %1880 = vmatpush1.bf16.msra.mxu0 %v1858
        %1881 = vmatprep.subr.bf16.mxu0 0
        %1882 = vmatpush1.bf16.msra.mxu0 %v1859
        %1883 = vmatprep.subr.bf16.mxu0 0
        %1884 = vmatpush1.bf16.msra.mxu0 %v1860
        %1885 = vmatprep.subr.bf16.mxu0 0
        %1886 = vmatpush1.bf16.msra.mxu0 %v1861
        %1887 = vmatprep.subr.bf16.mxu0 0
        %1888 = vmatpush1.bf16.msra.mxu0 %v1862
        %1889 = vmatprep.subr.bf16.mxu0 0
        %1890 = vmatpush1.bf16.msra.mxu0 %v1863
        %1891 = vmatprep.subr.bf16.mxu0 0
        %1892 = vmatpush1.bf16.msra.mxu0 %v1864
        %1893 = vmatprep.subr.bf16.mxu0 0
        %1894 = vmatpush1.bf16.msra.mxu0 %v1865
        %1895 = vmatprep.subr.bf16.mxu0 0
        %1896 = vmatpush1.bf16.msra.mxu0 %v1866
        %1897 = vmatprep.subr.bf16.mxu0 0
        %1898 = vmatpush1.bf16.msra.mxu0 %v1867
        %1899 = vmatprep.subr.bf16.mxu0 0
        %1900 = vmatpush1.bf16.msra.mxu0 %v1868
        %1901 = vmatprep.mubr.bf16.mxu0 %v1838
        %1902 = vmatmul.mubr.bf16.gmra.mrb[0].mxu0 %v1837
        %v1903 = vpop.f32.mrb[0].mxu0
        %v1904 = vadd.f32 0.0, %v1903
        %v1905 = vpop.f32.mrb[0].mxu0
        %v1906 = vpop.f32.mrb[0].mxu0
        %v1907 = vadd.f32 0.0, %v1906
        %v1908 = vpop.f32.mrb[0].mxu0
        %1909 = vmatprep.mubr.bf16.mxu0 %v1840
        %1910 = vmatmul.mubr.bf16.gmra.mrb[0].mxu0 %v1839
        %v1911 = vpop.f32.mrb[0].mxu0
        %v1912 = vadd.f32 0.0, %v1911
        %v1913 = vpop.f32.mrb[0].mxu0
        %v1914 = vpop.f32.mrb[0].mxu0
        %v1915 = vadd.f32 0.0, %v1914
        %v1916 = vpop.f32.mrb[0].mxu0
        %1917 = vmatprep.mubr.bf16.mxu0 %v1842
        %1918 = vmatmul.mubr.bf16.gmra.mrb[0].mxu0 %v1841
        %v1919 = vpop.f32.mrb[0].mxu0
        %v1920 = vadd.f32 0.0, %v1919
        %v1921 = vpop.f32.mrb[0].mxu0
        %v1922 = vpop.f32.mrb[0].mxu0
        %v1923 = vadd.f32 0.0, %v1922
        %v1924 = vpop.f32.mrb[0].mxu0
        %1925 = vmatprep.mubr.bf16.mxu0 %v1844
        %1926 = vmatmul.mubr.bf16.gmra.mrb[0].mxu0 %v1843
        %v1927 = vpop.f32.mrb[0].mxu0
        %v1928 = vadd.f32 0.0, %v1927
        %v1929 = vpop.f32.mrb[0].mxu0
        %v1930 = vpop.f32.mrb[0].mxu0
        %v1931 = vadd.f32 0.0, %v1930
        %v1932 = vpop.f32.mrb[0].mxu0
        %1933 = vmatprep.mubr.bf16.mxu0 %v1846
        %1934 = vmatmul.mubr.bf16.gmra.mrb[0].mxu0 %v1845
        %v1935 = vpop.f32.mrb[0].mxu0
        %v1936 = vadd.f32 0.0, %v1935
        %v1937 = vpop.f32.mrb[0].mxu0
        %v1938 = vpop.f32.mrb[0].mxu0
        %v1939 = vadd.f32 0.0, %v1938
        %v1940 = vpop.f32.mrb[0].mxu0
        %1941 = vmatprep.mubr.bf16.mxu0 %v1848
        %1942 = vmatmul.mubr.bf16.gmra.mrb[0].mxu0 %v1847
        %v1943 = vpop.f32.mrb[0].mxu0
        %v1944 = vadd.f32 0.0, %v1943
        %v1945 = vpop.f32.mrb[0].mxu0
        %v1946 = vpop.f32.mrb[0].mxu0
        %v1947 = vadd.f32 0.0, %v1946
        %v1948 = vpop.f32.mrb[0].mxu0
        %1949 = vmatprep.mubr.bf16.mxu0 %v1850
        %1950 = vmatmul.mubr.bf16.gmra.mrb[0].mxu0 %v1849
        %v1951 = vpop.f32.mrb[0].mxu0
        %v1952 = vadd.f32 0.0, %v1951
        %v1953 = vpop.f32.mrb[0].mxu0
        %v1954 = vpop.f32.mrb[0].mxu0
        %v1955 = vadd.f32 0.0, %v1954
        %v1956 = vpop.f32.mrb[0].mxu0
        %1957 = vmatprep.mubr.bf16.mxu0 %v1852
        %1958 = vmatmul.mubr.bf16.gmra.mrb[0].mxu0 %v1851
        %v1959 = vpop.f32.mrb[0].mxu0
        %v1960 = vadd.f32 0.0, %v1959
        %v1961 = vpop.f32.mrb[0].mxu0
        %v1962 = vpop.f32.mrb[0].mxu0
        %v1963 = vadd.f32 0.0, %v1962
        %v1964 = vpop.f32.mrb[0].mxu0
        %1965 = vdwg.mxu0
        %v1966 = vrcp.pop %v1904
        %v1967 = vrcp.pop %v1907
        %v1968 = vrcp.pop %v1912
        %v1969 = vrcp.pop %v1915
        %v1970 = vrcp.pop %v1920
        %v1971 = vrcp.pop %v1923
        %v1972 = vrcp.pop %v1928
        %v1973 = vrcp.pop %v1931
        %v1974 = vrcp.pop %v1936
        %v1975 = vrcp.pop %v1939
        %v1976 = vrcp.pop %v1944
        %v1977 = vrcp.pop %v1947
        %v1978 = vrcp.pop %v1952
        %v1979 = vrcp.pop %v1955
        %v1980 = vrcp.pop %v1960
        %v1981 = vrcp.pop %v1963
        %1983 = vset.pattern.permute.xlu0 16
        %1984 = vperm.xlu0 %1983, %v1966
        %v1985 = vpop.permute.xlu0 %1984
        %1988 = vset.pattern.permute.xlu0 16
        %1989 = vperm.xlu0 %1988, %v1967
        %v1990 = vpop.permute.xlu0 %1989
        %1993 = vset.pattern.permute.xlu0 16
        %1994 = vperm.xlu0 %1993, %v1968
        %v1995 = vpop.permute.xlu0 %1994
        %1998 = vset.pattern.permute.xlu0 16
        %1999 = vperm.xlu0 %1998, %v1969
        %v2000 = vpop.permute.xlu0 %1999
        %2003 = vset.pattern.permute.xlu0 16
        %2004 = vperm.xlu0 %2003, %v1970
        %v2005 = vpop.permute.xlu0 %2004
        %2008 = vset.pattern.permute.xlu0 16
        %2009 = vperm.xlu0 %2008, %v1971
        %v2010 = vpop.permute.xlu0 %2009
        %2013 = vset.pattern.permute.xlu0 16
        %2014 = vperm.xlu0 %2013, %v1972
        %v2015 = vpop.permute.xlu0 %2014
        %2018 = vset.pattern.permute.xlu0 16
        %2019 = vperm.xlu0 %2018, %v1973
        %v2020 = vpop.permute.xlu0 %2019
        %2023 = vset.pattern.permute.xlu0 16
        %2024 = vperm.xlu0 %2023, %v1974
        %v2025 = vpop.permute.xlu0 %2024
        %2028 = vset.pattern.permute.xlu0 16
        %2029 = vperm.xlu0 %2028, %v1975
        %v2030 = vpop.permute.xlu0 %2029
        %2033 = vset.pattern.permute.xlu0 16
        %2034 = vperm.xlu0 %2033, %v1976
        %v2035 = vpop.permute.xlu0 %2034
        %2038 = vset.pattern.permute.xlu0 16
        %2039 = vperm.xlu0 %2038, %v1977
        %v2040 = vpop.permute.xlu0 %2039
        %2043 = vset.pattern.permute.xlu0 16
        %2044 = vperm.xlu0 %2043, %v1978
        %v2045 = vpop.permute.xlu0 %2044
        %2048 = vset.pattern.permute.xlu0 16
        %2049 = vperm.xlu0 %2048, %v1979
        %v2050 = vpop.permute.xlu0 %2049
        %2053 = vset.pattern.permute.xlu0 16
        %2054 = vperm.xlu0 %2053, %v1980
        %v2055 = vpop.permute.xlu0 %2054
        %2058 = vset.pattern.permute.xlu0 16
        %2059 = vperm.xlu0 %2058, %v1981
        %v2060 = vpop.permute.xlu0 %2059
        %v2062 = vmul.f32 %v1904, %v1985
        %v2063 = vmul.f32 %v1907, %v1990
        %v2064 = vmul.f32 %v1912, %v1995
        %v2065 = vmul.f32 %v1915, %v2000
        %v2066 = vmul.f32 %v1920, %v2005
        %v2067 = vmul.f32 %v1923, %v2010
        %v2068 = vmul.f32 %v1928, %v2015
        %v2069 = vmul.f32 %v1931, %v2020
        %v2070 = vmul.f32 %v1936, %v2025
        %v2071 = vmul.f32 %v1939, %v2030
        %v2072 = vmul.f32 %v1944, %v2035
        %v2073 = vmul.f32 %v1947, %v2040
        %v2074 = vmul.f32 %v1952, %v2045
        %v2075 = vmul.f32 %v1955, %v2050
        %v2076 = vmul.f32 %v1960, %v2055
        %v2077 = vmul.f32 %v1963, %v2060
        %v2078 = vld [vmem:[%s4] sm:$0x1]
        %v2079 = vlaneseq
        %v2080 = vshrl.u32 %v2079, 7
        %v2081 = vsub.s32 0, %v2080
        %v2082 = vrot.slane %v2078, %v2081
        %v2083 = vadd.f32 %v2062, %v2082
        %v2084 = vadd.f32 %v2063, %v2082
        %v2085 = vadd.f32 %v2064, %v2082
        %v2086 = vadd.f32 %v2065, %v2082
        %v2087 = vadd.f32 %v2066, %v2082
        %v2088 = vadd.f32 %v2067, %v2082
        %v2089 = vadd.f32 %v2068, %v2082
        %v2090 = vadd.f32 %v2069, %v2082
        %v2091 = vadd.f32 %v2070, %v2082
        %v2092 = vadd.f32 %v2071, %v2082
        %v2093 = vadd.f32 %v2072, %v2082
        %v2094 = vadd.f32 %v2073, %v2082
        %v2095 = vadd.f32 %v2074, %v2082
        %v2096 = vadd.f32 %v2075, %v2082
        %v2097 = vadd.f32 %v2076, %v2082
        %v2098 = vadd.f32 %v2077, %v2082
        %vm2099 = vcmp.gt.f32.partialorder %v2083, 0.0
        %vm2100 = vcmp.gt.f32.partialorder %v2084, 0.0
        %vm2101 = vcmp.gt.f32.partialorder %v2085, 0.0
        %vm2102 = vcmp.gt.f32.partialorder %v2086, 0.0
        %vm2103 = vcmp.gt.f32.partialorder %v2087, 0.0
        %vm2104 = vcmp.gt.f32.partialorder %v2088, 0.0
        %vm2105 = vcmp.gt.f32.partialorder %v2089, 0.0
        %vm2106 = vcmp.gt.f32.partialorder %v2090, 0.0
        %vm2107 = vcmp.gt.f32.partialorder %v2091, 0.0
        %vm2108 = vcmp.gt.f32.partialorder %v2092, 0.0
        %vm2109 = vcmp.gt.f32.partialorder %v2093, 0.0
        %vm2110 = vcmp.gt.f32.partialorder %v2094, 0.0
        %vm2111 = vcmp.gt.f32.partialorder %v2095, 0.0
        %vm2112 = vcmp.gt.f32.partialorder %v2096, 0.0
        %vm2113 = vcmp.gt.f32.partialorder %v2097, 0.0
        %vm2114 = vcmp.gt.f32.partialorder %v2098, 0.0
        %v2115 = vmul.f32 %v2083, 0.01
        %v2116 = vmul.f32 %v2084, 0.01
        %v2117 = vmul.f32 %v2085, 0.01
        %v2118 = vmul.f32 %v2086, 0.01
        %v2119 = vmul.f32 %v2087, 0.01
        %v2120 = vmul.f32 %v2088, 0.01
        %v2121 = vmul.f32 %v2089, 0.01
        %v2122 = vmul.f32 %v2090, 0.01
        %v2123 = vmul.f32 %v2091, 0.01
        %v2124 = vmul.f32 %v2092, 0.01
        %v2125 = vmul.f32 %v2093, 0.01
        %v2126 = vmul.f32 %v2094, 0.01
        %v2127 = vmul.f32 %v2095, 0.01
        %v2128 = vmul.f32 %v2096, 0.01
        %v2129 = vmul.f32 %v2097, 0.01
        %v2130 = vmul.f32 %v2098, 0.01
        %v2131 = vsel %vm2099, %v2083, %v2115
        %v2132 = vsel %vm2100, %v2084, %v2116
        %v2133 = vsel %vm2101, %v2085, %v2117
        %v2134 = vsel %vm2102, %v2086, %v2118
        %v2135 = vsel %vm2103, %v2087, %v2119
        %v2136 = vsel %vm2104, %v2088, %v2120
        %v2137 = vsel %vm2105, %v2089, %v2121
        %v2138 = vsel %vm2106, %v2090, %v2122
        %v2139 = vsel %vm2107, %v2091, %v2123
        %v2140 = vsel %vm2108, %v2092, %v2124
        %v2141 = vsel %vm2109, %v2093, %v2125
        %v2142 = vsel %vm2110, %v2094, %v2126
        %v2143 = vsel %vm2111, %v2095, %v2127
        %v2144 = vsel %vm2112, %v2096, %v2128
        %v2145 = vsel %vm2113, %v2097, %v2129
        %v2146 = vsel %vm2114, %v2098, %v2130
        %2147 = vset.pattern.permute.xlu0 1
        %2148 = vperm.xlu0 %2147, %v1418
        %v2149 = vpop.permute.xlu0 %2148
        %2151 = vset.pattern.permute.xlu0 1
        %2152 = vperm.xlu0 %2151, %v1419
        %v2153 = vpop.permute.xlu0 %2152
        %2155 = vset.pattern.permute.xlu0 1
        %2156 = vperm.xlu0 %2155, %v1420
        %v2157 = vpop.permute.xlu0 %2156
        %2159 = vset.pattern.permute.xlu0 1
        %2160 = vperm.xlu0 %2159, %v1421
        %v2161 = vpop.permute.xlu0 %2160
        %2163 = vset.pattern.permute.xlu0 1
        %2164 = vperm.xlu0 %2163, %v1422
        %v2165 = vpop.permute.xlu0 %2164
        %2167 = vset.pattern.permute.xlu0 1
        %2168 = vperm.xlu0 %2167, %v1423
        %v2169 = vpop.permute.xlu0 %2168
        %2171 = vset.pattern.permute.xlu0 1
        %2172 = vperm.xlu0 %2171, %v1424
        %v2173 = vpop.permute.xlu0 %2172
        %2175 = vset.pattern.permute.xlu0 1
        %2176 = vperm.xlu0 %2175, %v1425
        %v2177 = vpop.permute.xlu0 %2176
        %2179 = vset.pattern.permute.xlu0 1
        %2180 = vperm.xlu0 %2179, %v1426
        %v2181 = vpop.permute.xlu0 %2180
        %2183 = vset.pattern.permute.xlu0 1
        %2184 = vperm.xlu0 %2183, %v1427
        %v2185 = vpop.permute.xlu0 %2184
        %2187 = vset.pattern.permute.xlu0 1
        %2188 = vperm.xlu0 %2187, %v1428
        %v2189 = vpop.permute.xlu0 %2188
        %2191 = vset.pattern.permute.xlu0 1
        %2192 = vperm.xlu0 %2191, %v1429
        %v2193 = vpop.permute.xlu0 %2192
        %2195 = vset.pattern.permute.xlu0 1
        %2196 = vperm.xlu0 %2195, %v1430
        %v2197 = vpop.permute.xlu0 %2196
        %2199 = vset.pattern.permute.xlu0 1
        %2200 = vperm.xlu0 %2199, %v1431
        %v2201 = vpop.permute.xlu0 %2200
        %2203 = vset.pattern.permute.xlu0 1
        %2204 = vperm.xlu0 %2203, %v1432
        %v2205 = vpop.permute.xlu0 %2204
        %2207 = vset.pattern.permute.xlu0 1
        %2208 = vperm.xlu0 %2207, %v1433
        %v2209 = vpop.permute.xlu0 %2208
        %v2211 = vlaneseq
        %v2212 = vshrl.u32 %v2211, 7
        %v2213 = vsub.s32 1, %v2212
        %v2214 = vrot.slane %v1416, %v2213
        %v2215 = vlaneseq
        %v2216 = vshrl.u32 %v2215, 7
        %v2217 = vsub.s32 3, %v2216
        %v2218 = vrot.slane %v1416, %v2217
        %v2221 = vlaneseq
        %v2222 = vshrl.u32 %v2221, 7
        %v2223 = vsub.s32 1, %v2222
        %v2224 = vrot.slane %v2214, %v2223
        %v2225 = vlaneseq
        %v2226 = vshrl.u32 %v2225, 7
        %v2227 = vsub.s32 1, %v2226
        %v2228 = vrot.slane %v2218, %v2227
        %v2229 = vadd.f32 %v2149, %v2224
        %v2230 = vadd.f32 %v2149, %v2228
        %v2231 = vadd.f32 %v2153, %v2224
        %v2232 = vadd.f32 %v2153, %v2228
        %v2233 = vadd.f32 %v2157, %v2224
        %v2234 = vadd.f32 %v2157, %v2228
        %v2235 = vadd.f32 %v2161, %v2224
        %v2236 = vadd.f32 %v2161, %v2228
        %v2237 = vadd.f32 %v2165, %v2224
        %v2238 = vadd.f32 %v2165, %v2228
        %v2239 = vadd.f32 %v2169, %v2224
        %v2240 = vadd.f32 %v2169, %v2228
        %v2241 = vadd.f32 %v2173, %v2224
        %v2242 = vadd.f32 %v2173, %v2228
        %v2243 = vadd.f32 %v2177, %v2224
        %v2244 = vadd.f32 %v2177, %v2228
        %v2245 = vadd.f32 %v2181, %v2224
        %v2246 = vadd.f32 %v2181, %v2228
        %v2247 = vadd.f32 %v2185, %v2224
        %v2248 = vadd.f32 %v2185, %v2228
        %v2249 = vadd.f32 %v2189, %v2224
        %v2250 = vadd.f32 %v2189, %v2228
        %v2251 = vadd.f32 %v2193, %v2224
        %v2252 = vadd.f32 %v2193, %v2228
        %v2253 = vadd.f32 %v2197, %v2224
        %v2254 = vadd.f32 %v2197, %v2228
        %v2255 = vadd.f32 %v2201, %v2224
        %v2256 = vadd.f32 %v2201, %v2228
        %v2257 = vadd.f32 %v2205, %v2224
        %v2258 = vadd.f32 %v2205, %v2228
        %v2259 = vadd.f32 %v2209, %v2224
        %v2260 = vadd.f32 %v2209, %v2228
        %vm2261 = vcmp.gt.f32.partialorder %v2229, 0.0
        %vm2262 = vcmp.gt.f32.partialorder %v2230, 0.0
        %vm2263 = vcmp.gt.f32.partialorder %v2231, 0.0
        %vm2264 = vcmp.gt.f32.partialorder %v2232, 0.0
        %vm2265 = vcmp.gt.f32.partialorder %v2233, 0.0
        %vm2266 = vcmp.gt.f32.partialorder %v2234, 0.0
        %vm2267 = vcmp.gt.f32.partialorder %v2235, 0.0
        %vm2268 = vcmp.gt.f32.partialorder %v2236, 0.0
        %vm2269 = vcmp.gt.f32.partialorder %v2237, 0.0
        %vm2270 = vcmp.gt.f32.partialorder %v2238, 0.0
        %vm2271 = vcmp.gt.f32.partialorder %v2239, 0.0
        %vm2272 = vcmp.gt.f32.partialorder %v2240, 0.0
        %vm2273 = vcmp.gt.f32.partialorder %v2241, 0.0
        %vm2274 = vcmp.gt.f32.partialorder %v2242, 0.0
        %vm2275 = vcmp.gt.f32.partialorder %v2243, 0.0
        %vm2276 = vcmp.gt.f32.partialorder %v2244, 0.0
        %vm2277 = vcmp.gt.f32.partialorder %v2245, 0.0
        %vm2278 = vcmp.gt.f32.partialorder %v2246, 0.0
        %vm2279 = vcmp.gt.f32.partialorder %v2247, 0.0
        %vm2280 = vcmp.gt.f32.partialorder %v2248, 0.0
        %vm2281 = vcmp.gt.f32.partialorder %v2249, 0.0
        %vm2282 = vcmp.gt.f32.partialorder %v2250, 0.0
        %vm2283 = vcmp.gt.f32.partialorder %v2251, 0.0
        %vm2284 = vcmp.gt.f32.partialorder %v2252, 0.0
        %vm2285 = vcmp.gt.f32.partialorder %v2253, 0.0
        %vm2286 = vcmp.gt.f32.partialorder %v2254, 0.0
        %vm2287 = vcmp.gt.f32.partialorder %v2255, 0.0
        %vm2288 = vcmp.gt.f32.partialorder %v2256, 0.0
        %vm2289 = vcmp.gt.f32.partialorder %v2257, 0.0
        %vm2290 = vcmp.gt.f32.partialorder %v2258, 0.0
        %vm2291 = vcmp.gt.f32.partialorder %v2259, 0.0
        %vm2292 = vcmp.gt.f32.partialorder %v2260, 0.0
        %v2293 = vmul.f32 %v2229, 0.2
        %v2294 = vmul.f32 %v2230, 0.2
        %v2295 = vmul.f32 %v2231, 0.2
        %v2296 = vmul.f32 %v2232, 0.2
        %v2297 = vmul.f32 %v2233, 0.2
        %v2298 = vmul.f32 %v2234, 0.2
        %v2299 = vmul.f32 %v2235, 0.2
        %v2300 = vmul.f32 %v2236, 0.2
        %v2301 = vmul.f32 %v2237, 0.2
        %v2302 = vmul.f32 %v2238, 0.2
        %v2303 = vmul.f32 %v2239, 0.2
        %v2304 = vmul.f32 %v2240, 0.2
        %v2305 = vmul.f32 %v2241, 0.2
        %v2306 = vmul.f32 %v2242, 0.2
        %v2307 = vmul.f32 %v2243, 0.2
        %v2308 = vmul.f32 %v2244, 0.2
        %v2309 = vmul.f32 %v2245, 0.2
        %v2310 = vmul.f32 %v2246, 0.2
        %v2311 = vmul.f32 %v2247, 0.2
        %v2312 = vmul.f32 %v2248, 0.2
        %v2313 = vmul.f32 %v2249, 0.2
        %v2314 = vmul.f32 %v2250, 0.2
        %v2315 = vmul.f32 %v2251, 0.2
        %v2316 = vmul.f32 %v2252, 0.2
        %v2317 = vmul.f32 %v2253, 0.2
        %v2318 = vmul.f32 %v2254, 0.2
        %v2319 = vmul.f32 %v2255, 0.2
        %v2320 = vmul.f32 %v2256, 0.2
        %v2321 = vmul.f32 %v2257, 0.2
        %v2322 = vmul.f32 %v2258, 0.2
        %v2323 = vmul.f32 %v2259, 0.2
        %v2324 = vmul.f32 %v2260, 0.2
        %v2325 = vsel %vm2261, %v2229, %v2293
        %v2326 = vsel %vm2262, %v2230, %v2294
        %v2327 = vsel %vm2263, %v2231, %v2295
        %v2328 = vsel %vm2264, %v2232, %v2296
        %v2329 = vsel %vm2265, %v2233, %v2297
        %v2330 = vsel %vm2266, %v2234, %v2298
        %v2331 = vsel %vm2267, %v2235, %v2299
        %v2332 = vsel %vm2268, %v2236, %v2300
        %v2333 = vsel %vm2269, %v2237, %v2301
        %v2334 = vsel %vm2270, %v2238, %v2302
        %v2335 = vsel %vm2271, %v2239, %v2303
        %v2336 = vsel %vm2272, %v2240, %v2304
        %v2337 = vsel %vm2273, %v2241, %v2305
        %v2338 = vsel %vm2274, %v2242, %v2306
        %v2339 = vsel %vm2275, %v2243, %v2307
        %v2340 = vsel %vm2276, %v2244, %v2308
        %v2341 = vsel %vm2277, %v2245, %v2309
        %v2342 = vsel %vm2278, %v2246, %v2310
        %v2343 = vsel %vm2279, %v2247, %v2311
        %v2344 = vsel %vm2280, %v2248, %v2312
        %v2345 = vsel %vm2281, %v2249, %v2313
        %v2346 = vsel %vm2282, %v2250, %v2314
        %v2347 = vsel %vm2283, %v2251, %v2315
        %v2348 = vsel %vm2284, %v2252, %v2316
        %v2349 = vsel %vm2285, %v2253, %v2317
        %v2350 = vsel %vm2286, %v2254, %v2318
        %v2351 = vsel %vm2287, %v2255, %v2319
        %v2352 = vsel %vm2288, %v2256, %v2320
        %v2353 = vsel %vm2289, %v2257, %v2321
        %v2354 = vsel %vm2290, %v2258, %v2322
        %v2355 = vsel %vm2291, %v2259, %v2323
        %v2356 = vsel %vm2292, %v2260, %v2324
        %v2357 = vsel %vm1384, %v2325, -1e+30
        %v2358 = vsel %vm1385, %v2326, -1e+30
        %v2359 = vsel %vm1386, %v2327, -1e+30
        %v2360 = vsel %vm1387, %v2328, -1e+30
        %v2361 = vsel %vm1388, %v2329, -1e+30
        %v2362 = vsel %vm1389, %v2330, -1e+30
        %v2363 = vsel %vm1390, %v2331, -1e+30
        %v2364 = vsel %vm1391, %v2332, -1e+30
        %v2365 = vsel %vm1392, %v2333, -1e+30
        %v2366 = vsel %vm1393, %v2334, -1e+30
        %v2367 = vsel %vm1394, %v2335, -1e+30
        %v2368 = vsel %vm1395, %v2336, -1e+30
        %v2369 = vsel %vm1396, %v2337, -1e+30
        %v2370 = vsel %vm1397, %v2338, -1e+30
        %v2371 = vsel %vm1398, %v2339, -1e+30
        %v2372 = vsel %vm1399, %v2340, -1e+30
        %v2373 = vsel %vm1400, %v2341, -1e+30
        %v2374 = vsel %vm1401, %v2342, -1e+30
        %v2375 = vsel %vm1402, %v2343, -1e+30
        %v2376 = vsel %vm1403, %v2344, -1e+30
        %v2377 = vsel %vm1404, %v2345, -1e+30
        %v2378 = vsel %vm1405, %v2346, -1e+30
        %v2379 = vsel %vm1406, %v2347, -1e+30
        %v2380 = vsel %vm1407, %v2348, -1e+30
        %v2381 = vsel %vm1408, %v2349, -1e+30
        %v2382 = vsel %vm1409, %v2350, -1e+30
        %v2383 = vsel %vm1410, %v2351, -1e+30
        %v2384 = vsel %vm1411, %v2352, -1e+30
        %v2385 = vsel %vm1412, %v2353, -1e+30
        %v2386 = vsel %vm1413, %v2354, -1e+30
        %v2387 = vsel %vm1414, %v2355, -1e+30
        %v2388 = vsel %vm1415, %v2356, -1e+30
        %v2389 = vmax.f32 %v2357, %v2358
        %2390 = vmax.xlane.f32.xlu0 %v2389
        %v2391 = vpop.xlane.xlu0 %2390
        %v2392 = vmax.f32 %v2359, %v2360
        %2393 = vmax.xlane.f32.xlu0 %v2392
        %v2394 = vpop.xlane.xlu0 %2393
        %v2395 = vmax.f32 %v2361, %v2362
        %2396 = vmax.xlane.f32.xlu0 %v2395
        %v2397 = vpop.xlane.xlu0 %2396
        %v2398 = vmax.f32 %v2363, %v2364
        %2399 = vmax.xlane.f32.xlu0 %v2398
        %v2400 = vpop.xlane.xlu0 %2399
        %v2401 = vmax.f32 %v2365, %v2366
        %2402 = vmax.xlane.f32.xlu0 %v2401
        %v2403 = vpop.xlane.xlu0 %2402
        %v2404 = vmax.f32 %v2367, %v2368
        %2405 = vmax.xlane.f32.xlu0 %v2404
        %v2406 = vpop.xlane.xlu0 %2405
        %v2407 = vmax.f32 %v2369, %v2370
        %2408 = vmax.xlane.f32.xlu0 %v2407
        %v2409 = vpop.xlane.xlu0 %2408
        %v2410 = vmax.f32 %v2371, %v2372
        %2411 = vmax.xlane.f32.xlu0 %v2410
        %v2412 = vpop.xlane.xlu0 %2411
        %v2413 = vmax.f32 %v2373, %v2374
        %2414 = vmax.xlane.f32.xlu0 %v2413
        %v2415 = vpop.xlane.xlu0 %2414
        %v2416 = vmax.f32 %v2375, %v2376
        %2417 = vmax.xlane.f32.xlu0 %v2416
        %v2418 = vpop.xlane.xlu0 %2417
        %v2419 = vmax.f32 %v2377, %v2378
        %2420 = vmax.xlane.f32.xlu0 %v2419
        %v2421 = vpop.xlane.xlu0 %2420
        %v2422 = vmax.f32 %v2379, %v2380
        %2423 = vmax.xlane.f32.xlu0 %v2422
        %v2424 = vpop.xlane.xlu0 %2423
        %v2425 = vmax.f32 %v2381, %v2382
        %2426 = vmax.xlane.f32.xlu0 %v2425
        %v2427 = vpop.xlane.xlu0 %2426
        %v2428 = vmax.f32 %v2383, %v2384
        %2429 = vmax.xlane.f32.xlu0 %v2428
        %v2430 = vpop.xlane.xlu0 %2429
        %v2431 = vmax.f32 %v2385, %v2386
        %2432 = vmax.xlane.f32.xlu0 %v2431
        %v2433 = vpop.xlane.xlu0 %2432
        %v2434 = vmax.f32 %v2387, %v2388
        %2435 = vmax.xlane.f32.xlu0 %v2434
        %v2436 = vpop.xlane.xlu0 %2435
        %v2437 = vsub.f32 %v2357, %v2391
        %v2438 = vsub.f32 %v2358, %v2391
        %v2439 = vsub.f32 %v2359, %v2394
        %v2440 = vsub.f32 %v2360, %v2394
        %v2441 = vsub.f32 %v2361, %v2397
        %v2442 = vsub.f32 %v2362, %v2397
        %v2443 = vsub.f32 %v2363, %v2400
        %v2444 = vsub.f32 %v2364, %v2400
        %v2445 = vsub.f32 %v2365, %v2403
        %v2446 = vsub.f32 %v2366, %v2403
        %v2447 = vsub.f32 %v2367, %v2406
        %v2448 = vsub.f32 %v2368, %v2406
        %v2449 = vsub.f32 %v2369, %v2409
        %v2450 = vsub.f32 %v2370, %v2409
        %v2451 = vsub.f32 %v2371, %v2412
        %v2452 = vsub.f32 %v2372, %v2412
        %v2453 = vsub.f32 %v2373, %v2415
        %v2454 = vsub.f32 %v2374, %v2415
        %v2455 = vsub.f32 %v2375, %v2418
        %v2456 = vsub.f32 %v2376, %v2418
        %v2457 = vsub.f32 %v2377, %v2421
        %v2458 = vsub.f32 %v2378, %v2421
        %v2459 = vsub.f32 %v2379, %v2424
        %v2460 = vsub.f32 %v2380, %v2424
        %v2461 = vsub.f32 %v2381, %v2427
        %v2462 = vsub.f32 %v2382, %v2427
        %v2463 = vsub.f32 %v2383, %v2430
        %v2464 = vsub.f32 %v2384, %v2430
        %v2465 = vsub.f32 %v2385, %v2433
        %v2466 = vsub.f32 %v2386, %v2433
        %v2467 = vsub.f32 %v2387, %v2436
        %v2468 = vsub.f32 %v2388, %v2436
        %v2469 = vmul.f32 %v2437, 1.442695
        %v2470 = vpow.pop %v2469
        %v2471 = vmul.f32 %v2438, 1.442695
        %v2472 = vpow.pop %v2471
        %v2473 = vmul.f32 %v2439, 1.442695
        %v2474 = vpow.pop %v2473
        %v2475 = vmul.f32 %v2440, 1.442695
        %v2476 = vpow.pop %v2475
        %v2477 = vmul.f32 %v2441, 1.442695
        %v2478 = vpow.pop %v2477
        %v2479 = vmul.f32 %v2442, 1.442695
        %v2480 = vpow.pop %v2479
        %v2481 = vmul.f32 %v2443, 1.442695
        %v2482 = vpow.pop %v2481
        %v2483 = vmul.f32 %v2444, 1.442695
        %v2484 = vpow.pop %v2483
        %v2485 = vmul.f32 %v2445, 1.442695
        %v2486 = vpow.pop %v2485
        %v2487 = vmul.f32 %v2446, 1.442695
        %v2488 = vpow.pop %v2487
        %v2489 = vmul.f32 %v2447, 1.442695
        %v2490 = vpow.pop %v2489
        %v2491 = vmul.f32 %v2448, 1.442695
        %v2492 = vpow.pop %v2491
        %v2493 = vmul.f32 %v2449, 1.442695
        %v2494 = vpow.pop %v2493
        %v2495 = vmul.f32 %v2450, 1.442695
        %v2496 = vpow.pop %v2495
        %v2497 = vmul.f32 %v2451, 1.442695
        %v2498 = vpow.pop %v2497
        %v2499 = vmul.f32 %v2452, 1.442695
        %v2500 = vpow.pop %v2499
        %v2501 = vmul.f32 %v2453, 1.442695
        %v2502 = vpow.pop %v2501
        %v2503 = vmul.f32 %v2454, 1.442695
        %v2504 = vpow.pop %v2503
        %v2505 = vmul.f32 %v2455, 1.442695
        %v2506 = vpow.pop %v2505
        %v2507 = vmul.f32 %v2456, 1.442695
        %v2508 = vpow.pop %v2507
        %v2509 = vmul.f32 %v2457, 1.442695
        %v2510 = vpow.pop %v2509
        %v2511 = vmul.f32 %v2458, 1.442695
        %v2512 = vpow.pop %v2511
        %v2513 = vmul.f32 %v2459, 1.442695
        %v2514 = vpow.pop %v2513
        %v2515 = vmul.f32 %v2460, 1.442695
        %v2516 = vpow.pop %v2515
        %v2517 = vmul.f32 %v2461, 1.442695
        %v2518 = vpow.pop %v2517
        %v2519 = vmul.f32 %v2462, 1.442695
        %v2520 = vpow.pop %v2519
        %v2521 = vmul.f32 %v2463, 1.442695
        %v2522 = vpow.pop %v2521
        %v2523 = vmul.f32 %v2464, 1.442695
        %v2524 = vpow.pop %v2523
        %v2525 = vmul.f32 %v2465, 1.442695
        %v2526 = vpow.pop %v2525
        %v2527 = vmul.f32 %v2466, 1.442695
        %v2528 = vpow.pop %v2527
        %v2529 = vmul.f32 %v2467, 1.442695
        %v2530 = vpow.pop %v2529
        %v2531 = vmul.f32 %v2468, 1.442695
        %v2532 = vpow.pop %v2531
        %v2533 = vpack.c.bf16 %v2474, %v2470
        %v2534 = vpack.c.bf16 %v2476, %v2472
        %v2535 = vpack.c.bf16 %v2482, %v2478
        %v2536 = vpack.c.bf16 %v2484, %v2480
        %v2537 = vpack.c.bf16 %v2490, %v2486
        %v2538 = vpack.c.bf16 %v2492, %v2488
        %v2539 = vpack.c.bf16 %v2498, %v2494
        %v2540 = vpack.c.bf16 %v2500, %v2496
        %v2541 = vpack.c.bf16 %v2506, %v2502
        %v2542 = vpack.c.bf16 %v2508, %v2504
        %v2543 = vpack.c.bf16 %v2514, %v2510
        %v2544 = vpack.c.bf16 %v2516, %v2512
        %v2545 = vpack.c.bf16 %v2522, %v2518
        %v2546 = vpack.c.bf16 %v2524, %v2520
        %v2547 = vpack.c.bf16 %v2530, %v2526
        %v2548 = vpack.c.bf16 %v2532, %v2528
        %2565 = vrot.lane.b32.xlu0 %v1853, 111
        %v2566 = vpop.permute.xlu0 %2565
        %2567 = vrot.lane.b32.xlu0 %v1854, 111
        %v2568 = vpop.permute.xlu0 %2567
        %2569 = vrot.lane.b32.xlu0 %v1855, 111
        %v2570 = vpop.permute.xlu0 %2569
        %2571 = vrot.lane.b32.xlu0 %v1856, 111
        %v2572 = vpop.permute.xlu0 %2571
        %2573 = vrot.lane.b32.xlu0 %v1857, 111
        %v2574 = vpop.permute.xlu0 %2573
        %2575 = vrot.lane.b32.xlu0 %v1858, 111
        %v2576 = vpop.permute.xlu0 %2575
        %2577 = vrot.lane.b32.xlu0 %v1859, 111
        %v2578 = vpop.permute.xlu0 %2577
        %2579 = vrot.lane.b32.xlu0 %v1860, 111
        %v2580 = vpop.permute.xlu0 %2579
        %2581 = vrot.lane.b32.xlu0 %v1861, 111
        %v2582 = vpop.permute.xlu0 %2581
        %2583 = vrot.lane.b32.xlu0 %v1862, 111
        %v2584 = vpop.permute.xlu0 %2583
        %2585 = vrot.lane.b32.xlu0 %v1863, 111
        %v2586 = vpop.permute.xlu0 %2585
        %2587 = vrot.lane.b32.xlu0 %v1864, 111
        %v2588 = vpop.permute.xlu0 %2587
        %2589 = vrot.lane.b32.xlu0 %v1865, 111
        %v2590 = vpop.permute.xlu0 %2589
        %2591 = vrot.lane.b32.xlu0 %v1866, 111
        %v2592 = vpop.permute.xlu0 %2591
        %2593 = vrot.lane.b32.xlu0 %v1867, 111
        %v2594 = vpop.permute.xlu0 %2593
        %2595 = vrot.lane.b32.xlu0 %v1868, 111
        %v2596 = vpop.permute.xlu0 %2595
        %2613 = vmatprep.subr.bf16.mxu0 0
        %2614 = vmatpush1.bf16.msra.mxu0 %v2566
        %2615 = vmatprep.subr.bf16.mxu0 0
        %2616 = vmatpush1.bf16.msra.mxu0 %v2568
        %2617 = vmatprep.subr.bf16.mxu0 0
        %2618 = vmatpush1.bf16.msra.mxu0 %v2570
        %2619 = vmatprep.subr.bf16.mxu0 0
        %2620 = vmatpush1.bf16.msra.mxu0 %v2572
        %2621 = vmatprep.subr.bf16.mxu0 0
        %2622 = vmatpush1.bf16.msra.mxu0 %v2574
        %2623 = vmatprep.subr.bf16.mxu0 0
        %2624 = vmatpush1.bf16.msra.mxu0 %v2576
        %2625 = vmatprep.subr.bf16.mxu0 0
        %2626 = vmatpush1.bf16.msra.mxu0 %v2578
        %2627 = vmatprep.subr.bf16.mxu0 0
        %2628 = vmatpush1.bf16.msra.mxu0 %v2580
        %2629 = vmatprep.subr.bf16.mxu0 0
        %2630 = vmatpush1.bf16.msra.mxu0 %v2582
        %2631 = vmatprep.subr.bf16.mxu0 0
        %2632 = vmatpush1.bf16.msra.mxu0 %v2584
        %2633 = vmatprep.subr.bf16.mxu0 0
        %2634 = vmatpush1.bf16.msra.mxu0 %v2586
        %2635 = vmatprep.subr.bf16.mxu0 0
        %2636 = vmatpush1.bf16.msra.mxu0 %v2588
        %2637 = vmatprep.subr.bf16.mxu0 0
        %2638 = vmatpush1.bf16.msra.mxu0 %v2590
        %2639 = vmatprep.subr.bf16.mxu0 0
        %2640 = vmatpush1.bf16.msra.mxu0 %v2592
        %2641 = vmatprep.subr.bf16.mxu0 0
        %2642 = vmatpush1.bf16.msra.mxu0 %v2594
        %2643 = vmatprep.subr.bf16.mxu0 0
        %2644 = vmatpush1.bf16.msra.mxu0 %v2596
        %2645 = vmatprep.mubr.bf16.mxu0 %v2534
        %2646 = vmatmul.mubr.bf16.gmra.mrb[0].mxu0 %v2533
        %v2647 = vpop.f32.mrb[0].mxu0
        %v2648 = vadd.f32 0.0, %v2647
        %v2649 = vpop.f32.mrb[0].mxu0
        %v2650 = vpop.f32.mrb[0].mxu0
        %v2651 = vadd.f32 0.0, %v2650
        %v2652 = vpop.f32.mrb[0].mxu0
        %2653 = vmatprep.mubr.bf16.mxu0 %v2536
        %2654 = vmatmul.mubr.bf16.gmra.mrb[0].mxu0 %v2535
        %v2655 = vpop.f32.mrb[0].mxu0
        %v2656 = vadd.f32 0.0, %v2655
        %v2657 = vpop.f32.mrb[0].mxu0
        %v2658 = vpop.f32.mrb[0].mxu0
        %v2659 = vadd.f32 0.0, %v2658
        %v2660 = vpop.f32.mrb[0].mxu0
        %2661 = vmatprep.mubr.bf16.mxu0 %v2538
        %2662 = vmatmul.mubr.bf16.gmra.mrb[0].mxu0 %v2537
        %v2663 = vpop.f32.mrb[0].mxu0
        %v2664 = vadd.f32 0.0, %v2663
        %v2665 = vpop.f32.mrb[0].mxu0
        %v2666 = vpop.f32.mrb[0].mxu0
        %v2667 = vadd.f32 0.0, %v2666
        %v2668 = vpop.f32.mrb[0].mxu0
        %2669 = vmatprep.mubr.bf16.mxu0 %v2540
        %2670 = vmatmul.mubr.bf16.gmra.mrb[0].mxu0 %v2539
        %v2671 = vpop.f32.mrb[0].mxu0
        %v2672 = vadd.f32 0.0, %v2671
        %v2673 = vpop.f32.mrb[0].mxu0
        %v2674 = vpop.f32.mrb[0].mxu0
        %v2675 = vadd.f32 0.0, %v2674
        %v2676 = vpop.f32.mrb[0].mxu0
        %2677 = vmatprep.mubr.bf16.mxu0 %v2542
        %2678 = vmatmul.mubr.bf16.gmra.mrb[0].mxu0 %v2541
        %v2679 = vpop.f32.mrb[0].mxu0
        %v2680 = vadd.f32 0.0, %v2679
        %v2681 = vpop.f32.mrb[0].mxu0
        %v2682 = vpop.f32.mrb[0].mxu0
        %v2683 = vadd.f32 0.0, %v2682
        %v2684 = vpop.f32.mrb[0].mxu0
        %2685 = vmatprep.mubr.bf16.mxu0 %v2544
        %2686 = vmatmul.mubr.bf16.gmra.mrb[0].mxu0 %v2543
        %v2687 = vpop.f32.mrb[0].mxu0
        %v2688 = vadd.f32 0.0, %v2687
        %v2689 = vpop.f32.mrb[0].mxu0
        %v2690 = vpop.f32.mrb[0].mxu0
        %v2691 = vadd.f32 0.0, %v2690
        %v2692 = vpop.f32.mrb[0].mxu0
        %2693 = vmatprep.mubr.bf16.mxu0 %v2546
        %2694 = vmatmul.mubr.bf16.gmra.mrb[0].mxu0 %v2545
        %v2695 = vpop.f32.mrb[0].mxu0
        %v2696 = vadd.f32 0.0, %v2695
        %v2697 = vpop.f32.mrb[0].mxu0
        %v2698 = vpop.f32.mrb[0].mxu0
        %v2699 = vadd.f32 0.0, %v2698
        %v2700 = vpop.f32.mrb[0].mxu0
        %2701 = vmatprep.mubr.bf16.mxu0 %v2548
        %2702 = vmatmul.mubr.bf16.gmra.mrb[0].mxu0 %v2547
        %v2703 = vpop.f32.mrb[0].mxu0
        %v2704 = vadd.f32 0.0, %v2703
        %v2705 = vpop.f32.mrb[0].mxu0
        %v2706 = vpop.f32.mrb[0].mxu0
        %v2707 = vadd.f32 0.0, %v2706
        %v2708 = vpop.f32.mrb[0].mxu0
        %2709 = vdwg.mxu0
        %v2710 = vrcp.pop %v2648
        %v2711 = vrcp.pop %v2651
        %v2712 = vrcp.pop %v2656
        %v2713 = vrcp.pop %v2659
        %v2714 = vrcp.pop %v2664
        %v2715 = vrcp.pop %v2667
        %v2716 = vrcp.pop %v2672
        %v2717 = vrcp.pop %v2675
        %v2718 = vrcp.pop %v2680
        %v2719 = vrcp.pop %v2683
        %v2720 = vrcp.pop %v2688
        %v2721 = vrcp.pop %v2691
        %v2722 = vrcp.pop %v2696
        %v2723 = vrcp.pop %v2699
        %v2724 = vrcp.pop %v2704
        %v2725 = vrcp.pop %v2707
        %2727 = vset.pattern.permute.xlu0 16
        %2728 = vperm.xlu0 %2727, %v2710
        %v2729 = vpop.permute.xlu0 %2728
        %2732 = vset.pattern.permute.xlu0 16
        %2733 = vperm.xlu0 %2732, %v2711
        %v2734 = vpop.permute.xlu0 %2733
        %2737 = vset.pattern.permute.xlu0 16
        %2738 = vperm.xlu0 %2737, %v2712
        %v2739 = vpop.permute.xlu0 %2738
        %2742 = vset.pattern.permute.xlu0 16
        %2743 = vperm.xlu0 %2742, %v2713
        %v2744 = vpop.permute.xlu0 %2743
        %2747 = vset.pattern.permute.xlu0 16
        %2748 = vperm.xlu0 %2747, %v2714
        %v2749 = vpop.permute.xlu0 %2748
        %2752 = vset.pattern.permute.xlu0 16
        %2753 = vperm.xlu0 %2752, %v2715
        %v2754 = vpop.permute.xlu0 %2753
        %2757 = vset.pattern.permute.xlu0 16
        %2758 = vperm.xlu0 %2757, %v2716
        %v2759 = vpop.permute.xlu0 %2758
        %2762 = vset.pattern.permute.xlu0 16
        %2763 = vperm.xlu0 %2762, %v2717
        %v2764 = vpop.permute.xlu0 %2763
        %2767 = vset.pattern.permute.xlu0 16
        %2768 = vperm.xlu0 %2767, %v2718
        %v2769 = vpop.permute.xlu0 %2768
        %2772 = vset.pattern.permute.xlu0 16
        %2773 = vperm.xlu0 %2772, %v2719
        %v2774 = vpop.permute.xlu0 %2773
        %2777 = vset.pattern.permute.xlu0 16
        %2778 = vperm.xlu0 %2777, %v2720
        %v2779 = vpop.permute.xlu0 %2778
        %2782 = vset.pattern.permute.xlu0 16
        %2783 = vperm.xlu0 %2782, %v2721
        %v2784 = vpop.permute.xlu0 %2783
        %2787 = vset.pattern.permute.xlu0 16
        %2788 = vperm.xlu0 %2787, %v2722
        %v2789 = vpop.permute.xlu0 %2788
        %2792 = vset.pattern.permute.xlu0 16
        %2793 = vperm.xlu0 %2792, %v2723
        %v2794 = vpop.permute.xlu0 %2793
        %2797 = vset.pattern.permute.xlu0 16
        %2798 = vperm.xlu0 %2797, %v2724
        %v2799 = vpop.permute.xlu0 %2798
        %2802 = vset.pattern.permute.xlu0 16
        %2803 = vperm.xlu0 %2802, %v2725
        %v2804 = vpop.permute.xlu0 %2803
        %v2806 = vmul.f32 %v2648, %v2729
        %v2807 = vmul.f32 %v2651, %v2734
        %v2808 = vmul.f32 %v2656, %v2739
        %v2809 = vmul.f32 %v2659, %v2744
        %v2810 = vmul.f32 %v2664, %v2749
        %v2811 = vmul.f32 %v2667, %v2754
        %v2812 = vmul.f32 %v2672, %v2759
        %v2813 = vmul.f32 %v2675, %v2764
        %v2814 = vmul.f32 %v2680, %v2769
        %v2815 = vmul.f32 %v2683, %v2774
        %v2816 = vmul.f32 %v2688, %v2779
        %v2817 = vmul.f32 %v2691, %v2784
        %v2818 = vmul.f32 %v2696, %v2789
        %v2819 = vmul.f32 %v2699, %v2794
        %v2820 = vmul.f32 %v2704, %v2799
        %v2821 = vmul.f32 %v2707, %v2804
        %v2822 = vld [vmem:[%s4 + $0x1] sm:$0x1]
        %v2823 = vlaneseq
        %v2824 = vshrl.u32 %v2823, 7
        %v2825 = vsub.s32 0, %v2824
        %v2826 = vrot.slane %v2822, %v2825
        %v2827 = vadd.f32 %v2806, %v2826
        %v2828 = vadd.f32 %v2807, %v2826
        %v2829 = vadd.f32 %v2808, %v2826
        %v2830 = vadd.f32 %v2809, %v2826
        %v2831 = vadd.f32 %v2810, %v2826
        %v2832 = vadd.f32 %v2811, %v2826
        %v2833 = vadd.f32 %v2812, %v2826
        %v2834 = vadd.f32 %v2813, %v2826
        %v2835 = vadd.f32 %v2814, %v2826
        %v2836 = vadd.f32 %v2815, %v2826
        %v2837 = vadd.f32 %v2816, %v2826
        %v2838 = vadd.f32 %v2817, %v2826
        %v2839 = vadd.f32 %v2818, %v2826
        %v2840 = vadd.f32 %v2819, %v2826
        %v2841 = vadd.f32 %v2820, %v2826
        %v2842 = vadd.f32 %v2821, %v2826
        %vm2843 = vcmp.gt.f32.partialorder %v2827, 0.0
        %vm2844 = vcmp.gt.f32.partialorder %v2828, 0.0
        %vm2845 = vcmp.gt.f32.partialorder %v2829, 0.0
        %vm2846 = vcmp.gt.f32.partialorder %v2830, 0.0
        %vm2847 = vcmp.gt.f32.partialorder %v2831, 0.0
        %vm2848 = vcmp.gt.f32.partialorder %v2832, 0.0
        %vm2849 = vcmp.gt.f32.partialorder %v2833, 0.0
        %vm2850 = vcmp.gt.f32.partialorder %v2834, 0.0
        %vm2851 = vcmp.gt.f32.partialorder %v2835, 0.0
        %vm2852 = vcmp.gt.f32.partialorder %v2836, 0.0
        %vm2853 = vcmp.gt.f32.partialorder %v2837, 0.0
        %vm2854 = vcmp.gt.f32.partialorder %v2838, 0.0
        %vm2855 = vcmp.gt.f32.partialorder %v2839, 0.0
        %vm2856 = vcmp.gt.f32.partialorder %v2840, 0.0
        %vm2857 = vcmp.gt.f32.partialorder %v2841, 0.0
        %vm2858 = vcmp.gt.f32.partialorder %v2842, 0.0
        %v2859 = vmul.f32 %v2827, 0.01
        %v2860 = vmul.f32 %v2828, 0.01
        %v2861 = vmul.f32 %v2829, 0.01
        %v2862 = vmul.f32 %v2830, 0.01
        %v2863 = vmul.f32 %v2831, 0.01
        %v2864 = vmul.f32 %v2832, 0.01
        %v2865 = vmul.f32 %v2833, 0.01
        %v2866 = vmul.f32 %v2834, 0.01
        %v2867 = vmul.f32 %v2835, 0.01
        %v2868 = vmul.f32 %v2836, 0.01
        %v2869 = vmul.f32 %v2837, 0.01
        %v2870 = vmul.f32 %v2838, 0.01
        %v2871 = vmul.f32 %v2839, 0.01
        %v2872 = vmul.f32 %v2840, 0.01
        %v2873 = vmul.f32 %v2841, 0.01
        %v2874 = vmul.f32 %v2842, 0.01
        %v2875 = vsel %vm2843, %v2827, %v2859
        %v2876 = vsel %vm2844, %v2828, %v2860
        %v2877 = vsel %vm2845, %v2829, %v2861
        %v2878 = vsel %vm2846, %v2830, %v2862
        %v2879 = vsel %vm2847, %v2831, %v2863
        %v2880 = vsel %vm2848, %v2832, %v2864
        %v2881 = vsel %vm2849, %v2833, %v2865
        %v2882 = vsel %vm2850, %v2834, %v2866
        %v2883 = vsel %vm2851, %v2835, %v2867
        %v2884 = vsel %vm2852, %v2836, %v2868
        %v2885 = vsel %vm2853, %v2837, %v2869
        %v2886 = vsel %vm2854, %v2838, %v2870
        %v2887 = vsel %vm2855, %v2839, %v2871
        %v2888 = vsel %vm2856, %v2840, %v2872
        %v2889 = vsel %vm2857, %v2841, %v2873
        %v2890 = vsel %vm2858, %v2842, %v2874
        %v2891 = vadd.f32 %v2131, %v2875
        %v2892 = vadd.f32 %v2132, %v2876
        %v2893 = vadd.f32 %v2133, %v2877
        %v2894 = vadd.f32 %v2134, %v2878
        %v2895 = vadd.f32 %v2135, %v2879
        %v2896 = vadd.f32 %v2136, %v2880
        %v2897 = vadd.f32 %v2137, %v2881
        %v2898 = vadd.f32 %v2138, %v2882
        %v2899 = vadd.f32 %v2139, %v2883
        %v2900 = vadd.f32 %v2140, %v2884
        %v2901 = vadd.f32 %v2141, %v2885
        %v2902 = vadd.f32 %v2142, %v2886
        %v2903 = vadd.f32 %v2143, %v2887
        %v2904 = vadd.f32 %v2144, %v2888
        %v2905 = vadd.f32 %v2145, %v2889
        %v2906 = vadd.f32 %v2146, %v2890
        %v2907 = vmul.f32 %v2891, 0.5
        %v2908 = vmul.f32 %v2892, 0.5
        %v2909 = vmul.f32 %v2893, 0.5
        %v2910 = vmul.f32 %v2894, 0.5
        %v2911 = vmul.f32 %v2895, 0.5
        %v2912 = vmul.f32 %v2896, 0.5
        %v2913 = vmul.f32 %v2897, 0.5
        %v2914 = vmul.f32 %v2898, 0.5
        %v2915 = vmul.f32 %v2899, 0.5
        %v2916 = vmul.f32 %v2900, 0.5
        %v2917 = vmul.f32 %v2901, 0.5
        %v2918 = vmul.f32 %v2902, 0.5
        %v2919 = vmul.f32 %v2903, 0.5
        %v2920 = vmul.f32 %v2904, 0.5
        %v2921 = vmul.f32 %v2905, 0.5
        %v2922 = vmul.f32 %v2906, 0.5
        %vm2923 = vcmask 130048
        %2924 = vst.msk [vmem:[%s267] sm:$0xff] %vm2923, %v2907
        %2925 = vst.msk [vmem:[%s267 + $0x8] sm:$0xff] %vm2923, %v2908
        %2926 = vst.msk [vmem:[%s267 + $0x10] sm:$0xff] %vm2923, %v2909
        %2927 = vst.msk [vmem:[%s267 + $0x18] sm:$0xff] %vm2923, %v2910
        %2928 = vst.msk [vmem:[%s267 + $0x20] sm:$0xff] %vm2923, %v2911
        %2929 = vst.msk [vmem:[%s267 + $0x28] sm:$0xff] %vm2923, %v2912
        %2930 = vst.msk [vmem:[%s267 + $0x30] sm:$0xff] %vm2923, %v2913
        %2931 = vst.msk [vmem:[%s267 + $0x38] sm:$0xff] %vm2923, %v2914
        %2932 = vst.msk [vmem:[%s267 + $0x40] sm:$0xff] %vm2923, %v2915
        %2933 = vst.msk [vmem:[%s267 + $0x48] sm:$0xff] %vm2923, %v2916
        %2934 = vst.msk [vmem:[%s267 + $0x50] sm:$0xff] %vm2923, %v2917
        %2935 = vst.msk [vmem:[%s267 + $0x58] sm:$0xff] %vm2923, %v2918
        %2936 = vst.msk [vmem:[%s267 + $0x60] sm:$0xff] %vm2923, %v2919
        %2937 = vst.msk [vmem:[%s267 + $0x68] sm:$0xff] %vm2923, %v2920
        %2938 = vst.msk [vmem:[%s267 + $0x70] sm:$0xff] %vm2923, %v2921
        %2939 = vst.msk [vmem:[%s267 + $0x78] sm:$0xff] %vm2923, %v2922
        %s2940 = scalar_lea.vmem %s0, %s271
        %v2941 = vld [vmem:[%s2940] sm:$0xff]
        %v2942 = vld [vmem:[%s2940 + $0x8] sm:$0xff]
        %v2943 = vld [vmem:[%s2940 + $0x10] sm:$0xff]
        %v2944 = vld [vmem:[%s2940 + $0x18] sm:$0xff]
        %v2945 = vld [vmem:[%s2940 + $0x20] sm:$0xff]
        %v2946 = vld [vmem:[%s2940 + $0x28] sm:$0xff]
        %v2947 = vld [vmem:[%s2940 + $0x30] sm:$0xff]
        %v2948 = vld [vmem:[%s2940 + $0x38] sm:$0xff]
        %v2949 = vld [vmem:[%s2940 + $0x40] sm:$0xff]
        %v2950 = vld [vmem:[%s2940 + $0x48] sm:$0xff]
        %v2951 = vld [vmem:[%s2940 + $0x50] sm:$0xff]
        %v2952 = vld [vmem:[%s2940 + $0x58] sm:$0xff]
        %v2953 = vld [vmem:[%s2940 + $0x60] sm:$0xff]
        %v2954 = vld [vmem:[%s2940 + $0x68] sm:$0xff]
        %v2955 = vld [vmem:[%s2940 + $0x70] sm:$0xff]
        %v2956 = vld [vmem:[%s2940 + $0x78] sm:$0xff]
        %v2957 = vld [vmem:[%s0] sm:$0xff]
        %v2958 = vld [vmem:[%s0 + $0x8] sm:$0xff]
        %v2959 = vld [vmem:[%s0 + $0x10] sm:$0xff]
        %v2960 = vld [vmem:[%s0 + $0x18] sm:$0xff]
        %v2961 = vld [vmem:[%s0 + $0x20] sm:$0xff]
        %v2962 = vld [vmem:[%s0 + $0x28] sm:$0xff]
        %v2963 = vld [vmem:[%s0 + $0x30] sm:$0xff]
        %v2964 = vld [vmem:[%s0 + $0x38] sm:$0xff]
        %v2965 = vld [vmem:[%s0 + $0x40] sm:$0xff]
        %v2966 = vld [vmem:[%s0 + $0x48] sm:$0xff]
        %v2967 = vld [vmem:[%s0 + $0x50] sm:$0xff]
        %v2968 = vld [vmem:[%s0 + $0x58] sm:$0xff]
        %v2969 = vld [vmem:[%s0 + $0x60] sm:$0xff]
        %v2970 = vld [vmem:[%s0 + $0x68] sm:$0xff]
        %v2971 = vld [vmem:[%s0 + $0x70] sm:$0xff]
        %v2972 = vld [vmem:[%s0 + $0x78] sm:$0xff]
        %v2973 = vld [vmem:[%s0 + $0x80] sm:$0xff]
        %v2974 = vld [vmem:[%s0 + $0x88] sm:$0xff]
        %v2975 = vld [vmem:[%s0 + $0x90] sm:$0xff]
        %v2976 = vld [vmem:[%s0 + $0x98] sm:$0xff]
        %v2977 = vld [vmem:[%s0 + $0xa0] sm:$0xff]
        %v2978 = vld [vmem:[%s0 + $0xa8] sm:$0xff]
        %v2979 = vld [vmem:[%s0 + $0xb0] sm:$0xff]
        %v2980 = vld [vmem:[%s0 + $0xb8] sm:$0xff]
        %v2981 = vld [vmem:[%s0 + $0xc0] sm:$0xff]
        %v2982 = vld [vmem:[%s0 + $0xc8] sm:$0xff]
        %v2983 = vld [vmem:[%s0 + $0xd0] sm:$0xff]
        %v2984 = vld [vmem:[%s0 + $0xd8] sm:$0xff]
        %v2985 = vld [vmem:[%s0 + $0xe0] sm:$0xff]
        %v2986 = vld [vmem:[%s0 + $0xe8] sm:$0xff]
        %v2987 = vld [vmem:[%s0 + $0xf0] sm:$0xff]
        %v2988 = vld [vmem:[%s0 + $0xf8] sm:$0xff]
        %v2990 = vsel %vm2923, %v2941, 0
        %v2993 = vsel %vm2923, %v2942, 0
        %v2996 = vsel %vm2923, %v2943, 0
        %v2999 = vsel %vm2923, %v2944, 0
        %v3002 = vsel %vm2923, %v2945, 0
        %v3005 = vsel %vm2923, %v2946, 0
        %v3008 = vsel %vm2923, %v2947, 0
        %v3011 = vsel %vm2923, %v2948, 0
        %v3014 = vsel %vm2923, %v2949, 0
        %v3017 = vsel %vm2923, %v2950, 0
        %v3020 = vsel %vm2923, %v2951, 0
        %v3023 = vsel %vm2923, %v2952, 0
        %v3026 = vsel %vm2923, %v2953, 0
        %v3029 = vsel %vm2923, %v2954, 0
        %v3032 = vsel %vm2923, %v2955, 0
        %v3035 = vsel %vm2923, %v2956, 0
        %v3038 = vsel %vm2923, %v2957, 0
        %v3041 = vsel %vm2923, %v2958, 0
        %v3044 = vsel %vm2923, %v2959, 0
        %v3047 = vsel %vm2923, %v2960, 0
        %v3050 = vsel %vm2923, %v2961, 0
        %v3053 = vsel %vm2923, %v2962, 0
        %v3056 = vsel %vm2923, %v2963, 0
        %v3059 = vsel %vm2923, %v2964, 0
        %v3062 = vsel %vm2923, %v2965, 0
        %v3065 = vsel %vm2923, %v2966, 0
        %v3068 = vsel %vm2923, %v2967, 0
        %v3071 = vsel %vm2923, %v2968, 0
        %v3074 = vsel %vm2923, %v2969, 0
        %v3077 = vsel %vm2923, %v2970, 0
        %v3080 = vsel %vm2923, %v2971, 0
        %v3083 = vsel %vm2923, %v2972, 0
        %v3086 = vsel %vm2923, %v2973, 0
        %v3089 = vsel %vm2923, %v2974, 0
        %v3092 = vsel %vm2923, %v2975, 0
        %v3095 = vsel %vm2923, %v2976, 0
        %v3098 = vsel %vm2923, %v2977, 0
        %v3101 = vsel %vm2923, %v2978, 0
        %v3104 = vsel %vm2923, %v2979, 0
        %v3107 = vsel %vm2923, %v2980, 0
        %v3110 = vsel %vm2923, %v2981, 0
        %v3113 = vsel %vm2923, %v2982, 0
        %v3116 = vsel %vm2923, %v2983, 0
        %v3119 = vsel %vm2923, %v2984, 0
        %v3122 = vsel %vm2923, %v2985, 0
        %v3125 = vsel %vm2923, %v2986, 0
        %v3128 = vsel %vm2923, %v2987, 0
        %v3131 = vsel %vm2923, %v2988, 0
        %3133 = vmatprep.subr.mxu0 0.0
        %3134 = vmatpush1.xpose.msra.mxu0 %v3038
        %3135 = vmatprep.subr.mxu0 0.0
        %3136 = vmatpush1.xpose.msra.mxu0 %v3041
        %3137 = vmatprep.subr.mxu0 0.0
        %3138 = vmatpush1.xpose.msra.mxu0 %v3044
        %3139 = vmatprep.subr.mxu0 0.0
        %3140 = vmatpush1.xpose.msra.mxu0 %v3047
        %3141 = vmatprep.subr.mxu0 0.0
        %3142 = vmatpush1.xpose.msra.mxu0 %v3050
        %3143 = vmatprep.subr.mxu0 0.0
        %3144 = vmatpush1.xpose.msra.mxu0 %v3053
        %3145 = vmatprep.subr.mxu0 0.0
        %3146 = vmatpush1.xpose.msra.mxu0 %v3056
        %3147 = vmatprep.subr.mxu0 0.0
        %3148 = vmatpush1.xpose.msra.mxu0 %v3059
        %3149 = vmatprep.subr.mxu0 0.0
        %3150 = vmatpush1.xpose.msra.mxu0 %v3062
        %3151 = vmatprep.subr.mxu0 0.0
        %3152 = vmatpush1.xpose.msra.mxu0 %v3065
        %3153 = vmatprep.subr.mxu0 0.0
        %3154 = vmatpush1.xpose.msra.mxu0 %v3068
        %3155 = vmatprep.subr.mxu0 0.0
        %3156 = vmatpush1.xpose.msra.mxu0 %v3071
        %3157 = vmatprep.subr.mxu0 0.0
        %3158 = vmatpush1.xpose.msra.mxu0 %v3074
        %3159 = vmatprep.subr.mxu0 0.0
        %3160 = vmatpush1.xpose.msra.mxu0 %v3077
        %3161 = vmatprep.subr.mxu0 0.0
        %3162 = vmatpush1.xpose.msra.mxu0 %v3080
        %3163 = vmatprep.subr.mxu0 0.0
        %3164 = vmatpush1.xpose.msra.mxu0 %v3083
        %3165 = vmatprep.subr.mxu0 0.0
        %3166 = vmatpush1.xpose.msra.mxu0 %v3086
        %3167 = vmatprep.subr.mxu0 0.0
        %3168 = vmatpush1.xpose.msra.mxu0 %v3089
        %3169 = vmatprep.subr.mxu0 0.0
        %3170 = vmatpush1.xpose.msra.mxu0 %v3092
        %3171 = vmatprep.subr.mxu0 0.0
        %3172 = vmatpush1.xpose.msra.mxu0 %v3095
        %3173 = vmatprep.subr.mxu0 0.0
        %3174 = vmatpush1.xpose.msra.mxu0 %v3098
        %3175 = vmatprep.subr.mxu0 0.0
        %3176 = vmatpush1.xpose.msra.mxu0 %v3101
        %3177 = vmatprep.subr.mxu0 0.0
        %3178 = vmatpush1.xpose.msra.mxu0 %v3104
        %3179 = vmatprep.subr.mxu0 0.0
        %3180 = vmatpush1.xpose.msra.mxu0 %v3107
        %3181 = vmatprep.subr.mxu0 0.0
        %3182 = vmatpush1.xpose.msra.mxu0 %v3110
        %3183 = vmatprep.subr.mxu0 0.0
        %3184 = vmatpush1.xpose.msra.mxu0 %v3113
        %3185 = vmatprep.subr.mxu0 0.0
        %3186 = vmatpush1.xpose.msra.mxu0 %v3116
        %3187 = vmatprep.subr.mxu0 0.0
        %3188 = vmatpush1.xpose.msra.mxu0 %v3119
        %3189 = vmatprep.subr.mxu0 0.0
        %3190 = vmatpush1.xpose.msra.mxu0 %v3122
        %3191 = vmatprep.subr.mxu0 0.0
        %3192 = vmatpush1.xpose.msra.mxu0 %v3125
        %3193 = vmatprep.subr.mxu0 0.0
        %3194 = vmatpush1.xpose.msra.mxu0 %v3128
        %3195 = vmatprep.subr.mxu0 0.0
        %3196 = vmatpush1.xpose.msra.mxu0 %v3131
        %3197 = vmatprep.mubr.f32.mxu0 0.0
        %3198 = vmatmul.mubr.f32.gmra.mrb[0].mxu0 %v2990
        %v3199 = vpop.f32.mrb[0].mxu0
        %v3200 = vadd.f32 0.0, %v3199
        %v3201 = vpop.f32.mrb[0].mxu0
        %v3202 = vadd.f32 0.0, %v3201
        %3203 = vmatprep.mubr.f32.mxu0 0.0
        %3204 = vmatmul.mubr.f32.gmra.mrb[0].mxu0 %v2993
        %v3205 = vpop.f32.mrb[0].mxu0
        %v3206 = vadd.f32 0.0, %v3205
        %v3207 = vpop.f32.mrb[0].mxu0
        %v3208 = vadd.f32 0.0, %v3207
        %3209 = vmatprep.mubr.f32.mxu0 0.0
        %3210 = vmatmul.mubr.f32.gmra.mrb[0].mxu0 %v2996
        %v3211 = vpop.f32.mrb[0].mxu0
        %v3212 = vadd.f32 0.0, %v3211
        %v3213 = vpop.f32.mrb[0].mxu0
        %v3214 = vadd.f32 0.0, %v3213
        %3215 = vmatprep.mubr.f32.mxu0 0.0
        %3216 = vmatmul.mubr.f32.gmra.mrb[0].mxu0 %v2999
        %v3217 = vpop.f32.mrb[0].mxu0
        %v3218 = vadd.f32 0.0, %v3217
        %v3219 = vpop.f32.mrb[0].mxu0
        %v3220 = vadd.f32 0.0, %v3219
        %3221 = vmatprep.mubr.f32.mxu0 0.0
        %3222 = vmatmul.mubr.f32.gmra.mrb[0].mxu0 %v3002
        %v3223 = vpop.f32.mrb[0].mxu0
        %v3224 = vadd.f32 0.0, %v3223
        %v3225 = vpop.f32.mrb[0].mxu0
        %v3226 = vadd.f32 0.0, %v3225
        %3227 = vmatprep.mubr.f32.mxu0 0.0
        %3228 = vmatmul.mubr.f32.gmra.mrb[0].mxu0 %v3005
        %v3229 = vpop.f32.mrb[0].mxu0
        %v3230 = vadd.f32 0.0, %v3229
        %v3231 = vpop.f32.mrb[0].mxu0
        %v3232 = vadd.f32 0.0, %v3231
        %3233 = vmatprep.mubr.f32.mxu0 0.0
        %3234 = vmatmul.mubr.f32.gmra.mrb[0].mxu0 %v3008
        %v3235 = vpop.f32.mrb[0].mxu0
        %v3236 = vadd.f32 0.0, %v3235
        %v3237 = vpop.f32.mrb[0].mxu0
        %v3238 = vadd.f32 0.0, %v3237
        %3239 = vmatprep.mubr.f32.mxu0 0.0
        %3240 = vmatmul.mubr.f32.gmra.mrb[0].mxu0 %v3011
        %v3241 = vpop.f32.mrb[0].mxu0
        %v3242 = vadd.f32 0.0, %v3241
        %v3243 = vpop.f32.mrb[0].mxu0
        %v3244 = vadd.f32 0.0, %v3243
        %3245 = vmatprep.mubr.f32.mxu0 0.0
        %3246 = vmatmul.mubr.f32.gmra.mrb[0].mxu0 %v3014
        %v3247 = vpop.f32.mrb[0].mxu0
        %v3248 = vadd.f32 0.0, %v3247
        %v3249 = vpop.f32.mrb[0].mxu0
        %v3250 = vadd.f32 0.0, %v3249
        %3251 = vmatprep.mubr.f32.mxu0 0.0
        %3252 = vmatmul.mubr.f32.gmra.mrb[0].mxu0 %v3017
        %v3253 = vpop.f32.mrb[0].mxu0
        %v3254 = vadd.f32 0.0, %v3253
        %v3255 = vpop.f32.mrb[0].mxu0
        %v3256 = vadd.f32 0.0, %v3255
        %3257 = vmatprep.mubr.f32.mxu0 0.0
        %3258 = vmatmul.mubr.f32.gmra.mrb[0].mxu0 %v3020
        %v3259 = vpop.f32.mrb[0].mxu0
        %v3260 = vadd.f32 0.0, %v3259
        %v3261 = vpop.f32.mrb[0].mxu0
        %v3262 = vadd.f32 0.0, %v3261
        %3263 = vmatprep.mubr.f32.mxu0 0.0
        %3264 = vmatmul.mubr.f32.gmra.mrb[0].mxu0 %v3023
        %v3265 = vpop.f32.mrb[0].mxu0
        %v3266 = vadd.f32 0.0, %v3265
        %v3267 = vpop.f32.mrb[0].mxu0
        %v3268 = vadd.f32 0.0, %v3267
        %3269 = vmatprep.mubr.f32.mxu0 0.0
        %3270 = vmatmul.mubr.f32.gmra.mrb[0].mxu0 %v3026
        %v3271 = vpop.f32.mrb[0].mxu0
        %v3272 = vadd.f32 0.0, %v3271
        %v3273 = vpop.f32.mrb[0].mxu0
        %v3274 = vadd.f32 0.0, %v3273
        %3275 = vmatprep.mubr.f32.mxu0 0.0
        %3276 = vmatmul.mubr.f32.gmra.mrb[0].mxu0 %v3029
        %v3277 = vpop.f32.mrb[0].mxu0
        %v3278 = vadd.f32 0.0, %v3277
        %v3279 = vpop.f32.mrb[0].mxu0
        %v3280 = vadd.f32 0.0, %v3279
        %3281 = vmatprep.mubr.f32.mxu0 0.0
        %3282 = vmatmul.mubr.f32.gmra.mrb[0].mxu0 %v3032
        %v3283 = vpop.f32.mrb[0].mxu0
        %v3284 = vadd.f32 0.0, %v3283
        %v3285 = vpop.f32.mrb[0].mxu0
        %v3286 = vadd.f32 0.0, %v3285
        %3287 = vmatprep.mubr.f32.mxu0 0.0
        %3288 = vmatmul.mubr.f32.gmra.mrb[0].mxu0 %v3035
        %v3289 = vpop.f32.mrb[0].mxu0
        %v3290 = vadd.f32 0.0, %v3289
        %v3291 = vpop.f32.mrb[0].mxu0
        %v3292 = vadd.f32 0.0, %v3291
        %3293 = vdwg.mxu0
        %3294 = vst [vmem:[%s255] sm:$0xff] %v3200
        %3295 = vst [vmem:[%s255 + $0x8] sm:$0xff] %v3202
        %3296 = vst [vmem:[%s255 + $0x10] sm:$0xff] %v3206
        %3297 = vst [vmem:[%s255 + $0x18] sm:$0xff] %v3208
        %3298 = vst [vmem:[%s255 + $0x20] sm:$0xff] %v3212
        %3299 = vst [vmem:[%s255 + $0x28] sm:$0xff] %v3214
        %3300 = vst [vmem:[%s255 + $0x30] sm:$0xff] %v3218
        %3301 = vst [vmem:[%s255 + $0x38] sm:$0xff] %v3220
        %3302 = vst [vmem:[%s255 + $0x40] sm:$0xff] %v3224
        %3303 = vst [vmem:[%s255 + $0x48] sm:$0xff] %v3226
        %3304 = vst [vmem:[%s255 + $0x50] sm:$0xff] %v3230
        %3305 = vst [vmem:[%s255 + $0x58] sm:$0xff] %v3232
        %3306 = vst [vmem:[%s255 + $0x60] sm:$0xff] %v3236
        %3307 = vst [vmem:[%s255 + $0x68] sm:$0xff] %v3238
        %3308 = vst [vmem:[%s255 + $0x70] sm:$0xff] %v3242
        %3309 = vst [vmem:[%s255 + $0x78] sm:$0xff] %v3244
        %3310 = vst [vmem:[%s255 + $0x80] sm:$0xff] %v3248
        %3311 = vst [vmem:[%s255 + $0x88] sm:$0xff] %v3250
        %3312 = vst [vmem:[%s255 + $0x90] sm:$0xff] %v3254
        %3313 = vst [vmem:[%s255 + $0x98] sm:$0xff] %v3256
        %3314 = vst [vmem:[%s255 + $0xa0] sm:$0xff] %v3260
        %3315 = vst [vmem:[%s255 + $0xa8] sm:$0xff] %v3262
        %3316 = vst [vmem:[%s255 + $0xb0] sm:$0xff] %v3266
        %3317 = vst [vmem:[%s255 + $0xb8] sm:$0xff] %v3268
        %3318 = vst [vmem:[%s255 + $0xc0] sm:$0xff] %v3272
        %3319 = vst [vmem:[%s255 + $0xc8] sm:$0xff] %v3274
        %3320 = vst [vmem:[%s255 + $0xd0] sm:$0xff] %v3278
        %3321 = vst [vmem:[%s255 + $0xd8] sm:$0xff] %v3280
        %3322 = vst [vmem:[%s255 + $0xe0] sm:$0xff] %v3284
        %3323 = vst [vmem:[%s255 + $0xe8] sm:$0xff] %v3286
        %3324 = vst [vmem:[%s255 + $0xf0] sm:$0xff] %v3290
        %3325 = vst [vmem:[%s255 + $0xf8] sm:$0xff] %v3292
        %s3326 = smul.u32 16, %s21
        %p3327 = scmp.lt.s32.totalorder %s3326, 31
        %s3328 = scalar_select %p3327, %s3326, 31
        %s3329 = smul.addr %s3328, 8
        %s3330 = scalar_lea.vmem %s5, %s3329
        %s3331 = sand.u32 %s165, 1
        %s3332 = scalar_lea.sflag [#allocation6], %s3331
        %s3333 = sand.u32 %s165, 1
        %s3334 = smul.addr %s3333, 256
        %s3335 = scalar_lea.vmem [#allocation5], %s3334
        // Predicated region
        $region45: #{conad_forward.5} parent=39 // pred_check
          %p3336 = pneg %p149
        $region46: #{conad_forward.5} parent=39 // pred_check_branch
          %3338 = sbr.rel (%p3336) target = $region48
        $region47: #{conad_forward.5} parent=39 // pred_region
          %s3339 = smul.u32 16, %s21
        $region48: #{conad_forward.5} parent=39 // pred_fallthru
          _
        // Predicated region
        $region49: #{conad_forward.5} parent=39 // pred_check
          %p3340 = pneg %p175
        $region50: #{conad_forward.5} parent=39 // pred_check_branch
          %3342 = sbr.rel (%p3340) target = $region52
        $region51: #{conad_forward.5} parent=39 // pred_region
          %s3343 = smul.u32 16, %s21
          %s3345 = ssub.s32 4096, 4096
          %3346 = vsyncadd %s3332, %s3345
          %s3347 = smul.addr %s3343, 2
          %s3348 = smul.addr %s3347, 128
          %s3349 = scalar_lea.hbm %s6, %s3348
          %s3350 = sshll.u32 %s3335, 4
          %s3351 = int_to_ptr.vmem [resolvable:$true] %s3350
          %3356 = dma.vmem_to_hbm [thread:$0]  %s3351, 4096, %s3349, %s3332, 256, 256, 16
        $region52: #{conad_forward.5} parent=39 // pred_fallthru
          _
      $region40: #{conad_forward.5} parent=5 // pred_fallthru
        _
      %p3357 = scmp.le.s32.totalorder 2, %s16
      // Predicated region
      $region53: #{conad_forward.5} parent=5 // pred_check
        %p3358 = pneg %p3357
      $region54: #{conad_forward.5} parent=5 // pred_check_branch
        %3360 = sbr.rel (%p3358) target = $region56
      $region55: #{conad_forward.5} parent=5 // pred_region
        %s3361 = ssub.s32 %s16, 2
        // Predicated region
        $region57: #{conad_forward.5} parent=55 // pred_check
          %p3362 = pneg %p155
        $region58: #{conad_forward.5} parent=55 // pred_check_branch
          %3364 = sbr.rel (%p3362) target = $region60
        $region59: #{conad_forward.5} parent=55 // pred_region
          %s3365 = smul.u32 16, %s22
          %p3366 = scmp.lt.s32.totalorder %s3365, 31
          %s3367 = scalar_select %p3366, %s3365, 31
          %s3368 = smul.addr %s3367, 8
          %s3369 = scalar_lea.vmem %s5, %s3368
        $region60: #{conad_forward.5} parent=55 // pred_fallthru
          _
        // Predicated region
        $region61: #{conad_forward.5} parent=55 // pred_check
          %p3370 = pneg %p181
        $region62: #{conad_forward.5} parent=55 // pred_check_branch
          %3372 = sbr.rel (%p3370) target = $region64
        $region63: #{conad_forward.5} parent=55 // pred_region
          %s3373 = sand.u32 %s166, 1
          %s3374 = scalar_lea.sflag [#allocation6], %s3373
          %s3375 = sand.u32 %s166, 1
          %s3376 = smul.addr %s3375, 256
          %s3377 = scalar_lea.vmem [#allocation5], %s3376
          %3378 = dma.done %s3374, 4096
        $region64: #{conad_forward.5} parent=55 // pred_fallthru
          _
      $region56: #{conad_forward.5} parent=5 // pred_fallthru
        _
    $region6: #{conad_forward.5} parent=1 // loop_footer
      %s20 = sadd.s32 1, %s16
    $region7: #{conad_forward.5} parent=1 // loop_footer_branch
      %15 = sbr.rel target = $region3
    $region8: #{conad_forward.5} parent=1 // loop_exit
      _
    %3379 = vsyncpa [#allocation6], 1
    %s3380 = scalar_lea.sflag [#allocation6], 1
    %3381 = vsyncpa %s3380, 1

</llo_original>
